<compile_context>
chip_gen: v7x
topology: tpu7x:2x2x1
jax: 0.10.0
libtpu: 0.0.40
codegen_flags: <defaults>
</compile_context>

<pallas_src>
import functools

import jax
import jax.numpy as jnp
import numpy as np
from jax import lax
from jax.experimental import pallas as pl
from jax.experimental.pallas import tpu as pltpu


def _layer_norm(x, w, b, eps=1e-5):
    mu = jnp.mean(x, axis=-1, keepdims=True)
    var = jnp.mean((x - mu) ** 2, axis=-1, keepdims=True)
    return (x - mu) * lax.rsqrt(var + eps) * w + b


def _sigmoid(x):
    # exp on the EUP + approximate reciprocal (EUP) -> keeps the divide off the VALU.
    return pl.reciprocal(1.0 + jnp.exp(-x), approx=True)


# ----------------------------------------------------------------------------- kernel

def block_kernel(n,                       # static: N (bound via functools.partial)
                 x_ref, m_ref,
                 ni_w_ref, ni_b_ref, wpg_i_ref, bpg_i_ref,
                 no_w_ref, no_b_ref, wpg_o_ref, bpg_o_ref,
                 wn_ref, bn_ref, w1_ref, b1_ref, w2_ref, b2_ref,
                 o_ref,
                 pack_ref):
    r, d = x_ref.shape[1], x_ref.shape[2]   # r = N*N rows, d = channels
    d4, d2 = d // 4, d // 2

    x = x_ref[0]                                             # (R, D) f32

    # ---- TriangularUpdate: input LayerNorm + fused p/g gating projection --------------
    xn = _layer_norm(x, ni_w_ref[...], ni_b_ref[...])
    pg = jnp.dot(xn, wpg_i_ref[...], preferred_element_type=jnp.float32) + bpg_i_ref[...]
    gated = (pg[:, :d] * _sigmoid(pg[:, d:])) * m_ref[0]     # (R, D) * (R, 1)
    g3 = gated.reshape(n, n, d)                              # free view; chunks are
    #   a1 = g3[..., 0:d4], b1 = g3[..., d4:2d4], a2 = g3[..., 2d4:3d4], b2 = g3[..., 3d4:]

    # ---- pack phase (once): per k-pair (k0=2p, k1=2p+1) build one (N, 2D) row
    #   lanes   0:D   = a_pair[x] = [a1[x,k0] | a2[k0,x] | a1[x,k1] | a2[k1,x]]
    #   lanes   D:2D  = b_pair[x] = [b1[x,k0] | b2[k0,x] | b1[x,k1] | b2[k1,x]]
    # The swapped (i,k)->(k,i) view comes from the strided slices g3[:, k, :] (static k);
    # each full-width row is loaded once and lane sub-sliced in registers.
    for p in range(n // 2):
        k0, k1 = 2 * p, 2 * p + 1
        s0 = g3[:, k0, :]                                    # (N, D) swapped-view source
        s1 = g3[:, k1, :]
        c0 = g3[k0]                                          # (N, D) natural-view source
        c1 = g3[k1]
        pack_ref[p] = jnp.concatenate(
            [s0[:, 0:d4],      c0[:, 2 * d4:3 * d4],
             s1[:, 0:d4],      c1[:, 2 * d4:3 * d4],
             s0[:, d4:2 * d4], c0[:, 3 * d4:4 * d4],
             s1[:, d4:2 * d4], c1[:, 3 * d4:4 * d4]], axis=-1)   # (N, 2D)

    # ---- triangular einsums: one full 128-lane broadcast-FMA per k-pair ---------------
    #   x1[i,j,c] = sum_k a1[i,k,c]*b1[j,k,c];  x2[i,j,c] = sum_k a2[k,i,c]*b2[k,j,c]
    # acc lanes: [x1 even-k | x2 even-k | x1 odd-k | x2 odd-k] (32 lanes each).
    def body(p, acc):
        row = pack_ref[p]                                    # (N, 2D) contiguous, unmasked
        a = row[:, :d][:, None, :]                           # (N, 1, D)
        b = row[:, d:][None, :, :]                           # (1, N, D)
        return acc + a * b

    acc = lax.fori_loop(0, n // 2, body,
                        jnp.zeros((n, n, d), jnp.float32), unroll=True)
    z = (acc[:, :, :d2] + acc[:, :, d2:]).reshape(r, d2)     # [x1 | x2] -> (R, D/2)

    # ---- TriangularUpdate: output LayerNorm + fused p/g gating projection -------------
    zn = _layer_norm(z, no_w_ref[...], no_b_ref[...])
    pgo = jnp.dot(zn, wpg_o_ref[...], preferred_element_type=jnp.float32) + bpg_o_ref[...]
    y = x + pgo[:, :d] * _sigmoid(pgo[:, d:])                # first residual

    # ---- TransitionUpdate (LN -> linear -> relu -> linear) + second residual ----------
    yn = _layer_norm(y, wn_ref[...], bn_ref[...])
    h = jnp.maximum(
        jnp.dot(yn, w1_ref[...], preferred_element_type=jnp.float32) + b1_ref[...], 0.0)
    t = jnp.dot(h, w2_ref[...], preferred_element_type=jnp.float32) + b2_ref[...]

    o_ref[0] = (y + t).astype(o_ref.dtype)


# ----------------------------------------------------------------------------- wrapper

def prepare_params(p):
    """Fuse the p/g projections and reshape biases ONCE, outside the jitted forward."""
    return dict(
        ni_w=p["ni_w"][None, :], ni_b=p["ni_b"][None, :],
        wpg_i=jnp.concatenate([p["pi_wt"], p["gi_wt"]], axis=1),      # (D, 2D)
        bpg_i=jnp.concatenate([p["pi_b"], p["gi_b"]])[None, :],       # (1, 2D)
        no_w=p["no_w"][None, :], no_b=p["no_b"][None, :],
        wpg_o=jnp.concatenate([p["po_wt"], p["go_wt"]], axis=1),      # (D/2, 2D)
        bpg_o=jnp.concatenate([p["po_b"], p["go_b"]])[None, :],       # (1, 2D)
        wn=p["wn"][None, :], bn=p["bn"][None, :],
        w1t=p["w1t"], b1=p["b1"][None, :],
        w2t=p["w2t"], b2=p["b2"][None, :],
    )


@jax.jit
def block_forward(x, mask, fp):
    B, N, _, D = x.shape
    assert N % 2 == 0 and D % 4 == 0
    R, D2 = N * N, D // 2
    H = fp["w1t"].shape[1]

    x2 = x.reshape(B, R, D)                                  # contiguous -> free reshape
    mask2 = mask.reshape(B, R, 1).astype(x.dtype)

    rep = lambda shape: pl.BlockSpec(shape, lambda b: (0,) * len(shape))

    out = pl.pallas_call(
        functools.partial(block_kernel, N),
        out_shape=jax.ShapeDtypeStruct((B, R, D), x.dtype),
        grid=(B,),
        in_specs=[
            pl.BlockSpec((1, R, D), lambda b: (b, 0, 0)),
            pl.BlockSpec((1, R, 1), lambda b: (b, 0, 0)),
            rep((1, D)), rep((1, D)), rep((D, 2 * D)), rep((1, 2 * D)),
            rep((1, D2)), rep((1, D2)), rep((D2, 2 * D)), rep((1, 2 * D)),
            rep((1, D)), rep((1, D)), rep((D, H)), rep((1, H)),
            rep((H, D)), rep((1, D)),
        ],
        out_specs=pl.BlockSpec((1, R, D), lambda b: (b, 0, 0)),
        scratch_shapes=[pltpu.VMEM((N // 2, N, 2 * D), jnp.float32)],   # packed operands
        compiler_params=pltpu.CompilerParams(
            dimension_semantics=("parallel",),
            vmem_limit_bytes=32 * 1024 * 1024,
        ),
    )(x2, mask2,
      fp["ni_w"], fp["ni_b"], fp["wpg_i"], fp["bpg_i"],
      fp["no_w"], fp["no_b"], fp["wpg_o"], fp["bpg_o"],
      fp["wn"], fp["bn"], fp["w1t"], fp["b1"], fp["w2t"], fp["b2"])
    return out.reshape(B, N, N, D)


# ----------------------------------------------------------------------------- reference

def block_reference(x, mask, p):
    hp = jax.lax.Precision.HIGHEST   # faithful f32 reference
    xn = _layer_norm(x, p["ni_w"], p["ni_b"])
    h = (jnp.dot(xn, p["pi_wt"], precision=hp) + p["pi_b"]) * \
        jax.nn.sigmoid(jnp.dot(xn, p["gi_wt"], precision=hp) + p["gi_b"])
    h = h * mask[..., None]
    a1, b1, a2, b2 = jnp.split(h, 4, axis=-1)
    x1 = jnp.einsum("bikd,bjkd->bijd", a1, b1, precision=hp)
    x2 = jnp.einsum("bkid,bkjd->bijd", a2, b2, precision=hp)
    z = jnp.concatenate([x1, x2], axis=-1)
    zn = _layer_norm(z, p["no_w"], p["no_b"])
    tri = (jnp.dot(zn, p["po_wt"], precision=hp) + p["po_b"]) * \
          jax.nn.sigmoid(jnp.dot(zn, p["go_wt"], precision=hp) + p["go_b"])
    x = x + tri
    xn2 = _layer_norm(x, p["wn"], p["bn"])
    t = jnp.dot(jnp.maximum(jnp.dot(xn2, p["w1t"], precision=hp) + p["b1"], 0.0),
                p["w2t"], precision=hp) + p["b2"]
    return x + t


# ----------------------------------------------------------------------------- main

if __name__ == "__main__":
    B, N, D = 2, 16, 128                  # B even -> both v7x TensorCores busy
    H, D2 = 4 * D, D // 2

    key = jax.random.PRNGKey(0)
    ks = jax.random.split(key, 8)

    # NOTE: torch's gating_init_/final_init_ would zero gi_w / go_w / po_w / w2; scaled
    # random normals are used so the synthetic run exercises every compute path.
    params = dict(
        ni_w=jnp.ones((D,), jnp.float32), ni_b=jnp.zeros((D,), jnp.float32),
        pi_wt=jax.random.normal(ks[0], (D, D), jnp.float32) / np.sqrt(D),
        gi_wt=jax.random.normal(ks[1], (D, D), jnp.float32) / np.sqrt(D),
        pi_b=jnp.zeros((D,), jnp.float32), gi_b=jnp.ones((D,), jnp.float32),
        no_w=jnp.ones((D2,), jnp.float32), no_b=jnp.zeros((D2,), jnp.float32),
        po_wt=jax.random.normal(ks[2], (D2, D), jnp.float32) / np.sqrt(D2),
        go_wt=jax.random.normal(ks[3], (D2, D), jnp.float32) / np.sqrt(D2),
        po_b=jnp.zeros((D,), jnp.float32), go_b=jnp.ones((D,), jnp.float32),
        wn=jnp.ones((D,), jnp.float32), bn=jnp.zeros((D,), jnp.float32),
        w1t=jax.random.normal(ks[4], (D, H), jnp.float32) * np.sqrt(2.0 / D),
        b1=jnp.zeros((H,), jnp.float32),
        w2t=jax.random.normal(ks[5], (H, D), jnp.float32) * 0.02,
        b2=jnp.zeros((D,), jnp.float32),
    )

    x = jax.random.normal(ks[6], (B, N, N, D), jnp.float32)
    mask = (jax.random.uniform(ks[7], (B, N, N)) > 0.2).astype(jnp.float32)

    fused = prepare_params(params)        # weight fusion done once, outside jit

    out = jax.block_until_ready(block_forward(x, mask, fused))
    ref = jax.block_until_ready(block_reference(x, mask, params))

    assert out.shape == (B, N, N, D)
    # f32 accumulation in-kernel; tolerance leaves room for default-precision MXU passes
    # (and the approx-reciprocal sigmoids) vs the fp32-"highest" reference.
    err = float(np.max(np.abs(np.asarray(out) - np.asarray(ref))))
    assert np.allclose(np.asarray(out), np.asarray(ref), rtol=2e-2, atol=2e-2), err

    print("KERNEL_OK")
</pallas_src>

<mosaic_0001>
module attributes {stable_mosaic.version = 11 : i64} {
  func.func @block_kernel(%arg0: i32, %arg1: memref<1x256x128xf32, #tpu.memory_space<vmem>>, %arg2: memref<1x256x1xf32, #tpu.memory_space<vmem>>, %arg3: memref<1x128xf32, #tpu.memory_space<vmem>>, %arg4: memref<1x128xf32, #tpu.memory_space<vmem>>, %arg5: memref<128x256xf32, #tpu.memory_space<vmem>>, %arg6: memref<1x256xf32, #tpu.memory_space<vmem>>, %arg7: memref<1x64xf32, #tpu.memory_space<vmem>>, %arg8: memref<1x64xf32, #tpu.memory_space<vmem>>, %arg9: memref<64x256xf32, #tpu.memory_space<vmem>>, %arg10: memref<1x256xf32, #tpu.memory_space<vmem>>, %arg11: memref<1x128xf32, #tpu.memory_space<vmem>>, %arg12: memref<1x128xf32, #tpu.memory_space<vmem>>, %arg13: memref<128x512xf32, #tpu.memory_space<vmem>>, %arg14: memref<1x512xf32, #tpu.memory_space<vmem>>, %arg15: memref<512x128xf32, #tpu.memory_space<vmem>>, %arg16: memref<1x128xf32, #tpu.memory_space<vmem>>, %arg17: memref<1x256x128xf32, #tpu.memory_space<vmem>>, %arg18: memref<8x16x256xf32, #tpu.memory_space<vmem>>) attributes {dimension_semantics = [#tpu.dimension_semantics<parallel>], iteration_bounds = array<i64: 2>, scalar_prefetch = 0 : i64, scratch_operands = 1 : i64, tpu.core_type = #tpu.core_type<tc>, window_params = [{transform_indices = @transform_0, window_bounds = array<i64: 1, 256, 128>}, {transform_indices = @transform_1, window_bounds = array<i64: 1, 256, 1>}, {pipeline_mode = #tpu.pipeline_mode<synchronous>, transform_indices = @transform_2, window_bounds = array<i64: 1, 128>}, {pipeline_mode = #tpu.pipeline_mode<synchronous>, transform_indices = @transform_3, window_bounds = array<i64: 1, 128>}, {pipeline_mode = #tpu.pipeline_mode<synchronous>, transform_indices = @transform_4, window_bounds = array<i64: 128, 256>}, {pipeline_mode = #tpu.pipeline_mode<synchronous>, transform_indices = @transform_5, window_bounds = array<i64: 1, 256>}, {pipeline_mode = #tpu.pipeline_mode<synchronous>, transform_indices = @transform_6, window_bounds = array<i64: 1, 64>}, {pipeline_mode = #tpu.pipeline_mode<synchronous>, transform_indices = @transform_7, window_bounds = array<i64: 1, 64>}, {pipeline_mode = #tpu.pipeline_mode<synchronous>, transform_indices = @transform_8, window_bounds = array<i64: 64, 256>}, {pipeline_mode = #tpu.pipeline_mode<synchronous>, transform_indices = @transform_9, window_bounds = array<i64: 1, 256>}, {pipeline_mode = #tpu.pipeline_mode<synchronous>, transform_indices = @transform_10, window_bounds = array<i64: 1, 128>}, {pipeline_mode = #tpu.pipeline_mode<synchronous>, transform_indices = @transform_11, window_bounds = array<i64: 1, 128>}, {pipeline_mode = #tpu.pipeline_mode<synchronous>, transform_indices = @transform_12, window_bounds = array<i64: 128, 512>}, {pipeline_mode = #tpu.pipeline_mode<synchronous>, transform_indices = @transform_13, window_bounds = array<i64: 1, 512>}, {pipeline_mode = #tpu.pipeline_mode<synchronous>, transform_indices = @transform_14, window_bounds = array<i64: 512, 128>}, {pipeline_mode = #tpu.pipeline_mode<synchronous>, transform_indices = @transform_15, window_bounds = array<i64: 1, 128>}, {transform_indices = @transform_16, window_bounds = array<i64: 1, 256, 128>}]} {
    %c0 = arith.constant 0 : index
    %c0_0 = arith.constant 0 : index
    %c0_1 = arith.constant 0 : index
    %0 = vector.load %arg1[%c0, %c0_0, %c0_1] : memref<1x256x128xf32, #tpu.memory_space<vmem>>, vector<1x256x128xf32>
    %1 = vector.shape_cast %0 : vector<1x256x128xf32> to vector<256x128xf32>
    %c0_2 = arith.constant 0 : index
    %c0_3 = arith.constant 0 : index
    %2 = vector.load %arg3[%c0_2, %c0_3] : memref<1x128xf32, #tpu.memory_space<vmem>>, vector<1x128xf32>
    %c0_4 = arith.constant 0 : index
    %c0_5 = arith.constant 0 : index
    %3 = vector.load %arg4[%c0_4, %c0_5] : memref<1x128xf32, #tpu.memory_space<vmem>>, vector<1x128xf32>
    %cst = arith.constant dense<0.000000e+00> : vector<256xf32>
    %4 = vector.multi_reduction <add>, %1, %cst [1] : vector<256x128xf32> to vector<256xf32>
    %5 = vector.shape_cast %4 : vector<256xf32> to vector<256x1xf32>
    %cst_6 = arith.constant 1.280000e+02 : f32
    %6 = vector.broadcast %cst_6 : f32 to vector<256x1xf32>
    %7 = arith.divf %5, %6 : vector<256x1xf32>
    %8 = vector.broadcast %7 : vector<256x1xf32> to vector<256x128xf32>
    %9 = arith.subf %1, %8 : vector<256x128xf32>
    %10 = arith.mulf %9, %9 : vector<256x128xf32>
    %cst_7 = arith.constant dense<0.000000e+00> : vector<256xf32>
    %11 = vector.multi_reduction <add>, %10, %cst_7 [1] : vector<256x128xf32> to vector<256xf32>
    %12 = vector.shape_cast %11 : vector<256xf32> to vector<256x1xf32>
    %cst_8 = arith.constant 1.280000e+02 : f32
    %13 = vector.broadcast %cst_8 : f32 to vector<256x1xf32>
    %14 = arith.divf %12, %13 : vector<256x1xf32>
    %15 = vector.broadcast %7 : vector<256x1xf32> to vector<256x128xf32>
    %16 = arith.subf %1, %15 : vector<256x128xf32>
    %cst_9 = arith.constant 9.99999974E-6 : f32
    %17 = vector.broadcast %cst_9 : f32 to vector<256x1xf32>
    %18 = arith.addf %14, %17 : vector<256x1xf32>
    %19 = math.rsqrt %18 : vector<256x1xf32>
    %20 = vector.broadcast %19 : vector<256x1xf32> to vector<256x128xf32>
    %21 = arith.mulf %16, %20 : vector<256x128xf32>
    %22 = vector.broadcast %2 : vector<1x128xf32> to vector<256x128xf32>
    %23 = arith.mulf %21, %22 : vector<256x128xf32>
    %24 = vector.broadcast %3 : vector<1x128xf32> to vector<256x128xf32>
    %25 = arith.addf %23, %24 : vector<256x128xf32>
    %c0_10 = arith.constant 0 : index
    %c0_11 = arith.constant 0 : index
    %26 = vector.load %arg5[%c0_10, %c0_11] : memref<128x256xf32, #tpu.memory_space<vmem>>, vector<128x256xf32>
    %cst_12 = arith.constant dense<0.000000e+00> : vector<256x256xf32>
    %27 = tpu.matmul %25, %26, %cst_12 {dimension_numbers = #tpu.dot_dimension_numbers<[1], [0], [0], [1], [0, 0, 1, 1], [], []>} : vector<256x128xf32>, vector<128x256xf32>, vector<256x256xf32> -> vector<256x256xf32>
    %c0_13 = arith.constant 0 : index
    %c0_14 = arith.constant 0 : index
    %28 = vector.load %arg6[%c0_13, %c0_14] : memref<1x256xf32, #tpu.memory_space<vmem>>, vector<1x256xf32>
    %29 = vector.broadcast %28 : vector<1x256xf32> to vector<256x256xf32>
    %30 = arith.addf %27, %29 : vector<256x256xf32>
    %31 = vector.extract_strided_slice %30 {offsets = [0, 0], sizes = [256, 128], strides = [1, 1]} : vector<256x256xf32> to vector<256x128xf32>
    %32 = vector.extract_strided_slice %30 {offsets = [0, 128], sizes = [256, 128], strides = [1, 1]} : vector<256x256xf32> to vector<256x128xf32>
    %cst_15 = arith.constant 0.000000e+00 : f32
    %33 = vector.broadcast %cst_15 : f32 to vector<256x128xf32>
    %34 = arith.subf %33, %32 : vector<256x128xf32>
    %35 = math.exp %34 : vector<256x128xf32>
    %cst_16 = arith.constant 1.000000e+00 : f32
    %36 = vector.broadcast %cst_16 : f32 to vector<256x128xf32>
    %37 = arith.addf %36, %35 : vector<256x128xf32>
    %38 = tpu.reciprocal %37 {approx = true} : vector<256x128xf32> -> vector<256x128xf32>
    %39 = arith.mulf %31, %38 : vector<256x128xf32>
    %c0_17 = arith.constant 0 : index
    %c0_18 = arith.constant 0 : index
    %c0_19 = arith.constant 0 : index
    %40 = vector.load %arg2[%c0_17, %c0_18, %c0_19] : memref<1x256x1xf32, #tpu.memory_space<vmem>>, vector<1x256x1xf32>
    %41 = vector.shape_cast %40 : vector<1x256x1xf32> to vector<256x1xf32>
    %42 = vector.broadcast %41 : vector<256x1xf32> to vector<256x128xf32>
    %43 = arith.mulf %39, %42 : vector<256x128xf32>
    %44 = vector.shape_cast %43 : vector<256x128xf32> to vector<16x16x128xf32>
    %45 = vector.extract_strided_slice %44 {offsets = [0, 0, 0], sizes = [16, 1, 128], strides = [1, 1, 1]} : vector<16x16x128xf32> to vector<16x1x128xf32>
    %46 = vector.shape_cast %45 : vector<16x1x128xf32> to vector<16x128xf32>
    %47 = vector.extract_strided_slice %44 {offsets = [0, 1, 0], sizes = [16, 1, 128], strides = [1, 1, 1]} : vector<16x16x128xf32> to vector<16x1x128xf32>
    %48 = vector.shape_cast %47 : vector<16x1x128xf32> to vector<16x128xf32>
    %49 = vector.extract_strided_slice %44 {offsets = [0, 0, 0], sizes = [1, 16, 128], strides = [1, 1, 1]} : vector<16x16x128xf32> to vector<1x16x128xf32>
    %50 = vector.shape_cast %49 : vector<1x16x128xf32> to vector<16x128xf32>
    %51 = vector.extract_strided_slice %44 {offsets = [1, 0, 0], sizes = [1, 16, 128], strides = [1, 1, 1]} : vector<16x16x128xf32> to vector<1x16x128xf32>
    %52 = vector.shape_cast %51 : vector<1x16x128xf32> to vector<16x128xf32>
    %53 = vector.extract_strided_slice %46 {offsets = [0, 0], sizes = [16, 32], strides = [1, 1]} : vector<16x128xf32> to vector<16x32xf32>
    %54 = vector.extract_strided_slice %50 {offsets = [0, 64], sizes = [16, 32], strides = [1, 1]} : vector<16x128xf32> to vector<16x32xf32>
    %55 = vector.extract_strided_slice %48 {offsets = [0, 0], sizes = [16, 32], strides = [1, 1]} : vector<16x128xf32> to vector<16x32xf32>
    %56 = vector.extract_strided_slice %52 {offsets = [0, 64], sizes = [16, 32], strides = [1, 1]} : vector<16x128xf32> to vector<16x32xf32>
    %57 = vector.extract_strided_slice %46 {offsets = [0, 32], sizes = [16, 32], strides = [1, 1]} : vector<16x128xf32> to vector<16x32xf32>
    %58 = vector.extract_strided_slice %50 {offsets = [0, 96], sizes = [16, 32], strides = [1, 1]} : vector<16x128xf32> to vector<16x32xf32>
    %59 = vector.extract_strided_slice %48 {offsets = [0, 32], sizes = [16, 32], strides = [1, 1]} : vector<16x128xf32> to vector<16x32xf32>
    %60 = vector.extract_strided_slice %52 {offsets = [0, 96], sizes = [16, 32], strides = [1, 1]} : vector<16x128xf32> to vector<16x32xf32>
    %61 = tpu.concatenate %53, %54, %55, %56, %57, %58, %59, %60 in 1 : vector<16x32xf32>, vector<16x32xf32>, vector<16x32xf32>, vector<16x32xf32>, vector<16x32xf32>, vector<16x32xf32>, vector<16x32xf32>, vector<16x32xf32> -> vector<16x256xf32>
    %c0_20 = arith.constant 0 : index
    %c0_21 = arith.constant 0 : index
    %c0_22 = arith.constant 0 : index
    %62 = vector.load %arg18[%c0_20, %c0_21, %c0_22] : memref<8x16x256xf32, #tpu.memory_space<vmem>>, vector<1x16x256xf32>
    %63 = vector.shape_cast %62 : vector<1x16x256xf32> to vector<16x256xf32>
    %64 = vector.shape_cast %61 : vector<16x256xf32> to vector<1x16x256xf32>
    tpu.vector_store %arg18[%c0_20, %c0_21, %c0_22], %64 {strides = array<i32>} : memref<8x16x256xf32, #tpu.memory_space<vmem>>, vector<1x16x256xf32>,
    %65 = vector.extract_strided_slice %44 {offsets = [0, 2, 0], sizes = [16, 1, 128], strides = [1, 1, 1]} : vector<16x16x128xf32> to vector<16x1x128xf32>
    %66 = vector.shape_cast %65 : vector<16x1x128xf32> to vector<16x128xf32>
    %67 = vector.extract_strided_slice %44 {offsets = [0, 3, 0], sizes = [16, 1, 128], strides = [1, 1, 1]} : vector<16x16x128xf32> to vector<16x1x128xf32>
    %68 = vector.shape_cast %67 : vector<16x1x128xf32> to vector<16x128xf32>
    %69 = vector.extract_strided_slice %44 {offsets = [2, 0, 0], sizes = [1, 16, 128], strides = [1, 1, 1]} : vector<16x16x128xf32> to vector<1x16x128xf32>
    %70 = vector.shape_cast %69 : vector<1x16x128xf32> to vector<16x128xf32>
    %71 = vector.extract_strided_slice %44 {offsets = [3, 0, 0], sizes = [1, 16, 128], strides = [1, 1, 1]} : vector<16x16x128xf32> to vector<1x16x128xf32>
    %72 = vector.shape_cast %71 : vector<1x16x128xf32> to vector<16x128xf32>
    %73 = vector.extract_strided_slice %66 {offsets = [0, 0], sizes = [16, 32], strides = [1, 1]} : vector<16x128xf32> to vector<16x32xf32>
    %74 = vector.extract_strided_slice %70 {offsets = [0, 64], sizes = [16, 32], strides = [1, 1]} : vector<16x128xf32> to vector<16x32xf32>
    %75 = vector.extract_strided_slice %68 {offsets = [0, 0], sizes = [16, 32], strides = [1, 1]} : vector<16x128xf32> to vector<16x32xf32>
    %76 = vector.extract_strided_slice %72 {offsets = [0, 64], sizes = [16, 32], strides = [1, 1]} : vector<16x128xf32> to vector<16x32xf32>
    %77 = vector.extract_strided_slice %66 {offsets = [0, 32], sizes = [16, 32], strides = [1, 1]} : vector<16x128xf32> to vector<16x32xf32>
    %78 = vector.extract_strided_slice %70 {offsets = [0, 96], sizes = [16, 32], strides = [1, 1]} : vector<16x128xf32> to vector<16x32xf32>
    %79 = vector.extract_strided_slice %68 {offsets = [0, 32], sizes = [16, 32], strides = [1, 1]} : vector<16x128xf32> to vector<16x32xf32>
    %80 = vector.extract_strided_slice %72 {offsets = [0, 96], sizes = [16, 32], strides = [1, 1]} : vector<16x128xf32> to vector<16x32xf32>
    %81 = tpu.concatenate %73, %74, %75, %76, %77, %78, %79, %80 in 1 : vector<16x32xf32>, vector<16x32xf32>, vector<16x32xf32>, vector<16x32xf32>, vector<16x32xf32>, vector<16x32xf32>, vector<16x32xf32>, vector<16x32xf32> -> vector<16x256xf32>
    %c1 = arith.constant 1 : index
    %c0_23 = arith.constant 0 : index
    %c0_24 = arith.constant 0 : index
    %82 = vector.load %arg18[%c1, %c0_23, %c0_24] : memref<8x16x256xf32, #tpu.memory_space<vmem>>, vector<1x16x256xf32>
    %83 = vector.shape_cast %82 : vector<1x16x256xf32> to vector<16x256xf32>
    %84 = vector.shape_cast %81 : vector<16x256xf32> to vector<1x16x256xf32>
    tpu.vector_store %arg18[%c1, %c0_23, %c0_24], %84 {strides = array<i32>} : memref<8x16x256xf32, #tpu.memory_space<vmem>>, vector<1x16x256xf32>,
    %85 = vector.extract_strided_slice %44 {offsets = [0, 4, 0], sizes = [16, 1, 128], strides = [1, 1, 1]} : vector<16x16x128xf32> to vector<16x1x128xf32>
    %86 = vector.shape_cast %85 : vector<16x1x128xf32> to vector<16x128xf32>
    %87 = vector.extract_strided_slice %44 {offsets = [0, 5, 0], sizes = [16, 1, 128], strides = [1, 1, 1]} : vector<16x16x128xf32> to vector<16x1x128xf32>
    %88 = vector.shape_cast %87 : vector<16x1x128xf32> to vector<16x128xf32>
    %89 = vector.extract_strided_slice %44 {offsets = [4, 0, 0], sizes = [1, 16, 128], strides = [1, 1, 1]} : vector<16x16x128xf32> to vector<1x16x128xf32>
    %90 = vector.shape_cast %89 : vector<1x16x128xf32> to vector<16x128xf32>
    %91 = vector.extract_strided_slice %44 {offsets = [5, 0, 0], sizes = [1, 16, 128], strides = [1, 1, 1]} : vector<16x16x128xf32> to vector<1x16x128xf32>
    %92 = vector.shape_cast %91 : vector<1x16x128xf32> to vector<16x128xf32>
    %93 = vector.extract_strided_slice %86 {offsets = [0, 0], sizes = [16, 32], strides = [1, 1]} : vector<16x128xf32> to vector<16x32xf32>
    %94 = vector.extract_strided_slice %90 {offsets = [0, 64], sizes = [16, 32], strides = [1, 1]} : vector<16x128xf32> to vector<16x32xf32>
    %95 = vector.extract_strided_slice %88 {offsets = [0, 0], sizes = [16, 32], strides = [1, 1]} : vector<16x128xf32> to vector<16x32xf32>
    %96 = vector.extract_strided_slice %92 {offsets = [0, 64], sizes = [16, 32], strides = [1, 1]} : vector<16x128xf32> to vector<16x32xf32>
    %97 = vector.extract_strided_slice %86 {offsets = [0, 32], sizes = [16, 32], strides = [1, 1]} : vector<16x128xf32> to vector<16x32xf32>
    %98 = vector.extract_strided_slice %90 {offsets = [0, 96], sizes = [16, 32], strides = [1, 1]} : vector<16x128xf32> to vector<16x32xf32>
    %99 = vector.extract_strided_slice %88 {offsets = [0, 32], sizes = [16, 32], strides = [1, 1]} : vector<16x128xf32> to vector<16x32xf32>
    %100 = vector.extract_strided_slice %92 {offsets = [0, 96], sizes = [16, 32], strides = [1, 1]} : vector<16x128xf32> to vector<16x32xf32>
    %101 = tpu.concatenate %93, %94, %95, %96, %97, %98, %99, %100 in 1 : vector<16x32xf32>, vector<16x32xf32>, vector<16x32xf32>, vector<16x32xf32>, vector<16x32xf32>, vector<16x32xf32>, vector<16x32xf32>, vector<16x32xf32> -> vector<16x256xf32>
    %c2 = arith.constant 2 : index
    %c0_25 = arith.constant 0 : index
    %c0_26 = arith.constant 0 : index
    %102 = vector.load %arg18[%c2, %c0_25, %c0_26] : memref<8x16x256xf32, #tpu.memory_space<vmem>>, vector<1x16x256xf32>
    %103 = vector.shape_cast %102 : vector<1x16x256xf32> to vector<16x256xf32>
    %104 = vector.shape_cast %101 : vector<16x256xf32> to vector<1x16x256xf32>
    tpu.vector_store %arg18[%c2, %c0_25, %c0_26], %104 {strides = array<i32>} : memref<8x16x256xf32, #tpu.memory_space<vmem>>, vector<1x16x256xf32>,
    %105 = vector.extract_strided_slice %44 {offsets = [0, 6, 0], sizes = [16, 1, 128], strides = [1, 1, 1]} : vector<16x16x128xf32> to vector<16x1x128xf32>
    %106 = vector.shape_cast %105 : vector<16x1x128xf32> to vector<16x128xf32>
    %107 = vector.extract_strided_slice %44 {offsets = [0, 7, 0], sizes = [16, 1, 128], strides = [1, 1, 1]} : vector<16x16x128xf32> to vector<16x1x128xf32>
    %108 = vector.shape_cast %107 : vector<16x1x128xf32> to vector<16x128xf32>
    %109 = vector.extract_strided_slice %44 {offsets = [6, 0, 0], sizes = [1, 16, 128], strides = [1, 1, 1]} : vector<16x16x128xf32> to vector<1x16x128xf32>
    %110 = vector.shape_cast %109 : vector<1x16x128xf32> to vector<16x128xf32>
    %111 = vector.extract_strided_slice %44 {offsets = [7, 0, 0], sizes = [1, 16, 128], strides = [1, 1, 1]} : vector<16x16x128xf32> to vector<1x16x128xf32>
    %112 = vector.shape_cast %111 : vector<1x16x128xf32> to vector<16x128xf32>
    %113 = vector.extract_strided_slice %106 {offsets = [0, 0], sizes = [16, 32], strides = [1, 1]} : vector<16x128xf32> to vector<16x32xf32>
    %114 = vector.extract_strided_slice %110 {offsets = [0, 64], sizes = [16, 32], strides = [1, 1]} : vector<16x128xf32> to vector<16x32xf32>
    %115 = vector.extract_strided_slice %108 {offsets = [0, 0], sizes = [16, 32], strides = [1, 1]} : vector<16x128xf32> to vector<16x32xf32>
    %116 = vector.extract_strided_slice %112 {offsets = [0, 64], sizes = [16, 32], strides = [1, 1]} : vector<16x128xf32> to vector<16x32xf32>
    %117 = vector.extract_strided_slice %106 {offsets = [0, 32], sizes = [16, 32], strides = [1, 1]} : vector<16x128xf32> to vector<16x32xf32>
    %118 = vector.extract_strided_slice %110 {offsets = [0, 96], sizes = [16, 32], strides = [1, 1]} : vector<16x128xf32> to vector<16x32xf32>
    %119 = vector.extract_strided_slice %108 {offsets = [0, 32], sizes = [16, 32], strides = [1, 1]} : vector<16x128xf32> to vector<16x32xf32>
    %120 = vector.extract_strided_slice %112 {offsets = [0, 96], sizes = [16, 32], strides = [1, 1]} : vector<16x128xf32> to vector<16x32xf32>
    %121 = tpu.concatenate %113, %114, %115, %116, %117, %118, %119, %120 in 1 : vector<16x32xf32>, vector<16x32xf32>, vector<16x32xf32>, vector<16x32xf32>, vector<16x32xf32>, vector<16x32xf32>, vector<16x32xf32>, vector<16x32xf32> -> vector<16x256xf32>
    %c3 = arith.constant 3 : index
    %c0_27 = arith.constant 0 : index
    %c0_28 = arith.constant 0 : index
    %122 = vector.load %arg18[%c3, %c0_27, %c0_28] : memref<8x16x256xf32, #tpu.memory_space<vmem>>, vector<1x16x256xf32>
    %123 = vector.shape_cast %122 : vector<1x16x256xf32> to vector<16x256xf32>
    %124 = vector.shape_cast %121 : vector<16x256xf32> to vector<1x16x256xf32>
    tpu.vector_store %arg18[%c3, %c0_27, %c0_28], %124 {strides = array<i32>} : memref<8x16x256xf32, #tpu.memory_space<vmem>>, vector<1x16x256xf32>,
    %125 = vector.extract_strided_slice %44 {offsets = [0, 8, 0], sizes = [16, 1, 128], strides = [1, 1, 1]} : vector<16x16x128xf32> to vector<16x1x128xf32>
    %126 = vector.shape_cast %125 : vector<16x1x128xf32> to vector<16x128xf32>
    %127 = vector.extract_strided_slice %44 {offsets = [0, 9, 0], sizes = [16, 1, 128], strides = [1, 1, 1]} : vector<16x16x128xf32> to vector<16x1x128xf32>
    %128 = vector.shape_cast %127 : vector<16x1x128xf32> to vector<16x128xf32>
    %129 = vector.extract_strided_slice %44 {offsets = [8, 0, 0], sizes = [1, 16, 128], strides = [1, 1, 1]} : vector<16x16x128xf32> to vector<1x16x128xf32>
    %130 = vector.shape_cast %129 : vector<1x16x128xf32> to vector<16x128xf32>
    %131 = vector.extract_strided_slice %44 {offsets = [9, 0, 0], sizes = [1, 16, 128], strides = [1, 1, 1]} : vector<16x16x128xf32> to vector<1x16x128xf32>
    %132 = vector.shape_cast %131 : vector<1x16x128xf32> to vector<16x128xf32>
    %133 = vector.extract_strided_slice %126 {offsets = [0, 0], sizes = [16, 32], strides = [1, 1]} : vector<16x128xf32> to vector<16x32xf32>
    %134 = vector.extract_strided_slice %130 {offsets = [0, 64], sizes = [16, 32], strides = [1, 1]} : vector<16x128xf32> to vector<16x32xf32>
    %135 = vector.extract_strided_slice %128 {offsets = [0, 0], sizes = [16, 32], strides = [1, 1]} : vector<16x128xf32> to vector<16x32xf32>
    %136 = vector.extract_strided_slice %132 {offsets = [0, 64], sizes = [16, 32], strides = [1, 1]} : vector<16x128xf32> to vector<16x32xf32>
    %137 = vector.extract_strided_slice %126 {offsets = [0, 32], sizes = [16, 32], strides = [1, 1]} : vector<16x128xf32> to vector<16x32xf32>
    %138 = vector.extract_strided_slice %130 {offsets = [0, 96], sizes = [16, 32], strides = [1, 1]} : vector<16x128xf32> to vector<16x32xf32>
    %139 = vector.extract_strided_slice %128 {offsets = [0, 32], sizes = [16, 32], strides = [1, 1]} : vector<16x128xf32> to vector<16x32xf32>
    %140 = vector.extract_strided_slice %132 {offsets = [0, 96], sizes = [16, 32], strides = [1, 1]} : vector<16x128xf32> to vector<16x32xf32>
    %141 = tpu.concatenate %133, %134, %135, %136, %137, %138, %139, %140 in 1 : vector<16x32xf32>, vector<16x32xf32>, vector<16x32xf32>, vector<16x32xf32>, vector<16x32xf32>, vector<16x32xf32>, vector<16x32xf32>, vector<16x32xf32> -> vector<16x256xf32>
    %c4 = arith.constant 4 : index
    %c0_29 = arith.constant 0 : index
    %c0_30 = arith.constant 0 : index
    %142 = vector.load %arg18[%c4, %c0_29, %c0_30] : memref<8x16x256xf32, #tpu.memory_space<vmem>>, vector<1x16x256xf32>
    %143 = vector.shape_cast %142 : vector<1x16x256xf32> to vector<16x256xf32>
    %144 = vector.shape_cast %141 : vector<16x256xf32> to vector<1x16x256xf32>
    tpu.vector_store %arg18[%c4, %c0_29, %c0_30], %144 {strides = array<i32>} : memref<8x16x256xf32, #tpu.memory_space<vmem>>, vector<1x16x256xf32>,
    %145 = vector.extract_strided_slice %44 {offsets = [0, 10, 0], sizes = [16, 1, 128], strides = [1, 1, 1]} : vector<16x16x128xf32> to vector<16x1x128xf32>
    %146 = vector.shape_cast %145 : vector<16x1x128xf32> to vector<16x128xf32>
    %147 = vector.extract_strided_slice %44 {offsets = [0, 11, 0], sizes = [16, 1, 128], strides = [1, 1, 1]} : vector<16x16x128xf32> to vector<16x1x128xf32>
    %148 = vector.shape_cast %147 : vector<16x1x128xf32> to vector<16x128xf32>
    %149 = vector.extract_strided_slice %44 {offsets = [10, 0, 0], sizes = [1, 16, 128], strides = [1, 1, 1]} : vector<16x16x128xf32> to vector<1x16x128xf32>
    %150 = vector.shape_cast %149 : vector<1x16x128xf32> to vector<16x128xf32>
    %151 = vector.extract_strided_slice %44 {offsets = [11, 0, 0], sizes = [1, 16, 128], strides = [1, 1, 1]} : vector<16x16x128xf32> to vector<1x16x128xf32>
    %152 = vector.shape_cast %151 : vector<1x16x128xf32> to vector<16x128xf32>
    %153 = vector.extract_strided_slice %146 {offsets = [0, 0], sizes = [16, 32], strides = [1, 1]} : vector<16x128xf32> to vector<16x32xf32>
    %154 = vector.extract_strided_slice %150 {offsets = [0, 64], sizes = [16, 32], strides = [1, 1]} : vector<16x128xf32> to vector<16x32xf32>
    %155 = vector.extract_strided_slice %148 {offsets = [0, 0], sizes = [16, 32], strides = [1, 1]} : vector<16x128xf32> to vector<16x32xf32>
    %156 = vector.extract_strided_slice %152 {offsets = [0, 64], sizes = [16, 32], strides = [1, 1]} : vector<16x128xf32> to vector<16x32xf32>
    %157 = vector.extract_strided_slice %146 {offsets = [0, 32], sizes = [16, 32], strides = [1, 1]} : vector<16x128xf32> to vector<16x32xf32>
    %158 = vector.extract_strided_slice %150 {offsets = [0, 96], sizes = [16, 32], strides = [1, 1]} : vector<16x128xf32> to vector<16x32xf32>
    %159 = vector.extract_strided_slice %148 {offsets = [0, 32], sizes = [16, 32], strides = [1, 1]} : vector<16x128xf32> to vector<16x32xf32>
    %160 = vector.extract_strided_slice %152 {offsets = [0, 96], sizes = [16, 32], strides = [1, 1]} : vector<16x128xf32> to vector<16x32xf32>
    %161 = tpu.concatenate %153, %154, %155, %156, %157, %158, %159, %160 in 1 : vector<16x32xf32>, vector<16x32xf32>, vector<16x32xf32>, vector<16x32xf32>, vector<16x32xf32>, vector<16x32xf32>, vector<16x32xf32>, vector<16x32xf32> -> vector<16x256xf32>
    %c5 = arith.constant 5 : index
    %c0_31 = arith.constant 0 : index
    %c0_32 = arith.constant 0 : index
    %162 = vector.load %arg18[%c5, %c0_31, %c0_32] : memref<8x16x256xf32, #tpu.memory_space<vmem>>, vector<1x16x256xf32>
    %163 = vector.shape_cast %162 : vector<1x16x256xf32> to vector<16x256xf32>
    %164 = vector.shape_cast %161 : vector<16x256xf32> to vector<1x16x256xf32>
    tpu.vector_store %arg18[%c5, %c0_31, %c0_32], %164 {strides = array<i32>} : memref<8x16x256xf32, #tpu.memory_space<vmem>>, vector<1x16x256xf32>,
    %165 = vector.extract_strided_slice %44 {offsets = [0, 12, 0], sizes = [16, 1, 128], strides = [1, 1, 1]} : vector<16x16x128xf32> to vector<16x1x128xf32>
    %166 = vector.shape_cast %165 : vector<16x1x128xf32> to vector<16x128xf32>
    %167 = vector.extract_strided_slice %44 {offsets = [0, 13, 0], sizes = [16, 1, 128], strides = [1, 1, 1]} : vector<16x16x128xf32> to vector<16x1x128xf32>
    %168 = vector.shape_cast %167 : vector<16x1x128xf32> to vector<16x128xf32>
    %169 = vector.extract_strided_slice %44 {offsets = [12, 0, 0], sizes = [1, 16, 128], strides = [1, 1, 1]} : vector<16x16x128xf32> to vector<1x16x128xf32>
    %170 = vector.shape_cast %169 : vector<1x16x128xf32> to vector<16x128xf32>
    %171 = vector.extract_strided_slice %44 {offsets = [13, 0, 0], sizes = [1, 16, 128], strides = [1, 1, 1]} : vector<16x16x128xf32> to vector<1x16x128xf32>
    %172 = vector.shape_cast %171 : vector<1x16x128xf32> to vector<16x128xf32>
    %173 = vector.extract_strided_slice %166 {offsets = [0, 0], sizes = [16, 32], strides = [1, 1]} : vector<16x128xf32> to vector<16x32xf32>
    %174 = vector.extract_strided_slice %170 {offsets = [0, 64], sizes = [16, 32], strides = [1, 1]} : vector<16x128xf32> to vector<16x32xf32>
    %175 = vector.extract_strided_slice %168 {offsets = [0, 0], sizes = [16, 32], strides = [1, 1]} : vector<16x128xf32> to vector<16x32xf32>
    %176 = vector.extract_strided_slice %172 {offsets = [0, 64], sizes = [16, 32], strides = [1, 1]} : vector<16x128xf32> to vector<16x32xf32>
    %177 = vector.extract_strided_slice %166 {offsets = [0, 32], sizes = [16, 32], strides = [1, 1]} : vector<16x128xf32> to vector<16x32xf32>
    %178 = vector.extract_strided_slice %170 {offsets = [0, 96], sizes = [16, 32], strides = [1, 1]} : vector<16x128xf32> to vector<16x32xf32>
    %179 = vector.extract_strided_slice %168 {offsets = [0, 32], sizes = [16, 32], strides = [1, 1]} : vector<16x128xf32> to vector<16x32xf32>
    %180 = vector.extract_strided_slice %172 {offsets = [0, 96], sizes = [16, 32], strides = [1, 1]} : vector<16x128xf32> to vector<16x32xf32>
    %181 = tpu.concatenate %173, %174, %175, %176, %177, %178, %179, %180 in 1 : vector<16x32xf32>, vector<16x32xf32>, vector<16x32xf32>, vector<16x32xf32>, vector<16x32xf32>, vector<16x32xf32>, vector<16x32xf32>, vector<16x32xf32> -> vector<16x256xf32>
    %c6 = arith.constant 6 : index
    %c0_33 = arith.constant 0 : index
    %c0_34 = arith.constant 0 : index
    %182 = vector.load %arg18[%c6, %c0_33, %c0_34] : memref<8x16x256xf32, #tpu.memory_space<vmem>>, vector<1x16x256xf32>
    %183 = vector.shape_cast %182 : vector<1x16x256xf32> to vector<16x256xf32>
    %184 = vector.shape_cast %181 : vector<16x256xf32> to vector<1x16x256xf32>
    tpu.vector_store %arg18[%c6, %c0_33, %c0_34], %184 {strides = array<i32>} : memref<8x16x256xf32, #tpu.memory_space<vmem>>, vector<1x16x256xf32>,
    %185 = vector.extract_strided_slice %44 {offsets = [0, 14, 0], sizes = [16, 1, 128], strides = [1, 1, 1]} : vector<16x16x128xf32> to vector<16x1x128xf32>
    %186 = vector.shape_cast %185 : vector<16x1x128xf32> to vector<16x128xf32>
    %187 = vector.extract_strided_slice %44 {offsets = [0, 15, 0], sizes = [16, 1, 128], strides = [1, 1, 1]} : vector<16x16x128xf32> to vector<16x1x128xf32>
    %188 = vector.shape_cast %187 : vector<16x1x128xf32> to vector<16x128xf32>
    %189 = vector.extract_strided_slice %44 {offsets = [14, 0, 0], sizes = [1, 16, 128], strides = [1, 1, 1]} : vector<16x16x128xf32> to vector<1x16x128xf32>
    %190 = vector.shape_cast %189 : vector<1x16x128xf32> to vector<16x128xf32>
    %191 = vector.extract_strided_slice %44 {offsets = [15, 0, 0], sizes = [1, 16, 128], strides = [1, 1, 1]} : vector<16x16x128xf32> to vector<1x16x128xf32>
    %192 = vector.shape_cast %191 : vector<1x16x128xf32> to vector<16x128xf32>
    %193 = vector.extract_strided_slice %186 {offsets = [0, 0], sizes = [16, 32], strides = [1, 1]} : vector<16x128xf32> to vector<16x32xf32>
    %194 = vector.extract_strided_slice %190 {offsets = [0, 64], sizes = [16, 32], strides = [1, 1]} : vector<16x128xf32> to vector<16x32xf32>
    %195 = vector.extract_strided_slice %188 {offsets = [0, 0], sizes = [16, 32], strides = [1, 1]} : vector<16x128xf32> to vector<16x32xf32>
    %196 = vector.extract_strided_slice %192 {offsets = [0, 64], sizes = [16, 32], strides = [1, 1]} : vector<16x128xf32> to vector<16x32xf32>
    %197 = vector.extract_strided_slice %186 {offsets = [0, 32], sizes = [16, 32], strides = [1, 1]} : vector<16x128xf32> to vector<16x32xf32>
    %198 = vector.extract_strided_slice %190 {offsets = [0, 96], sizes = [16, 32], strides = [1, 1]} : vector<16x128xf32> to vector<16x32xf32>
    %199 = vector.extract_strided_slice %188 {offsets = [0, 32], sizes = [16, 32], strides = [1, 1]} : vector<16x128xf32> to vector<16x32xf32>
    %200 = vector.extract_strided_slice %192 {offsets = [0, 96], sizes = [16, 32], strides = [1, 1]} : vector<16x128xf32> to vector<16x32xf32>
    %201 = tpu.concatenate %193, %194, %195, %196, %197, %198, %199, %200 in 1 : vector<16x32xf32>, vector<16x32xf32>, vector<16x32xf32>, vector<16x32xf32>, vector<16x32xf32>, vector<16x32xf32>, vector<16x32xf32>, vector<16x32xf32> -> vector<16x256xf32>
    %c7 = arith.constant 7 : index
    %c0_35 = arith.constant 0 : index
    %c0_36 = arith.constant 0 : index
    %202 = vector.load %arg18[%c7, %c0_35, %c0_36] : memref<8x16x256xf32, #tpu.memory_space<vmem>>, vector<1x16x256xf32>
    %203 = vector.shape_cast %202 : vector<1x16x256xf32> to vector<16x256xf32>
    %204 = vector.shape_cast %201 : vector<16x256xf32> to vector<1x16x256xf32>
    tpu.vector_store %arg18[%c7, %c0_35, %c0_36], %204 {strides = array<i32>} : memref<8x16x256xf32, #tpu.memory_space<vmem>>, vector<1x16x256xf32>,
    %cst_37 = arith.constant 0.000000e+00 : f32
    %205 = vector.broadcast %cst_37 : f32 to vector<16x16x128xf32>
    %c0_i32 = arith.constant 0 : i32
    %206 = arith.index_cast %c0_i32 : i32 to index
    %c0_38 = arith.constant 0 : index
    %c0_39 = arith.constant 0 : index
    %207 = vector.load %arg18[%206, %c0_38, %c0_39] : memref<8x16x256xf32, #tpu.memory_space<vmem>>, vector<1x16x256xf32>
    %208 = vector.shape_cast %207 : vector<1x16x256xf32> to vector<16x256xf32>
    %209 = vector.extract_strided_slice %208 {offsets = [0, 0], sizes = [16, 128], strides = [1, 1]} : vector<16x256xf32> to vector<16x128xf32>
    %210 = vector.shape_cast %209 : vector<16x128xf32> to vector<16x1x128xf32>
    %211 = vector.extract_strided_slice %208 {offsets = [0, 128], sizes = [16, 128], strides = [1, 1]} : vector<16x256xf32> to vector<16x128xf32>
    %212 = vector.shape_cast %211 : vector<16x128xf32> to vector<1x16x128xf32>
    %213 = vector.broadcast %210 : vector<16x1x128xf32> to vector<16x16x128xf32>
    %214 = vector.broadcast %212 : vector<1x16x128xf32> to vector<16x16x128xf32>
    %215 = arith.mulf %213, %214 : vector<16x16x128xf32>
    %216 = arith.addf %205, %215 : vector<16x16x128xf32>
    %c1_i32 = arith.constant 1 : i32
    %217 = arith.index_cast %c1_i32 : i32 to index
    %c0_40 = arith.constant 0 : index
    %c0_41 = arith.constant 0 : index
    %218 = vector.load %arg18[%217, %c0_40, %c0_41] : memref<8x16x256xf32, #tpu.memory_space<vmem>>, vector<1x16x256xf32>
    %219 = vector.shape_cast %218 : vector<1x16x256xf32> to vector<16x256xf32>
    %220 = vector.extract_strided_slice %219 {offsets = [0, 0], sizes = [16, 128], strides = [1, 1]} : vector<16x256xf32> to vector<16x128xf32>
    %221 = vector.shape_cast %220 : vector<16x128xf32> to vector<16x1x128xf32>
    %222 = vector.extract_strided_slice %219 {offsets = [0, 128], sizes = [16, 128], strides = [1, 1]} : vector<16x256xf32> to vector<16x128xf32>
    %223 = vector.shape_cast %222 : vector<16x128xf32> to vector<1x16x128xf32>
    %224 = vector.broadcast %221 : vector<16x1x128xf32> to vector<16x16x128xf32>
    %225 = vector.broadcast %223 : vector<1x16x128xf32> to vector<16x16x128xf32>
    %226 = arith.mulf %224, %225 : vector<16x16x128xf32>
    %227 = arith.addf %216, %226 : vector<16x16x128xf32>
    %c2_i32 = arith.constant 2 : i32
    %228 = arith.index_cast %c2_i32 : i32 to index
    %c0_42 = arith.constant 0 : index
    %c0_43 = arith.constant 0 : index
    %229 = vector.load %arg18[%228, %c0_42, %c0_43] : memref<8x16x256xf32, #tpu.memory_space<vmem>>, vector<1x16x256xf32>
    %230 = vector.shape_cast %229 : vector<1x16x256xf32> to vector<16x256xf32>
    %231 = vector.extract_strided_slice %230 {offsets = [0, 0], sizes = [16, 128], strides = [1, 1]} : vector<16x256xf32> to vector<16x128xf32>
    %232 = vector.shape_cast %231 : vector<16x128xf32> to vector<16x1x128xf32>
    %233 = vector.extract_strided_slice %230 {offsets = [0, 128], sizes = [16, 128], strides = [1, 1]} : vector<16x256xf32> to vector<16x128xf32>
    %234 = vector.shape_cast %233 : vector<16x128xf32> to vector<1x16x128xf32>
    %235 = vector.broadcast %232 : vector<16x1x128xf32> to vector<16x16x128xf32>
    %236 = vector.broadcast %234 : vector<1x16x128xf32> to vector<16x16x128xf32>
    %237 = arith.mulf %235, %236 : vector<16x16x128xf32>
    %238 = arith.addf %227, %237 : vector<16x16x128xf32>
    %c3_i32 = arith.constant 3 : i32
    %239 = arith.index_cast %c3_i32 : i32 to index
    %c0_44 = arith.constant 0 : index
    %c0_45 = arith.constant 0 : index
    %240 = vector.load %arg18[%239, %c0_44, %c0_45] : memref<8x16x256xf32, #tpu.memory_space<vmem>>, vector<1x16x256xf32>
    %241 = vector.shape_cast %240 : vector<1x16x256xf32> to vector<16x256xf32>
    %242 = vector.extract_strided_slice %241 {offsets = [0, 0], sizes = [16, 128], strides = [1, 1]} : vector<16x256xf32> to vector<16x128xf32>
    %243 = vector.shape_cast %242 : vector<16x128xf32> to vector<16x1x128xf32>
    %244 = vector.extract_strided_slice %241 {offsets = [0, 128], sizes = [16, 128], strides = [1, 1]} : vector<16x256xf32> to vector<16x128xf32>
    %245 = vector.shape_cast %244 : vector<16x128xf32> to vector<1x16x128xf32>
    %246 = vector.broadcast %243 : vector<16x1x128xf32> to vector<16x16x128xf32>
    %247 = vector.broadcast %245 : vector<1x16x128xf32> to vector<16x16x128xf32>
    %248 = arith.mulf %246, %247 : vector<16x16x128xf32>
    %249 = arith.addf %238, %248 : vector<16x16x128xf32>
    %c4_i32 = arith.constant 4 : i32
    %250 = arith.index_cast %c4_i32 : i32 to index
    %c0_46 = arith.constant 0 : index
    %c0_47 = arith.constant 0 : index
    %251 = vector.load %arg18[%250, %c0_46, %c0_47] : memref<8x16x256xf32, #tpu.memory_space<vmem>>, vector<1x16x256xf32>
    %252 = vector.shape_cast %251 : vector<1x16x256xf32> to vector<16x256xf32>
    %253 = vector.extract_strided_slice %252 {offsets = [0, 0], sizes = [16, 128], strides = [1, 1]} : vector<16x256xf32> to vector<16x128xf32>
    %254 = vector.shape_cast %253 : vector<16x128xf32> to vector<16x1x128xf32>
    %255 = vector.extract_strided_slice %252 {offsets = [0, 128], sizes = [16, 128], strides = [1, 1]} : vector<16x256xf32> to vector<16x128xf32>
    %256 = vector.shape_cast %255 : vector<16x128xf32> to vector<1x16x128xf32>
    %257 = vector.broadcast %254 : vector<16x1x128xf32> to vector<16x16x128xf32>
    %258 = vector.broadcast %256 : vector<1x16x128xf32> to vector<16x16x128xf32>
    %259 = arith.mulf %257, %258 : vector<16x16x128xf32>
    %260 = arith.addf %249, %259 : vector<16x16x128xf32>
    %c5_i32 = arith.constant 5 : i32
    %261 = arith.index_cast %c5_i32 : i32 to index
    %c0_48 = arith.constant 0 : index
    %c0_49 = arith.constant 0 : index
    %262 = vector.load %arg18[%261, %c0_48, %c0_49] : memref<8x16x256xf32, #tpu.memory_space<vmem>>, vector<1x16x256xf32>
    %263 = vector.shape_cast %262 : vector<1x16x256xf32> to vector<16x256xf32>
    %264 = vector.extract_strided_slice %263 {offsets = [0, 0], sizes = [16, 128], strides = [1, 1]} : vector<16x256xf32> to vector<16x128xf32>
    %265 = vector.shape_cast %264 : vector<16x128xf32> to vector<16x1x128xf32>
    %266 = vector.extract_strided_slice %263 {offsets = [0, 128], sizes = [16, 128], strides = [1, 1]} : vector<16x256xf32> to vector<16x128xf32>
    %267 = vector.shape_cast %266 : vector<16x128xf32> to vector<1x16x128xf32>
    %268 = vector.broadcast %265 : vector<16x1x128xf32> to vector<16x16x128xf32>
    %269 = vector.broadcast %267 : vector<1x16x128xf32> to vector<16x16x128xf32>
    %270 = arith.mulf %268, %269 : vector<16x16x128xf32>
    %271 = arith.addf %260, %270 : vector<16x16x128xf32>
    %c6_i32 = arith.constant 6 : i32
    %272 = arith.index_cast %c6_i32 : i32 to index
    %c0_50 = arith.constant 0 : index
    %c0_51 = arith.constant 0 : index
    %273 = vector.load %arg18[%272, %c0_50, %c0_51] : memref<8x16x256xf32, #tpu.memory_space<vmem>>, vector<1x16x256xf32>
    %274 = vector.shape_cast %273 : vector<1x16x256xf32> to vector<16x256xf32>
    %275 = vector.extract_strided_slice %274 {offsets = [0, 0], sizes = [16, 128], strides = [1, 1]} : vector<16x256xf32> to vector<16x128xf32>
    %276 = vector.shape_cast %275 : vector<16x128xf32> to vector<16x1x128xf32>
    %277 = vector.extract_strided_slice %274 {offsets = [0, 128], sizes = [16, 128], strides = [1, 1]} : vector<16x256xf32> to vector<16x128xf32>
    %278 = vector.shape_cast %277 : vector<16x128xf32> to vector<1x16x128xf32>
    %279 = vector.broadcast %276 : vector<16x1x128xf32> to vector<16x16x128xf32>
    %280 = vector.broadcast %278 : vector<1x16x128xf32> to vector<16x16x128xf32>
    %281 = arith.mulf %279, %280 : vector<16x16x128xf32>
    %282 = arith.addf %271, %281 : vector<16x16x128xf32>
    %c7_i32 = arith.constant 7 : i32
    %283 = arith.index_cast %c7_i32 : i32 to index
    %c0_52 = arith.constant 0 : index
    %c0_53 = arith.constant 0 : index
    %284 = vector.load %arg18[%283, %c0_52, %c0_53] : memref<8x16x256xf32, #tpu.memory_space<vmem>>, vector<1x16x256xf32>
    %285 = vector.shape_cast %284 : vector<1x16x256xf32> to vector<16x256xf32>
    %286 = vector.extract_strided_slice %285 {offsets = [0, 0], sizes = [16, 128], strides = [1, 1]} : vector<16x256xf32> to vector<16x128xf32>
    %287 = vector.shape_cast %286 : vector<16x128xf32> to vector<16x1x128xf32>
    %288 = vector.extract_strided_slice %285 {offsets = [0, 128], sizes = [16, 128], strides = [1, 1]} : vector<16x256xf32> to vector<16x128xf32>
    %289 = vector.shape_cast %288 : vector<16x128xf32> to vector<1x16x128xf32>
    %290 = vector.broadcast %287 : vector<16x1x128xf32> to vector<16x16x128xf32>
    %291 = vector.broadcast %289 : vector<1x16x128xf32> to vector<16x16x128xf32>
    %292 = arith.mulf %290, %291 : vector<16x16x128xf32>
    %293 = arith.addf %282, %292 : vector<16x16x128xf32>
    %c8_i32 = arith.constant 8 : i32
    %294 = vector.extract_strided_slice %293 {offsets = [0, 0, 0], sizes = [16, 16, 64], strides = [1, 1, 1]} : vector<16x16x128xf32> to vector<16x16x64xf32>
    %295 = vector.extract_strided_slice %293 {offsets = [0, 0, 64], sizes = [16, 16, 64], strides = [1, 1, 1]} : vector<16x16x128xf32> to vector<16x16x64xf32>
    %296 = arith.addf %294, %295 : vector<16x16x64xf32>
    %297 = vector.shape_cast %296 : vector<16x16x64xf32> to vector<256x64xf32>
    %c0_54 = arith.constant 0 : index
    %c0_55 = arith.constant 0 : index
    %298 = vector.load %arg7[%c0_54, %c0_55] : memref<1x64xf32, #tpu.memory_space<vmem>>, vector<1x64xf32>
    %c0_56 = arith.constant 0 : index
    %c0_57 = arith.constant 0 : index
    %299 = vector.load %arg8[%c0_56, %c0_57] : memref<1x64xf32, #tpu.memory_space<vmem>>, vector<1x64xf32>
    %cst_58 = arith.constant dense<0.000000e+00> : vector<256xf32>
    %300 = vector.multi_reduction <add>, %297, %cst_58 [1] : vector<256x64xf32> to vector<256xf32>
    %301 = vector.shape_cast %300 : vector<256xf32> to vector<256x1xf32>
    %cst_59 = arith.constant 6.400000e+01 : f32
    %302 = vector.broadcast %cst_59 : f32 to vector<256x1xf32>
    %303 = arith.divf %301, %302 : vector<256x1xf32>
    %304 = vector.broadcast %303 : vector<256x1xf32> to vector<256x64xf32>
    %305 = arith.subf %297, %304 : vector<256x64xf32>
    %306 = arith.mulf %305, %305 : vector<256x64xf32>
    %cst_60 = arith.constant dense<0.000000e+00> : vector<256xf32>
    %307 = vector.multi_reduction <add>, %306, %cst_60 [1] : vector<256x64xf32> to vector<256xf32>
    %308 = vector.shape_cast %307 : vector<256xf32> to vector<256x1xf32>
    %cst_61 = arith.constant 6.400000e+01 : f32
    %309 = vector.broadcast %cst_61 : f32 to vector<256x1xf32>
    %310 = arith.divf %308, %309 : vector<256x1xf32>
    %311 = vector.broadcast %303 : vector<256x1xf32> to vector<256x64xf32>
    %312 = arith.subf %297, %311 : vector<256x64xf32>
    %cst_62 = arith.constant 9.99999974E-6 : f32
    %313 = vector.broadcast %cst_62 : f32 to vector<256x1xf32>
    %314 = arith.addf %310, %313 : vector<256x1xf32>
    %315 = math.rsqrt %314 : vector<256x1xf32>
    %316 = vector.broadcast %315 : vector<256x1xf32> to vector<256x64xf32>
    %317 = arith.mulf %312, %316 : vector<256x64xf32>
    %318 = vector.broadcast %298 : vector<1x64xf32> to vector<256x64xf32>
    %319 = arith.mulf %317, %318 : vector<256x64xf32>
    %320 = vector.broadcast %299 : vector<1x64xf32> to vector<256x64xf32>
    %321 = arith.addf %319, %320 : vector<256x64xf32>
    %c0_63 = arith.constant 0 : index
    %c0_64 = arith.constant 0 : index
    %322 = vector.load %arg9[%c0_63, %c0_64] : memref<64x256xf32, #tpu.memory_space<vmem>>, vector<64x256xf32>
    %cst_65 = arith.constant dense<0.000000e+00> : vector<256x256xf32>
    %323 = tpu.matmul %321, %322, %cst_65 {dimension_numbers = #tpu.dot_dimension_numbers<[1], [0], [0], [1], [0, 0, 1, 1], [], []>} : vector<256x64xf32>, vector<64x256xf32>, vector<256x256xf32> -> vector<256x256xf32>
    %c0_66 = arith.constant 0 : index
    %c0_67 = arith.constant 0 : index
    %324 = vector.load %arg10[%c0_66, %c0_67] : memref<1x256xf32, #tpu.memory_space<vmem>>, vector<1x256xf32>
    %325 = vector.broadcast %324 : vector<1x256xf32> to vector<256x256xf32>
    %326 = arith.addf %323, %325 : vector<256x256xf32>
    %327 = vector.extract_strided_slice %326 {offsets = [0, 0], sizes = [256, 128], strides = [1, 1]} : vector<256x256xf32> to vector<256x128xf32>
    %328 = vector.extract_strided_slice %326 {offsets = [0, 128], sizes = [256, 128], strides = [1, 1]} : vector<256x256xf32> to vector<256x128xf32>
    %cst_68 = arith.constant 0.000000e+00 : f32
    %329 = vector.broadcast %cst_68 : f32 to vector<256x128xf32>
    %330 = arith.subf %329, %328 : vector<256x128xf32>
    %331 = math.exp %330 : vector<256x128xf32>
    %cst_69 = arith.constant 1.000000e+00 : f32
    %332 = vector.broadcast %cst_69 : f32 to vector<256x128xf32>
    %333 = arith.addf %332, %331 : vector<256x128xf32>
    %334 = tpu.reciprocal %333 {approx = true} : vector<256x128xf32> -> vector<256x128xf32>
    %335 = arith.mulf %327, %334 : vector<256x128xf32>
    %336 = arith.addf %1, %335 : vector<256x128xf32>
    %c0_70 = arith.constant 0 : index
    %c0_71 = arith.constant 0 : index
    %337 = vector.load %arg11[%c0_70, %c0_71] : memref<1x128xf32, #tpu.memory_space<vmem>>, vector<1x128xf32>
    %c0_72 = arith.constant 0 : index
    %c0_73 = arith.constant 0 : index
    %338 = vector.load %arg12[%c0_72, %c0_73] : memref<1x128xf32, #tpu.memory_space<vmem>>, vector<1x128xf32>
    %cst_74 = arith.constant dense<0.000000e+00> : vector<256xf32>
    %339 = vector.multi_reduction <add>, %336, %cst_74 [1] : vector<256x128xf32> to vector<256xf32>
    %340 = vector.shape_cast %339 : vector<256xf32> to vector<256x1xf32>
    %cst_75 = arith.constant 1.280000e+02 : f32
    %341 = vector.broadcast %cst_75 : f32 to vector<256x1xf32>
    %342 = arith.divf %340, %341 : vector<256x1xf32>
    %343 = vector.broadcast %342 : vector<256x1xf32> to vector<256x128xf32>
    %344 = arith.subf %336, %343 : vector<256x128xf32>
    %345 = arith.mulf %344, %344 : vector<256x128xf32>
    %cst_76 = arith.constant dense<0.000000e+00> : vector<256xf32>
    %346 = vector.multi_reduction <add>, %345, %cst_76 [1] : vector<256x128xf32> to vector<256xf32>
    %347 = vector.shape_cast %346 : vector<256xf32> to vector<256x1xf32>
    %cst_77 = arith.constant 1.280000e+02 : f32
    %348 = vector.broadcast %cst_77 : f32 to vector<256x1xf32>
    %349 = arith.divf %347, %348 : vector<256x1xf32>
    %350 = vector.broadcast %342 : vector<256x1xf32> to vector<256x128xf32>
    %351 = arith.subf %336, %350 : vector<256x128xf32>
    %cst_78 = arith.constant 9.99999974E-6 : f32
    %352 = vector.broadcast %cst_78 : f32 to vector<256x1xf32>
    %353 = arith.addf %349, %352 : vector<256x1xf32>
    %354 = math.rsqrt %353 : vector<256x1xf32>
    %355 = vector.broadcast %354 : vector<256x1xf32> to vector<256x128xf32>
    %356 = arith.mulf %351, %355 : vector<256x128xf32>
    %357 = vector.broadcast %337 : vector<1x128xf32> to vector<256x128xf32>
    %358 = arith.mulf %356, %357 : vector<256x128xf32>
    %359 = vector.broadcast %338 : vector<1x128xf32> to vector<256x128xf32>
    %360 = arith.addf %358, %359 : vector<256x128xf32>
    %c0_79 = arith.constant 0 : index
    %c0_80 = arith.constant 0 : index
    %361 = vector.load %arg13[%c0_79, %c0_80] : memref<128x512xf32, #tpu.memory_space<vmem>>, vector<128x512xf32>
    %cst_81 = arith.constant dense<0.000000e+00> : vector<256x512xf32>
    %362 = tpu.matmul %360, %361, %cst_81 {dimension_numbers = #tpu.dot_dimension_numbers<[1], [0], [0], [1], [0, 0, 1, 1], [], []>} : vector<256x128xf32>, vector<128x512xf32>, vector<256x512xf32> -> vector<256x512xf32>
    %c0_82 = arith.constant 0 : index
    %c0_83 = arith.constant 0 : index
    %363 = vector.load %arg14[%c0_82, %c0_83] : memref<1x512xf32, #tpu.memory_space<vmem>>, vector<1x512xf32>
    %364 = vector.broadcast %363 : vector<1x512xf32> to vector<256x512xf32>
    %365 = arith.addf %362, %364 : vector<256x512xf32>
    %cst_84 = arith.constant 0.000000e+00 : f32
    %366 = vector.broadcast %cst_84 : f32 to vector<256x512xf32>
    %367 = arith.maximumf %365, %366 : vector<256x512xf32>
    %c0_85 = arith.constant 0 : index
    %c0_86 = arith.constant 0 : index
    %368 = vector.load %arg15[%c0_85, %c0_86] : memref<512x128xf32, #tpu.memory_space<vmem>>, vector<512x128xf32>
    %cst_87 = arith.constant dense<0.000000e+00> : vector<256x128xf32>
    %369 = tpu.matmul %367, %368, %cst_87 {dimension_numbers = #tpu.dot_dimension_numbers<[1], [0], [0], [1], [0, 0, 1, 1], [], []>} : vector<256x512xf32>, vector<512x128xf32>, vector<256x128xf32> -> vector<256x128xf32>
    %c0_88 = arith.constant 0 : index
    %c0_89 = arith.constant 0 : index
    %370 = vector.load %arg16[%c0_88, %c0_89] : memref<1x128xf32, #tpu.memory_space<vmem>>, vector<1x128xf32>
    %371 = vector.broadcast %370 : vector<1x128xf32> to vector<256x128xf32>
    %372 = arith.addf %369, %371 : vector<256x128xf32>
    %373 = arith.addf %336, %372 : vector<256x128xf32>
    %c0_90 = arith.constant 0 : index
    %c0_91 = arith.constant 0 : index
    %c0_92 = arith.constant 0 : index
    %374 = vector.load %arg17[%c0_90, %c0_91, %c0_92] : memref<1x256x128xf32, #tpu.memory_space<vmem>>, vector<1x256x128xf32>
    %375 = vector.shape_cast %374 : vector<1x256x128xf32> to vector<256x128xf32>
    %376 = vector.shape_cast %373 : vector<256x128xf32> to vector<1x256x128xf32>
    tpu.vector_store %arg17[%c0_90, %c0_91, %c0_92], %376 {strides = array<i32>} : memref<1x256x128xf32, #tpu.memory_space<vmem>>, vector<1x256x128xf32>,
    return
  }
  func.func @transform_0(%arg0: i32) -> (i32, i32, i32) {
    %c0_i32 = arith.constant 0 : i32
    %c0_i32_0 = arith.constant 0 : i32
    %c0_i32_1 = arith.constant 0 : i32
    return %arg0, %c0_i32, %c0_i32_0 : i32, i32, i32
  }
  func.func @transform_1(%arg0: i32) -> (i32, i32, i32) {
    %c0_i32 = arith.constant 0 : i32
    %c0_i32_0 = arith.constant 0 : i32
    %c0_i32_1 = arith.constant 0 : i32
    return %arg0, %c0_i32, %c0_i32_0 : i32, i32, i32
  }
  func.func @transform_2(%arg0: i32) -> (i32, i32) {
    %c0_i32 = arith.constant 0 : i32
    %c0_i32_0 = arith.constant 0 : i32
    %c0_i32_1 = arith.constant 0 : i32
    return %c0_i32, %c0_i32_0 : i32, i32
  }
  func.func @transform_3(%arg0: i32) -> (i32, i32) {
    %c0_i32 = arith.constant 0 : i32
    %c0_i32_0 = arith.constant 0 : i32
    %c0_i32_1 = arith.constant 0 : i32
    return %c0_i32, %c0_i32_0 : i32, i32
  }
  func.func @transform_4(%arg0: i32) -> (i32, i32) {
    %c0_i32 = arith.constant 0 : i32
    %c0_i32_0 = arith.constant 0 : i32
    %c0_i32_1 = arith.constant 0 : i32
    return %c0_i32, %c0_i32_0 : i32, i32
  }
  func.func @transform_5(%arg0: i32) -> (i32, i32) {
    %c0_i32 = arith.constant 0 : i32
    %c0_i32_0 = arith.constant 0 : i32
    %c0_i32_1 = arith.constant 0 : i32
    return %c0_i32, %c0_i32_0 : i32, i32
  }
  func.func @transform_6(%arg0: i32) -> (i32, i32) {
    %c0_i32 = arith.constant 0 : i32
    %c0_i32_0 = arith.constant 0 : i32
    %c0_i32_1 = arith.constant 0 : i32
    return %c0_i32, %c0_i32_0 : i32, i32
  }
  func.func @transform_7(%arg0: i32) -> (i32, i32) {
    %c0_i32 = arith.constant 0 : i32
    %c0_i32_0 = arith.constant 0 : i32
    %c0_i32_1 = arith.constant 0 : i32
    return %c0_i32, %c0_i32_0 : i32, i32
  }
  func.func @transform_8(%arg0: i32) -> (i32, i32) {
    %c0_i32 = arith.constant 0 : i32
    %c0_i32_0 = arith.constant 0 : i32
    %c0_i32_1 = arith.constant 0 : i32
    return %c0_i32, %c0_i32_0 : i32, i32
  }
  func.func @transform_9(%arg0: i32) -> (i32, i32) {
    %c0_i32 = arith.constant 0 : i32
    %c0_i32_0 = arith.constant 0 : i32
    %c0_i32_1 = arith.constant 0 : i32
    return %c0_i32, %c0_i32_0 : i32, i32
  }
  func.func @transform_10(%arg0: i32) -> (i32, i32) {
    %c0_i32 = arith.constant 0 : i32
    %c0_i32_0 = arith.constant 0 : i32
    %c0_i32_1 = arith.constant 0 : i32
    return %c0_i32, %c0_i32_0 : i32, i32
  }
  func.func @transform_11(%arg0: i32) -> (i32, i32) {
    %c0_i32 = arith.constant 0 : i32
    %c0_i32_0 = arith.constant 0 : i32
    %c0_i32_1 = arith.constant 0 : i32
    return %c0_i32, %c0_i32_0 : i32, i32
  }
  func.func @transform_12(%arg0: i32) -> (i32, i32) {
    %c0_i32 = arith.constant 0 : i32
    %c0_i32_0 = arith.constant 0 : i32
    %c0_i32_1 = arith.constant 0 : i32
    return %c0_i32, %c0_i32_0 : i32, i32
  }
  func.func @transform_13(%arg0: i32) -> (i32, i32) {
    %c0_i32 = arith.constant 0 : i32
    %c0_i32_0 = arith.constant 0 : i32
    %c0_i32_1 = arith.constant 0 : i32
    return %c0_i32, %c0_i32_0 : i32, i32
  }
  func.func @transform_14(%arg0: i32) -> (i32, i32) {
    %c0_i32 = arith.constant 0 : i32
    %c0_i32_0 = arith.constant 0 : i32
    %c0_i32_1 = arith.constant 0 : i32
    return %c0_i32, %c0_i32_0 : i32, i32
  }
  func.func @transform_15(%arg0: i32) -> (i32, i32) {
    %c0_i32 = arith.constant 0 : i32
    %c0_i32_0 = arith.constant 0 : i32
    %c0_i32_1 = arith.constant 0 : i32
    return %c0_i32, %c0_i32_0 : i32, i32
  }
  func.func @transform_16(%arg0: i32) -> (i32, i32, i32) {
    %c0_i32 = arith.constant 0 : i32
    %c0_i32_0 = arith.constant 0 : i32
    %c0_i32_1 = arith.constant 0 : i32
    return %arg0, %c0_i32, %c0_i32_0 : i32, i32, i32
  }
}

</mosaic_0001>

<llo_original>
// kernel: block_forward.1
$region0: #{block_forward.1}
  #allocation0 [shape = 'u32[]', space=smem, size = 0x4, offset = 0x4, fixed_abs, tag = 'smem constant byte address 0x4 - core index']
  #allocation1 [shape = 'u32[144,128]{1,0:T(1,128)}', space=vmem, size = 0x12000, scoped, tag = 'internal scratch']
  #allocation2 [shape = 'f32[8,16,256]{2,1,0:T(8,128)}', space=vmem, size = 0x20000, scoped, tag = 'scratch operand']
  %s0 = inlined_call_operand.vmem [shape: f32[2,256,128], index: 0, kind: input, shape index: {}]
  %s1 = inlined_call_operand.vmem [shape: f32[2,256,1], index: 1, kind: input, shape index: {}]
  %s2 = inlined_call_operand.vmem [shape: f32[1,128], index: 2, kind: input, shape index: {}]
  %s3 = inlined_call_operand.vmem [shape: f32[1,128], index: 3, kind: input, shape index: {}]
  %s4 = inlined_call_operand.hbm [shape: f32[128,256], index: 4, kind: input, shape index: {}]
  %s5 = inlined_call_operand.vmem [shape: f32[1,256], index: 5, kind: input, shape index: {}]
  %s6 = inlined_call_operand.vmem [shape: f32[1,64], index: 6, kind: input, shape index: {}]
  %s7 = inlined_call_operand.vmem [shape: f32[1,64], index: 7, kind: input, shape index: {}]
  %s8 = inlined_call_operand.hbm [shape: f32[64,256], index: 8, kind: input, shape index: {}]
  %s9 = inlined_call_operand.vmem [shape: f32[1,256], index: 9, kind: input, shape index: {}]
  %s10 = inlined_call_operand.vmem [shape: f32[1,128], index: 10, kind: input, shape index: {}]
  %s11 = inlined_call_operand.vmem [shape: f32[1,128], index: 11, kind: input, shape index: {}]
  %s12 = inlined_call_operand.hbm [shape: f32[128,512], index: 12, kind: input, shape index: {}]
  %s13 = inlined_call_operand.vmem [shape: f32[1,512], index: 13, kind: input, shape index: {}]
  %s14 = inlined_call_operand.hbm [shape: f32[512,128], index: 14, kind: input, shape index: {}]
  %s15 = inlined_call_operand.vmem [shape: f32[1,128], index: 15, kind: input, shape index: {}]
  %s16 = inlined_call_operand.hbm [shape: f32[2,256,128], index: 16, kind: output, shape index: {}]
  %s17 = sld [smem:[#allocation0]]
  $region113: #{block_forward.1} parent=0
    _
  %s19 = ssub.s32 1, %s17
  %s20 = scalar_select 0, %s19, %s17
  $region1: #{block_forward.1} parent=0
    #allocation3 [shape = 'u8[131072]{0}', space=vmem, size = 0x20000, scoped, tag = 'input window, operand 4, single buffered']
    #allocation4 [shape = 's32[2]{0}', space=sflag, size = 0x8, scoped, tag = 'scoped memory for block_forward.1']
    #allocation5 [shape = 's32[2]{0}', space=sflag, size = 0x8, scoped, tag = 'scoped memory for block_forward.1']
    #allocation6 [shape = 'u8[65536]{0}', space=vmem, size = 0x10000, scoped, tag = 'input window, operand 8, single buffered']
    #allocation7 [shape = 's32[1]{0}', space=sflag, size = 0x4, scoped, tag = 'scoped memory for block_forward.1']
    #allocation8 [shape = 'u8[262144]{0}', space=vmem, size = 0x40000, scoped, tag = 'input window, operand 12, single buffered']
    #allocation9 [shape = 'u8[262144]{0}', space=vmem, size = 0x40000, scoped, tag = 'input window, operand 14, single buffered']
    #allocation10 [shape = 's32[1]{0}', space=sflag, size = 0x4, scoped, tag = 'scoped memory for block_forward.1']
    #allocation11 [shape = 'u8[262144]{0}', space=vmem, size = 0x40000, scoped, tag = 'output window, operand 0']
    %21 = vsyncpa [#allocation4], 0
    %22 = vsyncpa [#allocation7], 0
    %23 = vsyncpa [#allocation10], 0
    %24 = vsyncpa [#allocation5], 0
    %s25 = scalar_lea.sflag [#allocation5], 1
    %26 = vsyncpa %s25, 0
    loop: start=0, step=1, limit=4
    $region2: #{block_forward.1} parent=1 // loop_pre_header
      _
    $region3: #{block_forward.1} parent=1 // loop_header
      %s28 = sphi 0, %s32
      %p29 = scmp.ge.s32.totalorder %s28, 4
      %s38 = sphi 0, %s40
      %s41 = sphi 0, %s38
      %s42 = sphi 0, %s41
      %s58 = sphi 0, %s42
      %s64 = sphi 0, %s66
      %s67 = sphi 0, %s64
      %s68 = sphi 0, %s67
      %s84 = sphi 0, %s68
      %s88 = sphi 0, %s88
      %s90 = sphi 0, %s88
      %s91 = sphi 0, %s90
      %s105 = sphi 0, %s91
      %s109 = sphi 0, %s109
      %s111 = sphi 0, %s109
      %s112 = sphi 0, %s111
      %s126 = sphi 0, %s112
      %s130 = sphi 0, %s130
      %s132 = sphi 0, %s130
      %s133 = sphi 0, %s132
      %s147 = sphi 0, %s133
      %s151 = sphi 0, %s151
      %s153 = sphi 0, %s151
      %s154 = sphi 0, %s153
      %s168 = sphi 0, %s154
      %s172 = sphi 0, %s172
      %s174 = sphi 0, %s172
      %s175 = sphi 0, %s174
      %s189 = sphi 0, %s175
      %s193 = sphi 0, %s193
      %s195 = sphi 0, %s193
      %s196 = sphi 0, %s195
      %s210 = sphi 0, %s196
      %s214 = sphi 0, %s214
      %s216 = sphi 0, %s214
      %s217 = sphi 0, %s216
      %s231 = sphi 0, %s217
      %s235 = sphi 0, %s235
      %s237 = sphi 0, %s235
      %s238 = sphi 0, %s237
      %s252 = sphi 0, %s238
      %s256 = sphi 0, %s256
      %s258 = sphi 0, %s256
      %s259 = sphi 0, %s258
      %s273 = sphi 0, %s259
      %s277 = sphi 0, %s277
      %s279 = sphi 0, %s277
      %s280 = sphi 0, %s279
      %s294 = sphi 0, %s280
      %s298 = sphi 0, %s298
      %s300 = sphi 0, %s298
      %s301 = sphi 0, %s300
      %s315 = sphi 0, %s301
      %s319 = sphi 0, %s319
      %s321 = sphi 0, %s319
      %s322 = sphi 0, %s321
      %s336 = sphi 0, %s322
      %s340 = sphi 0, %s340
      %s342 = sphi 0, %s340
      %s343 = sphi 0, %s342
      %s357 = sphi 0, %s343
      %s361 = sphi 0, %s361
      %s363 = sphi 0, %s361
      %s364 = sphi 0, %s363
      %s378 = sphi 0, %s364
      %s384 = sphi 0, %s386
      %s387 = sphi 0, %s384
      %s388 = sphi 0, %s387
      %s404 = sphi 0, %s388
    $region4: #{block_forward.1} parent=1 // loop_header_branch
      %31 = sbr.rel (%p29) target = $region8
    $region5: #{block_forward.1} parent=1 // loop_body
      %s33 = ssub.s32 %s28, 1
      %s34 = ssub.s32 %s28, 2
      %s35 = sadd.s32 %s28, 1
      %s36 = ssub.s32 %s28, %s35
      %p37 = scmp.eq.s32.totalorder %s36, 0
      %s39 = sadd.s32 %s38, 1
      %s40 = scalar_select %p37, %s38, %s39
      %p43 = pneg %p37
      %p44 = scmp.eq.s32.totalorder %s28, 1
      %p45 = por %p43, %p44
      %p46 = scmp.ne.s32.totalorder %s38, %s41
      %p47 = scmp.eq.s32.totalorder %s28, 0
      %p48 = por %p46, %p47
      %p49 = scmp.ne.s32.totalorder %s38, %s41
      %p50 = scmp.eq.s32.totalorder %s33, 1
      %p51 = por %p49, %p50
      %p52 = scmp.ne.s32.totalorder %s41, %s42
      %p53 = scmp.eq.s32.totalorder %s33, 0
      %p54 = por %p52, %p53
      %p55 = scmp.ne.s32.totalorder %s41, %s42
      %p56 = scmp.eq.s32.totalorder %s34, 1
      %p57 = por %p55, %p56
      %p59 = scmp.ne.s32.totalorder %s42, %s58
      %p60 = scmp.eq.s32.totalorder %s34, 0
      %p61 = por %p59, %p60
      %s62 = ssub.s32 %s28, %s35
      %p63 = scmp.eq.s32.totalorder %s62, 0
      %s65 = sadd.s32 %s64, 1
      %s66 = scalar_select %p63, %s64, %s65
      %p69 = pneg %p63
      %p70 = scmp.eq.s32.totalorder %s28, 1
      %p71 = por %p69, %p70
      %p72 = scmp.ne.s32.totalorder %s64, %s67
      %p73 = scmp.eq.s32.totalorder %s28, 0
      %p74 = por %p72, %p73
      %p75 = scmp.ne.s32.totalorder %s64, %s67
      %p76 = scmp.eq.s32.totalorder %s33, 1
      %p77 = por %p75, %p76
      %p78 = scmp.ne.s32.totalorder %s67, %s68
      %p79 = scmp.eq.s32.totalorder %s33, 0
      %p80 = por %p78, %p79
      %p81 = scmp.ne.s32.totalorder %s67, %s68
      %p82 = scmp.eq.s32.totalorder %s34, 1
      %p83 = por %p81, %p82
      %p85 = scmp.ne.s32.totalorder %s68, %s84
      %p86 = scmp.eq.s32.totalorder %s34, 0
      %p87 = por %p85, %p86
      %s89 = sadd.s32 %s88, 1
      %p92 = scmp.eq.s32.totalorder %s28, 1
      %p93 = scmp.ne.s32.totalorder %s88, %s90
      %p94 = scmp.eq.s32.totalorder %s28, 0
      %p95 = por %p93, %p94
      %p96 = scmp.ne.s32.totalorder %s88, %s90
      %p97 = scmp.eq.s32.totalorder %s33, 1
      %p98 = por %p96, %p97
      %p99 = scmp.ne.s32.totalorder %s90, %s91
      %p100 = scmp.eq.s32.totalorder %s33, 0
      %p101 = por %p99, %p100
      %p102 = scmp.ne.s32.totalorder %s90, %s91
      %p103 = scmp.eq.s32.totalorder %s34, 1
      %p104 = por %p102, %p103
      %p106 = scmp.ne.s32.totalorder %s91, %s105
      %p107 = scmp.eq.s32.totalorder %s34, 0
      %p108 = por %p106, %p107
      %s110 = sadd.s32 %s109, 1
      %p113 = scmp.eq.s32.totalorder %s28, 1
      %p114 = scmp.ne.s32.totalorder %s109, %s111
      %p115 = scmp.eq.s32.totalorder %s28, 0
      %p116 = por %p114, %p115
      %p117 = scmp.ne.s32.totalorder %s109, %s111
      %p118 = scmp.eq.s32.totalorder %s33, 1
      %p119 = por %p117, %p118
      %p120 = scmp.ne.s32.totalorder %s111, %s112
      %p121 = scmp.eq.s32.totalorder %s33, 0
      %p122 = por %p120, %p121
      %p123 = scmp.ne.s32.totalorder %s111, %s112
      %p124 = scmp.eq.s32.totalorder %s34, 1
      %p125 = por %p123, %p124
      %p127 = scmp.ne.s32.totalorder %s112, %s126
      %p128 = scmp.eq.s32.totalorder %s34, 0
      %p129 = por %p127, %p128
      %s131 = sadd.s32 %s130, 1
      %p134 = scmp.eq.s32.totalorder %s28, 1
      %p135 = scmp.ne.s32.totalorder %s130, %s132
      %p136 = scmp.eq.s32.totalorder %s28, 0
      %p137 = por %p135, %p136
      %p138 = scmp.ne.s32.totalorder %s130, %s132
      %p139 = scmp.eq.s32.totalorder %s33, 1
      %p140 = por %p138, %p139
      %p141 = scmp.ne.s32.totalorder %s132, %s133
      %p142 = scmp.eq.s32.totalorder %s33, 0
      %p143 = por %p141, %p142
      %p144 = scmp.ne.s32.totalorder %s132, %s133
      %p145 = scmp.eq.s32.totalorder %s34, 1
      %p146 = por %p144, %p145
      %p148 = scmp.ne.s32.totalorder %s133, %s147
      %p149 = scmp.eq.s32.totalorder %s34, 0
      %p150 = por %p148, %p149
      %s152 = sadd.s32 %s151, 1
      %p155 = scmp.eq.s32.totalorder %s28, 1
      %p156 = scmp.ne.s32.totalorder %s151, %s153
      %p157 = scmp.eq.s32.totalorder %s28, 0
      %p158 = por %p156, %p157
      %p159 = scmp.ne.s32.totalorder %s151, %s153
      %p160 = scmp.eq.s32.totalorder %s33, 1
      %p161 = por %p159, %p160
      %p162 = scmp.ne.s32.totalorder %s153, %s154
      %p163 = scmp.eq.s32.totalorder %s33, 0
      %p164 = por %p162, %p163
      %p165 = scmp.ne.s32.totalorder %s153, %s154
      %p166 = scmp.eq.s32.totalorder %s34, 1
      %p167 = por %p165, %p166
      %p169 = scmp.ne.s32.totalorder %s154, %s168
      %p170 = scmp.eq.s32.totalorder %s34, 0
      %p171 = por %p169, %p170
      %s173 = sadd.s32 %s172, 1
      %p176 = scmp.eq.s32.totalorder %s28, 1
      %p177 = scmp.ne.s32.totalorder %s172, %s174
      %p178 = scmp.eq.s32.totalorder %s28, 0
      %p179 = por %p177, %p178
      %p180 = scmp.ne.s32.totalorder %s172, %s174
      %p181 = scmp.eq.s32.totalorder %s33, 1
      %p182 = por %p180, %p181
      %p183 = scmp.ne.s32.totalorder %s174, %s175
      %p184 = scmp.eq.s32.totalorder %s33, 0
      %p185 = por %p183, %p184
      %p186 = scmp.ne.s32.totalorder %s174, %s175
      %p187 = scmp.eq.s32.totalorder %s34, 1
      %p188 = por %p186, %p187
      %p190 = scmp.ne.s32.totalorder %s175, %s189
      %p191 = scmp.eq.s32.totalorder %s34, 0
      %p192 = por %p190, %p191
      %s194 = sadd.s32 %s193, 1
      %p197 = scmp.eq.s32.totalorder %s28, 1
      %p198 = scmp.ne.s32.totalorder %s193, %s195
      %p199 = scmp.eq.s32.totalorder %s28, 0
      %p200 = por %p198, %p199
      %p201 = scmp.ne.s32.totalorder %s193, %s195
      %p202 = scmp.eq.s32.totalorder %s33, 1
      %p203 = por %p201, %p202
      %p204 = scmp.ne.s32.totalorder %s195, %s196
      %p205 = scmp.eq.s32.totalorder %s33, 0
      %p206 = por %p204, %p205
      %p207 = scmp.ne.s32.totalorder %s195, %s196
      %p208 = scmp.eq.s32.totalorder %s34, 1
      %p209 = por %p207, %p208
      %p211 = scmp.ne.s32.totalorder %s196, %s210
      %p212 = scmp.eq.s32.totalorder %s34, 0
      %p213 = por %p211, %p212
      %s215 = sadd.s32 %s214, 1
      %p218 = scmp.eq.s32.totalorder %s28, 1
      %p219 = scmp.ne.s32.totalorder %s214, %s216
      %p220 = scmp.eq.s32.totalorder %s28, 0
      %p221 = por %p219, %p220
      %p222 = scmp.ne.s32.totalorder %s214, %s216
      %p223 = scmp.eq.s32.totalorder %s33, 1
      %p224 = por %p222, %p223
      %p225 = scmp.ne.s32.totalorder %s216, %s217
      %p226 = scmp.eq.s32.totalorder %s33, 0
      %p227 = por %p225, %p226
      %p228 = scmp.ne.s32.totalorder %s216, %s217
      %p229 = scmp.eq.s32.totalorder %s34, 1
      %p230 = por %p228, %p229
      %p232 = scmp.ne.s32.totalorder %s217, %s231
      %p233 = scmp.eq.s32.totalorder %s34, 0
      %p234 = por %p232, %p233
      %s236 = sadd.s32 %s235, 1
      %p239 = scmp.eq.s32.totalorder %s28, 1
      %p240 = scmp.ne.s32.totalorder %s235, %s237
      %p241 = scmp.eq.s32.totalorder %s28, 0
      %p242 = por %p240, %p241
      %p243 = scmp.ne.s32.totalorder %s235, %s237
      %p244 = scmp.eq.s32.totalorder %s33, 1
      %p245 = por %p243, %p244
      %p246 = scmp.ne.s32.totalorder %s237, %s238
      %p247 = scmp.eq.s32.totalorder %s33, 0
      %p248 = por %p246, %p247
      %p249 = scmp.ne.s32.totalorder %s237, %s238
      %p250 = scmp.eq.s32.totalorder %s34, 1
      %p251 = por %p249, %p250
      %p253 = scmp.ne.s32.totalorder %s238, %s252
      %p254 = scmp.eq.s32.totalorder %s34, 0
      %p255 = por %p253, %p254
      %s257 = sadd.s32 %s256, 1
      %p260 = scmp.eq.s32.totalorder %s28, 1
      %p261 = scmp.ne.s32.totalorder %s256, %s258
      %p262 = scmp.eq.s32.totalorder %s28, 0
      %p263 = por %p261, %p262
      %p264 = scmp.ne.s32.totalorder %s256, %s258
      %p265 = scmp.eq.s32.totalorder %s33, 1
      %p266 = por %p264, %p265
      %p267 = scmp.ne.s32.totalorder %s258, %s259
      %p268 = scmp.eq.s32.totalorder %s33, 0
      %p269 = por %p267, %p268
      %p270 = scmp.ne.s32.totalorder %s258, %s259
      %p271 = scmp.eq.s32.totalorder %s34, 1
      %p272 = por %p270, %p271
      %p274 = scmp.ne.s32.totalorder %s259, %s273
      %p275 = scmp.eq.s32.totalorder %s34, 0
      %p276 = por %p274, %p275
      %s278 = sadd.s32 %s277, 1
      %p281 = scmp.eq.s32.totalorder %s28, 1
      %p282 = scmp.ne.s32.totalorder %s277, %s279
      %p283 = scmp.eq.s32.totalorder %s28, 0
      %p284 = por %p282, %p283
      %p285 = scmp.ne.s32.totalorder %s277, %s279
      %p286 = scmp.eq.s32.totalorder %s33, 1
      %p287 = por %p285, %p286
      %p288 = scmp.ne.s32.totalorder %s279, %s280
      %p289 = scmp.eq.s32.totalorder %s33, 0
      %p290 = por %p288, %p289
      %p291 = scmp.ne.s32.totalorder %s279, %s280
      %p292 = scmp.eq.s32.totalorder %s34, 1
      %p293 = por %p291, %p292
      %p295 = scmp.ne.s32.totalorder %s280, %s294
      %p296 = scmp.eq.s32.totalorder %s34, 0
      %p297 = por %p295, %p296
      %s299 = sadd.s32 %s298, 1
      %p302 = scmp.eq.s32.totalorder %s28, 1
      %p303 = scmp.ne.s32.totalorder %s298, %s300
      %p304 = scmp.eq.s32.totalorder %s28, 0
      %p305 = por %p303, %p304
      %p306 = scmp.ne.s32.totalorder %s298, %s300
      %p307 = scmp.eq.s32.totalorder %s33, 1
      %p308 = por %p306, %p307
      %p309 = scmp.ne.s32.totalorder %s300, %s301
      %p310 = scmp.eq.s32.totalorder %s33, 0
      %p311 = por %p309, %p310
      %p312 = scmp.ne.s32.totalorder %s300, %s301
      %p313 = scmp.eq.s32.totalorder %s34, 1
      %p314 = por %p312, %p313
      %p316 = scmp.ne.s32.totalorder %s301, %s315
      %p317 = scmp.eq.s32.totalorder %s34, 0
      %p318 = por %p316, %p317
      %s320 = sadd.s32 %s319, 1
      %p323 = scmp.eq.s32.totalorder %s28, 1
      %p324 = scmp.ne.s32.totalorder %s319, %s321
      %p325 = scmp.eq.s32.totalorder %s28, 0
      %p326 = por %p324, %p325
      %p327 = scmp.ne.s32.totalorder %s319, %s321
      %p328 = scmp.eq.s32.totalorder %s33, 1
      %p329 = por %p327, %p328
      %p330 = scmp.ne.s32.totalorder %s321, %s322
      %p331 = scmp.eq.s32.totalorder %s33, 0
      %p332 = por %p330, %p331
      %p333 = scmp.ne.s32.totalorder %s321, %s322
      %p334 = scmp.eq.s32.totalorder %s34, 1
      %p335 = por %p333, %p334
      %p337 = scmp.ne.s32.totalorder %s322, %s336
      %p338 = scmp.eq.s32.totalorder %s34, 0
      %p339 = por %p337, %p338
      %s341 = sadd.s32 %s340, 1
      %p344 = scmp.eq.s32.totalorder %s28, 1
      %p345 = scmp.ne.s32.totalorder %s340, %s342
      %p346 = scmp.eq.s32.totalorder %s28, 0
      %p347 = por %p345, %p346
      %p348 = scmp.ne.s32.totalorder %s340, %s342
      %p349 = scmp.eq.s32.totalorder %s33, 1
      %p350 = por %p348, %p349
      %p351 = scmp.ne.s32.totalorder %s342, %s343
      %p352 = scmp.eq.s32.totalorder %s33, 0
      %p353 = por %p351, %p352
      %p354 = scmp.ne.s32.totalorder %s342, %s343
      %p355 = scmp.eq.s32.totalorder %s34, 1
      %p356 = por %p354, %p355
      %p358 = scmp.ne.s32.totalorder %s343, %s357
      %p359 = scmp.eq.s32.totalorder %s34, 0
      %p360 = por %p358, %p359
      %s362 = sadd.s32 %s361, 1
      %p365 = scmp.eq.s32.totalorder %s28, 1
      %p366 = scmp.ne.s32.totalorder %s361, %s363
      %p367 = scmp.eq.s32.totalorder %s28, 0
      %p368 = por %p366, %p367
      %p369 = scmp.ne.s32.totalorder %s361, %s363
      %p370 = scmp.eq.s32.totalorder %s33, 1
      %p371 = por %p369, %p370
      %p372 = scmp.ne.s32.totalorder %s363, %s364
      %p373 = scmp.eq.s32.totalorder %s33, 0
      %p374 = por %p372, %p373
      %p375 = scmp.ne.s32.totalorder %s363, %s364
      %p376 = scmp.eq.s32.totalorder %s34, 1
      %p377 = por %p375, %p376
      %p379 = scmp.ne.s32.totalorder %s364, %s378
      %p380 = scmp.eq.s32.totalorder %s34, 0
      %p381 = por %p379, %p380
      %s382 = ssub.s32 %s28, %s35
      %p383 = scmp.eq.s32.totalorder %s382, 0
      %s385 = sadd.s32 %s384, 1
      %s386 = scalar_select %p383, %s384, %s385
      %p389 = pneg %p383
      %p390 = scmp.eq.s32.totalorder %s28, 1
      %p391 = por %p389, %p390
      %p392 = scmp.ne.s32.totalorder %s384, %s387
      %p393 = scmp.eq.s32.totalorder %s28, 0
      %p394 = por %p392, %p393
      %p395 = scmp.ne.s32.totalorder %s384, %s387
      %p396 = scmp.eq.s32.totalorder %s33, 1
      %p397 = por %p395, %p396
      %p398 = scmp.ne.s32.totalorder %s387, %s388
      %p399 = scmp.eq.s32.totalorder %s33, 0
      %p400 = por %p398, %p399
      %p401 = scmp.ne.s32.totalorder %s387, %s388
      %p402 = scmp.eq.s32.totalorder %s34, 1
      %p403 = por %p401, %p402
      %p405 = scmp.ne.s32.totalorder %s388, %s404
      %p406 = scmp.eq.s32.totalorder %s34, 0
      %p407 = por %p405, %p406
      %p408 = scmp.le.s32.totalorder 1, %s28
      %p409 = scmp.lt.s32.totalorder %s28, 3
      %p410 = pnand %p408, %p409
      %p411 = pneg %p410
      // Predicated region
      $region9: #{block_forward.1} parent=5 // pred_check
        _
      $region10: #{block_forward.1} parent=5 // pred_check_branch
        %413 = sbr.rel (%p410) target = $region12
      $region11: #{block_forward.1} parent=5 // pred_region
        %s414 = ssub.s32 %s28, 1
        // Predicated region
        $region13: #{block_forward.1} parent=11 // pred_check
          %p415 = pneg %p101
        $region14: #{block_forward.1} parent=11 // pred_check_branch
          %417 = sbr.rel (%p415) target = $region16
        $region15: #{block_forward.1} parent=11 // pred_region
          _
        $region16: #{block_forward.1} parent=11 // pred_fallthru
          _
        // Predicated region
        $region17: #{block_forward.1} parent=11 // pred_check
          %p418 = pneg %p122
        $region18: #{block_forward.1} parent=11 // pred_check_branch
          %420 = sbr.rel (%p418) target = $region20
        $region19: #{block_forward.1} parent=11 // pred_region
          _
        $region20: #{block_forward.1} parent=11 // pred_fallthru
          _
        // Predicated region
        $region21: #{block_forward.1} parent=11 // pred_check
          %p421 = pneg %p143
        $region22: #{block_forward.1} parent=11 // pred_check_branch
          %423 = sbr.rel (%p421) target = $region24
        $region23: #{block_forward.1} parent=11 // pred_region
          %s425 = ssub.s32 4096, 4096
          %426 = vsyncadd [#allocation4], %s425
          %s427 = sshll.u32 [#allocation3], 4
          %s428 = int_to_ptr.vmem [resolvable:$true] %s427
          %433 = dma.hbm_to_vmem [thread:$0]  %s4, 4096, %s428, [#allocation4], 256, 256, 16
        $region24: #{block_forward.1} parent=11 // pred_fallthru
          _
        // Predicated region
        $region25: #{block_forward.1} parent=11 // pred_check
          %p434 = pneg %p164
        $region26: #{block_forward.1} parent=11 // pred_check_branch
          %436 = sbr.rel (%p434) target = $region28
        $region27: #{block_forward.1} parent=11 // pred_region
          _
        $region28: #{block_forward.1} parent=11 // pred_fallthru
          _
        // Predicated region
        $region29: #{block_forward.1} parent=11 // pred_check
          %p437 = pneg %p185
        $region30: #{block_forward.1} parent=11 // pred_check_branch
          %439 = sbr.rel (%p437) target = $region32
        $region31: #{block_forward.1} parent=11 // pred_region
          _
        $region32: #{block_forward.1} parent=11 // pred_fallthru
          _
        // Predicated region
        $region33: #{block_forward.1} parent=11 // pred_check
          %p440 = pneg %p206
        $region34: #{block_forward.1} parent=11 // pred_check_branch
          %442 = sbr.rel (%p440) target = $region36
        $region35: #{block_forward.1} parent=11 // pred_region
          _
        $region36: #{block_forward.1} parent=11 // pred_fallthru
          _
        // Predicated region
        $region37: #{block_forward.1} parent=11 // pred_check
          %p443 = pneg %p227
        $region38: #{block_forward.1} parent=11 // pred_check_branch
          %445 = sbr.rel (%p443) target = $region40
        $region39: #{block_forward.1} parent=11 // pred_region
          %s447 = ssub.s32 2048, 2048
          %448 = vsyncadd [#allocation7], %s447
          %s449 = sshll.u32 [#allocation6], 4
          %s450 = int_to_ptr.vmem [resolvable:$true] %s449
          %455 = dma.hbm_to_vmem [thread:$0]  %s8, 2048, %s450, [#allocation7], 256, 256, 16
        $region40: #{block_forward.1} parent=11 // pred_fallthru
          _
        // Predicated region
        $region41: #{block_forward.1} parent=11 // pred_check
          %p456 = pneg %p248
        $region42: #{block_forward.1} parent=11 // pred_check_branch
          %458 = sbr.rel (%p456) target = $region44
        $region43: #{block_forward.1} parent=11 // pred_region
          _
        $region44: #{block_forward.1} parent=11 // pred_fallthru
          _
        // Predicated region
        $region45: #{block_forward.1} parent=11 // pred_check
          %p459 = pneg %p269
        $region46: #{block_forward.1} parent=11 // pred_check_branch
          %461 = sbr.rel (%p459) target = $region48
        $region47: #{block_forward.1} parent=11 // pred_region
          _
        $region48: #{block_forward.1} parent=11 // pred_fallthru
          _
        // Predicated region
        $region49: #{block_forward.1} parent=11 // pred_check
          %p462 = pneg %p290
        $region50: #{block_forward.1} parent=11 // pred_check_branch
          %464 = sbr.rel (%p462) target = $region52
        $region51: #{block_forward.1} parent=11 // pred_region
          _
        $region52: #{block_forward.1} parent=11 // pred_fallthru
          _
        // Predicated region
        $region53: #{block_forward.1} parent=11 // pred_check
          %p465 = pneg %p311
        $region54: #{block_forward.1} parent=11 // pred_check_branch
          %467 = sbr.rel (%p465) target = $region56
        $region55: #{block_forward.1} parent=11 // pred_region
          %s469 = ssub.s32 8192, 8192
          %470 = vsyncadd [#allocation7], %s469
          %s471 = sshll.u32 [#allocation8], 4
          %s472 = int_to_ptr.vmem [resolvable:$true] %s471
          %477 = dma.hbm_to_vmem [thread:$0]  %s12, 8192, %s472, [#allocation7], 512, 512, 32
        $region56: #{block_forward.1} parent=11 // pred_fallthru
          _
        // Predicated region
        $region57: #{block_forward.1} parent=11 // pred_check
          %p478 = pneg %p332
        $region58: #{block_forward.1} parent=11 // pred_check_branch
          %480 = sbr.rel (%p478) target = $region60
        $region59: #{block_forward.1} parent=11 // pred_region
          _
        $region60: #{block_forward.1} parent=11 // pred_fallthru
          _
        // Predicated region
        $region61: #{block_forward.1} parent=11 // pred_check
          %p481 = pneg %p353
        $region62: #{block_forward.1} parent=11 // pred_check_branch
          %483 = sbr.rel (%p481) target = $region64
        $region63: #{block_forward.1} parent=11 // pred_region
          %s485 = ssub.s32 8192, 8192
          %486 = vsyncadd [#allocation10], %s485
          %s487 = sshll.u32 [#allocation9], 4
          %s488 = int_to_ptr.vmem [resolvable:$true] %s487
          %493 = dma.hbm_to_vmem [thread:$0]  %s14, 8192, %s488, [#allocation10], 128, 128, 8
        $region64: #{block_forward.1} parent=11 // pred_fallthru
          _
        // Predicated region
        $region65: #{block_forward.1} parent=11 // pred_check
          %p494 = pneg %p374
        $region66: #{block_forward.1} parent=11 // pred_check_branch
          %496 = sbr.rel (%p494) target = $region68
        $region67: #{block_forward.1} parent=11 // pred_region
          _
        $region68: #{block_forward.1} parent=11 // pred_fallthru
          _
      $region12: #{block_forward.1} parent=5 // pred_fallthru
        _
      %p497 = scmp.lt.s32.totalorder %s28, 2
      // Predicated region
      $region69: #{block_forward.1} parent=5 // pred_check
        %p498 = pneg %p497
      $region70: #{block_forward.1} parent=5 // pred_check_branch
        %500 = sbr.rel (%p498) target = $region72
      $region71: #{block_forward.1} parent=5 // pred_region
        // Predicated region
        $region73: #{block_forward.1} parent=71 // pred_check
          %p501 = pneg %p48
        $region74: #{block_forward.1} parent=71 // pred_check_branch
          %503 = sbr.rel (%p501) target = $region76
        $region75: #{block_forward.1} parent=71 // pred_region
          %p504 = scmp.lt.s32.totalorder %s28, 1
          %s505 = scalar_select %p504, %s28, 1
          %s506 = smul.addr %s505, 32
          %s507 = smul.addr %s506, 8
          %s508 = scalar_lea.vmem %s0, %s507
        $region76: #{block_forward.1} parent=71 // pred_fallthru
          _
        // Predicated region
        $region77: #{block_forward.1} parent=71 // pred_check
          %p509 = pneg %p74
        $region78: #{block_forward.1} parent=71 // pred_check_branch
          %511 = sbr.rel (%p509) target = $region80
        $region79: #{block_forward.1} parent=71 // pred_region
          %p512 = scmp.lt.s32.totalorder %s28, 1
          %s513 = scalar_select %p512, %s28, 1
          %s514 = smul.addr %s513, 32
          %s515 = smul.addr %s514, 8
          %s516 = scalar_lea.vmem %s1, %s515
        $region80: #{block_forward.1} parent=71 // pred_fallthru
          _
      $region72: #{block_forward.1} parent=5 // pred_fallthru
        _
      %p517 = scmp.le.s32.totalorder 1, %s28
      %p518 = scmp.lt.s32.totalorder %s28, 3
      %p519 = pnand %p517, %p518
      %p520 = pneg %p519
      // Predicated region
      $region81: #{block_forward.1} parent=5 // pred_check
        _
      $region82: #{block_forward.1} parent=5 // pred_check_branch
        %522 = sbr.rel (%p519) target = $region84
      $region83: #{block_forward.1} parent=5 // pred_region
        %s523 = ssub.s32 %s28, 1
        // Predicated region
        $region85: #{block_forward.1} parent=83 // pred_check
          %p524 = pneg %p143
        $region86: #{block_forward.1} parent=83 // pred_check_branch
          %526 = sbr.rel (%p524) target = $region88
        $region87: #{block_forward.1} parent=83 // pred_region
          %527 = dma.done [#allocation4], 4096
        $region88: #{block_forward.1} parent=83 // pred_fallthru
          _
        // Predicated region
        $region89: #{block_forward.1} parent=83 // pred_check
          %p528 = pneg %p227
        $region90: #{block_forward.1} parent=83 // pred_check_branch
          %530 = sbr.rel (%p528) target = $region92
        $region91: #{block_forward.1} parent=83 // pred_region
          %531 = dma.done [#allocation7], 2048
        $region92: #{block_forward.1} parent=83 // pred_fallthru
          _
        // Predicated region
        $region93: #{block_forward.1} parent=83 // pred_check
          %p532 = pneg %p311
        $region94: #{block_forward.1} parent=83 // pred_check_branch
          %534 = sbr.rel (%p532) target = $region96
        $region95: #{block_forward.1} parent=83 // pred_region
          %535 = dma.done [#allocation7], 8192
        $region96: #{block_forward.1} parent=83 // pred_fallthru
          _
        // Predicated region
        $region97: #{block_forward.1} parent=83 // pred_check
          %p536 = pneg %p353
        $region98: #{block_forward.1} parent=83 // pred_check_branch
          %538 = sbr.rel (%p536) target = $region100
        $region99: #{block_forward.1} parent=83 // pred_region
          %539 = dma.done [#allocation10], 8192
        $region100: #{block_forward.1} parent=83 // pred_fallthru
          _
        %p540 = scmp.lt.s32.totalorder %s33, 1
        %s541 = scalar_select %p540, %s33, 1
        %s542 = smul.addr %s541, 32
        %s543 = smul.addr %s542, 8
        %s544 = scalar_lea.vmem %s0, %s543
        %p545 = pneg %p54
        %p546 = pneg %p51
        %p547 = scmp.lt.s32.totalorder %s33, 1
        %s548 = scalar_select %p547, %s33, 1
        %s549 = smul.addr %s548, 32
        %s550 = smul.addr %s549, 8
        %s551 = scalar_lea.vmem %s1, %s550
        %p552 = pneg %p80
        %p553 = pneg %p77
        %p554 = pneg %p101
        %p555 = pneg %p98
        %p556 = pneg %p122
        %p557 = pneg %p119
        %p558 = pneg %p143
        %p559 = pneg %p140
        %p560 = pneg %p164
        %p561 = pneg %p161
        %p562 = pneg %p185
        %p563 = pneg %p182
        %p564 = pneg %p206
        %p565 = pneg %p203
        %p566 = pneg %p227
        %p567 = pneg %p224
        %p568 = pneg %p248
        %p569 = pneg %p245
        %p570 = pneg %p269
        %p571 = pneg %p266
        %p572 = pneg %p290
        %p573 = pneg %p287
        %p574 = pneg %p311
        %p575 = pneg %p308
        %p576 = pneg %p332
        %p577 = pneg %p329
        %p578 = pneg %p353
        %p579 = pneg %p350
        %p580 = pneg %p374
        %p581 = pneg %p371
        %p582 = pneg %p400
        %p583 = pneg %p397
        %s584 = sand.u32 %s387, 1
        %s585 = scalar_lea.sflag [#allocation5], %s584
        %s586 = sand.u32 %s387, 1
        %s587 = smul.addr %s586, 256
        %s588 = scalar_lea.vmem [#allocation11], %s587
        %p589 = scmp.lt.s32.totalorder %s33, 1
        %s590 = scalar_select %p589, %s33, 1
        %s591 = smul.addr %s590, 32
        %s592 = smul.addr %s591, 8
        %s593 = scalar_lea.vmem %s0, %s592
        %p594 = scmp.lt.s32.totalorder %s33, 1
        %s595 = scalar_select %p594, %s33, 1
        %s596 = smul.addr %s595, 32
        %s597 = smul.addr %s596, 8
        %s598 = scalar_lea.vmem %s1, %s597
        %v599 = vld [vmem:[%s593] sm:$0xff]
        %v600 = vld [vmem:[%s593 + $0x8] sm:$0xff]
        %v601 = vld [vmem:[%s593 + $0x10] sm:$0xff]
        %v602 = vld [vmem:[%s593 + $0x18] sm:$0xff]
        %v603 = vld [vmem:[%s593 + $0x20] sm:$0xff]
        %v604 = vld [vmem:[%s593 + $0x28] sm:$0xff]
        %v605 = vld [vmem:[%s593 + $0x30] sm:$0xff]
        %v606 = vld [vmem:[%s593 + $0x38] sm:$0xff]
        %v607 = vld [vmem:[%s593 + $0x40] sm:$0xff]
        %v608 = vld [vmem:[%s593 + $0x48] sm:$0xff]
        %v609 = vld [vmem:[%s593 + $0x50] sm:$0xff]
        %v610 = vld [vmem:[%s593 + $0x58] sm:$0xff]
        %v611 = vld [vmem:[%s593 + $0x60] sm:$0xff]
        %v612 = vld [vmem:[%s593 + $0x68] sm:$0xff]
        %v613 = vld [vmem:[%s593 + $0x70] sm:$0xff]
        %v614 = vld [vmem:[%s593 + $0x78] sm:$0xff]
        %v615 = vld [vmem:[%s593 + $0x80] sm:$0xff]
        %v616 = vld [vmem:[%s593 + $0x88] sm:$0xff]
        %v617 = vld [vmem:[%s593 + $0x90] sm:$0xff]
        %v618 = vld [vmem:[%s593 + $0x98] sm:$0xff]
        %v619 = vld [vmem:[%s593 + $0xa0] sm:$0xff]
        %v620 = vld [vmem:[%s593 + $0xa8] sm:$0xff]
        %v621 = vld [vmem:[%s593 + $0xb0] sm:$0xff]
        %v622 = vld [vmem:[%s593 + $0xb8] sm:$0xff]
        %v623 = vld [vmem:[%s593 + $0xc0] sm:$0xff]
        %v624 = vld [vmem:[%s593 + $0xc8] sm:$0xff]
        %v625 = vld [vmem:[%s593 + $0xd0] sm:$0xff]
        %v626 = vld [vmem:[%s593 + $0xd8] sm:$0xff]
        %v627 = vld [vmem:[%s593 + $0xe0] sm:$0xff]
        %v628 = vld [vmem:[%s593 + $0xe8] sm:$0xff]
        %v629 = vld [vmem:[%s593 + $0xf0] sm:$0xff]
        %v630 = vld [vmem:[%s593 + $0xf8] sm:$0xff]
        %v631 = vld [vmem:[%s2] sm:$0x1]
        %v632 = vld [vmem:[%s3] sm:$0x1]
        %633 = vadd.xlane.f32.xlu0 %v599
        %v634 = vpop.xlane.xlu0 %633
        %635 = vadd.xlane.f32.xlu0 %v600
        %v636 = vpop.xlane.xlu0 %635
        %637 = vadd.xlane.f32.xlu0 %v601
        %v638 = vpop.xlane.xlu0 %637
        %639 = vadd.xlane.f32.xlu0 %v602
        %v640 = vpop.xlane.xlu0 %639
        %641 = vadd.xlane.f32.xlu0 %v603
        %v642 = vpop.xlane.xlu0 %641
        %643 = vadd.xlane.f32.xlu0 %v604
        %v644 = vpop.xlane.xlu0 %643
        %645 = vadd.xlane.f32.xlu0 %v605
        %v646 = vpop.xlane.xlu0 %645
        %647 = vadd.xlane.f32.xlu0 %v606
        %v648 = vpop.xlane.xlu0 %647
        %649 = vadd.xlane.f32.xlu0 %v607
        %v650 = vpop.xlane.xlu0 %649
        %651 = vadd.xlane.f32.xlu0 %v608
        %v652 = vpop.xlane.xlu0 %651
        %653 = vadd.xlane.f32.xlu0 %v609
        %v654 = vpop.xlane.xlu0 %653
        %655 = vadd.xlane.f32.xlu0 %v610
        %v656 = vpop.xlane.xlu0 %655
        %657 = vadd.xlane.f32.xlu0 %v611
        %v658 = vpop.xlane.xlu0 %657
        %659 = vadd.xlane.f32.xlu0 %v612
        %v660 = vpop.xlane.xlu0 %659
        %661 = vadd.xlane.f32.xlu0 %v613
        %v662 = vpop.xlane.xlu0 %661
        %663 = vadd.xlane.f32.xlu0 %v614
        %v664 = vpop.xlane.xlu0 %663
        %665 = vadd.xlane.f32.xlu0 %v615
        %v666 = vpop.xlane.xlu0 %665
        %667 = vadd.xlane.f32.xlu0 %v616
        %v668 = vpop.xlane.xlu0 %667
        %669 = vadd.xlane.f32.xlu0 %v617
        %v670 = vpop.xlane.xlu0 %669
        %671 = vadd.xlane.f32.xlu0 %v618
        %v672 = vpop.xlane.xlu0 %671
        %673 = vadd.xlane.f32.xlu0 %v619
        %v674 = vpop.xlane.xlu0 %673
        %675 = vadd.xlane.f32.xlu0 %v620
        %v676 = vpop.xlane.xlu0 %675
        %677 = vadd.xlane.f32.xlu0 %v621
        %v678 = vpop.xlane.xlu0 %677
        %679 = vadd.xlane.f32.xlu0 %v622
        %v680 = vpop.xlane.xlu0 %679
        %681 = vadd.xlane.f32.xlu0 %v623
        %v682 = vpop.xlane.xlu0 %681
        %683 = vadd.xlane.f32.xlu0 %v624
        %v684 = vpop.xlane.xlu0 %683
        %685 = vadd.xlane.f32.xlu0 %v625
        %v686 = vpop.xlane.xlu0 %685
        %687 = vadd.xlane.f32.xlu0 %v626
        %v688 = vpop.xlane.xlu0 %687
        %689 = vadd.xlane.f32.xlu0 %v627
        %v690 = vpop.xlane.xlu0 %689
        %691 = vadd.xlane.f32.xlu0 %v628
        %v692 = vpop.xlane.xlu0 %691
        %693 = vadd.xlane.f32.xlu0 %v629
        %v694 = vpop.xlane.xlu0 %693
        %695 = vadd.xlane.f32.xlu0 %v630
        %v696 = vpop.xlane.xlu0 %695
        %v697 = vrcp.pop 128.0
        %v698 = vmul.f32 %v634, %v697
        %v699 = vmul.f32 %v636, %v697
        %v700 = vmul.f32 %v638, %v697
        %v701 = vmul.f32 %v640, %v697
        %v702 = vmul.f32 %v642, %v697
        %v703 = vmul.f32 %v644, %v697
        %v704 = vmul.f32 %v646, %v697
        %v705 = vmul.f32 %v648, %v697
        %v706 = vmul.f32 %v650, %v697
        %v707 = vmul.f32 %v652, %v697
        %v708 = vmul.f32 %v654, %v697
        %v709 = vmul.f32 %v656, %v697
        %v710 = vmul.f32 %v658, %v697
        %v711 = vmul.f32 %v660, %v697
        %v712 = vmul.f32 %v662, %v697
        %v713 = vmul.f32 %v664, %v697
        %v714 = vmul.f32 %v666, %v697
        %v715 = vmul.f32 %v668, %v697
        %v716 = vmul.f32 %v670, %v697
        %v717 = vmul.f32 %v672, %v697
        %v718 = vmul.f32 %v674, %v697
        %v719 = vmul.f32 %v676, %v697
        %v720 = vmul.f32 %v678, %v697
        %v721 = vmul.f32 %v680, %v697
        %v722 = vmul.f32 %v682, %v697
        %v723 = vmul.f32 %v684, %v697
        %v724 = vmul.f32 %v686, %v697
        %v725 = vmul.f32 %v688, %v697
        %v726 = vmul.f32 %v690, %v697
        %v727 = vmul.f32 %v692, %v697
        %v728 = vmul.f32 %v694, %v697
        %v729 = vmul.f32 %v696, %v697
        %v730 = vsub.f32 %v599, %v698
        %v731 = vsub.f32 %v600, %v699
        %v732 = vsub.f32 %v601, %v700
        %v733 = vsub.f32 %v602, %v701
        %v734 = vsub.f32 %v603, %v702
        %v735 = vsub.f32 %v604, %v703
        %v736 = vsub.f32 %v605, %v704
        %v737 = vsub.f32 %v606, %v705
        %v738 = vsub.f32 %v607, %v706
        %v739 = vsub.f32 %v608, %v707
        %v740 = vsub.f32 %v609, %v708
        %v741 = vsub.f32 %v610, %v709
        %v742 = vsub.f32 %v611, %v710
        %v743 = vsub.f32 %v612, %v711
        %v744 = vsub.f32 %v613, %v712
        %v745 = vsub.f32 %v614, %v713
        %v746 = vsub.f32 %v615, %v714
        %v747 = vsub.f32 %v616, %v715
        %v748 = vsub.f32 %v617, %v716
        %v749 = vsub.f32 %v618, %v717
        %v750 = vsub.f32 %v619, %v718
        %v751 = vsub.f32 %v620, %v719
        %v752 = vsub.f32 %v621, %v720
        %v753 = vsub.f32 %v622, %v721
        %v754 = vsub.f32 %v623, %v722
        %v755 = vsub.f32 %v624, %v723
        %v756 = vsub.f32 %v625, %v724
        %v757 = vsub.f32 %v626, %v725
        %v758 = vsub.f32 %v627, %v726
        %v759 = vsub.f32 %v628, %v727
        %v760 = vsub.f32 %v629, %v728
        %v761 = vsub.f32 %v630, %v729
        %v762 = vmul.f32 %v730, %v730
        %v763 = vmul.f32 %v731, %v731
        %v764 = vmul.f32 %v732, %v732
        %v765 = vmul.f32 %v733, %v733
        %v766 = vmul.f32 %v734, %v734
        %v767 = vmul.f32 %v735, %v735
        %v768 = vmul.f32 %v736, %v736
        %v769 = vmul.f32 %v737, %v737
        %v770 = vmul.f32 %v738, %v738
        %v771 = vmul.f32 %v739, %v739
        %v772 = vmul.f32 %v740, %v740
        %v773 = vmul.f32 %v741, %v741
        %v774 = vmul.f32 %v742, %v742
        %v775 = vmul.f32 %v743, %v743
        %v776 = vmul.f32 %v744, %v744
        %v777 = vmul.f32 %v745, %v745
        %v778 = vmul.f32 %v746, %v746
        %v779 = vmul.f32 %v747, %v747
        %v780 = vmul.f32 %v748, %v748
        %v781 = vmul.f32 %v749, %v749
        %v782 = vmul.f32 %v750, %v750
        %v783 = vmul.f32 %v751, %v751
        %v784 = vmul.f32 %v752, %v752
        %v785 = vmul.f32 %v753, %v753
        %v786 = vmul.f32 %v754, %v754
        %v787 = vmul.f32 %v755, %v755
        %v788 = vmul.f32 %v756, %v756
        %v789 = vmul.f32 %v757, %v757
        %v790 = vmul.f32 %v758, %v758
        %v791 = vmul.f32 %v759, %v759
        %v792 = vmul.f32 %v760, %v760
        %v793 = vmul.f32 %v761, %v761
        %794 = vadd.xlane.f32.xlu0 %v762
        %v795 = vpop.xlane.xlu0 %794
        %796 = vadd.xlane.f32.xlu0 %v763
        %v797 = vpop.xlane.xlu0 %796
        %798 = vadd.xlane.f32.xlu0 %v764
        %v799 = vpop.xlane.xlu0 %798
        %800 = vadd.xlane.f32.xlu0 %v765
        %v801 = vpop.xlane.xlu0 %800
        %802 = vadd.xlane.f32.xlu0 %v766
        %v803 = vpop.xlane.xlu0 %802
        %804 = vadd.xlane.f32.xlu0 %v767
        %v805 = vpop.xlane.xlu0 %804
        %806 = vadd.xlane.f32.xlu0 %v768
        %v807 = vpop.xlane.xlu0 %806
        %808 = vadd.xlane.f32.xlu0 %v769
        %v809 = vpop.xlane.xlu0 %808
        %810 = vadd.xlane.f32.xlu0 %v770
        %v811 = vpop.xlane.xlu0 %810
        %812 = vadd.xlane.f32.xlu0 %v771
        %v813 = vpop.xlane.xlu0 %812
        %814 = vadd.xlane.f32.xlu0 %v772
        %v815 = vpop.xlane.xlu0 %814
        %816 = vadd.xlane.f32.xlu0 %v773
        %v817 = vpop.xlane.xlu0 %816
        %818 = vadd.xlane.f32.xlu0 %v774
        %v819 = vpop.xlane.xlu0 %818
        %820 = vadd.xlane.f32.xlu0 %v775
        %v821 = vpop.xlane.xlu0 %820
        %822 = vadd.xlane.f32.xlu0 %v776
        %v823 = vpop.xlane.xlu0 %822
        %824 = vadd.xlane.f32.xlu0 %v777
        %v825 = vpop.xlane.xlu0 %824
        %826 = vadd.xlane.f32.xlu0 %v778
        %v827 = vpop.xlane.xlu0 %826
        %828 = vadd.xlane.f32.xlu0 %v779
        %v829 = vpop.xlane.xlu0 %828
        %830 = vadd.xlane.f32.xlu0 %v780
        %v831 = vpop.xlane.xlu0 %830
        %832 = vadd.xlane.f32.xlu0 %v781
        %v833 = vpop.xlane.xlu0 %832
        %834 = vadd.xlane.f32.xlu0 %v782
        %v835 = vpop.xlane.xlu0 %834
        %836 = vadd.xlane.f32.xlu0 %v783
        %v837 = vpop.xlane.xlu0 %836
        %838 = vadd.xlane.f32.xlu0 %v784
        %v839 = vpop.xlane.xlu0 %838
        %840 = vadd.xlane.f32.xlu0 %v785
        %v841 = vpop.xlane.xlu0 %840
        %842 = vadd.xlane.f32.xlu0 %v786
        %v843 = vpop.xlane.xlu0 %842
        %844 = vadd.xlane.f32.xlu0 %v787
        %v845 = vpop.xlane.xlu0 %844
        %846 = vadd.xlane.f32.xlu0 %v788
        %v847 = vpop.xlane.xlu0 %846
        %848 = vadd.xlane.f32.xlu0 %v789
        %v849 = vpop.xlane.xlu0 %848
        %850 = vadd.xlane.f32.xlu0 %v790
        %v851 = vpop.xlane.xlu0 %850
        %852 = vadd.xlane.f32.xlu0 %v791
        %v853 = vpop.xlane.xlu0 %852
        %854 = vadd.xlane.f32.xlu0 %v792
        %v855 = vpop.xlane.xlu0 %854
        %856 = vadd.xlane.f32.xlu0 %v793
        %v857 = vpop.xlane.xlu0 %856
        %v858 = vmul.f32 %v795, %v697
        %v859 = vmul.f32 %v797, %v697
        %v860 = vmul.f32 %v799, %v697
        %v861 = vmul.f32 %v801, %v697
        %v862 = vmul.f32 %v803, %v697
        %v863 = vmul.f32 %v805, %v697
        %v864 = vmul.f32 %v807, %v697
        %v865 = vmul.f32 %v809, %v697
        %v866 = vmul.f32 %v811, %v697
        %v867 = vmul.f32 %v813, %v697
        %v868 = vmul.f32 %v815, %v697
        %v869 = vmul.f32 %v817, %v697
        %v870 = vmul.f32 %v819, %v697
        %v871 = vmul.f32 %v821, %v697
        %v872 = vmul.f32 %v823, %v697
        %v873 = vmul.f32 %v825, %v697
        %v874 = vmul.f32 %v827, %v697
        %v875 = vmul.f32 %v829, %v697
        %v876 = vmul.f32 %v831, %v697
        %v877 = vmul.f32 %v833, %v697
        %v878 = vmul.f32 %v835, %v697
        %v879 = vmul.f32 %v837, %v697
        %v880 = vmul.f32 %v839, %v697
        %v881 = vmul.f32 %v841, %v697
        %v882 = vmul.f32 %v843, %v697
        %v883 = vmul.f32 %v845, %v697
        %v884 = vmul.f32 %v847, %v697
        %v885 = vmul.f32 %v849, %v697
        %v886 = vmul.f32 %v851, %v697
        %v887 = vmul.f32 %v853, %v697
        %v888 = vmul.f32 %v855, %v697
        %v889 = vmul.f32 %v857, %v697
        %v890 = vadd.f32 %v858, 1e-05
        %v891 = vadd.f32 %v859, 1e-05
        %v892 = vadd.f32 %v860, 1e-05
        %v893 = vadd.f32 %v861, 1e-05
        %v894 = vadd.f32 %v862, 1e-05
        %v895 = vadd.f32 %v863, 1e-05
        %v896 = vadd.f32 %v864, 1e-05
        %v897 = vadd.f32 %v865, 1e-05
        %v898 = vadd.f32 %v866, 1e-05
        %v899 = vadd.f32 %v867, 1e-05
        %v900 = vadd.f32 %v868, 1e-05
        %v901 = vadd.f32 %v869, 1e-05
        %v902 = vadd.f32 %v870, 1e-05
        %v903 = vadd.f32 %v871, 1e-05
        %v904 = vadd.f32 %v872, 1e-05
        %v905 = vadd.f32 %v873, 1e-05
        %v906 = vadd.f32 %v874, 1e-05
        %v907 = vadd.f32 %v875, 1e-05
        %v908 = vadd.f32 %v876, 1e-05
        %v909 = vadd.f32 %v877, 1e-05
        %v910 = vadd.f32 %v878, 1e-05
        %v911 = vadd.f32 %v879, 1e-05
        %v912 = vadd.f32 %v880, 1e-05
        %v913 = vadd.f32 %v881, 1e-05
        %v914 = vadd.f32 %v882, 1e-05
        %v915 = vadd.f32 %v883, 1e-05
        %v916 = vadd.f32 %v884, 1e-05
        %v917 = vadd.f32 %v885, 1e-05
        %v918 = vadd.f32 %v886, 1e-05
        %v919 = vadd.f32 %v887, 1e-05
        %v920 = vadd.f32 %v888, 1e-05
        %v921 = vadd.f32 %v889, 1e-05
        %v922 = vrsqrt.pop %v890
        %v923 = vrsqrt.pop %v891
        %v924 = vrsqrt.pop %v892
        %v925 = vrsqrt.pop %v893
        %v926 = vrsqrt.pop %v894
        %v927 = vrsqrt.pop %v895
        %v928 = vrsqrt.pop %v896
        %v929 = vrsqrt.pop %v897
        %v930 = vrsqrt.pop %v898
        %v931 = vrsqrt.pop %v899
        %v932 = vrsqrt.pop %v900
        %v933 = vrsqrt.pop %v901
        %v934 = vrsqrt.pop %v902
        %v935 = vrsqrt.pop %v903
        %v936 = vrsqrt.pop %v904
        %v937 = vrsqrt.pop %v905
        %v938 = vrsqrt.pop %v906
        %v939 = vrsqrt.pop %v907
        %v940 = vrsqrt.pop %v908
        %v941 = vrsqrt.pop %v909
        %v942 = vrsqrt.pop %v910
        %v943 = vrsqrt.pop %v911
        %v944 = vrsqrt.pop %v912
        %v945 = vrsqrt.pop %v913
        %v946 = vrsqrt.pop %v914
        %v947 = vrsqrt.pop %v915
        %v948 = vrsqrt.pop %v916
        %v949 = vrsqrt.pop %v917
        %v950 = vrsqrt.pop %v918
        %v951 = vrsqrt.pop %v919
        %v952 = vrsqrt.pop %v920
        %v953 = vrsqrt.pop %v921
        %v954 = vmul.f32 %v730, %v922
        %v955 = vmul.f32 %v731, %v923
        %v956 = vmul.f32 %v732, %v924
        %v957 = vmul.f32 %v733, %v925
        %v958 = vmul.f32 %v734, %v926
        %v959 = vmul.f32 %v735, %v927
        %v960 = vmul.f32 %v736, %v928
        %v961 = vmul.f32 %v737, %v929
        %v962 = vmul.f32 %v738, %v930
        %v963 = vmul.f32 %v739, %v931
        %v964 = vmul.f32 %v740, %v932
        %v965 = vmul.f32 %v741, %v933
        %v966 = vmul.f32 %v742, %v934
        %v967 = vmul.f32 %v743, %v935
        %v968 = vmul.f32 %v744, %v936
        %v969 = vmul.f32 %v745, %v937
        %v970 = vmul.f32 %v746, %v938
        %v971 = vmul.f32 %v747, %v939
        %v972 = vmul.f32 %v748, %v940
        %v973 = vmul.f32 %v749, %v941
        %v974 = vmul.f32 %v750, %v942
        %v975 = vmul.f32 %v751, %v943
        %v976 = vmul.f32 %v752, %v944
        %v977 = vmul.f32 %v753, %v945
        %v978 = vmul.f32 %v754, %v946
        %v979 = vmul.f32 %v755, %v947
        %v980 = vmul.f32 %v756, %v948
        %v981 = vmul.f32 %v757, %v949
        %v982 = vmul.f32 %v758, %v950
        %v983 = vmul.f32 %v759, %v951
        %v984 = vmul.f32 %v760, %v952
        %v985 = vmul.f32 %v761, %v953
        %v987 = vlaneseq
        %v988 = vshrl.u32 %v987, 7
        %v989 = vsub.s32 0, %v988
        %v990 = vrot.slane %v631, %v989
        %v992 = vmul.f32 %v954, %v990
        %v993 = vmul.f32 %v955, %v990
        %v994 = vmul.f32 %v956, %v990
        %v995 = vmul.f32 %v957, %v990
        %v996 = vmul.f32 %v958, %v990
        %v997 = vmul.f32 %v959, %v990
        %v998 = vmul.f32 %v960, %v990
        %v999 = vmul.f32 %v961, %v990
        %v1000 = vmul.f32 %v962, %v990
        %v1001 = vmul.f32 %v963, %v990
        %v1002 = vmul.f32 %v964, %v990
        %v1003 = vmul.f32 %v965, %v990
        %v1004 = vmul.f32 %v966, %v990
        %v1005 = vmul.f32 %v967, %v990
        %v1006 = vmul.f32 %v968, %v990
        %v1007 = vmul.f32 %v969, %v990
        %v1008 = vmul.f32 %v970, %v990
        %v1009 = vmul.f32 %v971, %v990
        %v1010 = vmul.f32 %v972, %v990
        %v1011 = vmul.f32 %v973, %v990
        %v1012 = vmul.f32 %v974, %v990
        %v1013 = vmul.f32 %v975, %v990
        %v1014 = vmul.f32 %v976, %v990
        %v1015 = vmul.f32 %v977, %v990
        %v1016 = vmul.f32 %v978, %v990
        %v1017 = vmul.f32 %v979, %v990
        %v1018 = vmul.f32 %v980, %v990
        %v1019 = vmul.f32 %v981, %v990
        %v1020 = vmul.f32 %v982, %v990
        %v1021 = vmul.f32 %v983, %v990
        %v1022 = vmul.f32 %v984, %v990
        %v1023 = vmul.f32 %v985, %v990
        %v1025 = vlaneseq
        %v1026 = vshrl.u32 %v1025, 7
        %v1027 = vsub.s32 0, %v1026
        %v1028 = vrot.slane %v632, %v1027
        %v1030 = vadd.f32 %v992, %v1028
        %v1031 = vadd.f32 %v993, %v1028
        %v1032 = vadd.f32 %v994, %v1028
        %v1033 = vadd.f32 %v995, %v1028
        %v1034 = vadd.f32 %v996, %v1028
        %v1035 = vadd.f32 %v997, %v1028
        %v1036 = vadd.f32 %v998, %v1028
        %v1037 = vadd.f32 %v999, %v1028
        %v1038 = vadd.f32 %v1000, %v1028
        %v1039 = vadd.f32 %v1001, %v1028
        %v1040 = vadd.f32 %v1002, %v1028
        %v1041 = vadd.f32 %v1003, %v1028
        %v1042 = vadd.f32 %v1004, %v1028
        %v1043 = vadd.f32 %v1005, %v1028
        %v1044 = vadd.f32 %v1006, %v1028
        %v1045 = vadd.f32 %v1007, %v1028
        %v1046 = vadd.f32 %v1008, %v1028
        %v1047 = vadd.f32 %v1009, %v1028
        %v1048 = vadd.f32 %v1010, %v1028
        %v1049 = vadd.f32 %v1011, %v1028
        %v1050 = vadd.f32 %v1012, %v1028
        %v1051 = vadd.f32 %v1013, %v1028
        %v1052 = vadd.f32 %v1014, %v1028
        %v1053 = vadd.f32 %v1015, %v1028
        %v1054 = vadd.f32 %v1016, %v1028
        %v1055 = vadd.f32 %v1017, %v1028
        %v1056 = vadd.f32 %v1018, %v1028
        %v1057 = vadd.f32 %v1019, %v1028
        %v1058 = vadd.f32 %v1020, %v1028
        %v1059 = vadd.f32 %v1021, %v1028
        %v1060 = vadd.f32 %v1022, %v1028
        %v1061 = vadd.f32 %v1023, %v1028
        %v1062 = vld [vmem:[#allocation3] sm:$0xff]
        %v1063 = vld [vmem:[#allocation3 + $0x8] sm:$0xff]
        %v1064 = vld [vmem:[#allocation3 + $0x10] sm:$0xff]
        %v1065 = vld [vmem:[#allocation3 + $0x18] sm:$0xff]
        %v1066 = vld [vmem:[#allocation3 + $0x20] sm:$0xff]
        %v1067 = vld [vmem:[#allocation3 + $0x28] sm:$0xff]
        %v1068 = vld [vmem:[#allocation3 + $0x30] sm:$0xff]
        %v1069 = vld [vmem:[#allocation3 + $0x38] sm:$0xff]
        %v1070 = vld [vmem:[#allocation3 + $0x40] sm:$0xff]
        %v1071 = vld [vmem:[#allocation3 + $0x48] sm:$0xff]
        %v1072 = vld [vmem:[#allocation3 + $0x50] sm:$0xff]
        %v1073 = vld [vmem:[#allocation3 + $0x58] sm:$0xff]
        %v1074 = vld [vmem:[#allocation3 + $0x60] sm:$0xff]
        %v1075 = vld [vmem:[#allocation3 + $0x68] sm:$0xff]
        %v1076 = vld [vmem:[#allocation3 + $0x70] sm:$0xff]
        %v1077 = vld [vmem:[#allocation3 + $0x78] sm:$0xff]
        %v1078 = vld [vmem:[#allocation3 + $0x80] sm:$0xff]
        %v1079 = vld [vmem:[#allocation3 + $0x88] sm:$0xff]
        %v1080 = vld [vmem:[#allocation3 + $0x90] sm:$0xff]
        %v1081 = vld [vmem:[#allocation3 + $0x98] sm:$0xff]
        %v1082 = vld [vmem:[#allocation3 + $0xa0] sm:$0xff]
        %v1083 = vld [vmem:[#allocation3 + $0xa8] sm:$0xff]
        %v1084 = vld [vmem:[#allocation3 + $0xb0] sm:$0xff]
        %v1085 = vld [vmem:[#allocation3 + $0xb8] sm:$0xff]
        %v1086 = vld [vmem:[#allocation3 + $0xc0] sm:$0xff]
        %v1087 = vld [vmem:[#allocation3 + $0xc8] sm:$0xff]
        %v1088 = vld [vmem:[#allocation3 + $0xd0] sm:$0xff]
        %v1089 = vld [vmem:[#allocation3 + $0xd8] sm:$0xff]
        %v1090 = vld [vmem:[#allocation3 + $0xe0] sm:$0xff]
        %v1091 = vld [vmem:[#allocation3 + $0xe8] sm:$0xff]
        %v1092 = vld [vmem:[#allocation3 + $0xf0] sm:$0xff]
        %v1093 = vld [vmem:[#allocation3 + $0xf8] sm:$0xff]
        %v1094 = vld [vmem:[%s5] sm:$0x3]
        %v1096 = vlaneseq
        %v1097 = vshrl.u32 %v1096, 7
        %v1098 = vsub.s32 0, %v1097
        %v1099 = vrot.slane %v1094, %v1098
        %v1100 = vlaneseq
        %v1101 = vshrl.u32 %v1100, 7
        %v1102 = vsub.s32 1, %v1101
        %v1103 = vrot.slane %v1094, %v1102
        %1106 = vmatprep.subr.mxu0 %v1063
        %1107 = vmatpush1.msra.mxu0 %v1062
        %1108 = vmatprep.subr.mxu0 %v1065
        %1109 = vmatpush1.msra.mxu0 %v1064
        %1110 = vmatprep.subr.mxu0 %v1067
        %1111 = vmatpush1.msra.mxu0 %v1066
        %1112 = vmatprep.subr.mxu0 %v1069
        %1113 = vmatpush1.msra.mxu0 %v1068
        %1114 = vmatprep.subr.mxu0 %v1071
        %1115 = vmatpush1.msra.mxu0 %v1070
        %1116 = vmatprep.subr.mxu0 %v1073
        %1117 = vmatpush1.msra.mxu0 %v1072
        %1118 = vmatprep.subr.mxu0 %v1075
        %1119 = vmatpush1.msra.mxu0 %v1074
        %1120 = vmatprep.subr.mxu0 %v1077
        %1121 = vmatpush1.msra.mxu0 %v1076
        %1122 = vmatprep.subr.mxu0 %v1079
        %1123 = vmatpush1.msra.mxu0 %v1078
        %1124 = vmatprep.subr.mxu0 %v1081
        %1125 = vmatpush1.msra.mxu0 %v1080
        %1126 = vmatprep.subr.mxu0 %v1083
        %1127 = vmatpush1.msra.mxu0 %v1082
        %1128 = vmatprep.subr.mxu0 %v1085
        %1129 = vmatpush1.msra.mxu0 %v1084
        %1130 = vmatprep.subr.mxu0 %v1087
        %1131 = vmatpush1.msra.mxu0 %v1086
        %1132 = vmatprep.subr.mxu0 %v1089
        %1133 = vmatpush1.msra.mxu0 %v1088
        %1134 = vmatprep.subr.mxu0 %v1091
        %1135 = vmatpush1.msra.mxu0 %v1090
        %1136 = vmatprep.subr.mxu0 %v1093
        %1137 = vmatpush1.msra.mxu0 %v1092
        %1138 = vmatprep.subr.mxu0 0.0
        %1139 = vmatpush1.msra.mxu0 0.0
        %1140 = vmatprep.subr.mxu0 0.0
        %1141 = vmatpush1.msra.mxu0 0.0
        %1142 = vmatprep.subr.mxu0 0.0
        %1143 = vmatpush1.msra.mxu0 0.0
        %1144 = vmatprep.subr.mxu0 0.0
        %1145 = vmatpush1.msra.mxu0 0.0
        %1146 = vmatprep.subr.mxu0 0.0
        %1147 = vmatpush1.msra.mxu0 0.0
        %1148 = vmatprep.subr.mxu0 0.0
        %1149 = vmatpush1.msra.mxu0 0.0
        %1150 = vmatprep.subr.mxu0 0.0
        %1151 = vmatpush1.msra.mxu0 0.0
        %1152 = vmatprep.subr.mxu0 0.0
        %1153 = vmatpush1.msra.mxu0 0.0
        %1154 = vmatprep.subr.mxu0 0.0
        %1155 = vmatpush1.msra.mxu0 0.0
        %1156 = vmatprep.subr.mxu0 0.0
        %1157 = vmatpush1.msra.mxu0 0.0
        %1158 = vmatprep.subr.mxu0 0.0
        %1159 = vmatpush1.msra.mxu0 0.0
        %1160 = vmatprep.subr.mxu0 0.0
        %1161 = vmatpush1.msra.mxu0 0.0
        %1162 = vmatprep.subr.mxu0 0.0
        %1163 = vmatpush1.msra.mxu0 0.0
        %1164 = vmatprep.subr.mxu0 0.0
        %1165 = vmatpush1.msra.mxu0 0.0
        %1166 = vmatprep.subr.mxu0 0.0
        %1167 = vmatpush1.msra.mxu0 0.0
        %1168 = vmatprep.subr.mxu0 0.0
        %1169 = vmatpush1.msra.mxu0 0.0
        %1170 = vmatprep.mubr.f32.mxu0 0.0
        %1171 = vmatmul.mubr.f32.gmra.mrb[0].mxu0 %v1030
        %v1172 = vpop.f32.mrb[0].mxu0
        %v1173 = vadd.f32 %v1099, %v1172
        %v1174 = vpop.f32.mrb[0].mxu0
        %v1175 = vadd.f32 %v1103, %v1174
        %1176 = vmatprep.mubr.f32.mxu0 0.0
        %1177 = vmatmul.mubr.f32.gmra.mrb[0].mxu0 %v1031
        %v1178 = vpop.f32.mrb[0].mxu0
        %v1179 = vadd.f32 %v1099, %v1178
        %v1180 = vpop.f32.mrb[0].mxu0
        %v1181 = vadd.f32 %v1103, %v1180
        %1182 = vmatprep.mubr.f32.mxu0 0.0
        %1183 = vmatmul.mubr.f32.gmra.mrb[0].mxu0 %v1032
        %v1184 = vpop.f32.mrb[0].mxu0
        %v1185 = vadd.f32 %v1099, %v1184
        %v1186 = vpop.f32.mrb[0].mxu0
        %v1187 = vadd.f32 %v1103, %v1186
        %1188 = vmatprep.mubr.f32.mxu0 0.0
        %1189 = vmatmul.mubr.f32.gmra.mrb[0].mxu0 %v1033
        %v1190 = vpop.f32.mrb[0].mxu0
        %v1191 = vadd.f32 %v1099, %v1190
        %v1192 = vpop.f32.mrb[0].mxu0
        %v1193 = vadd.f32 %v1103, %v1192
        %1194 = vmatprep.mubr.f32.mxu0 0.0
        %1195 = vmatmul.mubr.f32.gmra.mrb[0].mxu0 %v1034
        %v1196 = vpop.f32.mrb[0].mxu0
        %v1197 = vadd.f32 %v1099, %v1196
        %v1198 = vpop.f32.mrb[0].mxu0
        %v1199 = vadd.f32 %v1103, %v1198
        %1200 = vmatprep.mubr.f32.mxu0 0.0
        %1201 = vmatmul.mubr.f32.gmra.mrb[0].mxu0 %v1035
        %v1202 = vpop.f32.mrb[0].mxu0
        %v1203 = vadd.f32 %v1099, %v1202
        %v1204 = vpop.f32.mrb[0].mxu0
        %v1205 = vadd.f32 %v1103, %v1204
        %1206 = vmatprep.mubr.f32.mxu0 0.0
        %1207 = vmatmul.mubr.f32.gmra.mrb[0].mxu0 %v1036
        %v1208 = vpop.f32.mrb[0].mxu0
        %v1209 = vadd.f32 %v1099, %v1208
        %v1210 = vpop.f32.mrb[0].mxu0
        %v1211 = vadd.f32 %v1103, %v1210
        %1212 = vmatprep.mubr.f32.mxu0 0.0
        %1213 = vmatmul.mubr.f32.gmra.mrb[0].mxu0 %v1037
        %v1214 = vpop.f32.mrb[0].mxu0
        %v1215 = vadd.f32 %v1099, %v1214
        %v1216 = vpop.f32.mrb[0].mxu0
        %v1217 = vadd.f32 %v1103, %v1216
        %1218 = vmatprep.mubr.f32.mxu0 0.0
        %1219 = vmatmul.mubr.f32.gmra.mrb[0].mxu0 %v1038
        %v1220 = vpop.f32.mrb[0].mxu0
        %v1221 = vadd.f32 %v1099, %v1220
        %v1222 = vpop.f32.mrb[0].mxu0
        %v1223 = vadd.f32 %v1103, %v1222
        %1224 = vmatprep.mubr.f32.mxu0 0.0
        %1225 = vmatmul.mubr.f32.gmra.mrb[0].mxu0 %v1039
        %v1226 = vpop.f32.mrb[0].mxu0
        %v1227 = vadd.f32 %v1099, %v1226
        %v1228 = vpop.f32.mrb[0].mxu0
        %v1229 = vadd.f32 %v1103, %v1228
        %1230 = vmatprep.mubr.f32.mxu0 0.0
        %1231 = vmatmul.mubr.f32.gmra.mrb[0].mxu0 %v1040
        %v1232 = vpop.f32.mrb[0].mxu0
        %v1233 = vadd.f32 %v1099, %v1232
        %v1234 = vpop.f32.mrb[0].mxu0
        %v1235 = vadd.f32 %v1103, %v1234
        %1236 = vmatprep.mubr.f32.mxu0 0.0
        %1237 = vmatmul.mubr.f32.gmra.mrb[0].mxu0 %v1041
        %v1238 = vpop.f32.mrb[0].mxu0
        %v1239 = vadd.f32 %v1099, %v1238
        %v1240 = vpop.f32.mrb[0].mxu0
        %v1241 = vadd.f32 %v1103, %v1240
        %1242 = vmatprep.mubr.f32.mxu0 0.0
        %1243 = vmatmul.mubr.f32.gmra.mrb[0].mxu0 %v1042
        %v1244 = vpop.f32.mrb[0].mxu0
        %v1245 = vadd.f32 %v1099, %v1244
        %v1246 = vpop.f32.mrb[0].mxu0
        %v1247 = vadd.f32 %v1103, %v1246
        %1248 = vmatprep.mubr.f32.mxu0 0.0
        %1249 = vmatmul.mubr.f32.gmra.mrb[0].mxu0 %v1043
        %v1250 = vpop.f32.mrb[0].mxu0
        %v1251 = vadd.f32 %v1099, %v1250
        %v1252 = vpop.f32.mrb[0].mxu0
        %v1253 = vadd.f32 %v1103, %v1252
        %1254 = vmatprep.mubr.f32.mxu0 0.0
        %1255 = vmatmul.mubr.f32.gmra.mrb[0].mxu0 %v1044
        %v1256 = vpop.f32.mrb[0].mxu0
        %v1257 = vadd.f32 %v1099, %v1256
        %v1258 = vpop.f32.mrb[0].mxu0
        %v1259 = vadd.f32 %v1103, %v1258
        %1260 = vmatprep.mubr.f32.mxu0 0.0
        %1261 = vmatmul.mubr.f32.gmra.mrb[0].mxu0 %v1045
        %v1262 = vpop.f32.mrb[0].mxu0
        %v1263 = vadd.f32 %v1099, %v1262
        %v1264 = vpop.f32.mrb[0].mxu0
        %v1265 = vadd.f32 %v1103, %v1264
        %1266 = vmatprep.mubr.f32.mxu0 0.0
        %1267 = vmatmul.mubr.f32.gmra.mrb[0].mxu0 %v1046
        %v1268 = vpop.f32.mrb[0].mxu0
        %v1269 = vadd.f32 %v1099, %v1268
        %v1270 = vpop.f32.mrb[0].mxu0
        %v1271 = vadd.f32 %v1103, %v1270
        %1272 = vmatprep.mubr.f32.mxu0 0.0
        %1273 = vmatmul.mubr.f32.gmra.mrb[0].mxu0 %v1047
        %v1274 = vpop.f32.mrb[0].mxu0
        %v1275 = vadd.f32 %v1099, %v1274
        %v1276 = vpop.f32.mrb[0].mxu0
        %v1277 = vadd.f32 %v1103, %v1276
        %1278 = vmatprep.mubr.f32.mxu0 0.0
        %1279 = vmatmul.mubr.f32.gmra.mrb[0].mxu0 %v1048
        %v1280 = vpop.f32.mrb[0].mxu0
        %v1281 = vadd.f32 %v1099, %v1280
        %v1282 = vpop.f32.mrb[0].mxu0
        %v1283 = vadd.f32 %v1103, %v1282
        %1284 = vmatprep.mubr.f32.mxu0 0.0
        %1285 = vmatmul.mubr.f32.gmra.mrb[0].mxu0 %v1049
        %v1286 = vpop.f32.mrb[0].mxu0
        %v1287 = vadd.f32 %v1099, %v1286
        %v1288 = vpop.f32.mrb[0].mxu0
        %v1289 = vadd.f32 %v1103, %v1288
        %1290 = vmatprep.mubr.f32.mxu0 0.0
        %1291 = vmatmul.mubr.f32.gmra.mrb[0].mxu0 %v1050
        %v1292 = vpop.f32.mrb[0].mxu0
        %v1293 = vadd.f32 %v1099, %v1292
        %v1294 = vpop.f32.mrb[0].mxu0
        %v1295 = vadd.f32 %v1103, %v1294
        %1296 = vmatprep.mubr.f32.mxu0 0.0
        %1297 = vmatmul.mubr.f32.gmra.mrb[0].mxu0 %v1051
        %v1298 = vpop.f32.mrb[0].mxu0
        %v1299 = vadd.f32 %v1099, %v1298
        %v1300 = vpop.f32.mrb[0].mxu0
        %v1301 = vadd.f32 %v1103, %v1300
        %1302 = vmatprep.mubr.f32.mxu0 0.0
        %1303 = vmatmul.mubr.f32.gmra.mrb[0].mxu0 %v1052
        %v1304 = vpop.f32.mrb[0].mxu0
        %v1305 = vadd.f32 %v1099, %v1304
        %v1306 = vpop.f32.mrb[0].mxu0
        %v1307 = vadd.f32 %v1103, %v1306
        %1308 = vmatprep.mubr.f32.mxu0 0.0
        %1309 = vmatmul.mubr.f32.gmra.mrb[0].mxu0 %v1053
        %v1310 = vpop.f32.mrb[0].mxu0
        %v1311 = vadd.f32 %v1099, %v1310
        %v1312 = vpop.f32.mrb[0].mxu0
        %v1313 = vadd.f32 %v1103, %v1312
        %1314 = vmatprep.mubr.f32.mxu0 0.0
        %1315 = vmatmul.mubr.f32.gmra.mrb[0].mxu0 %v1054
        %v1316 = vpop.f32.mrb[0].mxu0
        %v1317 = vadd.f32 %v1099, %v1316
        %v1318 = vpop.f32.mrb[0].mxu0
        %v1319 = vadd.f32 %v1103, %v1318
        %1320 = vmatprep.mubr.f32.mxu0 0.0
        %1321 = vmatmul.mubr.f32.gmra.mrb[0].mxu0 %v1055
        %v1322 = vpop.f32.mrb[0].mxu0
        %v1323 = vadd.f32 %v1099, %v1322
        %v1324 = vpop.f32.mrb[0].mxu0
        %v1325 = vadd.f32 %v1103, %v1324
        %1326 = vmatprep.mubr.f32.mxu0 0.0
        %1327 = vmatmul.mubr.f32.gmra.mrb[0].mxu0 %v1056
        %v1328 = vpop.f32.mrb[0].mxu0
        %v1329 = vadd.f32 %v1099, %v1328
        %v1330 = vpop.f32.mrb[0].mxu0
        %v1331 = vadd.f32 %v1103, %v1330
        %1332 = vmatprep.mubr.f32.mxu0 0.0
        %1333 = vmatmul.mubr.f32.gmra.mrb[0].mxu0 %v1057
        %v1334 = vpop.f32.mrb[0].mxu0
        %v1335 = vadd.f32 %v1099, %v1334
        %v1336 = vpop.f32.mrb[0].mxu0
        %v1337 = vadd.f32 %v1103, %v1336
        %1338 = vmatprep.mubr.f32.mxu0 0.0
        %1339 = vmatmul.mubr.f32.gmra.mrb[0].mxu0 %v1058
        %v1340 = vpop.f32.mrb[0].mxu0
        %v1341 = vadd.f32 %v1099, %v1340
        %v1342 = vpop.f32.mrb[0].mxu0
        %v1343 = vadd.f32 %v1103, %v1342
        %1344 = vmatprep.mubr.f32.mxu0 0.0
        %1345 = vmatmul.mubr.f32.gmra.mrb[0].mxu0 %v1059
        %v1346 = vpop.f32.mrb[0].mxu0
        %v1347 = vadd.f32 %v1099, %v1346
        %v1348 = vpop.f32.mrb[0].mxu0
        %v1349 = vadd.f32 %v1103, %v1348
        %1350 = vmatprep.mubr.f32.mxu0 0.0
        %1351 = vmatmul.mubr.f32.gmra.mrb[0].mxu0 %v1060
        %v1352 = vpop.f32.mrb[0].mxu0
        %v1353 = vadd.f32 %v1099, %v1352
        %v1354 = vpop.f32.mrb[0].mxu0
        %v1355 = vadd.f32 %v1103, %v1354
        %1356 = vmatprep.mubr.f32.mxu0 0.0
        %1357 = vmatmul.mubr.f32.gmra.mrb[0].mxu0 %v1061
        %v1358 = vpop.f32.mrb[0].mxu0
        %v1359 = vadd.f32 %v1099, %v1358
        %v1360 = vpop.f32.mrb[0].mxu0
        %v1361 = vadd.f32 %v1103, %v1360
        %1362 = vdwg.mxu0
        %v1363 = vsub.f32 0.0, %v1175
        %v1364 = vsub.f32 0.0, %v1181
        %v1365 = vsub.f32 0.0, %v1187
        %v1366 = vsub.f32 0.0, %v1193
        %v1367 = vsub.f32 0.0, %v1199
        %v1368 = vsub.f32 0.0, %v1205
        %v1369 = vsub.f32 0.0, %v1211
        %v1370 = vsub.f32 0.0, %v1217
        %v1371 = vsub.f32 0.0, %v1223
        %v1372 = vsub.f32 0.0, %v1229
        %v1373 = vsub.f32 0.0, %v1235
        %v1374 = vsub.f32 0.0, %v1241
        %v1375 = vsub.f32 0.0, %v1247
        %v1376 = vsub.f32 0.0, %v1253
        %v1377 = vsub.f32 0.0, %v1259
        %v1378 = vsub.f32 0.0, %v1265
        %v1379 = vsub.f32 0.0, %v1271
        %v1380 = vsub.f32 0.0, %v1277
        %v1381 = vsub.f32 0.0, %v1283
        %v1382 = vsub.f32 0.0, %v1289
        %v1383 = vsub.f32 0.0, %v1295
        %v1384 = vsub.f32 0.0, %v1301
        %v1385 = vsub.f32 0.0, %v1307
        %v1386 = vsub.f32 0.0, %v1313
        %v1387 = vsub.f32 0.0, %v1319
        %v1388 = vsub.f32 0.0, %v1325
        %v1389 = vsub.f32 0.0, %v1331
        %v1390 = vsub.f32 0.0, %v1337
        %v1391 = vsub.f32 0.0, %v1343
        %v1392 = vsub.f32 0.0, %v1349
        %v1393 = vsub.f32 0.0, %v1355
        %v1394 = vsub.f32 0.0, %v1361
        %v1395 = vmul.f32 %v1363, 1.442695
        %v1396 = vpow.pop %v1395
        %v1397 = vmul.f32 %v1364, 1.442695
        %v1398 = vpow.pop %v1397
        %v1399 = vmul.f32 %v1365, 1.442695
        %v1400 = vpow.pop %v1399
        %v1401 = vmul.f32 %v1366, 1.442695
        %v1402 = vpow.pop %v1401
        %v1403 = vmul.f32 %v1367, 1.442695
        %v1404 = vpow.pop %v1403
        %v1405 = vmul.f32 %v1368, 1.442695
        %v1406 = vpow.pop %v1405
        %v1407 = vmul.f32 %v1369, 1.442695
        %v1408 = vpow.pop %v1407
        %v1409 = vmul.f32 %v1370, 1.442695
        %v1410 = vpow.pop %v1409
        %v1411 = vmul.f32 %v1371, 1.442695
        %v1412 = vpow.pop %v1411
        %v1413 = vmul.f32 %v1372, 1.442695
        %v1414 = vpow.pop %v1413
        %v1415 = vmul.f32 %v1373, 1.442695
        %v1416 = vpow.pop %v1415
        %v1417 = vmul.f32 %v1374, 1.442695
        %v1418 = vpow.pop %v1417
        %v1419 = vmul.f32 %v1375, 1.442695
        %v1420 = vpow.pop %v1419
        %v1421 = vmul.f32 %v1376, 1.442695
        %v1422 = vpow.pop %v1421
        %v1423 = vmul.f32 %v1377, 1.442695
        %v1424 = vpow.pop %v1423
        %v1425 = vmul.f32 %v1378, 1.442695
        %v1426 = vpow.pop %v1425
        %v1427 = vmul.f32 %v1379, 1.442695
        %v1428 = vpow.pop %v1427
        %v1429 = vmul.f32 %v1380, 1.442695
        %v1430 = vpow.pop %v1429
        %v1431 = vmul.f32 %v1381, 1.442695
        %v1432 = vpow.pop %v1431
        %v1433 = vmul.f32 %v1382, 1.442695
        %v1434 = vpow.pop %v1433
        %v1435 = vmul.f32 %v1383, 1.442695
        %v1436 = vpow.pop %v1435
        %v1437 = vmul.f32 %v1384, 1.442695
        %v1438 = vpow.pop %v1437
        %v1439 = vmul.f32 %v1385, 1.442695
        %v1440 = vpow.pop %v1439
        %v1441 = vmul.f32 %v1386, 1.442695
        %v1442 = vpow.pop %v1441
        %v1443 = vmul.f32 %v1387, 1.442695
        %v1444 = vpow.pop %v1443
        %v1445 = vmul.f32 %v1388, 1.442695
        %v1446 = vpow.pop %v1445
        %v1447 = vmul.f32 %v1389, 1.442695
        %v1448 = vpow.pop %v1447
        %v1449 = vmul.f32 %v1390, 1.442695
        %v1450 = vpow.pop %v1449
        %v1451 = vmul.f32 %v1391, 1.442695
        %v1452 = vpow.pop %v1451
        %v1453 = vmul.f32 %v1392, 1.442695
        %v1454 = vpow.pop %v1453
        %v1455 = vmul.f32 %v1393, 1.442695
        %v1456 = vpow.pop %v1455
        %v1457 = vmul.f32 %v1394, 1.442695
        %v1458 = vpow.pop %v1457
        %v1459 = vadd.f32 %v1396, 1.0
        %v1460 = vadd.f32 %v1398, 1.0
        %v1461 = vadd.f32 %v1400, 1.0
        %v1462 = vadd.f32 %v1402, 1.0
        %v1463 = vadd.f32 %v1404, 1.0
        %v1464 = vadd.f32 %v1406, 1.0
        %v1465 = vadd.f32 %v1408, 1.0
        %v1466 = vadd.f32 %v1410, 1.0
        %v1467 = vadd.f32 %v1412, 1.0
        %v1468 = vadd.f32 %v1414, 1.0
        %v1469 = vadd.f32 %v1416, 1.0
        %v1470 = vadd.f32 %v1418, 1.0
        %v1471 = vadd.f32 %v1420, 1.0
        %v1472 = vadd.f32 %v1422, 1.0
        %v1473 = vadd.f32 %v1424, 1.0
        %v1474 = vadd.f32 %v1426, 1.0
        %v1475 = vadd.f32 %v1428, 1.0
        %v1476 = vadd.f32 %v1430, 1.0
        %v1477 = vadd.f32 %v1432, 1.0
        %v1478 = vadd.f32 %v1434, 1.0
        %v1479 = vadd.f32 %v1436, 1.0
        %v1480 = vadd.f32 %v1438, 1.0
        %v1481 = vadd.f32 %v1440, 1.0
        %v1482 = vadd.f32 %v1442, 1.0
        %v1483 = vadd.f32 %v1444, 1.0
        %v1484 = vadd.f32 %v1446, 1.0
        %v1485 = vadd.f32 %v1448, 1.0
        %v1486 = vadd.f32 %v1450, 1.0
        %v1487 = vadd.f32 %v1452, 1.0
        %v1488 = vadd.f32 %v1454, 1.0
        %v1489 = vadd.f32 %v1456, 1.0
        %v1490 = vadd.f32 %v1458, 1.0
        %v1491 = vrcp.pop %v1459
        %v1492 = vrcp.pop %v1460
        %v1493 = vrcp.pop %v1461
        %v1494 = vrcp.pop %v1462
        %v1495 = vrcp.pop %v1463
        %v1496 = vrcp.pop %v1464
        %v1497 = vrcp.pop %v1465
        %v1498 = vrcp.pop %v1466
        %v1499 = vrcp.pop %v1467
        %v1500 = vrcp.pop %v1468
        %v1501 = vrcp.pop %v1469
        %v1502 = vrcp.pop %v1470
        %v1503 = vrcp.pop %v1471
        %v1504 = vrcp.pop %v1472
        %v1505 = vrcp.pop %v1473
        %v1506 = vrcp.pop %v1474
        %v1507 = vrcp.pop %v1475
        %v1508 = vrcp.pop %v1476
        %v1509 = vrcp.pop %v1477
        %v1510 = vrcp.pop %v1478
        %v1511 = vrcp.pop %v1479
        %v1512 = vrcp.pop %v1480
        %v1513 = vrcp.pop %v1481
        %v1514 = vrcp.pop %v1482
        %v1515 = vrcp.pop %v1483
        %v1516 = vrcp.pop %v1484
        %v1517 = vrcp.pop %v1485
        %v1518 = vrcp.pop %v1486
        %v1519 = vrcp.pop %v1487
        %v1520 = vrcp.pop %v1488
        %v1521 = vrcp.pop %v1489
        %v1522 = vrcp.pop %v1490
        %v1523 = vmul.f32 %v1173, %v1491
        %v1524 = vmul.f32 %v1179, %v1492
        %v1525 = vmul.f32 %v1185, %v1493
        %v1526 = vmul.f32 %v1191, %v1494
        %v1527 = vmul.f32 %v1197, %v1495
        %v1528 = vmul.f32 %v1203, %v1496
        %v1529 = vmul.f32 %v1209, %v1497
        %v1530 = vmul.f32 %v1215, %v1498
        %v1531 = vmul.f32 %v1221, %v1499
        %v1532 = vmul.f32 %v1227, %v1500
        %v1533 = vmul.f32 %v1233, %v1501
        %v1534 = vmul.f32 %v1239, %v1502
        %v1535 = vmul.f32 %v1245, %v1503
        %v1536 = vmul.f32 %v1251, %v1504
        %v1537 = vmul.f32 %v1257, %v1505
        %v1538 = vmul.f32 %v1263, %v1506
        %v1539 = vmul.f32 %v1269, %v1507
        %v1540 = vmul.f32 %v1275, %v1508
        %v1541 = vmul.f32 %v1281, %v1509
        %v1542 = vmul.f32 %v1287, %v1510
        %v1543 = vmul.f32 %v1293, %v1511
        %v1544 = vmul.f32 %v1299, %v1512
        %v1545 = vmul.f32 %v1305, %v1513
        %v1546 = vmul.f32 %v1311, %v1514
        %v1547 = vmul.f32 %v1317, %v1515
        %v1548 = vmul.f32 %v1323, %v1516
        %v1549 = vmul.f32 %v1329, %v1517
        %v1550 = vmul.f32 %v1335, %v1518
        %v1551 = vmul.f32 %v1341, %v1519
        %v1552 = vmul.f32 %v1347, %v1520
        %v1553 = vmul.f32 %v1353, %v1521
        %v1554 = vmul.f32 %v1359, %v1522
        %v1555 = vld [vmem:[%s598] sm:$0xff]
        %v1556 = vld [vmem:[%s598 + $0x8] sm:$0xff]
        %v1557 = vld [vmem:[%s598 + $0x10] sm:$0xff]
        %v1558 = vld [vmem:[%s598 + $0x18] sm:$0xff]
        %v1559 = vld [vmem:[%s598 + $0x20] sm:$0xff]
        %v1560 = vld [vmem:[%s598 + $0x28] sm:$0xff]
        %v1561 = vld [vmem:[%s598 + $0x30] sm:$0xff]
        %v1562 = vld [vmem:[%s598 + $0x38] sm:$0xff]
        %v1563 = vld [vmem:[%s598 + $0x40] sm:$0xff]
        %v1564 = vld [vmem:[%s598 + $0x48] sm:$0xff]
        %v1565 = vld [vmem:[%s598 + $0x50] sm:$0xff]
        %v1566 = vld [vmem:[%s598 + $0x58] sm:$0xff]
        %v1567 = vld [vmem:[%s598 + $0x60] sm:$0xff]
        %v1568 = vld [vmem:[%s598 + $0x68] sm:$0xff]
        %v1569 = vld [vmem:[%s598 + $0x70] sm:$0xff]
        %v1570 = vld [vmem:[%s598 + $0x78] sm:$0xff]
        %v1571 = vld [vmem:[%s598 + $0x80] sm:$0xff]
        %v1572 = vld [vmem:[%s598 + $0x88] sm:$0xff]
        %v1573 = vld [vmem:[%s598 + $0x90] sm:$0xff]
        %v1574 = vld [vmem:[%s598 + $0x98] sm:$0xff]
        %v1575 = vld [vmem:[%s598 + $0xa0] sm:$0xff]
        %v1576 = vld [vmem:[%s598 + $0xa8] sm:$0xff]
        %v1577 = vld [vmem:[%s598 + $0xb0] sm:$0xff]
        %v1578 = vld [vmem:[%s598 + $0xb8] sm:$0xff]
        %v1579 = vld [vmem:[%s598 + $0xc0] sm:$0xff]
        %v1580 = vld [vmem:[%s598 + $0xc8] sm:$0xff]
        %v1581 = vld [vmem:[%s598 + $0xd0] sm:$0xff]
        %v1582 = vld [vmem:[%s598 + $0xd8] sm:$0xff]
        %v1583 = vld [vmem:[%s598 + $0xe0] sm:$0xff]
        %v1584 = vld [vmem:[%s598 + $0xe8] sm:$0xff]
        %v1585 = vld [vmem:[%s598 + $0xf0] sm:$0xff]
        %v1586 = vld [vmem:[%s598 + $0xf8] sm:$0xff]
        %1588 = vset.pattern.permute.xlu0 0
        %1589 = vperm.xlu0 %1588, %v1555
        %v1590 = vpop.permute.xlu0 %1589
        %1593 = vset.pattern.permute.xlu0 0
        %1594 = vperm.xlu0 %1593, %v1556
        %v1595 = vpop.permute.xlu0 %1594
        %1598 = vset.pattern.permute.xlu0 0
        %1599 = vperm.xlu0 %1598, %v1557
        %v1600 = vpop.permute.xlu0 %1599
        %1603 = vset.pattern.permute.xlu0 0
        %1604 = vperm.xlu0 %1603, %v1558
        %v1605 = vpop.permute.xlu0 %1604
        %1608 = vset.pattern.permute.xlu0 0
        %1609 = vperm.xlu0 %1608, %v1559
        %v1610 = vpop.permute.xlu0 %1609
        %1613 = vset.pattern.permute.xlu0 0
        %1614 = vperm.xlu0 %1613, %v1560
        %v1615 = vpop.permute.xlu0 %1614
        %1618 = vset.pattern.permute.xlu0 0
        %1619 = vperm.xlu0 %1618, %v1561
        %v1620 = vpop.permute.xlu0 %1619
        %1623 = vset.pattern.permute.xlu0 0
        %1624 = vperm.xlu0 %1623, %v1562
        %v1625 = vpop.permute.xlu0 %1624
        %1628 = vset.pattern.permute.xlu0 0
        %1629 = vperm.xlu0 %1628, %v1563
        %v1630 = vpop.permute.xlu0 %1629
        %1633 = vset.pattern.permute.xlu0 0
        %1634 = vperm.xlu0 %1633, %v1564
        %v1635 = vpop.permute.xlu0 %1634
        %1638 = vset.pattern.permute.xlu0 0
        %1639 = vperm.xlu0 %1638, %v1565
        %v1640 = vpop.permute.xlu0 %1639
        %1643 = vset.pattern.permute.xlu0 0
        %1644 = vperm.xlu0 %1643, %v1566
        %v1645 = vpop.permute.xlu0 %1644
        %1648 = vset.pattern.permute.xlu0 0
        %1649 = vperm.xlu0 %1648, %v1567
        %v1650 = vpop.permute.xlu0 %1649
        %1653 = vset.pattern.permute.xlu0 0
        %1654 = vperm.xlu0 %1653, %v1568
        %v1655 = vpop.permute.xlu0 %1654
        %1658 = vset.pattern.permute.xlu0 0
        %1659 = vperm.xlu0 %1658, %v1569
        %v1660 = vpop.permute.xlu0 %1659
        %1663 = vset.pattern.permute.xlu0 0
        %1664 = vperm.xlu0 %1663, %v1570
        %v1665 = vpop.permute.xlu0 %1664
        %1668 = vset.pattern.permute.xlu0 0
        %1669 = vperm.xlu0 %1668, %v1571
        %v1670 = vpop.permute.xlu0 %1669
        %1673 = vset.pattern.permute.xlu0 0
        %1674 = vperm.xlu0 %1673, %v1572
        %v1675 = vpop.permute.xlu0 %1674
        %1678 = vset.pattern.permute.xlu0 0
        %1679 = vperm.xlu0 %1678, %v1573
        %v1680 = vpop.permute.xlu0 %1679
        %1683 = vset.pattern.permute.xlu0 0
        %1684 = vperm.xlu0 %1683, %v1574
        %v1685 = vpop.permute.xlu0 %1684
        %1688 = vset.pattern.permute.xlu0 0
        %1689 = vperm.xlu0 %1688, %v1575
        %v1690 = vpop.permute.xlu0 %1689
        %1693 = vset.pattern.permute.xlu0 0
        %1694 = vperm.xlu0 %1693, %v1576
        %v1695 = vpop.permute.xlu0 %1694
        %1698 = vset.pattern.permute.xlu0 0
        %1699 = vperm.xlu0 %1698, %v1577
        %v1700 = vpop.permute.xlu0 %1699
        %1703 = vset.pattern.permute.xlu0 0
        %1704 = vperm.xlu0 %1703, %v1578
        %v1705 = vpop.permute.xlu0 %1704
        %1708 = vset.pattern.permute.xlu0 0
        %1709 = vperm.xlu0 %1708, %v1579
        %v1710 = vpop.permute.xlu0 %1709
        %1713 = vset.pattern.permute.xlu0 0
        %1714 = vperm.xlu0 %1713, %v1580
        %v1715 = vpop.permute.xlu0 %1714
        %1718 = vset.pattern.permute.xlu0 0
        %1719 = vperm.xlu0 %1718, %v1581
        %v1720 = vpop.permute.xlu0 %1719
        %1723 = vset.pattern.permute.xlu0 0
        %1724 = vperm.xlu0 %1723, %v1582
        %v1725 = vpop.permute.xlu0 %1724
        %1728 = vset.pattern.permute.xlu0 0
        %1729 = vperm.xlu0 %1728, %v1583
        %v1730 = vpop.permute.xlu0 %1729
        %1733 = vset.pattern.permute.xlu0 0
        %1734 = vperm.xlu0 %1733, %v1584
        %v1735 = vpop.permute.xlu0 %1734
        %1738 = vset.pattern.permute.xlu0 0
        %1739 = vperm.xlu0 %1738, %v1585
        %v1740 = vpop.permute.xlu0 %1739
        %1743 = vset.pattern.permute.xlu0 0
        %1744 = vperm.xlu0 %1743, %v1586
        %v1745 = vpop.permute.xlu0 %1744
        %v1747 = vmul.f32 %v1523, %v1590
        %v1748 = vmul.f32 %v1524, %v1595
        %v1749 = vmul.f32 %v1525, %v1600
        %v1750 = vmul.f32 %v1526, %v1605
        %v1751 = vmul.f32 %v1527, %v1610
        %v1752 = vmul.f32 %v1528, %v1615
        %v1753 = vmul.f32 %v1529, %v1620
        %v1754 = vmul.f32 %v1530, %v1625
        %v1755 = vmul.f32 %v1531, %v1630
        %v1756 = vmul.f32 %v1532, %v1635
        %v1757 = vmul.f32 %v1533, %v1640
        %v1758 = vmul.f32 %v1534, %v1645
        %v1759 = vmul.f32 %v1535, %v1650
        %v1760 = vmul.f32 %v1536, %v1655
        %v1761 = vmul.f32 %v1537, %v1660
        %v1762 = vmul.f32 %v1538, %v1665
        %v1763 = vmul.f32 %v1539, %v1670
        %v1764 = vmul.f32 %v1540, %v1675
        %v1765 = vmul.f32 %v1541, %v1680
        %v1766 = vmul.f32 %v1542, %v1685
        %v1767 = vmul.f32 %v1543, %v1690
        %v1768 = vmul.f32 %v1544, %v1695
        %v1769 = vmul.f32 %v1545, %v1700
        %v1770 = vmul.f32 %v1546, %v1705
        %v1771 = vmul.f32 %v1547, %v1710
        %v1772 = vmul.f32 %v1548, %v1715
        %v1773 = vmul.f32 %v1549, %v1720
        %v1774 = vmul.f32 %v1550, %v1725
        %v1775 = vmul.f32 %v1551, %v1730
        %v1776 = vmul.f32 %v1552, %v1735
        %v1777 = vmul.f32 %v1553, %v1740
        %v1778 = vmul.f32 %v1554, %v1745
        %v1795 = vrot.slane %v1749, 7
        %vm1796 = vcmask 1041409
        %v1797 = vsel %vm1796, %v1795, %v1747
        %v1798 = vrot.slane %v1751, 6
        %vm1799 = vcmask 1042434
        %v1800 = vsel %vm1799, %v1798, %v1797
        %v1801 = vrot.slane %v1753, 5
        %vm1802 = vcmask 1043459
        %v1803 = vsel %vm1802, %v1801, %v1800
        %v1804 = vrot.slane %v1755, 4
        %vm1805 = vcmask 1044484
        %v1806 = vsel %vm1805, %v1804, %v1803
        %v1807 = vrot.slane %v1757, 3
        %vm1808 = vcmask 1045509
        %v1809 = vsel %vm1808, %v1807, %v1806
        %v1810 = vrot.slane %v1759, 2
        %vm1811 = vcmask 1046534
        %v1812 = vsel %vm1811, %v1810, %v1809
        %v1813 = vrot.slane %v1761, 1
        %vm1814 = vcmask 1047559
        %v1815 = vsel %vm1814, %v1813, %v1812
        %v1816 = vrot.slane %v1765, 7
        %v1817 = vsel %vm1796, %v1816, %v1763
        %v1818 = vrot.slane %v1767, 6
        %v1819 = vsel %vm1799, %v1818, %v1817
        %v1820 = vrot.slane %v1769, 5
        %v1821 = vsel %vm1802, %v1820, %v1819
        %v1822 = vrot.slane %v1771, 4
        %v1823 = vsel %vm1805, %v1822, %v1821
        %v1824 = vrot.slane %v1773, 3
        %v1825 = vsel %vm1808, %v1824, %v1823
        %v1826 = vrot.slane %v1775, 2
        %v1827 = vsel %vm1811, %v1826, %v1825
        %v1828 = vrot.slane %v1777, 1
        %v1829 = vsel %vm1814, %v1828, %v1827
        %1833 = vrot.lane.b32.xlu0 %v1747, 96
        %v1834 = vpop.permute.xlu0 %1833
        %1835 = vrot.lane.b32.xlu0 %v1748, 96
        %v1836 = vpop.permute.xlu0 %1835
        %v1839 = vrot.slane %v1747, 1
        %v1840 = vsel %vm1796, %v1749, %v1839
        %v1841 = vrot.slane %v1751, 7
        %v1842 = vsel %vm1799, %v1841, %v1840
        %v1843 = vrot.slane %v1753, 6
        %v1844 = vsel %vm1802, %v1843, %v1842
        %v1845 = vrot.slane %v1755, 5
        %v1846 = vsel %vm1805, %v1845, %v1844
        %v1847 = vrot.slane %v1757, 4
        %v1848 = vsel %vm1808, %v1847, %v1846
        %v1849 = vrot.slane %v1759, 3
        %v1850 = vsel %vm1811, %v1849, %v1848
        %v1851 = vrot.slane %v1761, 2
        %v1852 = vsel %vm1814, %v1851, %v1850
        %v1853 = vrot.slane %v1763, 1
        %v1854 = vsel %vm1796, %v1765, %v1853
        %v1855 = vrot.slane %v1767, 7
        %v1856 = vsel %vm1799, %v1855, %v1854
        %v1857 = vrot.slane %v1769, 6
        %v1858 = vsel %vm1802, %v1857, %v1856
        %v1859 = vrot.slane %v1771, 5
        %v1860 = vsel %vm1805, %v1859, %v1858
        %v1861 = vrot.slane %v1773, 4
        %v1862 = vsel %vm1808, %v1861, %v1860
        %v1863 = vrot.slane %v1775, 3
        %v1864 = vsel %vm1811, %v1863, %v1862
        %v1865 = vrot.slane %v1777, 2
        %v1866 = vsel %vm1814, %v1865, %v1864
        %1867 = vrot.lane.b32.xlu0 %v1852, 64
        %v1868 = vpop.permute.xlu0 %1867
        %1869 = vrot.lane.b32.xlu0 %v1866, 64
        %v1870 = vpop.permute.xlu0 %1869
        %1874 = vrot.lane.b32.xlu0 %v1749, 32
        %v1875 = vpop.permute.xlu0 %1874
        %1876 = vrot.lane.b32.xlu0 %v1750, 32
        %v1877 = vpop.permute.xlu0 %1876
        %1880 = vrot.lane.b32.xlu0 %v1815, 96
        %v1881 = vpop.permute.xlu0 %1880
        %1882 = vrot.lane.b32.xlu0 %v1829, 96
        %v1883 = vpop.permute.xlu0 %1882
        %1886 = vrot.lane.b32.xlu0 %v1747, 64
        %v1887 = vpop.permute.xlu0 %1886
        %1888 = vrot.lane.b32.xlu0 %v1748, 64
        %v1889 = vpop.permute.xlu0 %1888
        %1892 = vrot.lane.b32.xlu0 %v1852, 32
        %v1893 = vpop.permute.xlu0 %1892
        %1894 = vrot.lane.b32.xlu0 %v1866, 32
        %v1895 = vpop.permute.xlu0 %1894
        %vm1898 = vcmask 261120
        %v1899 = vsel %vm1898, %v1815, %v1834
        %v1900 = vsel %vm1898, %v1829, %v1836
        %vm1901 = vcmask 523264
        %v1902 = vsel %vm1901, %v1899, %v1868
        %v1903 = vsel %vm1901, %v1900, %v1870
        %vm1904 = vcmask 785408
        %v1905 = vsel %vm1904, %v1902, %v1875
        %v1906 = vsel %vm1904, %v1903, %v1877
        %v1907 = vsel %vm1898, %v1881, %v1887
        %v1908 = vsel %vm1898, %v1883, %v1889
        %v1909 = vsel %vm1901, %v1907, %v1893
        %v1910 = vsel %vm1901, %v1908, %v1895
        %v1911 = vsel %vm1904, %v1909, %v1749
        %v1912 = vsel %vm1904, %v1910, %v1750
        %1913 = vst [vmem:[#allocation2] sm:$0xff] %v1905
        %1914 = vst [vmem:[#allocation2 + $0x8] sm:$0xff] %v1911
        %1915 = vst [vmem:[#allocation2 + $0x10] sm:$0xff] %v1906
        %1916 = vst [vmem:[#allocation2 + $0x18] sm:$0xff] %v1912
        %v1917 = vsel %vm1802, %v1795, %v1747
        %v1918 = vsel %vm1805, %v1798, %v1917
        %v1919 = vsel %vm1808, %v1801, %v1918
        %v1920 = vsel %vm1811, %v1804, %v1919
        %v1921 = vsel %vm1814, %v1807, %v1920
        %v1922 = vsel %vm1796, %v1813, %v1810
        %v1923 = vsel %vm1799, %v1763, %v1922
        %v1924 = vsel %vm1802, %v1816, %v1923
        %v1925 = vsel %vm1805, %v1818, %v1924
        %v1926 = vsel %vm1808, %v1820, %v1925
        %v1927 = vsel %vm1811, %v1822, %v1926
        %v1928 = vsel %vm1814, %v1824, %v1927
        %v1929 = vsel %vm1796, %v1828, %v1826
        %vm1934 = vcmask 1041408
        %v1935 = vrot.slane %v1752, 6
        %v1936 = vsel %vm1934, %v1798, %v1935
        %1937 = vrot.lane.b32.xlu0 %v1798, 96
        %v1938 = vpop.permute.xlu0 %1937
        %1939 = vrot.lane.b32.xlu0 %v1936, 96
        %v1940 = vpop.permute.xlu0 %1939
        %1941 = vrot.lane.b32.xlu0 %v1935, 96
        %v1942 = vpop.permute.xlu0 %1941
        %v1946 = vsel %vm1802, %v1749, %v1839
        %v1947 = vsel %vm1805, %v1841, %v1946
        %v1948 = vsel %vm1808, %v1843, %v1947
        %v1949 = vsel %vm1811, %v1845, %v1948
        %v1950 = vsel %vm1814, %v1847, %v1949
        %v1951 = vsel %vm1796, %v1851, %v1849
        %v1952 = vsel %vm1799, %v1853, %v1951
        %v1953 = vsel %vm1802, %v1765, %v1952
        %v1954 = vsel %vm1805, %v1855, %v1953
        %v1955 = vsel %vm1808, %v1857, %v1954
        %v1956 = vsel %vm1811, %v1859, %v1955
        %v1957 = vsel %vm1814, %v1861, %v1956
        %v1958 = vsel %vm1796, %v1865, %v1863
        %1959 = vrot.lane.b32.xlu0 %v1950, 64
        %v1960 = vpop.permute.xlu0 %1959
        %1961 = vrot.lane.b32.xlu0 %v1957, 64
        %v1962 = vpop.permute.xlu0 %1961
        %1963 = vrot.lane.b32.xlu0 %v1958, 64
        %v1964 = vpop.permute.xlu0 %1963
        %v1969 = vrot.slane %v1754, 6
        %v1970 = vsel %vm1934, %v1843, %v1969
        %1971 = vrot.lane.b32.xlu0 %v1843, 32
        %v1972 = vpop.permute.xlu0 %1971
        %1973 = vrot.lane.b32.xlu0 %v1970, 32
        %v1974 = vpop.permute.xlu0 %1973
        %1975 = vrot.lane.b32.xlu0 %v1969, 32
        %v1976 = vpop.permute.xlu0 %1975
        %1980 = vrot.lane.b32.xlu0 %v1921, 96
        %v1981 = vpop.permute.xlu0 %1980
        %1982 = vrot.lane.b32.xlu0 %v1928, 96
        %v1983 = vpop.permute.xlu0 %1982
        %1984 = vrot.lane.b32.xlu0 %v1929, 96
        %v1985 = vpop.permute.xlu0 %1984
        %1989 = vrot.lane.b32.xlu0 %v1798, 64
        %v1990 = vpop.permute.xlu0 %1989
        %1991 = vrot.lane.b32.xlu0 %v1936, 64
        %v1992 = vpop.permute.xlu0 %1991
        %1993 = vrot.lane.b32.xlu0 %v1935, 64
        %v1994 = vpop.permute.xlu0 %1993
        %1998 = vrot.lane.b32.xlu0 %v1950, 32
        %v1999 = vpop.permute.xlu0 %1998
        %2000 = vrot.lane.b32.xlu0 %v1957, 32
        %v2001 = vpop.permute.xlu0 %2000
        %2002 = vrot.lane.b32.xlu0 %v1958, 32
        %v2003 = vpop.permute.xlu0 %2002
        %v2010 = vsel %vm1898, %v1921, %v1938
        %v2011 = vsel %vm1898, %v1928, %v1940
        %v2012 = vsel %vm1898, %v1929, %v1942
        %v2013 = vsel %vm1901, %v2010, %v1960
        %v2014 = vsel %vm1901, %v2011, %v1962
        %v2015 = vsel %vm1901, %v2012, %v1964
        %v2016 = vsel %vm1904, %v2013, %v1972
        %v2017 = vsel %vm1904, %v2014, %v1974
        %v2018 = vsel %vm1904, %v2015, %v1976
        %v2019 = vsel %vm1898, %v1981, %v1990
        %v2020 = vsel %vm1898, %v1983, %v1992
        %v2021 = vsel %vm1898, %v1985, %v1994
        %v2022 = vsel %vm1901, %v2019, %v1999
        %v2023 = vsel %vm1901, %v2020, %v2001
        %v2024 = vsel %vm1901, %v2021, %v2003
        %v2025 = vsel %vm1904, %v2022, %v1843
        %v2026 = vsel %vm1904, %v2023, %v1970
        %v2027 = vsel %vm1904, %v2024, %v1969
        %vm2034 = vcmask 1045504
        %v2035 = vrot.slane %v2016, 2
        %v2036 = vrot.slane %v2017, 2
        %v2037 = vsel %vm2034, %v2035, %v2036
        %v2038 = vrot.slane %v2025, 2
        %v2039 = vrot.slane %v2026, 2
        %v2040 = vsel %vm2034, %v2038, %v2039
        %v2041 = vrot.slane %v2018, 2
        %v2042 = vsel %vm2034, %v2036, %v2041
        %v2043 = vrot.slane %v2027, 2
        %v2044 = vsel %vm2034, %v2039, %v2043
        %s2049 = scalar_lea.vmem [#allocation2], 32
        %2050 = vst [vmem:[%s2049] sm:$0xff] %v2037
        %2051 = vst [vmem:[%s2049 + $0x8] sm:$0xff] %v2040
        %2052 = vst [vmem:[%s2049 + $0x10] sm:$0xff] %v2042
        %2053 = vst [vmem:[%s2049 + $0x18] sm:$0xff] %v2044
        %v2054 = vsel %vm1808, %v1795, %v1747
        %v2055 = vsel %vm1811, %v1798, %v2054
        %v2056 = vsel %vm1814, %v1801, %v2055
        %v2057 = vsel %vm1796, %v1807, %v1804
        %v2058 = vsel %vm1799, %v1810, %v2057
        %v2059 = vsel %vm1802, %v1813, %v2058
        %v2060 = vsel %vm1805, %v1763, %v2059
        %v2061 = vsel %vm1808, %v1816, %v2060
        %v2062 = vsel %vm1811, %v1818, %v2061
        %v2063 = vsel %vm1814, %v1820, %v2062
        %v2064 = vsel %vm1796, %v1824, %v1822
        %v2065 = vsel %vm1799, %v1826, %v2064
        %v2066 = vsel %vm1802, %v1828, %v2065
        %vm2071 = vcmask 1043456
        %v2072 = vrot.slane %v1756, 4
        %v2073 = vsel %vm2071, %v1804, %v2072
        %2074 = vrot.lane.b32.xlu0 %v1804, 96
        %v2075 = vpop.permute.xlu0 %2074
        %2076 = vrot.lane.b32.xlu0 %v2073, 96
        %v2077 = vpop.permute.xlu0 %2076
        %2078 = vrot.lane.b32.xlu0 %v2072, 96
        %v2079 = vpop.permute.xlu0 %2078
        %v2083 = vsel %vm1808, %v1749, %v1839
        %v2084 = vsel %vm1811, %v1841, %v2083
        %v2085 = vsel %vm1814, %v1843, %v2084
        %v2086 = vsel %vm1796, %v1847, %v1845
        %v2087 = vsel %vm1799, %v1849, %v2086
        %v2088 = vsel %vm1802, %v1851, %v2087
        %v2089 = vsel %vm1805, %v1853, %v2088
        %v2090 = vsel %vm1808, %v1765, %v2089
        %v2091 = vsel %vm1811, %v1855, %v2090
        %v2092 = vsel %vm1814, %v1857, %v2091
        %v2093 = vsel %vm1796, %v1861, %v1859
        %v2094 = vsel %vm1799, %v1863, %v2093
        %v2095 = vsel %vm1802, %v1865, %v2094
        %2096 = vrot.lane.b32.xlu0 %v2085, 64
        %v2097 = vpop.permute.xlu0 %2096
        %2098 = vrot.lane.b32.xlu0 %v2092, 64
        %v2099 = vpop.permute.xlu0 %2098
        %2100 = vrot.lane.b32.xlu0 %v2095, 64
        %v2101 = vpop.permute.xlu0 %2100
        %v2106 = vrot.slane %v1758, 4
        %v2107 = vsel %vm2071, %v1847, %v2106
        %2108 = vrot.lane.b32.xlu0 %v1847, 32
        %v2109 = vpop.permute.xlu0 %2108
        %2110 = vrot.lane.b32.xlu0 %v2107, 32
        %v2111 = vpop.permute.xlu0 %2110
        %2112 = vrot.lane.b32.xlu0 %v2106, 32
        %v2113 = vpop.permute.xlu0 %2112
        %2117 = vrot.lane.b32.xlu0 %v2056, 96
        %v2118 = vpop.permute.xlu0 %2117
        %2119 = vrot.lane.b32.xlu0 %v2063, 96
        %v2120 = vpop.permute.xlu0 %2119
        %2121 = vrot.lane.b32.xlu0 %v2066, 96
        %v2122 = vpop.permute.xlu0 %2121
        %2126 = vrot.lane.b32.xlu0 %v1804, 64
        %v2127 = vpop.permute.xlu0 %2126
        %2128 = vrot.lane.b32.xlu0 %v2073, 64
        %v2129 = vpop.permute.xlu0 %2128
        %2130 = vrot.lane.b32.xlu0 %v2072, 64
        %v2131 = vpop.permute.xlu0 %2130
        %2135 = vrot.lane.b32.xlu0 %v2085, 32
        %v2136 = vpop.permute.xlu0 %2135
        %2137 = vrot.lane.b32.xlu0 %v2092, 32
        %v2138 = vpop.permute.xlu0 %2137
        %2139 = vrot.lane.b32.xlu0 %v2095, 32
        %v2140 = vpop.permute.xlu0 %2139
        %v2147 = vsel %vm1898, %v2056, %v2075
        %v2148 = vsel %vm1898, %v2063, %v2077
        %v2149 = vsel %vm1898, %v2066, %v2079
        %v2150 = vsel %vm1901, %v2147, %v2097
        %v2151 = vsel %vm1901, %v2148, %v2099
        %v2152 = vsel %vm1901, %v2149, %v2101
        %v2153 = vsel %vm1904, %v2150, %v2109
        %v2154 = vsel %vm1904, %v2151, %v2111
        %v2155 = vsel %vm1904, %v2152, %v2113
        %v2156 = vsel %vm1898, %v2118, %v2127
        %v2157 = vsel %vm1898, %v2120, %v2129
        %v2158 = vsel %vm1898, %v2122, %v2131
        %v2159 = vsel %vm1901, %v2156, %v2136
        %v2160 = vsel %vm1901, %v2157, %v2138
        %v2161 = vsel %vm1901, %v2158, %v2140
        %v2162 = vsel %vm1904, %v2159, %v1847
        %v2163 = vsel %vm1904, %v2160, %v2107
        %v2164 = vsel %vm1904, %v2161, %v2106
        %v2171 = vrot.slane %v2153, 4
        %v2172 = vrot.slane %v2154, 4
        %v2173 = vsel %vm2071, %v2171, %v2172
        %v2174 = vrot.slane %v2162, 4
        %v2175 = vrot.slane %v2163, 4
        %v2176 = vsel %vm2071, %v2174, %v2175
        %v2177 = vrot.slane %v2155, 4
        %v2178 = vsel %vm2071, %v2172, %v2177
        %v2179 = vrot.slane %v2164, 4
        %v2180 = vsel %vm2071, %v2175, %v2179
        %s2185 = scalar_lea.vmem [#allocation2], 64
        %2186 = vst [vmem:[%s2185] sm:$0xff] %v2173
        %2187 = vst [vmem:[%s2185 + $0x8] sm:$0xff] %v2176
        %2188 = vst [vmem:[%s2185 + $0x10] sm:$0xff] %v2178
        %2189 = vst [vmem:[%s2185 + $0x18] sm:$0xff] %v2180
        %v2190 = vsel %vm1814, %v1795, %v1747
        %v2191 = vsel %vm1796, %v1801, %v1798
        %v2192 = vsel %vm1799, %v1804, %v2191
        %v2193 = vsel %vm1802, %v1807, %v2192
        %v2194 = vsel %vm1805, %v1810, %v2193
        %v2195 = vsel %vm1808, %v1813, %v2194
        %v2196 = vsel %vm1811, %v1763, %v2195
        %v2197 = vsel %vm1814, %v1816, %v2196
        %v2198 = vsel %vm1796, %v1820, %v1818
        %v2199 = vsel %vm1799, %v1822, %v2198
        %v2200 = vsel %vm1802, %v1824, %v2199
        %v2201 = vsel %vm1805, %v1826, %v2200
        %v2202 = vsel %vm1808, %v1828, %v2201
        %v2207 = vrot.slane %v1760, 2
        %v2208 = vsel %vm2034, %v1810, %v2207
        %2209 = vrot.lane.b32.xlu0 %v1810, 96
        %v2210 = vpop.permute.xlu0 %2209
        %2211 = vrot.lane.b32.xlu0 %v2208, 96
        %v2212 = vpop.permute.xlu0 %2211
        %2213 = vrot.lane.b32.xlu0 %v2207, 96
        %v2214 = vpop.permute.xlu0 %2213
        %v2218 = vsel %vm1814, %v1749, %v1839
        %v2219 = vsel %vm1796, %v1843, %v1841
        %v2220 = vsel %vm1799, %v1845, %v2219
        %v2221 = vsel %vm1802, %v1847, %v2220
        %v2222 = vsel %vm1805, %v1849, %v2221
        %v2223 = vsel %vm1808, %v1851, %v2222
        %v2224 = vsel %vm1811, %v1853, %v2223
        %v2225 = vsel %vm1814, %v1765, %v2224
        %v2226 = vsel %vm1796, %v1857, %v1855
        %v2227 = vsel %vm1799, %v1859, %v2226
        %v2228 = vsel %vm1802, %v1861, %v2227
        %v2229 = vsel %vm1805, %v1863, %v2228
        %v2230 = vsel %vm1808, %v1865, %v2229
        %2231 = vrot.lane.b32.xlu0 %v2218, 64
        %v2232 = vpop.permute.xlu0 %2231
        %2233 = vrot.lane.b32.xlu0 %v2225, 64
        %v2234 = vpop.permute.xlu0 %2233
        %2235 = vrot.lane.b32.xlu0 %v2230, 64
        %v2236 = vpop.permute.xlu0 %2235
        %v2241 = vrot.slane %v1762, 2
        %v2242 = vsel %vm2034, %v1851, %v2241
        %2243 = vrot.lane.b32.xlu0 %v1851, 32
        %v2244 = vpop.permute.xlu0 %2243
        %2245 = vrot.lane.b32.xlu0 %v2242, 32
        %v2246 = vpop.permute.xlu0 %2245
        %2247 = vrot.lane.b32.xlu0 %v2241, 32
        %v2248 = vpop.permute.xlu0 %2247
        %2252 = vrot.lane.b32.xlu0 %v2190, 96
        %v2253 = vpop.permute.xlu0 %2252
        %2254 = vrot.lane.b32.xlu0 %v2197, 96
        %v2255 = vpop.permute.xlu0 %2254
        %2256 = vrot.lane.b32.xlu0 %v2202, 96
        %v2257 = vpop.permute.xlu0 %2256
        %2261 = vrot.lane.b32.xlu0 %v1810, 64
        %v2262 = vpop.permute.xlu0 %2261
        %2263 = vrot.lane.b32.xlu0 %v2208, 64
        %v2264 = vpop.permute.xlu0 %2263
        %2265 = vrot.lane.b32.xlu0 %v2207, 64
        %v2266 = vpop.permute.xlu0 %2265
        %2270 = vrot.lane.b32.xlu0 %v2218, 32
        %v2271 = vpop.permute.xlu0 %2270
        %2272 = vrot.lane.b32.xlu0 %v2225, 32
        %v2273 = vpop.permute.xlu0 %2272
        %2274 = vrot.lane.b32.xlu0 %v2230, 32
        %v2275 = vpop.permute.xlu0 %2274
        %v2282 = vsel %vm1898, %v2190, %v2210
        %v2283 = vsel %vm1898, %v2197, %v2212
        %v2284 = vsel %vm1898, %v2202, %v2214
        %v2285 = vsel %vm1901, %v2282, %v2232
        %v2286 = vsel %vm1901, %v2283, %v2234
        %v2287 = vsel %vm1901, %v2284, %v2236
        %v2288 = vsel %vm1904, %v2285, %v2244
        %v2289 = vsel %vm1904, %v2286, %v2246
        %v2290 = vsel %vm1904, %v2287, %v2248
        %v2291 = vsel %vm1898, %v2253, %v2262
        %v2292 = vsel %vm1898, %v2255, %v2264
        %v2293 = vsel %vm1898, %v2257, %v2266
        %v2294 = vsel %vm1901, %v2291, %v2271
        %v2295 = vsel %vm1901, %v2292, %v2273
        %v2296 = vsel %vm1901, %v2293, %v2275
        %v2297 = vsel %vm1904, %v2294, %v1851
        %v2298 = vsel %vm1904, %v2295, %v2242
        %v2299 = vsel %vm1904, %v2296, %v2241
        %v2306 = vrot.slane %v2288, 6
        %v2307 = vrot.slane %v2289, 6
        %v2308 = vsel %vm1934, %v2306, %v2307
        %v2309 = vrot.slane %v2297, 6
        %v2310 = vrot.slane %v2298, 6
        %v2311 = vsel %vm1934, %v2309, %v2310
        %v2312 = vrot.slane %v2290, 6
        %v2313 = vsel %vm1934, %v2307, %v2312
        %v2314 = vrot.slane %v2299, 6
        %v2315 = vsel %vm1934, %v2310, %v2314
        %s2320 = scalar_lea.vmem [#allocation2], 96
        %2321 = vst [vmem:[%s2320] sm:$0xff] %v2308
        %2322 = vst [vmem:[%s2320 + $0x8] sm:$0xff] %v2311
        %2323 = vst [vmem:[%s2320 + $0x10] sm:$0xff] %v2313
        %2324 = vst [vmem:[%s2320 + $0x18] sm:$0xff] %v2315
        %v2333 = vrot.slane %v1750, 7
        %v2334 = vsel %vm1796, %v2333, %v1748
        %v2335 = vsel %vm1799, %v1935, %v2334
        %v2336 = vrot.slane %v1754, 5
        %v2337 = vsel %vm1802, %v2336, %v2335
        %v2338 = vsel %vm1805, %v2072, %v2337
        %v2339 = vrot.slane %v1758, 3
        %v2340 = vsel %vm1808, %v2339, %v2338
        %v2341 = vsel %vm1811, %v2207, %v2340
        %v2342 = vrot.slane %v1762, 1
        %v2343 = vsel %vm1814, %v2342, %v2341
        %v2344 = vrot.slane %v1766, 7
        %v2345 = vsel %vm1796, %v2344, %v1764
        %v2346 = vrot.slane %v1768, 6
        %v2347 = vsel %vm1799, %v2346, %v2345
        %v2348 = vrot.slane %v1770, 5
        %v2349 = vsel %vm1802, %v2348, %v2347
        %v2350 = vrot.slane %v1772, 4
        %v2351 = vsel %vm1805, %v2350, %v2349
        %v2352 = vrot.slane %v1774, 3
        %v2353 = vsel %vm1808, %v2352, %v2351
        %v2354 = vrot.slane %v1776, 2
        %v2355 = vsel %vm1811, %v2354, %v2353
        %v2356 = vrot.slane %v1778, 1
        %v2357 = vsel %vm1814, %v2356, %v2355
        %2360 = vrot.lane.b32.xlu0 %v1763, 96
        %v2361 = vpop.permute.xlu0 %2360
        %2362 = vrot.lane.b32.xlu0 %v1764, 96
        %v2363 = vpop.permute.xlu0 %2362
        %v2366 = vrot.slane %v1748, 1
        %v2367 = vsel %vm1796, %v1750, %v2366
        %v2368 = vrot.slane %v1752, 7
        %v2369 = vsel %vm1799, %v2368, %v2367
        %v2370 = vsel %vm1802, %v1969, %v2369
        %v2371 = vrot.slane %v1756, 5
        %v2372 = vsel %vm1805, %v2371, %v2370
        %v2373 = vsel %vm1808, %v2106, %v2372
        %v2374 = vrot.slane %v1760, 3
        %v2375 = vsel %vm1811, %v2374, %v2373
        %v2376 = vsel %vm1814, %v2241, %v2375
        %v2377 = vrot.slane %v1764, 1
        %v2378 = vsel %vm1796, %v1766, %v2377
        %v2379 = vrot.slane %v1768, 7
        %v2380 = vsel %vm1799, %v2379, %v2378
        %v2381 = vrot.slane %v1770, 6
        %v2382 = vsel %vm1802, %v2381, %v2380
        %v2383 = vrot.slane %v1772, 5
        %v2384 = vsel %vm1805, %v2383, %v2382
        %v2385 = vrot.slane %v1774, 4
        %v2386 = vsel %vm1808, %v2385, %v2384
        %v2387 = vrot.slane %v1776, 3
        %v2388 = vsel %vm1811, %v2387, %v2386
        %v2389 = vrot.slane %v1778, 2
        %v2390 = vsel %vm1814, %v2389, %v2388
        %2391 = vrot.lane.b32.xlu0 %v2376, 64
        %v2392 = vpop.permute.xlu0 %2391
        %2393 = vrot.lane.b32.xlu0 %v2390, 64
        %v2394 = vpop.permute.xlu0 %2393
        %2397 = vrot.lane.b32.xlu0 %v1765, 32
        %v2398 = vpop.permute.xlu0 %2397
        %2399 = vrot.lane.b32.xlu0 %v1766, 32
        %v2400 = vpop.permute.xlu0 %2399
        %2403 = vrot.lane.b32.xlu0 %v2343, 96
        %v2404 = vpop.permute.xlu0 %2403
        %2405 = vrot.lane.b32.xlu0 %v2357, 96
        %v2406 = vpop.permute.xlu0 %2405
        %2409 = vrot.lane.b32.xlu0 %v1763, 64
        %v2410 = vpop.permute.xlu0 %2409
        %2411 = vrot.lane.b32.xlu0 %v1764, 64
        %v2412 = vpop.permute.xlu0 %2411
        %2415 = vrot.lane.b32.xlu0 %v2376, 32
        %v2416 = vpop.permute.xlu0 %2415
        %2417 = vrot.lane.b32.xlu0 %v2390, 32
        %v2418 = vpop.permute.xlu0 %2417
        %v2421 = vsel %vm1898, %v2343, %v2361
        %v2422 = vsel %vm1898, %v2357, %v2363
        %v2423 = vsel %vm1901, %v2421, %v2392
        %v2424 = vsel %vm1901, %v2422, %v2394
        %v2425 = vsel %vm1904, %v2423, %v2398
        %v2426 = vsel %vm1904, %v2424, %v2400
        %v2427 = vsel %vm1898, %v2404, %v2410
        %v2428 = vsel %vm1898, %v2406, %v2412
        %v2429 = vsel %vm1901, %v2427, %v2416
        %v2430 = vsel %vm1901, %v2428, %v2418
        %v2431 = vsel %vm1904, %v2429, %v1765
        %v2432 = vsel %vm1904, %v2430, %v1766
        %s2433 = scalar_lea.vmem [#allocation2], 128
        %2434 = vst [vmem:[%s2433] sm:$0xff] %v2425
        %2435 = vst [vmem:[%s2433 + $0x8] sm:$0xff] %v2431
        %2436 = vst [vmem:[%s2433 + $0x10] sm:$0xff] %v2426
        %2437 = vst [vmem:[%s2433 + $0x18] sm:$0xff] %v2432
        %v2438 = vsel %vm1802, %v2333, %v1748
        %v2439 = vsel %vm1805, %v1935, %v2438
        %v2440 = vsel %vm1808, %v2336, %v2439
        %v2441 = vsel %vm1811, %v2072, %v2440
        %v2442 = vsel %vm1814, %v2339, %v2441
        %v2443 = vsel %vm1796, %v2342, %v2207
        %v2444 = vsel %vm1799, %v1764, %v2443
        %v2445 = vsel %vm1802, %v2344, %v2444
        %v2446 = vsel %vm1805, %v2346, %v2445
        %v2447 = vsel %vm1808, %v2348, %v2446
        %v2448 = vsel %vm1811, %v2350, %v2447
        %v2449 = vsel %vm1814, %v2352, %v2448
        %v2450 = vsel %vm1796, %v2356, %v2354
        %v2454 = vsel %vm1934, %v1818, %v2346
        %2455 = vrot.lane.b32.xlu0 %v1818, 96
        %v2456 = vpop.permute.xlu0 %2455
        %2457 = vrot.lane.b32.xlu0 %v2454, 96
        %v2458 = vpop.permute.xlu0 %2457
        %2459 = vrot.lane.b32.xlu0 %v2346, 96
        %v2460 = vpop.permute.xlu0 %2459
        %v2464 = vsel %vm1802, %v1750, %v2366
        %v2465 = vsel %vm1805, %v2368, %v2464
        %v2466 = vsel %vm1808, %v1969, %v2465
        %v2467 = vsel %vm1811, %v2371, %v2466
        %v2468 = vsel %vm1814, %v2106, %v2467
        %v2469 = vsel %vm1796, %v2241, %v2374
        %v2470 = vsel %vm1799, %v2377, %v2469
        %v2471 = vsel %vm1802, %v1766, %v2470
        %v2472 = vsel %vm1805, %v2379, %v2471
        %v2473 = vsel %vm1808, %v2381, %v2472
        %v2474 = vsel %vm1811, %v2383, %v2473
        %v2475 = vsel %vm1814, %v2385, %v2474
        %v2476 = vsel %vm1796, %v2389, %v2387
        %2477 = vrot.lane.b32.xlu0 %v2468, 64
        %v2478 = vpop.permute.xlu0 %2477
        %2479 = vrot.lane.b32.xlu0 %v2475, 64
        %v2480 = vpop.permute.xlu0 %2479
        %2481 = vrot.lane.b32.xlu0 %v2476, 64
        %v2482 = vpop.permute.xlu0 %2481
        %v2486 = vsel %vm1934, %v1857, %v2381
        %2487 = vrot.lane.b32.xlu0 %v1857, 32
        %v2488 = vpop.permute.xlu0 %2487
        %2489 = vrot.lane.b32.xlu0 %v2486, 32
        %v2490 = vpop.permute.xlu0 %2489
        %2491 = vrot.lane.b32.xlu0 %v2381, 32
        %v2492 = vpop.permute.xlu0 %2491
        %2496 = vrot.lane.b32.xlu0 %v2442, 96
        %v2497 = vpop.permute.xlu0 %2496
        %2498 = vrot.lane.b32.xlu0 %v2449, 96
        %v2499 = vpop.permute.xlu0 %2498
        %2500 = vrot.lane.b32.xlu0 %v2450, 96
        %v2501 = vpop.permute.xlu0 %2500
        %2505 = vrot.lane.b32.xlu0 %v1818, 64
        %v2506 = vpop.permute.xlu0 %2505
        %2507 = vrot.lane.b32.xlu0 %v2454, 64
        %v2508 = vpop.permute.xlu0 %2507
        %2509 = vrot.lane.b32.xlu0 %v2346, 64
        %v2510 = vpop.permute.xlu0 %2509
        %2514 = vrot.lane.b32.xlu0 %v2468, 32
        %v2515 = vpop.permute.xlu0 %2514
        %2516 = vrot.lane.b32.xlu0 %v2475, 32
        %v2517 = vpop.permute.xlu0 %2516
        %2518 = vrot.lane.b32.xlu0 %v2476, 32
        %v2519 = vpop.permute.xlu0 %2518
        %v2526 = vsel %vm1898, %v2442, %v2456
        %v2527 = vsel %vm1898, %v2449, %v2458
        %v2528 = vsel %vm1898, %v2450, %v2460
        %v2529 = vsel %vm1901, %v2526, %v2478
        %v2530 = vsel %vm1901, %v2527, %v2480
        %v2531 = vsel %vm1901, %v2528, %v2482
        %v2532 = vsel %vm1904, %v2529, %v2488
        %v2533 = vsel %vm1904, %v2530, %v2490
        %v2534 = vsel %vm1904, %v2531, %v2492
        %v2535 = vsel %vm1898, %v2497, %v2506
        %v2536 = vsel %vm1898, %v2499, %v2508
        %v2537 = vsel %vm1898, %v2501, %v2510
        %v2538 = vsel %vm1901, %v2535, %v2515
        %v2539 = vsel %vm1901, %v2536, %v2517
        %v2540 = vsel %vm1901, %v2537, %v2519
        %v2541 = vsel %vm1904, %v2538, %v1857
        %v2542 = vsel %vm1904, %v2539, %v2486
        %v2543 = vsel %vm1904, %v2540, %v2381
        %v2550 = vrot.slane %v2532, 2
        %v2551 = vrot.slane %v2533, 2
        %v2552 = vsel %vm2034, %v2550, %v2551
        %v2553 = vrot.slane %v2541, 2
        %v2554 = vrot.slane %v2542, 2
        %v2555 = vsel %vm2034, %v2553, %v2554
        %v2556 = vrot.slane %v2534, 2
        %v2557 = vsel %vm2034, %v2551, %v2556
        %v2558 = vrot.slane %v2543, 2
        %v2559 = vsel %vm2034, %v2554, %v2558
        %s2564 = scalar_lea.vmem [#allocation2], 160
        %2565 = vst [vmem:[%s2564] sm:$0xff] %v2552
        %2566 = vst [vmem:[%s2564 + $0x8] sm:$0xff] %v2555
        %2567 = vst [vmem:[%s2564 + $0x10] sm:$0xff] %v2557
        %2568 = vst [vmem:[%s2564 + $0x18] sm:$0xff] %v2559
        %v2569 = vsel %vm1808, %v2333, %v1748
        %v2570 = vsel %vm1811, %v1935, %v2569
        %v2571 = vsel %vm1814, %v2336, %v2570
        %v2572 = vsel %vm1796, %v2339, %v2072
        %v2573 = vsel %vm1799, %v2207, %v2572
        %v2574 = vsel %vm1802, %v2342, %v2573
        %v2575 = vsel %vm1805, %v1764, %v2574
        %v2576 = vsel %vm1808, %v2344, %v2575
        %v2577 = vsel %vm1811, %v2346, %v2576
        %v2578 = vsel %vm1814, %v2348, %v2577
        %v2579 = vsel %vm1796, %v2352, %v2350
        %v2580 = vsel %vm1799, %v2354, %v2579
        %v2581 = vsel %vm1802, %v2356, %v2580
        %v2585 = vsel %vm2071, %v1822, %v2350
        %2586 = vrot.lane.b32.xlu0 %v1822, 96
        %v2587 = vpop.permute.xlu0 %2586
        %2588 = vrot.lane.b32.xlu0 %v2585, 96
        %v2589 = vpop.permute.xlu0 %2588
        %2590 = vrot.lane.b32.xlu0 %v2350, 96
        %v2591 = vpop.permute.xlu0 %2590
        %v2595 = vsel %vm1808, %v1750, %v2366
        %v2596 = vsel %vm1811, %v2368, %v2595
        %v2597 = vsel %vm1814, %v1969, %v2596
        %v2598 = vsel %vm1796, %v2106, %v2371
        %v2599 = vsel %vm1799, %v2374, %v2598
        %v2600 = vsel %vm1802, %v2241, %v2599
        %v2601 = vsel %vm1805, %v2377, %v2600
        %v2602 = vsel %vm1808, %v1766, %v2601
        %v2603 = vsel %vm1811, %v2379, %v2602
        %v2604 = vsel %vm1814, %v2381, %v2603
        %v2605 = vsel %vm1796, %v2385, %v2383
        %v2606 = vsel %vm1799, %v2387, %v2605
        %v2607 = vsel %vm1802, %v2389, %v2606
        %2608 = vrot.lane.b32.xlu0 %v2597, 64
        %v2609 = vpop.permute.xlu0 %2608
        %2610 = vrot.lane.b32.xlu0 %v2604, 64
        %v2611 = vpop.permute.xlu0 %2610
        %2612 = vrot.lane.b32.xlu0 %v2607, 64
        %v2613 = vpop.permute.xlu0 %2612
        %v2617 = vsel %vm2071, %v1861, %v2385
        %2618 = vrot.lane.b32.xlu0 %v1861, 32
        %v2619 = vpop.permute.xlu0 %2618
        %2620 = vrot.lane.b32.xlu0 %v2617, 32
        %v2621 = vpop.permute.xlu0 %2620
        %2622 = vrot.lane.b32.xlu0 %v2385, 32
        %v2623 = vpop.permute.xlu0 %2622
        %2627 = vrot.lane.b32.xlu0 %v2571, 96
        %v2628 = vpop.permute.xlu0 %2627
        %2629 = vrot.lane.b32.xlu0 %v2578, 96
        %v2630 = vpop.permute.xlu0 %2629
        %2631 = vrot.lane.b32.xlu0 %v2581, 96
        %v2632 = vpop.permute.xlu0 %2631
        %2636 = vrot.lane.b32.xlu0 %v1822, 64
        %v2637 = vpop.permute.xlu0 %2636
        %2638 = vrot.lane.b32.xlu0 %v2585, 64
        %v2639 = vpop.permute.xlu0 %2638
        %2640 = vrot.lane.b32.xlu0 %v2350, 64
        %v2641 = vpop.permute.xlu0 %2640
        %2645 = vrot.lane.b32.xlu0 %v2597, 32
        %v2646 = vpop.permute.xlu0 %2645
        %2647 = vrot.lane.b32.xlu0 %v2604, 32
        %v2648 = vpop.permute.xlu0 %2647
        %2649 = vrot.lane.b32.xlu0 %v2607, 32
        %v2650 = vpop.permute.xlu0 %2649
        %v2657 = vsel %vm1898, %v2571, %v2587
        %v2658 = vsel %vm1898, %v2578, %v2589
        %v2659 = vsel %vm1898, %v2581, %v2591
        %v2660 = vsel %vm1901, %v2657, %v2609
        %v2661 = vsel %vm1901, %v2658, %v2611
        %v2662 = vsel %vm1901, %v2659, %v2613
        %v2663 = vsel %vm1904, %v2660, %v2619
        %v2664 = vsel %vm1904, %v2661, %v2621
        %v2665 = vsel %vm1904, %v2662, %v2623
        %v2666 = vsel %vm1898, %v2628, %v2637
        %v2667 = vsel %vm1898, %v2630, %v2639
        %v2668 = vsel %vm1898, %v2632, %v2641
        %v2669 = vsel %vm1901, %v2666, %v2646
        %v2670 = vsel %vm1901, %v2667, %v2648
        %v2671 = vsel %vm1901, %v2668, %v2650
        %v2672 = vsel %vm1904, %v2669, %v1861
        %v2673 = vsel %vm1904, %v2670, %v2617
        %v2674 = vsel %vm1904, %v2671, %v2385
        %v2681 = vrot.slane %v2663, 4
        %v2682 = vrot.slane %v2664, 4
        %v2683 = vsel %vm2071, %v2681, %v2682
        %v2684 = vrot.slane %v2672, 4
        %v2685 = vrot.slane %v2673, 4
        %v2686 = vsel %vm2071, %v2684, %v2685
        %v2687 = vrot.slane %v2665, 4
        %v2688 = vsel %vm2071, %v2682, %v2687
        %v2689 = vrot.slane %v2674, 4
        %v2690 = vsel %vm2071, %v2685, %v2689
        %s2695 = scalar_lea.vmem [#allocation2], 192
        %2696 = vst [vmem:[%s2695] sm:$0xff] %v2683
        %2697 = vst [vmem:[%s2695 + $0x8] sm:$0xff] %v2686
        %2698 = vst [vmem:[%s2695 + $0x10] sm:$0xff] %v2688
        %2699 = vst [vmem:[%s2695 + $0x18] sm:$0xff] %v2690
        %v2700 = vsel %vm1814, %v2333, %v1748
        %v2701 = vsel %vm1796, %v2336, %v1935
        %v2702 = vsel %vm1799, %v2072, %v2701
        %v2703 = vsel %vm1802, %v2339, %v2702
        %v2704 = vsel %vm1805, %v2207, %v2703
        %v2705 = vsel %vm1808, %v2342, %v2704
        %v2706 = vsel %vm1811, %v1764, %v2705
        %v2707 = vsel %vm1814, %v2344, %v2706
        %v2708 = vsel %vm1796, %v2348, %v2346
        %v2709 = vsel %vm1799, %v2350, %v2708
        %v2710 = vsel %vm1802, %v2352, %v2709
        %v2711 = vsel %vm1805, %v2354, %v2710
        %v2712 = vsel %vm1808, %v2356, %v2711
        %v2716 = vsel %vm2034, %v1826, %v2354
        %2717 = vrot.lane.b32.xlu0 %v1826, 96
        %v2718 = vpop.permute.xlu0 %2717
        %2719 = vrot.lane.b32.xlu0 %v2716, 96
        %v2720 = vpop.permute.xlu0 %2719
        %2721 = vrot.lane.b32.xlu0 %v2354, 96
        %v2722 = vpop.permute.xlu0 %2721
        %v2726 = vsel %vm1814, %v1750, %v2366
        %v2727 = vsel %vm1796, %v1969, %v2368
        %v2728 = vsel %vm1799, %v2371, %v2727
        %v2729 = vsel %vm1802, %v2106, %v2728
        %v2730 = vsel %vm1805, %v2374, %v2729
        %v2731 = vsel %vm1808, %v2241, %v2730
        %v2732 = vsel %vm1811, %v2377, %v2731
        %v2733 = vsel %vm1814, %v1766, %v2732
        %v2734 = vsel %vm1796, %v2381, %v2379
        %v2735 = vsel %vm1799, %v2383, %v2734
        %v2736 = vsel %vm1802, %v2385, %v2735
        %v2737 = vsel %vm1805, %v2387, %v2736
        %v2738 = vsel %vm1808, %v2389, %v2737
        %2739 = vrot.lane.b32.xlu0 %v2726, 64
        %v2740 = vpop.permute.xlu0 %2739
        %2741 = vrot.lane.b32.xlu0 %v2733, 64
        %v2742 = vpop.permute.xlu0 %2741
        %2743 = vrot.lane.b32.xlu0 %v2738, 64
        %v2744 = vpop.permute.xlu0 %2743
        %v2748 = vsel %vm2034, %v1865, %v2389
        %2749 = vrot.lane.b32.xlu0 %v1865, 32
        %v2750 = vpop.permute.xlu0 %2749
        %2751 = vrot.lane.b32.xlu0 %v2748, 32
        %v2752 = vpop.permute.xlu0 %2751
        %2753 = vrot.lane.b32.xlu0 %v2389, 32
        %v2754 = vpop.permute.xlu0 %2753
        %2758 = vrot.lane.b32.xlu0 %v2700, 96
        %v2759 = vpop.permute.xlu0 %2758
        %2760 = vrot.lane.b32.xlu0 %v2707, 96
        %v2761 = vpop.permute.xlu0 %2760
        %2762 = vrot.lane.b32.xlu0 %v2712, 96
        %v2763 = vpop.permute.xlu0 %2762
        %2767 = vrot.lane.b32.xlu0 %v1826, 64
        %v2768 = vpop.permute.xlu0 %2767
        %2769 = vrot.lane.b32.xlu0 %v2716, 64
        %v2770 = vpop.permute.xlu0 %2769
        %2771 = vrot.lane.b32.xlu0 %v2354, 64
        %v2772 = vpop.permute.xlu0 %2771
        %2776 = vrot.lane.b32.xlu0 %v2726, 32
        %v2777 = vpop.permute.xlu0 %2776
        %2778 = vrot.lane.b32.xlu0 %v2733, 32
        %v2779 = vpop.permute.xlu0 %2778
        %2780 = vrot.lane.b32.xlu0 %v2738, 32
        %v2781 = vpop.permute.xlu0 %2780
        %v2788 = vsel %vm1898, %v2700, %v2718
        %v2789 = vsel %vm1898, %v2707, %v2720
        %v2790 = vsel %vm1898, %v2712, %v2722
        %v2791 = vsel %vm1901, %v2788, %v2740
        %v2792 = vsel %vm1901, %v2789, %v2742
        %v2793 = vsel %vm1901, %v2790, %v2744
        %v2794 = vsel %vm1904, %v2791, %v2750
        %v2795 = vsel %vm1904, %v2792, %v2752
        %v2796 = vsel %vm1904, %v2793, %v2754
        %v2797 = vsel %vm1898, %v2759, %v2768
        %v2798 = vsel %vm1898, %v2761, %v2770
        %v2799 = vsel %vm1898, %v2763, %v2772
        %v2800 = vsel %vm1901, %v2797, %v2777
        %v2801 = vsel %vm1901, %v2798, %v2779
        %v2802 = vsel %vm1901, %v2799, %v2781
        %v2803 = vsel %vm1904, %v2800, %v1865
        %v2804 = vsel %vm1904, %v2801, %v2748
        %v2805 = vsel %vm1904, %v2802, %v2389
        %v2812 = vrot.slane %v2794, 6
        %v2813 = vrot.slane %v2795, 6
        %v2814 = vsel %vm1934, %v2812, %v2813
        %v2815 = vrot.slane %v2803, 6
        %v2816 = vrot.slane %v2804, 6
        %v2817 = vsel %vm1934, %v2815, %v2816
        %v2818 = vrot.slane %v2796, 6
        %v2819 = vsel %vm1934, %v2813, %v2818
        %v2820 = vrot.slane %v2805, 6
        %v2821 = vsel %vm1934, %v2816, %v2820
        %s2826 = scalar_lea.vmem [#allocation2], 224
        %2827 = vst [vmem:[%s2826] sm:$0xff] %v2814
        %2828 = vst [vmem:[%s2826 + $0x8] sm:$0xff] %v2817
        %2829 = vst [vmem:[%s2826 + $0x10] sm:$0xff] %v2819
        %2830 = vst [vmem:[%s2826 + $0x18] sm:$0xff] %v2821
        %v2831 = vld [vmem:[#allocation2] sm:$0xff]
        %v2832 = vld [vmem:[#allocation2 + $0x8] sm:$0xff]
        %v2833 = vld [vmem:[#allocation2 + $0x10] sm:$0xff]
        %v2834 = vld [vmem:[#allocation2 + $0x18] sm:$0xff]
        %v2837 = vcombine.high %v2831, %v2831
        %v2839 = vunpack.c.l.s4 1966171168
        %v2840 = vunpack.c.0.s8 %v2839
        %v2841 = vlaneseq
        %v2842 = vshrl.u32 %v2841, 7
        %v2843 = vsub.s32 %v2840, %v2842
        %v2844 = vrot.slane %v2831, %v2843
        %v2846 = vunpack.c.l.s4 1966171168
        %v2847 = vunpack.c.0.s8 %v2846
        %v2848 = vlaneseq
        %v2849 = vshrl.u32 %v2848, 7
        %v2850 = vsub.s32 %v2847, %v2849
        %v2851 = vrot.slane %v2837, %v2850
        %v2852 = vcombine.high %v2844, %v2844
        %v2853 = vcombine.high %v2851, %v2851
        %v2855 = vunpack.c.l.s4 1966171168
        %v2856 = vunpack.c.0.s8 %v2855
        %v2857 = vlaneseq
        %v2858 = vshrl.u32 %v2857, 7
        %v2859 = vsub.s32 %v2856, %v2858
        %v2860 = vrot.slane %v2844, %v2859
        %v2862 = vunpack.c.l.s4 1966171168
        %v2863 = vunpack.c.0.s8 %v2862
        %v2864 = vlaneseq
        %v2865 = vshrl.u32 %v2864, 7
        %v2866 = vsub.s32 %v2863, %v2865
        %v2867 = vrot.slane %v2851, %v2866
        %v2869 = vunpack.c.l.s4 1966171168
        %v2870 = vunpack.c.0.s8 %v2869
        %v2871 = vlaneseq
        %v2872 = vshrl.u32 %v2871, 7
        %v2873 = vsub.s32 %v2870, %v2872
        %v2874 = vrot.slane %v2852, %v2873
        %v2876 = vunpack.c.l.s4 1966171168
        %v2877 = vunpack.c.0.s8 %v2876
        %v2878 = vlaneseq
        %v2879 = vshrl.u32 %v2878, 7
        %v2880 = vsub.s32 %v2877, %v2879
        %v2881 = vrot.slane %v2853, %v2880
        %v2882 = vcombine.high %v2860, %v2860
        %v2883 = vcombine.high %v2867, %v2867
        %v2884 = vcombine.high %v2874, %v2874
        %v2885 = vcombine.high %v2881, %v2881
        %v2886 = vcombine.high %v2833, %v2833
        %v2888 = vunpack.c.l.s4 1966171168
        %v2889 = vunpack.c.0.s8 %v2888
        %v2890 = vlaneseq
        %v2891 = vshrl.u32 %v2890, 7
        %v2892 = vsub.s32 %v2889, %v2891
        %v2893 = vrot.slane %v2833, %v2892
        %v2895 = vunpack.c.l.s4 1966171168
        %v2896 = vunpack.c.0.s8 %v2895
        %v2897 = vlaneseq
        %v2898 = vshrl.u32 %v2897, 7
        %v2899 = vsub.s32 %v2896, %v2898
        %v2900 = vrot.slane %v2886, %v2899
        %v2901 = vcombine.high %v2893, %v2893
        %v2902 = vcombine.high %v2900, %v2900
        %v2904 = vunpack.c.l.s4 1966171168
        %v2905 = vunpack.c.0.s8 %v2904
        %v2906 = vlaneseq
        %v2907 = vshrl.u32 %v2906, 7
        %v2908 = vsub.s32 %v2905, %v2907
        %v2909 = vrot.slane %v2893, %v2908
        %v2911 = vunpack.c.l.s4 1966171168
        %v2912 = vunpack.c.0.s8 %v2911
        %v2913 = vlaneseq
        %v2914 = vshrl.u32 %v2913, 7
        %v2915 = vsub.s32 %v2912, %v2914
        %v2916 = vrot.slane %v2900, %v2915
        %v2918 = vunpack.c.l.s4 1966171168
        %v2919 = vunpack.c.0.s8 %v2918
        %v2920 = vlaneseq
        %v2921 = vshrl.u32 %v2920, 7
        %v2922 = vsub.s32 %v2919, %v2921
        %v2923 = vrot.slane %v2901, %v2922
        %v2925 = vunpack.c.l.s4 1966171168
        %v2926 = vunpack.c.0.s8 %v2925
        %v2927 = vlaneseq
        %v2928 = vshrl.u32 %v2927, 7
        %v2929 = vsub.s32 %v2926, %v2928
        %v2930 = vrot.slane %v2902, %v2929
        %v2931 = vcombine.high %v2909, %v2909
        %v2932 = vcombine.high %v2916, %v2916
        %v2933 = vcombine.high %v2923, %v2923
        %v2934 = vcombine.high %v2930, %v2930
        %v2935 = vlaneseq
        %v2936 = vshrl.u32 %v2935, 7
        %v2937 = vsub.s32 0, %v2936
        %v2938 = vrot.slane %v2860, %v2937
        %v2939 = vlaneseq
        %v2940 = vshrl.u32 %v2939, 7
        %v2941 = vsub.s32 0, %v2940
        %v2942 = vrot.slane %v2874, %v2941
        %v2943 = vlaneseq
        %v2944 = vshrl.u32 %v2943, 7
        %v2945 = vsub.s32 0, %v2944
        %v2946 = vrot.slane %v2882, %v2945
        %v2947 = vlaneseq
        %v2948 = vshrl.u32 %v2947, 7
        %v2949 = vsub.s32 0, %v2948
        %v2950 = vrot.slane %v2884, %v2949
        %v2951 = vlaneseq
        %v2952 = vshrl.u32 %v2951, 7
        %v2953 = vsub.s32 0, %v2952
        %v2954 = vrot.slane %v2867, %v2953
        %v2955 = vlaneseq
        %v2956 = vshrl.u32 %v2955, 7
        %v2957 = vsub.s32 0, %v2956
        %v2958 = vrot.slane %v2881, %v2957
        %v2959 = vlaneseq
        %v2960 = vshrl.u32 %v2959, 7
        %v2961 = vsub.s32 0, %v2960
        %v2962 = vrot.slane %v2883, %v2961
        %v2963 = vlaneseq
        %v2964 = vshrl.u32 %v2963, 7
        %v2965 = vsub.s32 0, %v2964
        %v2966 = vrot.slane %v2885, %v2965
        %v2967 = vlaneseq
        %v2968 = vshrl.u32 %v2967, 7
        %v2969 = vsub.s32 0, %v2968
        %v2970 = vrot.slane %v2909, %v2969
        %v2971 = vlaneseq
        %v2972 = vshrl.u32 %v2971, 7
        %v2973 = vsub.s32 0, %v2972
        %v2974 = vrot.slane %v2923, %v2973
        %v2975 = vlaneseq
        %v2976 = vshrl.u32 %v2975, 7
        %v2977 = vsub.s32 0, %v2976
        %v2978 = vrot.slane %v2931, %v2977
        %v2979 = vlaneseq
        %v2980 = vshrl.u32 %v2979, 7
        %v2981 = vsub.s32 0, %v2980
        %v2982 = vrot.slane %v2933, %v2981
        %v2983 = vlaneseq
        %v2984 = vshrl.u32 %v2983, 7
        %v2985 = vsub.s32 0, %v2984
        %v2986 = vrot.slane %v2916, %v2985
        %v2987 = vlaneseq
        %v2988 = vshrl.u32 %v2987, 7
        %v2989 = vsub.s32 0, %v2988
        %v2990 = vrot.slane %v2930, %v2989
        %v2991 = vlaneseq
        %v2992 = vshrl.u32 %v2991, 7
        %v2993 = vsub.s32 0, %v2992
        %v2994 = vrot.slane %v2932, %v2993
        %v2995 = vlaneseq
        %v2996 = vshrl.u32 %v2995, 7
        %v2997 = vsub.s32 0, %v2996
        %v2998 = vrot.slane %v2934, %v2997
        %v3015 = vmul.f32 %v2938, %v2832
        %v3016 = vmul.f32 %v2938, %v2834
        %v3017 = vmul.f32 %v2942, %v2832
        %v3018 = vmul.f32 %v2942, %v2834
        %v3019 = vmul.f32 %v2946, %v2832
        %v3020 = vmul.f32 %v2946, %v2834
        %v3021 = vmul.f32 %v2950, %v2832
        %v3022 = vmul.f32 %v2950, %v2834
        %v3023 = vmul.f32 %v2954, %v2832
        %v3024 = vmul.f32 %v2954, %v2834
        %v3025 = vmul.f32 %v2958, %v2832
        %v3026 = vmul.f32 %v2958, %v2834
        %v3027 = vmul.f32 %v2962, %v2832
        %v3028 = vmul.f32 %v2962, %v2834
        %v3029 = vmul.f32 %v2966, %v2832
        %v3030 = vmul.f32 %v2966, %v2834
        %v3031 = vmul.f32 %v2970, %v2832
        %v3032 = vmul.f32 %v2970, %v2834
        %v3033 = vmul.f32 %v2974, %v2832
        %v3034 = vmul.f32 %v2974, %v2834
        %v3035 = vmul.f32 %v2978, %v2832
        %v3036 = vmul.f32 %v2978, %v2834
        %v3037 = vmul.f32 %v2982, %v2832
        %v3038 = vmul.f32 %v2982, %v2834
        %v3039 = vmul.f32 %v2986, %v2832
        %v3040 = vmul.f32 %v2986, %v2834
        %v3041 = vmul.f32 %v2990, %v2832
        %v3042 = vmul.f32 %v2990, %v2834
        %v3043 = vmul.f32 %v2994, %v2832
        %v3044 = vmul.f32 %v2994, %v2834
        %v3045 = vmul.f32 %v2998, %v2832
        %v3046 = vmul.f32 %v2998, %v2834
        %v3047 = vadd.f32 %v3015, 0.0
        %v3048 = vadd.f32 %v3016, 0.0
        %v3049 = vadd.f32 %v3017, 0.0
        %v3050 = vadd.f32 %v3018, 0.0
        %v3051 = vadd.f32 %v3019, 0.0
        %v3052 = vadd.f32 %v3020, 0.0
        %v3053 = vadd.f32 %v3021, 0.0
        %v3054 = vadd.f32 %v3022, 0.0
        %v3055 = vadd.f32 %v3023, 0.0
        %v3056 = vadd.f32 %v3024, 0.0
        %v3057 = vadd.f32 %v3025, 0.0
        %v3058 = vadd.f32 %v3026, 0.0
        %v3059 = vadd.f32 %v3027, 0.0
        %v3060 = vadd.f32 %v3028, 0.0
        %v3061 = vadd.f32 %v3029, 0.0
        %v3062 = vadd.f32 %v3030, 0.0
        %v3063 = vadd.f32 %v3031, 0.0
        %v3064 = vadd.f32 %v3032, 0.0
        %v3065 = vadd.f32 %v3033, 0.0
        %v3066 = vadd.f32 %v3034, 0.0
        %v3067 = vadd.f32 %v3035, 0.0
        %v3068 = vadd.f32 %v3036, 0.0
        %v3069 = vadd.f32 %v3037, 0.0
        %v3070 = vadd.f32 %v3038, 0.0
        %v3071 = vadd.f32 %v3039, 0.0
        %v3072 = vadd.f32 %v3040, 0.0
        %v3073 = vadd.f32 %v3041, 0.0
        %v3074 = vadd.f32 %v3042, 0.0
        %v3075 = vadd.f32 %v3043, 0.0
        %v3076 = vadd.f32 %v3044, 0.0
        %v3077 = vadd.f32 %v3045, 0.0
        %v3078 = vadd.f32 %v3046, 0.0
        %v3079 = vld [vmem:[%s2049] sm:$0xff]
        %v3080 = vld [vmem:[%s2049 + $0x8] sm:$0xff]
        %v3081 = vld [vmem:[%s2049 + $0x10] sm:$0xff]
        %v3082 = vld [vmem:[%s2049 + $0x18] sm:$0xff]
        %v3085 = vcombine.high %v3079, %v3079
        %v3087 = vunpack.c.l.s4 1966171168
        %v3088 = vunpack.c.0.s8 %v3087
        %v3089 = vlaneseq
        %v3090 = vshrl.u32 %v3089, 7
        %v3091 = vsub.s32 %v3088, %v3090
        %v3092 = vrot.slane %v3079, %v3091
        %v3094 = vunpack.c.l.s4 1966171168
        %v3095 = vunpack.c.0.s8 %v3094
        %v3096 = vlaneseq
        %v3097 = vshrl.u32 %v3096, 7
        %v3098 = vsub.s32 %v3095, %v3097
        %v3099 = vrot.slane %v3085, %v3098
        %v3100 = vcombine.high %v3092, %v3092
        %v3101 = vcombine.high %v3099, %v3099
        %v3103 = vunpack.c.l.s4 1966171168
        %v3104 = vunpack.c.0.s8 %v3103
        %v3105 = vlaneseq
        %v3106 = vshrl.u32 %v3105, 7
        %v3107 = vsub.s32 %v3104, %v3106
        %v3108 = vrot.slane %v3092, %v3107
        %v3110 = vunpack.c.l.s4 1966171168
        %v3111 = vunpack.c.0.s8 %v3110
        %v3112 = vlaneseq
        %v3113 = vshrl.u32 %v3112, 7
        %v3114 = vsub.s32 %v3111, %v3113
        %v3115 = vrot.slane %v3099, %v3114
        %v3117 = vunpack.c.l.s4 1966171168
        %v3118 = vunpack.c.0.s8 %v3117
        %v3119 = vlaneseq
        %v3120 = vshrl.u32 %v3119, 7
        %v3121 = vsub.s32 %v3118, %v3120
        %v3122 = vrot.slane %v3100, %v3121
        %v3124 = vunpack.c.l.s4 1966171168
        %v3125 = vunpack.c.0.s8 %v3124
        %v3126 = vlaneseq
        %v3127 = vshrl.u32 %v3126, 7
        %v3128 = vsub.s32 %v3125, %v3127
        %v3129 = vrot.slane %v3101, %v3128
        %v3130 = vcombine.high %v3108, %v3108
        %v3131 = vcombine.high %v3115, %v3115
        %v3132 = vcombine.high %v3122, %v3122
        %v3133 = vcombine.high %v3129, %v3129
        %v3134 = vcombine.high %v3081, %v3081
        %v3136 = vunpack.c.l.s4 1966171168
        %v3137 = vunpack.c.0.s8 %v3136
        %v3138 = vlaneseq
        %v3139 = vshrl.u32 %v3138, 7
        %v3140 = vsub.s32 %v3137, %v3139
        %v3141 = vrot.slane %v3081, %v3140
        %v3143 = vunpack.c.l.s4 1966171168
        %v3144 = vunpack.c.0.s8 %v3143
        %v3145 = vlaneseq
        %v3146 = vshrl.u32 %v3145, 7
        %v3147 = vsub.s32 %v3144, %v3146
        %v3148 = vrot.slane %v3134, %v3147
        %v3149 = vcombine.high %v3141, %v3141
        %v3150 = vcombine.high %v3148, %v3148
        %v3152 = vunpack.c.l.s4 1966171168
        %v3153 = vunpack.c.0.s8 %v3152
        %v3154 = vlaneseq
        %v3155 = vshrl.u32 %v3154, 7
        %v3156 = vsub.s32 %v3153, %v3155
        %v3157 = vrot.slane %v3141, %v3156
        %v3159 = vunpack.c.l.s4 1966171168
        %v3160 = vunpack.c.0.s8 %v3159
        %v3161 = vlaneseq
        %v3162 = vshrl.u32 %v3161, 7
        %v3163 = vsub.s32 %v3160, %v3162
        %v3164 = vrot.slane %v3148, %v3163
        %v3166 = vunpack.c.l.s4 1966171168
        %v3167 = vunpack.c.0.s8 %v3166
        %v3168 = vlaneseq
        %v3169 = vshrl.u32 %v3168, 7
        %v3170 = vsub.s32 %v3167, %v3169
        %v3171 = vrot.slane %v3149, %v3170
        %v3173 = vunpack.c.l.s4 1966171168
        %v3174 = vunpack.c.0.s8 %v3173
        %v3175 = vlaneseq
        %v3176 = vshrl.u32 %v3175, 7
        %v3177 = vsub.s32 %v3174, %v3176
        %v3178 = vrot.slane %v3150, %v3177
        %v3179 = vcombine.high %v3157, %v3157
        %v3180 = vcombine.high %v3164, %v3164
        %v3181 = vcombine.high %v3171, %v3171
        %v3182 = vcombine.high %v3178, %v3178
        %v3183 = vlaneseq
        %v3184 = vshrl.u32 %v3183, 7
        %v3185 = vsub.s32 0, %v3184
        %v3186 = vrot.slane %v3108, %v3185
        %v3187 = vlaneseq
        %v3188 = vshrl.u32 %v3187, 7
        %v3189 = vsub.s32 0, %v3188
        %v3190 = vrot.slane %v3122, %v3189
        %v3191 = vlaneseq
        %v3192 = vshrl.u32 %v3191, 7
        %v3193 = vsub.s32 0, %v3192
        %v3194 = vrot.slane %v3130, %v3193
        %v3195 = vlaneseq
        %v3196 = vshrl.u32 %v3195, 7
        %v3197 = vsub.s32 0, %v3196
        %v3198 = vrot.slane %v3132, %v3197
        %v3199 = vlaneseq
        %v3200 = vshrl.u32 %v3199, 7
        %v3201 = vsub.s32 0, %v3200
        %v3202 = vrot.slane %v3115, %v3201
        %v3203 = vlaneseq
        %v3204 = vshrl.u32 %v3203, 7
        %v3205 = vsub.s32 0, %v3204
        %v3206 = vrot.slane %v3129, %v3205
        %v3207 = vlaneseq
        %v3208 = vshrl.u32 %v3207, 7
        %v3209 = vsub.s32 0, %v3208
        %v3210 = vrot.slane %v3131, %v3209
        %v3211 = vlaneseq
        %v3212 = vshrl.u32 %v3211, 7
        %v3213 = vsub.s32 0, %v3212
        %v3214 = vrot.slane %v3133, %v3213
        %v3215 = vlaneseq
        %v3216 = vshrl.u32 %v3215, 7
        %v3217 = vsub.s32 0, %v3216
        %v3218 = vrot.slane %v3157, %v3217
        %v3219 = vlaneseq
        %v3220 = vshrl.u32 %v3219, 7
        %v3221 = vsub.s32 0, %v3220
        %v3222 = vrot.slane %v3171, %v3221
        %v3223 = vlaneseq
        %v3224 = vshrl.u32 %v3223, 7
        %v3225 = vsub.s32 0, %v3224
        %v3226 = vrot.slane %v3179, %v3225
        %v3227 = vlaneseq
        %v3228 = vshrl.u32 %v3227, 7
        %v3229 = vsub.s32 0, %v3228
        %v3230 = vrot.slane %v3181, %v3229
        %v3231 = vlaneseq
        %v3232 = vshrl.u32 %v3231, 7
        %v3233 = vsub.s32 0, %v3232
        %v3234 = vrot.slane %v3164, %v3233
        %v3235 = vlaneseq
        %v3236 = vshrl.u32 %v3235, 7
        %v3237 = vsub.s32 0, %v3236
        %v3238 = vrot.slane %v3178, %v3237
        %v3239 = vlaneseq
        %v3240 = vshrl.u32 %v3239, 7
        %v3241 = vsub.s32 0, %v3240
        %v3242 = vrot.slane %v3180, %v3241
        %v3243 = vlaneseq
        %v3244 = vshrl.u32 %v3243, 7
        %v3245 = vsub.s32 0, %v3244
        %v3246 = vrot.slane %v3182, %v3245
        %v3263 = vmul.f32 %v3186, %v3080
        %v3264 = vmul.f32 %v3186, %v3082
        %v3265 = vmul.f32 %v3190, %v3080
        %v3266 = vmul.f32 %v3190, %v3082
        %v3267 = vmul.f32 %v3194, %v3080
        %v3268 = vmul.f32 %v3194, %v3082
        %v3269 = vmul.f32 %v3198, %v3080
        %v3270 = vmul.f32 %v3198, %v3082
        %v3271 = vmul.f32 %v3202, %v3080
        %v3272 = vmul.f32 %v3202, %v3082
        %v3273 = vmul.f32 %v3206, %v3080
        %v3274 = vmul.f32 %v3206, %v3082
        %v3275 = vmul.f32 %v3210, %v3080
        %v3276 = vmul.f32 %v3210, %v3082
        %v3277 = vmul.f32 %v3214, %v3080
        %v3278 = vmul.f32 %v3214, %v3082
        %v3279 = vmul.f32 %v3218, %v3080
        %v3280 = vmul.f32 %v3218, %v3082
        %v3281 = vmul.f32 %v3222, %v3080
        %v3282 = vmul.f32 %v3222, %v3082
        %v3283 = vmul.f32 %v3226, %v3080
        %v3284 = vmul.f32 %v3226, %v3082
        %v3285 = vmul.f32 %v3230, %v3080
        %v3286 = vmul.f32 %v3230, %v3082
        %v3287 = vmul.f32 %v3234, %v3080
        %v3288 = vmul.f32 %v3234, %v3082
        %v3289 = vmul.f32 %v3238, %v3080
        %v3290 = vmul.f32 %v3238, %v3082
        %v3291 = vmul.f32 %v3242, %v3080
        %v3292 = vmul.f32 %v3242, %v3082
        %v3293 = vmul.f32 %v3246, %v3080
        %v3294 = vmul.f32 %v3246, %v3082
        %v3295 = vadd.f32 %v3047, %v3263
        %v3296 = vadd.f32 %v3048, %v3264
        %v3297 = vadd.f32 %v3049, %v3265
        %v3298 = vadd.f32 %v3050, %v3266
        %v3299 = vadd.f32 %v3051, %v3267
        %v3300 = vadd.f32 %v3052, %v3268
        %v3301 = vadd.f32 %v3053, %v3269
        %v3302 = vadd.f32 %v3054, %v3270
        %v3303 = vadd.f32 %v3055, %v3271
        %v3304 = vadd.f32 %v3056, %v3272
        %v3305 = vadd.f32 %v3057, %v3273
        %v3306 = vadd.f32 %v3058, %v3274
        %v3307 = vadd.f32 %v3059, %v3275
        %v3308 = vadd.f32 %v3060, %v3276
        %v3309 = vadd.f32 %v3061, %v3277
        %v3310 = vadd.f32 %v3062, %v3278
        %v3311 = vadd.f32 %v3063, %v3279
        %v3312 = vadd.f32 %v3064, %v3280
        %v3313 = vadd.f32 %v3065, %v3281
        %v3314 = vadd.f32 %v3066, %v3282
        %v3315 = vadd.f32 %v3067, %v3283
        %v3316 = vadd.f32 %v3068, %v3284
        %v3317 = vadd.f32 %v3069, %v3285
        %v3318 = vadd.f32 %v3070, %v3286
        %v3319 = vadd.f32 %v3071, %v3287
        %v3320 = vadd.f32 %v3072, %v3288
        %v3321 = vadd.f32 %v3073, %v3289
        %v3322 = vadd.f32 %v3074, %v3290
        %v3323 = vadd.f32 %v3075, %v3291
        %v3324 = vadd.f32 %v3076, %v3292
        %v3325 = vadd.f32 %v3077, %v3293
        %v3326 = vadd.f32 %v3078, %v3294
        %v3327 = vld [vmem:[%s2185] sm:$0xff]
        %v3328 = vld [vmem:[%s2185 + $0x8] sm:$0xff]
        %v3329 = vld [vmem:[%s2185 + $0x10] sm:$0xff]
        %v3330 = vld [vmem:[%s2185 + $0x18] sm:$0xff]
        %v3333 = vcombine.high %v3327, %v3327
        %v3335 = vunpack.c.l.s4 1966171168
        %v3336 = vunpack.c.0.s8 %v3335
        %v3337 = vlaneseq
        %v3338 = vshrl.u32 %v3337, 7
        %v3339 = vsub.s32 %v3336, %v3338
        %v3340 = vrot.slane %v3327, %v3339
        %v3342 = vunpack.c.l.s4 1966171168
        %v3343 = vunpack.c.0.s8 %v3342
        %v3344 = vlaneseq
        %v3345 = vshrl.u32 %v3344, 7
        %v3346 = vsub.s32 %v3343, %v3345
        %v3347 = vrot.slane %v3333, %v3346
        %v3348 = vcombine.high %v3340, %v3340
        %v3349 = vcombine.high %v3347, %v3347
        %v3351 = vunpack.c.l.s4 1966171168
        %v3352 = vunpack.c.0.s8 %v3351
        %v3353 = vlaneseq
        %v3354 = vshrl.u32 %v3353, 7
        %v3355 = vsub.s32 %v3352, %v3354
        %v3356 = vrot.slane %v3340, %v3355
        %v3358 = vunpack.c.l.s4 1966171168
        %v3359 = vunpack.c.0.s8 %v3358
        %v3360 = vlaneseq
        %v3361 = vshrl.u32 %v3360, 7
        %v3362 = vsub.s32 %v3359, %v3361
        %v3363 = vrot.slane %v3347, %v3362
        %v3365 = vunpack.c.l.s4 1966171168
        %v3366 = vunpack.c.0.s8 %v3365
        %v3367 = vlaneseq
        %v3368 = vshrl.u32 %v3367, 7
        %v3369 = vsub.s32 %v3366, %v3368
        %v3370 = vrot.slane %v3348, %v3369
        %v3372 = vunpack.c.l.s4 1966171168
        %v3373 = vunpack.c.0.s8 %v3372
        %v3374 = vlaneseq
        %v3375 = vshrl.u32 %v3374, 7
        %v3376 = vsub.s32 %v3373, %v3375
        %v3377 = vrot.slane %v3349, %v3376
        %v3378 = vcombine.high %v3356, %v3356
        %v3379 = vcombine.high %v3363, %v3363
        %v3380 = vcombine.high %v3370, %v3370
        %v3381 = vcombine.high %v3377, %v3377
        %v3382 = vcombine.high %v3329, %v3329
        %v3384 = vunpack.c.l.s4 1966171168
        %v3385 = vunpack.c.0.s8 %v3384
        %v3386 = vlaneseq
        %v3387 = vshrl.u32 %v3386, 7
        %v3388 = vsub.s32 %v3385, %v3387
        %v3389 = vrot.slane %v3329, %v3388
        %v3391 = vunpack.c.l.s4 1966171168
        %v3392 = vunpack.c.0.s8 %v3391
        %v3393 = vlaneseq
        %v3394 = vshrl.u32 %v3393, 7
        %v3395 = vsub.s32 %v3392, %v3394
        %v3396 = vrot.slane %v3382, %v3395
        %v3397 = vcombine.high %v3389, %v3389
        %v3398 = vcombine.high %v3396, %v3396
        %v3400 = vunpack.c.l.s4 1966171168
        %v3401 = vunpack.c.0.s8 %v3400
        %v3402 = vlaneseq
        %v3403 = vshrl.u32 %v3402, 7
        %v3404 = vsub.s32 %v3401, %v3403
        %v3405 = vrot.slane %v3389, %v3404
        %v3407 = vunpack.c.l.s4 1966171168
        %v3408 = vunpack.c.0.s8 %v3407
        %v3409 = vlaneseq
        %v3410 = vshrl.u32 %v3409, 7
        %v3411 = vsub.s32 %v3408, %v3410
        %v3412 = vrot.slane %v3396, %v3411
        %v3414 = vunpack.c.l.s4 1966171168
        %v3415 = vunpack.c.0.s8 %v3414
        %v3416 = vlaneseq
        %v3417 = vshrl.u32 %v3416, 7
        %v3418 = vsub.s32 %v3415, %v3417
        %v3419 = vrot.slane %v3397, %v3418
        %v3421 = vunpack.c.l.s4 1966171168
        %v3422 = vunpack.c.0.s8 %v3421
        %v3423 = vlaneseq
        %v3424 = vshrl.u32 %v3423, 7
        %v3425 = vsub.s32 %v3422, %v3424
        %v3426 = vrot.slane %v3398, %v3425
        %v3427 = vcombine.high %v3405, %v3405
        %v3428 = vcombine.high %v3412, %v3412
        %v3429 = vcombine.high %v3419, %v3419
        %v3430 = vcombine.high %v3426, %v3426
        %v3431 = vlaneseq
        %v3432 = vshrl.u32 %v3431, 7
        %v3433 = vsub.s32 0, %v3432
        %v3434 = vrot.slane %v3356, %v3433
        %v3435 = vlaneseq
        %v3436 = vshrl.u32 %v3435, 7
        %v3437 = vsub.s32 0, %v3436
        %v3438 = vrot.slane %v3370, %v3437
        %v3439 = vlaneseq
        %v3440 = vshrl.u32 %v3439, 7
        %v3441 = vsub.s32 0, %v3440
        %v3442 = vrot.slane %v3378, %v3441
        %v3443 = vlaneseq
        %v3444 = vshrl.u32 %v3443, 7
        %v3445 = vsub.s32 0, %v3444
        %v3446 = vrot.slane %v3380, %v3445
        %v3447 = vlaneseq
        %v3448 = vshrl.u32 %v3447, 7
        %v3449 = vsub.s32 0, %v3448
        %v3450 = vrot.slane %v3363, %v3449
        %v3451 = vlaneseq
        %v3452 = vshrl.u32 %v3451, 7
        %v3453 = vsub.s32 0, %v3452
        %v3454 = vrot.slane %v3377, %v3453
        %v3455 = vlaneseq
        %v3456 = vshrl.u32 %v3455, 7
        %v3457 = vsub.s32 0, %v3456
        %v3458 = vrot.slane %v3379, %v3457
        %v3459 = vlaneseq
        %v3460 = vshrl.u32 %v3459, 7
        %v3461 = vsub.s32 0, %v3460
        %v3462 = vrot.slane %v3381, %v3461
        %v3463 = vlaneseq
        %v3464 = vshrl.u32 %v3463, 7
        %v3465 = vsub.s32 0, %v3464
        %v3466 = vrot.slane %v3405, %v3465
        %v3467 = vlaneseq
        %v3468 = vshrl.u32 %v3467, 7
        %v3469 = vsub.s32 0, %v3468
        %v3470 = vrot.slane %v3419, %v3469
        %v3471 = vlaneseq
        %v3472 = vshrl.u32 %v3471, 7
        %v3473 = vsub.s32 0, %v3472
        %v3474 = vrot.slane %v3427, %v3473
        %v3475 = vlaneseq
        %v3476 = vshrl.u32 %v3475, 7
        %v3477 = vsub.s32 0, %v3476
        %v3478 = vrot.slane %v3429, %v3477
        %v3479 = vlaneseq
        %v3480 = vshrl.u32 %v3479, 7
        %v3481 = vsub.s32 0, %v3480
        %v3482 = vrot.slane %v3412, %v3481
        %v3483 = vlaneseq
        %v3484 = vshrl.u32 %v3483, 7
        %v3485 = vsub.s32 0, %v3484
        %v3486 = vrot.slane %v3426, %v3485
        %v3487 = vlaneseq
        %v3488 = vshrl.u32 %v3487, 7
        %v3489 = vsub.s32 0, %v3488
        %v3490 = vrot.slane %v3428, %v3489
        %v3491 = vlaneseq
        %v3492 = vshrl.u32 %v3491, 7
        %v3493 = vsub.s32 0, %v3492
        %v3494 = vrot.slane %v3430, %v3493
        %v3511 = vmul.f32 %v3434, %v3328
        %v3512 = vmul.f32 %v3434, %v3330
        %v3513 = vmul.f32 %v3438, %v3328
        %v3514 = vmul.f32 %v3438, %v3330
        %v3515 = vmul.f32 %v3442, %v3328
        %v3516 = vmul.f32 %v3442, %v3330
        %v3517 = vmul.f32 %v3446, %v3328
        %v3518 = vmul.f32 %v3446, %v3330
        %v3519 = vmul.f32 %v3450, %v3328
        %v3520 = vmul.f32 %v3450, %v3330
        %v3521 = vmul.f32 %v3454, %v3328
        %v3522 = vmul.f32 %v3454, %v3330
        %v3523 = vmul.f32 %v3458, %v3328
        %v3524 = vmul.f32 %v3458, %v3330
        %v3525 = vmul.f32 %v3462, %v3328
        %v3526 = vmul.f32 %v3462, %v3330
        %v3527 = vmul.f32 %v3466, %v3328
        %v3528 = vmul.f32 %v3466, %v3330
        %v3529 = vmul.f32 %v3470, %v3328
        %v3530 = vmul.f32 %v3470, %v3330
        %v3531 = vmul.f32 %v3474, %v3328
        %v3532 = vmul.f32 %v3474, %v3330
        %v3533 = vmul.f32 %v3478, %v3328
        %v3534 = vmul.f32 %v3478, %v3330
        %v3535 = vmul.f32 %v3482, %v3328
        %v3536 = vmul.f32 %v3482, %v3330
        %v3537 = vmul.f32 %v3486, %v3328
        %v3538 = vmul.f32 %v3486, %v3330
        %v3539 = vmul.f32 %v3490, %v3328
        %v3540 = vmul.f32 %v3490, %v3330
        %v3541 = vmul.f32 %v3494, %v3328
        %v3542 = vmul.f32 %v3494, %v3330
        %v3543 = vadd.f32 %v3295, %v3511
        %v3544 = vadd.f32 %v3296, %v3512
        %v3545 = vadd.f32 %v3297, %v3513
        %v3546 = vadd.f32 %v3298, %v3514
        %v3547 = vadd.f32 %v3299, %v3515
        %v3548 = vadd.f32 %v3300, %v3516
        %v3549 = vadd.f32 %v3301, %v3517
        %v3550 = vadd.f32 %v3302, %v3518
        %v3551 = vadd.f32 %v3303, %v3519
        %v3552 = vadd.f32 %v3304, %v3520
        %v3553 = vadd.f32 %v3305, %v3521
        %v3554 = vadd.f32 %v3306, %v3522
        %v3555 = vadd.f32 %v3307, %v3523
        %v3556 = vadd.f32 %v3308, %v3524
        %v3557 = vadd.f32 %v3309, %v3525
        %v3558 = vadd.f32 %v3310, %v3526
        %v3559 = vadd.f32 %v3311, %v3527
        %v3560 = vadd.f32 %v3312, %v3528
        %v3561 = vadd.f32 %v3313, %v3529
        %v3562 = vadd.f32 %v3314, %v3530
        %v3563 = vadd.f32 %v3315, %v3531
        %v3564 = vadd.f32 %v3316, %v3532
        %v3565 = vadd.f32 %v3317, %v3533
        %v3566 = vadd.f32 %v3318, %v3534
        %v3567 = vadd.f32 %v3319, %v3535
        %v3568 = vadd.f32 %v3320, %v3536
        %v3569 = vadd.f32 %v3321, %v3537
        %v3570 = vadd.f32 %v3322, %v3538
        %v3571 = vadd.f32 %v3323, %v3539
        %v3572 = vadd.f32 %v3324, %v3540
        %v3573 = vadd.f32 %v3325, %v3541
        %v3574 = vadd.f32 %v3326, %v3542
        %v3575 = vld [vmem:[%s2320] sm:$0xff]
        %v3576 = vld [vmem:[%s2320 + $0x8] sm:$0xff]
        %v3577 = vld [vmem:[%s2320 + $0x10] sm:$0xff]
        %v3578 = vld [vmem:[%s2320 + $0x18] sm:$0xff]
        %v3581 = vcombine.high %v3575, %v3575
        %v3583 = vunpack.c.l.s4 1966171168
        %v3584 = vunpack.c.0.s8 %v3583
        %v3585 = vlaneseq
        %v3586 = vshrl.u32 %v3585, 7
        %v3587 = vsub.s32 %v3584, %v3586
        %v3588 = vrot.slane %v3575, %v3587
        %v3590 = vunpack.c.l.s4 1966171168
        %v3591 = vunpack.c.0.s8 %v3590
        %v3592 = vlaneseq
        %v3593 = vshrl.u32 %v3592, 7
        %v3594 = vsub.s32 %v3591, %v3593
        %v3595 = vrot.slane %v3581, %v3594
        %v3596 = vcombine.high %v3588, %v3588
        %v3597 = vcombine.high %v3595, %v3595
        %v3599 = vunpack.c.l.s4 1966171168
        %v3600 = vunpack.c.0.s8 %v3599
        %v3601 = vlaneseq
        %v3602 = vshrl.u32 %v3601, 7
        %v3603 = vsub.s32 %v3600, %v3602
        %v3604 = vrot.slane %v3588, %v3603
        %v3606 = vunpack.c.l.s4 1966171168
        %v3607 = vunpack.c.0.s8 %v3606
        %v3608 = vlaneseq
        %v3609 = vshrl.u32 %v3608, 7
        %v3610 = vsub.s32 %v3607, %v3609
        %v3611 = vrot.slane %v3595, %v3610
        %v3613 = vunpack.c.l.s4 1966171168
        %v3614 = vunpack.c.0.s8 %v3613
        %v3615 = vlaneseq
        %v3616 = vshrl.u32 %v3615, 7
        %v3617 = vsub.s32 %v3614, %v3616
        %v3618 = vrot.slane %v3596, %v3617
        %v3620 = vunpack.c.l.s4 1966171168
        %v3621 = vunpack.c.0.s8 %v3620
        %v3622 = vlaneseq
        %v3623 = vshrl.u32 %v3622, 7
        %v3624 = vsub.s32 %v3621, %v3623
        %v3625 = vrot.slane %v3597, %v3624
        %v3626 = vcombine.high %v3604, %v3604
        %v3627 = vcombine.high %v3611, %v3611
        %v3628 = vcombine.high %v3618, %v3618
        %v3629 = vcombine.high %v3625, %v3625
        %v3630 = vcombine.high %v3577, %v3577
        %v3632 = vunpack.c.l.s4 1966171168
        %v3633 = vunpack.c.0.s8 %v3632
        %v3634 = vlaneseq
        %v3635 = vshrl.u32 %v3634, 7
        %v3636 = vsub.s32 %v3633, %v3635
        %v3637 = vrot.slane %v3577, %v3636
        %v3639 = vunpack.c.l.s4 1966171168
        %v3640 = vunpack.c.0.s8 %v3639
        %v3641 = vlaneseq
        %v3642 = vshrl.u32 %v3641, 7
        %v3643 = vsub.s32 %v3640, %v3642
        %v3644 = vrot.slane %v3630, %v3643
        %v3645 = vcombine.high %v3637, %v3637
        %v3646 = vcombine.high %v3644, %v3644
        %v3648 = vunpack.c.l.s4 1966171168
        %v3649 = vunpack.c.0.s8 %v3648
        %v3650 = vlaneseq
        %v3651 = vshrl.u32 %v3650, 7
        %v3652 = vsub.s32 %v3649, %v3651
        %v3653 = vrot.slane %v3637, %v3652
        %v3655 = vunpack.c.l.s4 1966171168
        %v3656 = vunpack.c.0.s8 %v3655
        %v3657 = vlaneseq
        %v3658 = vshrl.u32 %v3657, 7
        %v3659 = vsub.s32 %v3656, %v3658
        %v3660 = vrot.slane %v3644, %v3659
        %v3662 = vunpack.c.l.s4 1966171168
        %v3663 = vunpack.c.0.s8 %v3662
        %v3664 = vlaneseq
        %v3665 = vshrl.u32 %v3664, 7
        %v3666 = vsub.s32 %v3663, %v3665
        %v3667 = vrot.slane %v3645, %v3666
        %v3669 = vunpack.c.l.s4 1966171168
        %v3670 = vunpack.c.0.s8 %v3669
        %v3671 = vlaneseq
        %v3672 = vshrl.u32 %v3671, 7
        %v3673 = vsub.s32 %v3670, %v3672
        %v3674 = vrot.slane %v3646, %v3673
        %v3675 = vcombine.high %v3653, %v3653
        %v3676 = vcombine.high %v3660, %v3660
        %v3677 = vcombine.high %v3667, %v3667
        %v3678 = vcombine.high %v3674, %v3674
        %v3679 = vlaneseq
        %v3680 = vshrl.u32 %v3679, 7
        %v3681 = vsub.s32 0, %v3680
        %v3682 = vrot.slane %v3604, %v3681
        %v3683 = vlaneseq
        %v3684 = vshrl.u32 %v3683, 7
        %v3685 = vsub.s32 0, %v3684
        %v3686 = vrot.slane %v3618, %v3685
        %v3687 = vlaneseq
        %v3688 = vshrl.u32 %v3687, 7
        %v3689 = vsub.s32 0, %v3688
        %v3690 = vrot.slane %v3626, %v3689
        %v3691 = vlaneseq
        %v3692 = vshrl.u32 %v3691, 7
        %v3693 = vsub.s32 0, %v3692
        %v3694 = vrot.slane %v3628, %v3693
        %v3695 = vlaneseq
        %v3696 = vshrl.u32 %v3695, 7
        %v3697 = vsub.s32 0, %v3696
        %v3698 = vrot.slane %v3611, %v3697
        %v3699 = vlaneseq
        %v3700 = vshrl.u32 %v3699, 7
        %v3701 = vsub.s32 0, %v3700
        %v3702 = vrot.slane %v3625, %v3701
        %v3703 = vlaneseq
        %v3704 = vshrl.u32 %v3703, 7
        %v3705 = vsub.s32 0, %v3704
        %v3706 = vrot.slane %v3627, %v3705
        %v3707 = vlaneseq
        %v3708 = vshrl.u32 %v3707, 7
        %v3709 = vsub.s32 0, %v3708
        %v3710 = vrot.slane %v3629, %v3709
        %v3711 = vlaneseq
        %v3712 = vshrl.u32 %v3711, 7
        %v3713 = vsub.s32 0, %v3712
        %v3714 = vrot.slane %v3653, %v3713
        %v3715 = vlaneseq
        %v3716 = vshrl.u32 %v3715, 7
        %v3717 = vsub.s32 0, %v3716
        %v3718 = vrot.slane %v3667, %v3717
        %v3719 = vlaneseq
        %v3720 = vshrl.u32 %v3719, 7
        %v3721 = vsub.s32 0, %v3720
        %v3722 = vrot.slane %v3675, %v3721
        %v3723 = vlaneseq
        %v3724 = vshrl.u32 %v3723, 7
        %v3725 = vsub.s32 0, %v3724
        %v3726 = vrot.slane %v3677, %v3725
        %v3727 = vlaneseq
        %v3728 = vshrl.u32 %v3727, 7
        %v3729 = vsub.s32 0, %v3728
        %v3730 = vrot.slane %v3660, %v3729
        %v3731 = vlaneseq
        %v3732 = vshrl.u32 %v3731, 7
        %v3733 = vsub.s32 0, %v3732
        %v3734 = vrot.slane %v3674, %v3733
        %v3735 = vlaneseq
        %v3736 = vshrl.u32 %v3735, 7
        %v3737 = vsub.s32 0, %v3736
        %v3738 = vrot.slane %v3676, %v3737
        %v3739 = vlaneseq
        %v3740 = vshrl.u32 %v3739, 7
        %v3741 = vsub.s32 0, %v3740
        %v3742 = vrot.slane %v3678, %v3741
        %v3759 = vmul.f32 %v3682, %v3576
        %v3760 = vmul.f32 %v3682, %v3578
        %v3761 = vmul.f32 %v3686, %v3576
        %v3762 = vmul.f32 %v3686, %v3578
        %v3763 = vmul.f32 %v3690, %v3576
        %v3764 = vmul.f32 %v3690, %v3578
        %v3765 = vmul.f32 %v3694, %v3576
        %v3766 = vmul.f32 %v3694, %v3578
        %v3767 = vmul.f32 %v3698, %v3576
        %v3768 = vmul.f32 %v3698, %v3578
        %v3769 = vmul.f32 %v3702, %v3576
        %v3770 = vmul.f32 %v3702, %v3578
        %v3771 = vmul.f32 %v3706, %v3576
        %v3772 = vmul.f32 %v3706, %v3578
        %v3773 = vmul.f32 %v3710, %v3576
        %v3774 = vmul.f32 %v3710, %v3578
        %v3775 = vmul.f32 %v3714, %v3576
        %v3776 = vmul.f32 %v3714, %v3578
        %v3777 = vmul.f32 %v3718, %v3576
        %v3778 = vmul.f32 %v3718, %v3578
        %v3779 = vmul.f32 %v3722, %v3576
        %v3780 = vmul.f32 %v3722, %v3578
        %v3781 = vmul.f32 %v3726, %v3576
        %v3782 = vmul.f32 %v3726, %v3578
        %v3783 = vmul.f32 %v3730, %v3576
        %v3784 = vmul.f32 %v3730, %v3578
        %v3785 = vmul.f32 %v3734, %v3576
        %v3786 = vmul.f32 %v3734, %v3578
        %v3787 = vmul.f32 %v3738, %v3576
        %v3788 = vmul.f32 %v3738, %v3578
        %v3789 = vmul.f32 %v3742, %v3576
        %v3790 = vmul.f32 %v3742, %v3578
        %v3791 = vadd.f32 %v3543, %v3759
        %v3792 = vadd.f32 %v3544, %v3760
        %v3793 = vadd.f32 %v3545, %v3761
        %v3794 = vadd.f32 %v3546, %v3762
        %v3795 = vadd.f32 %v3547, %v3763
        %v3796 = vadd.f32 %v3548, %v3764
        %v3797 = vadd.f32 %v3549, %v3765
        %v3798 = vadd.f32 %v3550, %v3766
        %v3799 = vadd.f32 %v3551, %v3767
        %v3800 = vadd.f32 %v3552, %v3768
        %v3801 = vadd.f32 %v3553, %v3769
        %v3802 = vadd.f32 %v3554, %v3770
        %v3803 = vadd.f32 %v3555, %v3771
        %v3804 = vadd.f32 %v3556, %v3772
        %v3805 = vadd.f32 %v3557, %v3773
        %v3806 = vadd.f32 %v3558, %v3774
        %v3807 = vadd.f32 %v3559, %v3775
        %v3808 = vadd.f32 %v3560, %v3776
        %v3809 = vadd.f32 %v3561, %v3777
        %v3810 = vadd.f32 %v3562, %v3778
        %v3811 = vadd.f32 %v3563, %v3779
        %v3812 = vadd.f32 %v3564, %v3780
        %v3813 = vadd.f32 %v3565, %v3781
        %v3814 = vadd.f32 %v3566, %v3782
        %v3815 = vadd.f32 %v3567, %v3783
        %v3816 = vadd.f32 %v3568, %v3784
        %v3817 = vadd.f32 %v3569, %v3785
        %v3818 = vadd.f32 %v3570, %v3786
        %v3819 = vadd.f32 %v3571, %v3787
        %v3820 = vadd.f32 %v3572, %v3788
        %v3821 = vadd.f32 %v3573, %v3789
        %v3822 = vadd.f32 %v3574, %v3790
        %v3823 = vld [vmem:[%s2433] sm:$0xff]
        %v3824 = vld [vmem:[%s2433 + $0x8] sm:$0xff]
        %v3825 = vld [vmem:[%s2433 + $0x10] sm:$0xff]
        %v3826 = vld [vmem:[%s2433 + $0x18] sm:$0xff]
        %v3829 = vcombine.high %v3823, %v3823
        %v3831 = vunpack.c.l.s4 1966171168
        %v3832 = vunpack.c.0.s8 %v3831
        %v3833 = vlaneseq
        %v3834 = vshrl.u32 %v3833, 7
        %v3835 = vsub.s32 %v3832, %v3834
        %v3836 = vrot.slane %v3823, %v3835
        %v3838 = vunpack.c.l.s4 1966171168
        %v3839 = vunpack.c.0.s8 %v3838
        %v3840 = vlaneseq
        %v3841 = vshrl.u32 %v3840, 7
        %v3842 = vsub.s32 %v3839, %v3841
        %v3843 = vrot.slane %v3829, %v3842
        %v3844 = vcombine.high %v3836, %v3836
        %v3845 = vcombine.high %v3843, %v3843
        %v3847 = vunpack.c.l.s4 1966171168
        %v3848 = vunpack.c.0.s8 %v3847
        %v3849 = vlaneseq
        %v3850 = vshrl.u32 %v3849, 7
        %v3851 = vsub.s32 %v3848, %v3850
        %v3852 = vrot.slane %v3836, %v3851
        %v3854 = vunpack.c.l.s4 1966171168
        %v3855 = vunpack.c.0.s8 %v3854
        %v3856 = vlaneseq
        %v3857 = vshrl.u32 %v3856, 7
        %v3858 = vsub.s32 %v3855, %v3857
        %v3859 = vrot.slane %v3843, %v3858
        %v3861 = vunpack.c.l.s4 1966171168
        %v3862 = vunpack.c.0.s8 %v3861
        %v3863 = vlaneseq
        %v3864 = vshrl.u32 %v3863, 7
        %v3865 = vsub.s32 %v3862, %v3864
        %v3866 = vrot.slane %v3844, %v3865
        %v3868 = vunpack.c.l.s4 1966171168
        %v3869 = vunpack.c.0.s8 %v3868
        %v3870 = vlaneseq
        %v3871 = vshrl.u32 %v3870, 7
        %v3872 = vsub.s32 %v3869, %v3871
        %v3873 = vrot.slane %v3845, %v3872
        %v3874 = vcombine.high %v3852, %v3852
        %v3875 = vcombine.high %v3859, %v3859
        %v3876 = vcombine.high %v3866, %v3866
        %v3877 = vcombine.high %v3873, %v3873
        %v3878 = vcombine.high %v3825, %v3825
        %v3880 = vunpack.c.l.s4 1966171168
        %v3881 = vunpack.c.0.s8 %v3880
        %v3882 = vlaneseq
        %v3883 = vshrl.u32 %v3882, 7
        %v3884 = vsub.s32 %v3881, %v3883
        %v3885 = vrot.slane %v3825, %v3884
        %v3887 = vunpack.c.l.s4 1966171168
        %v3888 = vunpack.c.0.s8 %v3887
        %v3889 = vlaneseq
        %v3890 = vshrl.u32 %v3889, 7
        %v3891 = vsub.s32 %v3888, %v3890
        %v3892 = vrot.slane %v3878, %v3891
        %v3893 = vcombine.high %v3885, %v3885
        %v3894 = vcombine.high %v3892, %v3892
        %v3896 = vunpack.c.l.s4 1966171168
        %v3897 = vunpack.c.0.s8 %v3896
        %v3898 = vlaneseq
        %v3899 = vshrl.u32 %v3898, 7
        %v3900 = vsub.s32 %v3897, %v3899
        %v3901 = vrot.slane %v3885, %v3900
        %v3903 = vunpack.c.l.s4 1966171168
        %v3904 = vunpack.c.0.s8 %v3903
        %v3905 = vlaneseq
        %v3906 = vshrl.u32 %v3905, 7
        %v3907 = vsub.s32 %v3904, %v3906
        %v3908 = vrot.slane %v3892, %v3907
        %v3910 = vunpack.c.l.s4 1966171168
        %v3911 = vunpack.c.0.s8 %v3910
        %v3912 = vlaneseq
        %v3913 = vshrl.u32 %v3912, 7
        %v3914 = vsub.s32 %v3911, %v3913
        %v3915 = vrot.slane %v3893, %v3914
        %v3917 = vunpack.c.l.s4 1966171168
        %v3918 = vunpack.c.0.s8 %v3917
        %v3919 = vlaneseq
        %v3920 = vshrl.u32 %v3919, 7
        %v3921 = vsub.s32 %v3918, %v3920
        %v3922 = vrot.slane %v3894, %v3921
        %v3923 = vcombine.high %v3901, %v3901
        %v3924 = vcombine.high %v3908, %v3908
        %v3925 = vcombine.high %v3915, %v3915
        %v3926 = vcombine.high %v3922, %v3922
        %v3927 = vlaneseq
        %v3928 = vshrl.u32 %v3927, 7
        %v3929 = vsub.s32 0, %v3928
        %v3930 = vrot.slane %v3852, %v3929
        %v3931 = vlaneseq
        %v3932 = vshrl.u32 %v3931, 7
        %v3933 = vsub.s32 0, %v3932
        %v3934 = vrot.slane %v3866, %v3933
        %v3935 = vlaneseq
        %v3936 = vshrl.u32 %v3935, 7
        %v3937 = vsub.s32 0, %v3936
        %v3938 = vrot.slane %v3874, %v3937
        %v3939 = vlaneseq
        %v3940 = vshrl.u32 %v3939, 7
        %v3941 = vsub.s32 0, %v3940
        %v3942 = vrot.slane %v3876, %v3941
        %v3943 = vlaneseq
        %v3944 = vshrl.u32 %v3943, 7
        %v3945 = vsub.s32 0, %v3944
        %v3946 = vrot.slane %v3859, %v3945
        %v3947 = vlaneseq
        %v3948 = vshrl.u32 %v3947, 7
        %v3949 = vsub.s32 0, %v3948
        %v3950 = vrot.slane %v3873, %v3949
        %v3951 = vlaneseq
        %v3952 = vshrl.u32 %v3951, 7
        %v3953 = vsub.s32 0, %v3952
        %v3954 = vrot.slane %v3875, %v3953
        %v3955 = vlaneseq
        %v3956 = vshrl.u32 %v3955, 7
        %v3957 = vsub.s32 0, %v3956
        %v3958 = vrot.slane %v3877, %v3957
        %v3959 = vlaneseq
        %v3960 = vshrl.u32 %v3959, 7
        %v3961 = vsub.s32 0, %v3960
        %v3962 = vrot.slane %v3901, %v3961
        %v3963 = vlaneseq
        %v3964 = vshrl.u32 %v3963, 7
        %v3965 = vsub.s32 0, %v3964
        %v3966 = vrot.slane %v3915, %v3965
        %v3967 = vlaneseq
        %v3968 = vshrl.u32 %v3967, 7
        %v3969 = vsub.s32 0, %v3968
        %v3970 = vrot.slane %v3923, %v3969
        %v3971 = vlaneseq
        %v3972 = vshrl.u32 %v3971, 7
        %v3973 = vsub.s32 0, %v3972
        %v3974 = vrot.slane %v3925, %v3973
        %v3975 = vlaneseq
        %v3976 = vshrl.u32 %v3975, 7
        %v3977 = vsub.s32 0, %v3976
        %v3978 = vrot.slane %v3908, %v3977
        %v3979 = vlaneseq
        %v3980 = vshrl.u32 %v3979, 7
        %v3981 = vsub.s32 0, %v3980
        %v3982 = vrot.slane %v3922, %v3981
        %v3983 = vlaneseq
        %v3984 = vshrl.u32 %v3983, 7
        %v3985 = vsub.s32 0, %v3984
        %v3986 = vrot.slane %v3924, %v3985
        %v3987 = vlaneseq
        %v3988 = vshrl.u32 %v3987, 7
        %v3989 = vsub.s32 0, %v3988
        %v3990 = vrot.slane %v3926, %v3989
        %v4007 = vmul.f32 %v3930, %v3824
        %v4008 = vmul.f32 %v3930, %v3826
        %v4009 = vmul.f32 %v3934, %v3824
        %v4010 = vmul.f32 %v3934, %v3826
        %v4011 = vmul.f32 %v3938, %v3824
        %v4012 = vmul.f32 %v3938, %v3826
        %v4013 = vmul.f32 %v3942, %v3824
        %v4014 = vmul.f32 %v3942, %v3826
        %v4015 = vmul.f32 %v3946, %v3824
        %v4016 = vmul.f32 %v3946, %v3826
        %v4017 = vmul.f32 %v3950, %v3824
        %v4018 = vmul.f32 %v3950, %v3826
        %v4019 = vmul.f32 %v3954, %v3824
        %v4020 = vmul.f32 %v3954, %v3826
        %v4021 = vmul.f32 %v3958, %v3824
        %v4022 = vmul.f32 %v3958, %v3826
        %v4023 = vmul.f32 %v3962, %v3824
        %v4024 = vmul.f32 %v3962, %v3826
        %v4025 = vmul.f32 %v3966, %v3824
        %v4026 = vmul.f32 %v3966, %v3826
        %v4027 = vmul.f32 %v3970, %v3824
        %v4028 = vmul.f32 %v3970, %v3826
        %v4029 = vmul.f32 %v3974, %v3824
        %v4030 = vmul.f32 %v3974, %v3826
        %v4031 = vmul.f32 %v3978, %v3824
        %v4032 = vmul.f32 %v3978, %v3826
        %v4033 = vmul.f32 %v3982, %v3824
        %v4034 = vmul.f32 %v3982, %v3826
        %v4035 = vmul.f32 %v3986, %v3824
        %v4036 = vmul.f32 %v3986, %v3826
        %v4037 = vmul.f32 %v3990, %v3824
        %v4038 = vmul.f32 %v3990, %v3826
        %v4039 = vadd.f32 %v3791, %v4007
        %v4040 = vadd.f32 %v3792, %v4008
        %v4041 = vadd.f32 %v3793, %v4009
        %v4042 = vadd.f32 %v3794, %v4010
        %v4043 = vadd.f32 %v3795, %v4011
        %v4044 = vadd.f32 %v3796, %v4012
        %v4045 = vadd.f32 %v3797, %v4013
        %v4046 = vadd.f32 %v3798, %v4014
        %v4047 = vadd.f32 %v3799, %v4015
        %v4048 = vadd.f32 %v3800, %v4016
        %v4049 = vadd.f32 %v3801, %v4017
        %v4050 = vadd.f32 %v3802, %v4018
        %v4051 = vadd.f32 %v3803, %v4019
        %v4052 = vadd.f32 %v3804, %v4020
        %v4053 = vadd.f32 %v3805, %v4021
        %v4054 = vadd.f32 %v3806, %v4022
        %v4055 = vadd.f32 %v3807, %v4023
        %v4056 = vadd.f32 %v3808, %v4024
        %v4057 = vadd.f32 %v3809, %v4025
        %v4058 = vadd.f32 %v3810, %v4026
        %v4059 = vadd.f32 %v3811, %v4027
        %v4060 = vadd.f32 %v3812, %v4028
        %v4061 = vadd.f32 %v3813, %v4029
        %v4062 = vadd.f32 %v3814, %v4030
        %v4063 = vadd.f32 %v3815, %v4031
        %v4064 = vadd.f32 %v3816, %v4032
        %v4065 = vadd.f32 %v3817, %v4033
        %v4066 = vadd.f32 %v3818, %v4034
        %v4067 = vadd.f32 %v3819, %v4035
        %v4068 = vadd.f32 %v3820, %v4036
        %v4069 = vadd.f32 %v3821, %v4037
        %v4070 = vadd.f32 %v3822, %v4038
        %v4071 = vld [vmem:[%s2564] sm:$0xff]
        %v4072 = vld [vmem:[%s2564 + $0x8] sm:$0xff]
        %v4073 = vld [vmem:[%s2564 + $0x10] sm:$0xff]
        %v4074 = vld [vmem:[%s2564 + $0x18] sm:$0xff]
        %v4077 = vcombine.high %v4071, %v4071
        %v4079 = vunpack.c.l.s4 1966171168
        %v4080 = vunpack.c.0.s8 %v4079
        %v4081 = vlaneseq
        %v4082 = vshrl.u32 %v4081, 7
        %v4083 = vsub.s32 %v4080, %v4082
        %v4084 = vrot.slane %v4071, %v4083
        %v4086 = vunpack.c.l.s4 1966171168
        %v4087 = vunpack.c.0.s8 %v4086
        %v4088 = vlaneseq
        %v4089 = vshrl.u32 %v4088, 7
        %v4090 = vsub.s32 %v4087, %v4089
        %v4091 = vrot.slane %v4077, %v4090
        %v4092 = vcombine.high %v4084, %v4084
        %v4093 = vcombine.high %v4091, %v4091
        %v4095 = vunpack.c.l.s4 1966171168
        %v4096 = vunpack.c.0.s8 %v4095
        %v4097 = vlaneseq
        %v4098 = vshrl.u32 %v4097, 7
        %v4099 = vsub.s32 %v4096, %v4098
        %v4100 = vrot.slane %v4084, %v4099
        %v4102 = vunpack.c.l.s4 1966171168
        %v4103 = vunpack.c.0.s8 %v4102
        %v4104 = vlaneseq
        %v4105 = vshrl.u32 %v4104, 7
        %v4106 = vsub.s32 %v4103, %v4105
        %v4107 = vrot.slane %v4091, %v4106
        %v4109 = vunpack.c.l.s4 1966171168
        %v4110 = vunpack.c.0.s8 %v4109
        %v4111 = vlaneseq
        %v4112 = vshrl.u32 %v4111, 7
        %v4113 = vsub.s32 %v4110, %v4112
        %v4114 = vrot.slane %v4092, %v4113
        %v4116 = vunpack.c.l.s4 1966171168
        %v4117 = vunpack.c.0.s8 %v4116
        %v4118 = vlaneseq
        %v4119 = vshrl.u32 %v4118, 7
        %v4120 = vsub.s32 %v4117, %v4119
        %v4121 = vrot.slane %v4093, %v4120
        %v4122 = vcombine.high %v4100, %v4100
        %v4123 = vcombine.high %v4107, %v4107
        %v4124 = vcombine.high %v4114, %v4114
        %v4125 = vcombine.high %v4121, %v4121
        %v4126 = vcombine.high %v4073, %v4073
        %v4128 = vunpack.c.l.s4 1966171168
        %v4129 = vunpack.c.0.s8 %v4128
        %v4130 = vlaneseq
        %v4131 = vshrl.u32 %v4130, 7
        %v4132 = vsub.s32 %v4129, %v4131
        %v4133 = vrot.slane %v4073, %v4132
        %v4135 = vunpack.c.l.s4 1966171168
        %v4136 = vunpack.c.0.s8 %v4135
        %v4137 = vlaneseq
        %v4138 = vshrl.u32 %v4137, 7
        %v4139 = vsub.s32 %v4136, %v4138
        %v4140 = vrot.slane %v4126, %v4139
        %v4141 = vcombine.high %v4133, %v4133
        %v4142 = vcombine.high %v4140, %v4140
        %v4144 = vunpack.c.l.s4 1966171168
        %v4145 = vunpack.c.0.s8 %v4144
        %v4146 = vlaneseq
        %v4147 = vshrl.u32 %v4146, 7
        %v4148 = vsub.s32 %v4145, %v4147
        %v4149 = vrot.slane %v4133, %v4148
        %v4151 = vunpack.c.l.s4 1966171168
        %v4152 = vunpack.c.0.s8 %v4151
        %v4153 = vlaneseq
        %v4154 = vshrl.u32 %v4153, 7
        %v4155 = vsub.s32 %v4152, %v4154
        %v4156 = vrot.slane %v4140, %v4155
        %v4158 = vunpack.c.l.s4 1966171168
        %v4159 = vunpack.c.0.s8 %v4158
        %v4160 = vlaneseq
        %v4161 = vshrl.u32 %v4160, 7
        %v4162 = vsub.s32 %v4159, %v4161
        %v4163 = vrot.slane %v4141, %v4162
        %v4165 = vunpack.c.l.s4 1966171168
        %v4166 = vunpack.c.0.s8 %v4165
        %v4167 = vlaneseq
        %v4168 = vshrl.u32 %v4167, 7
        %v4169 = vsub.s32 %v4166, %v4168
        %v4170 = vrot.slane %v4142, %v4169
        %v4171 = vcombine.high %v4149, %v4149
        %v4172 = vcombine.high %v4156, %v4156
        %v4173 = vcombine.high %v4163, %v4163
        %v4174 = vcombine.high %v4170, %v4170
        %v4175 = vlaneseq
        %v4176 = vshrl.u32 %v4175, 7
        %v4177 = vsub.s32 0, %v4176
        %v4178 = vrot.slane %v4100, %v4177
        %v4179 = vlaneseq
        %v4180 = vshrl.u32 %v4179, 7
        %v4181 = vsub.s32 0, %v4180
        %v4182 = vrot.slane %v4114, %v4181
        %v4183 = vlaneseq
        %v4184 = vshrl.u32 %v4183, 7
        %v4185 = vsub.s32 0, %v4184
        %v4186 = vrot.slane %v4122, %v4185
        %v4187 = vlaneseq
        %v4188 = vshrl.u32 %v4187, 7
        %v4189 = vsub.s32 0, %v4188
        %v4190 = vrot.slane %v4124, %v4189
        %v4191 = vlaneseq
        %v4192 = vshrl.u32 %v4191, 7
        %v4193 = vsub.s32 0, %v4192
        %v4194 = vrot.slane %v4107, %v4193
        %v4195 = vlaneseq
        %v4196 = vshrl.u32 %v4195, 7
        %v4197 = vsub.s32 0, %v4196
        %v4198 = vrot.slane %v4121, %v4197
        %v4199 = vlaneseq
        %v4200 = vshrl.u32 %v4199, 7
        %v4201 = vsub.s32 0, %v4200
        %v4202 = vrot.slane %v4123, %v4201
        %v4203 = vlaneseq
        %v4204 = vshrl.u32 %v4203, 7
        %v4205 = vsub.s32 0, %v4204
        %v4206 = vrot.slane %v4125, %v4205
        %v4207 = vlaneseq
        %v4208 = vshrl.u32 %v4207, 7
        %v4209 = vsub.s32 0, %v4208
        %v4210 = vrot.slane %v4149, %v4209
        %v4211 = vlaneseq
        %v4212 = vshrl.u32 %v4211, 7
        %v4213 = vsub.s32 0, %v4212
        %v4214 = vrot.slane %v4163, %v4213
        %v4215 = vlaneseq
        %v4216 = vshrl.u32 %v4215, 7
        %v4217 = vsub.s32 0, %v4216
        %v4218 = vrot.slane %v4171, %v4217
        %v4219 = vlaneseq
        %v4220 = vshrl.u32 %v4219, 7
        %v4221 = vsub.s32 0, %v4220
        %v4222 = vrot.slane %v4173, %v4221
        %v4223 = vlaneseq
        %v4224 = vshrl.u32 %v4223, 7
        %v4225 = vsub.s32 0, %v4224
        %v4226 = vrot.slane %v4156, %v4225
        %v4227 = vlaneseq
        %v4228 = vshrl.u32 %v4227, 7
        %v4229 = vsub.s32 0, %v4228
        %v4230 = vrot.slane %v4170, %v4229
        %v4231 = vlaneseq
        %v4232 = vshrl.u32 %v4231, 7
        %v4233 = vsub.s32 0, %v4232
        %v4234 = vrot.slane %v4172, %v4233
        %v4235 = vlaneseq
        %v4236 = vshrl.u32 %v4235, 7
        %v4237 = vsub.s32 0, %v4236
        %v4238 = vrot.slane %v4174, %v4237
        %v4255 = vmul.f32 %v4178, %v4072
        %v4256 = vmul.f32 %v4178, %v4074
        %v4257 = vmul.f32 %v4182, %v4072
        %v4258 = vmul.f32 %v4182, %v4074
        %v4259 = vmul.f32 %v4186, %v4072
        %v4260 = vmul.f32 %v4186, %v4074
        %v4261 = vmul.f32 %v4190, %v4072
        %v4262 = vmul.f32 %v4190, %v4074
        %v4263 = vmul.f32 %v4194, %v4072
        %v4264 = vmul.f32 %v4194, %v4074
        %v4265 = vmul.f32 %v4198, %v4072
        %v4266 = vmul.f32 %v4198, %v4074
        %v4267 = vmul.f32 %v4202, %v4072
        %v4268 = vmul.f32 %v4202, %v4074
        %v4269 = vmul.f32 %v4206, %v4072
        %v4270 = vmul.f32 %v4206, %v4074
        %v4271 = vmul.f32 %v4210, %v4072
        %v4272 = vmul.f32 %v4210, %v4074
        %v4273 = vmul.f32 %v4214, %v4072
        %v4274 = vmul.f32 %v4214, %v4074
        %v4275 = vmul.f32 %v4218, %v4072
        %v4276 = vmul.f32 %v4218, %v4074
        %v4277 = vmul.f32 %v4222, %v4072
        %v4278 = vmul.f32 %v4222, %v4074
        %v4279 = vmul.f32 %v4226, %v4072
        %v4280 = vmul.f32 %v4226, %v4074
        %v4281 = vmul.f32 %v4230, %v4072
        %v4282 = vmul.f32 %v4230, %v4074
        %v4283 = vmul.f32 %v4234, %v4072
        %v4284 = vmul.f32 %v4234, %v4074
        %v4285 = vmul.f32 %v4238, %v4072
        %v4286 = vmul.f32 %v4238, %v4074
        %v4287 = vadd.f32 %v4039, %v4255
        %v4288 = vadd.f32 %v4040, %v4256
        %v4289 = vadd.f32 %v4041, %v4257
        %v4290 = vadd.f32 %v4042, %v4258
        %v4291 = vadd.f32 %v4043, %v4259
        %v4292 = vadd.f32 %v4044, %v4260
        %v4293 = vadd.f32 %v4045, %v4261
        %v4294 = vadd.f32 %v4046, %v4262
        %v4295 = vadd.f32 %v4047, %v4263
        %v4296 = vadd.f32 %v4048, %v4264
        %v4297 = vadd.f32 %v4049, %v4265
        %v4298 = vadd.f32 %v4050, %v4266
        %v4299 = vadd.f32 %v4051, %v4267
        %v4300 = vadd.f32 %v4052, %v4268
        %v4301 = vadd.f32 %v4053, %v4269
        %v4302 = vadd.f32 %v4054, %v4270
        %v4303 = vadd.f32 %v4055, %v4271
        %v4304 = vadd.f32 %v4056, %v4272
        %v4305 = vadd.f32 %v4057, %v4273
        %v4306 = vadd.f32 %v4058, %v4274
        %v4307 = vadd.f32 %v4059, %v4275
        %v4308 = vadd.f32 %v4060, %v4276
        %v4309 = vadd.f32 %v4061, %v4277
        %v4310 = vadd.f32 %v4062, %v4278
        %v4311 = vadd.f32 %v4063, %v4279
        %v4312 = vadd.f32 %v4064, %v4280
        %v4313 = vadd.f32 %v4065, %v4281
        %v4314 = vadd.f32 %v4066, %v4282
        %v4315 = vadd.f32 %v4067, %v4283
        %v4316 = vadd.f32 %v4068, %v4284
        %v4317 = vadd.f32 %v4069, %v4285
        %v4318 = vadd.f32 %v4070, %v4286
        %v4319 = vld [vmem:[%s2695] sm:$0xff]
        %v4320 = vld [vmem:[%s2695 + $0x8] sm:$0xff]
        %v4321 = vld [vmem:[%s2695 + $0x10] sm:$0xff]
        %v4322 = vld [vmem:[%s2695 + $0x18] sm:$0xff]
        %v4325 = vcombine.high %v4319, %v4319
        %v4327 = vunpack.c.l.s4 1966171168
        %v4328 = vunpack.c.0.s8 %v4327
        %v4329 = vlaneseq
        %v4330 = vshrl.u32 %v4329, 7
        %v4331 = vsub.s32 %v4328, %v4330
        %v4332 = vrot.slane %v4319, %v4331
        %v4334 = vunpack.c.l.s4 1966171168
        %v4335 = vunpack.c.0.s8 %v4334
        %v4336 = vlaneseq
        %v4337 = vshrl.u32 %v4336, 7
        %v4338 = vsub.s32 %v4335, %v4337
        %v4339 = vrot.slane %v4325, %v4338
        %v4340 = vcombine.high %v4332, %v4332
        %v4341 = vcombine.high %v4339, %v4339
        %v4343 = vunpack.c.l.s4 1966171168
        %v4344 = vunpack.c.0.s8 %v4343
        %v4345 = vlaneseq
        %v4346 = vshrl.u32 %v4345, 7
        %v4347 = vsub.s32 %v4344, %v4346
        %v4348 = vrot.slane %v4332, %v4347
        %v4350 = vunpack.c.l.s4 1966171168
        %v4351 = vunpack.c.0.s8 %v4350
        %v4352 = vlaneseq
        %v4353 = vshrl.u32 %v4352, 7
        %v4354 = vsub.s32 %v4351, %v4353
        %v4355 = vrot.slane %v4339, %v4354
        %v4357 = vunpack.c.l.s4 1966171168
        %v4358 = vunpack.c.0.s8 %v4357
        %v4359 = vlaneseq
        %v4360 = vshrl.u32 %v4359, 7
        %v4361 = vsub.s32 %v4358, %v4360
        %v4362 = vrot.slane %v4340, %v4361
        %v4364 = vunpack.c.l.s4 1966171168
        %v4365 = vunpack.c.0.s8 %v4364
        %v4366 = vlaneseq
        %v4367 = vshrl.u32 %v4366, 7
        %v4368 = vsub.s32 %v4365, %v4367
        %v4369 = vrot.slane %v4341, %v4368
        %v4370 = vcombine.high %v4348, %v4348
        %v4371 = vcombine.high %v4355, %v4355
        %v4372 = vcombine.high %v4362, %v4362
        %v4373 = vcombine.high %v4369, %v4369
        %v4374 = vcombine.high %v4321, %v4321
        %v4376 = vunpack.c.l.s4 1966171168
        %v4377 = vunpack.c.0.s8 %v4376
        %v4378 = vlaneseq
        %v4379 = vshrl.u32 %v4378, 7
        %v4380 = vsub.s32 %v4377, %v4379
        %v4381 = vrot.slane %v4321, %v4380
        %v4383 = vunpack.c.l.s4 1966171168
        %v4384 = vunpack.c.0.s8 %v4383
        %v4385 = vlaneseq
        %v4386 = vshrl.u32 %v4385, 7
        %v4387 = vsub.s32 %v4384, %v4386
        %v4388 = vrot.slane %v4374, %v4387
        %v4389 = vcombine.high %v4381, %v4381
        %v4390 = vcombine.high %v4388, %v4388
        %v4392 = vunpack.c.l.s4 1966171168
        %v4393 = vunpack.c.0.s8 %v4392
        %v4394 = vlaneseq
        %v4395 = vshrl.u32 %v4394, 7
        %v4396 = vsub.s32 %v4393, %v4395
        %v4397 = vrot.slane %v4381, %v4396
        %v4399 = vunpack.c.l.s4 1966171168
        %v4400 = vunpack.c.0.s8 %v4399
        %v4401 = vlaneseq
        %v4402 = vshrl.u32 %v4401, 7
        %v4403 = vsub.s32 %v4400, %v4402
        %v4404 = vrot.slane %v4388, %v4403
        %v4406 = vunpack.c.l.s4 1966171168
        %v4407 = vunpack.c.0.s8 %v4406
        %v4408 = vlaneseq
        %v4409 = vshrl.u32 %v4408, 7
        %v4410 = vsub.s32 %v4407, %v4409
        %v4411 = vrot.slane %v4389, %v4410
        %v4413 = vunpack.c.l.s4 1966171168
        %v4414 = vunpack.c.0.s8 %v4413
        %v4415 = vlaneseq
        %v4416 = vshrl.u32 %v4415, 7
        %v4417 = vsub.s32 %v4414, %v4416
        %v4418 = vrot.slane %v4390, %v4417
        %v4419 = vcombine.high %v4397, %v4397
        %v4420 = vcombine.high %v4404, %v4404
        %v4421 = vcombine.high %v4411, %v4411
        %v4422 = vcombine.high %v4418, %v4418
        %v4423 = vlaneseq
        %v4424 = vshrl.u32 %v4423, 7
        %v4425 = vsub.s32 0, %v4424
        %v4426 = vrot.slane %v4348, %v4425
        %v4427 = vlaneseq
        %v4428 = vshrl.u32 %v4427, 7
        %v4429 = vsub.s32 0, %v4428
        %v4430 = vrot.slane %v4362, %v4429
        %v4431 = vlaneseq
        %v4432 = vshrl.u32 %v4431, 7
        %v4433 = vsub.s32 0, %v4432
        %v4434 = vrot.slane %v4370, %v4433
        %v4435 = vlaneseq
        %v4436 = vshrl.u32 %v4435, 7
        %v4437 = vsub.s32 0, %v4436
        %v4438 = vrot.slane %v4372, %v4437
        %v4439 = vlaneseq
        %v4440 = vshrl.u32 %v4439, 7
        %v4441 = vsub.s32 0, %v4440
        %v4442 = vrot.slane %v4355, %v4441
        %v4443 = vlaneseq
        %v4444 = vshrl.u32 %v4443, 7
        %v4445 = vsub.s32 0, %v4444
        %v4446 = vrot.slane %v4369, %v4445
        %v4447 = vlaneseq
        %v4448 = vshrl.u32 %v4447, 7
        %v4449 = vsub.s32 0, %v4448
        %v4450 = vrot.slane %v4371, %v4449
        %v4451 = vlaneseq
        %v4452 = vshrl.u32 %v4451, 7
        %v4453 = vsub.s32 0, %v4452
        %v4454 = vrot.slane %v4373, %v4453
        %v4455 = vlaneseq
        %v4456 = vshrl.u32 %v4455, 7
        %v4457 = vsub.s32 0, %v4456
        %v4458 = vrot.slane %v4397, %v4457
        %v4459 = vlaneseq
        %v4460 = vshrl.u32 %v4459, 7
        %v4461 = vsub.s32 0, %v4460
        %v4462 = vrot.slane %v4411, %v4461
        %v4463 = vlaneseq
        %v4464 = vshrl.u32 %v4463, 7
        %v4465 = vsub.s32 0, %v4464
        %v4466 = vrot.slane %v4419, %v4465
        %v4467 = vlaneseq
        %v4468 = vshrl.u32 %v4467, 7
        %v4469 = vsub.s32 0, %v4468
        %v4470 = vrot.slane %v4421, %v4469
        %v4471 = vlaneseq
        %v4472 = vshrl.u32 %v4471, 7
        %v4473 = vsub.s32 0, %v4472
        %v4474 = vrot.slane %v4404, %v4473
        %v4475 = vlaneseq
        %v4476 = vshrl.u32 %v4475, 7
        %v4477 = vsub.s32 0, %v4476
        %v4478 = vrot.slane %v4418, %v4477
        %v4479 = vlaneseq
        %v4480 = vshrl.u32 %v4479, 7
        %v4481 = vsub.s32 0, %v4480
        %v4482 = vrot.slane %v4420, %v4481
        %v4483 = vlaneseq
        %v4484 = vshrl.u32 %v4483, 7
        %v4485 = vsub.s32 0, %v4484
        %v4486 = vrot.slane %v4422, %v4485
        %v4503 = vmul.f32 %v4426, %v4320
        %v4504 = vmul.f32 %v4426, %v4322
        %v4505 = vmul.f32 %v4430, %v4320
        %v4506 = vmul.f32 %v4430, %v4322
        %v4507 = vmul.f32 %v4434, %v4320
        %v4508 = vmul.f32 %v4434, %v4322
        %v4509 = vmul.f32 %v4438, %v4320
        %v4510 = vmul.f32 %v4438, %v4322
        %v4511 = vmul.f32 %v4442, %v4320
        %v4512 = vmul.f32 %v4442, %v4322
        %v4513 = vmul.f32 %v4446, %v4320
        %v4514 = vmul.f32 %v4446, %v4322
        %v4515 = vmul.f32 %v4450, %v4320
        %v4516 = vmul.f32 %v4450, %v4322
        %v4517 = vmul.f32 %v4454, %v4320
        %v4518 = vmul.f32 %v4454, %v4322
        %v4519 = vmul.f32 %v4458, %v4320
        %v4520 = vmul.f32 %v4458, %v4322
        %v4521 = vmul.f32 %v4462, %v4320
        %v4522 = vmul.f32 %v4462, %v4322
        %v4523 = vmul.f32 %v4466, %v4320
        %v4524 = vmul.f32 %v4466, %v4322
        %v4525 = vmul.f32 %v4470, %v4320
        %v4526 = vmul.f32 %v4470, %v4322
        %v4527 = vmul.f32 %v4474, %v4320
        %v4528 = vmul.f32 %v4474, %v4322
        %v4529 = vmul.f32 %v4478, %v4320
        %v4530 = vmul.f32 %v4478, %v4322
        %v4531 = vmul.f32 %v4482, %v4320
        %v4532 = vmul.f32 %v4482, %v4322
        %v4533 = vmul.f32 %v4486, %v4320
        %v4534 = vmul.f32 %v4486, %v4322
        %v4535 = vadd.f32 %v4287, %v4503
        %v4536 = vadd.f32 %v4288, %v4504
        %v4537 = vadd.f32 %v4289, %v4505
        %v4538 = vadd.f32 %v4290, %v4506
        %v4539 = vadd.f32 %v4291, %v4507
        %v4540 = vadd.f32 %v4292, %v4508
        %v4541 = vadd.f32 %v4293, %v4509
        %v4542 = vadd.f32 %v4294, %v4510
        %v4543 = vadd.f32 %v4295, %v4511
        %v4544 = vadd.f32 %v4296, %v4512
        %v4545 = vadd.f32 %v4297, %v4513
        %v4546 = vadd.f32 %v4298, %v4514
        %v4547 = vadd.f32 %v4299, %v4515
        %v4548 = vadd.f32 %v4300, %v4516
        %v4549 = vadd.f32 %v4301, %v4517
        %v4550 = vadd.f32 %v4302, %v4518
        %v4551 = vadd.f32 %v4303, %v4519
        %v4552 = vadd.f32 %v4304, %v4520
        %v4553 = vadd.f32 %v4305, %v4521
        %v4554 = vadd.f32 %v4306, %v4522
        %v4555 = vadd.f32 %v4307, %v4523
        %v4556 = vadd.f32 %v4308, %v4524
        %v4557 = vadd.f32 %v4309, %v4525
        %v4558 = vadd.f32 %v4310, %v4526
        %v4559 = vadd.f32 %v4311, %v4527
        %v4560 = vadd.f32 %v4312, %v4528
        %v4561 = vadd.f32 %v4313, %v4529
        %v4562 = vadd.f32 %v4314, %v4530
        %v4563 = vadd.f32 %v4315, %v4531
        %v4564 = vadd.f32 %v4316, %v4532
        %v4565 = vadd.f32 %v4317, %v4533
        %v4566 = vadd.f32 %v4318, %v4534
        %v4567 = vld [vmem:[%s2826] sm:$0xff]
        %v4568 = vld [vmem:[%s2826 + $0x8] sm:$0xff]
        %v4569 = vld [vmem:[%s2826 + $0x10] sm:$0xff]
        %v4570 = vld [vmem:[%s2826 + $0x18] sm:$0xff]
        %v4573 = vcombine.high %v4567, %v4567
        %v4575 = vunpack.c.l.s4 1966171168
        %v4576 = vunpack.c.0.s8 %v4575
        %v4577 = vlaneseq
        %v4578 = vshrl.u32 %v4577, 7
        %v4579 = vsub.s32 %v4576, %v4578
        %v4580 = vrot.slane %v4567, %v4579
        %v4582 = vunpack.c.l.s4 1966171168
        %v4583 = vunpack.c.0.s8 %v4582
        %v4584 = vlaneseq
        %v4585 = vshrl.u32 %v4584, 7
        %v4586 = vsub.s32 %v4583, %v4585
        %v4587 = vrot.slane %v4573, %v4586
        %v4588 = vcombine.high %v4580, %v4580
        %v4589 = vcombine.high %v4587, %v4587
        %v4591 = vunpack.c.l.s4 1966171168
        %v4592 = vunpack.c.0.s8 %v4591
        %v4593 = vlaneseq
        %v4594 = vshrl.u32 %v4593, 7
        %v4595 = vsub.s32 %v4592, %v4594
        %v4596 = vrot.slane %v4580, %v4595
        %v4598 = vunpack.c.l.s4 1966171168
        %v4599 = vunpack.c.0.s8 %v4598
        %v4600 = vlaneseq
        %v4601 = vshrl.u32 %v4600, 7
        %v4602 = vsub.s32 %v4599, %v4601
        %v4603 = vrot.slane %v4587, %v4602
        %v4605 = vunpack.c.l.s4 1966171168
        %v4606 = vunpack.c.0.s8 %v4605
        %v4607 = vlaneseq
        %v4608 = vshrl.u32 %v4607, 7
        %v4609 = vsub.s32 %v4606, %v4608
        %v4610 = vrot.slane %v4588, %v4609
        %v4612 = vunpack.c.l.s4 1966171168
        %v4613 = vunpack.c.0.s8 %v4612
        %v4614 = vlaneseq
        %v4615 = vshrl.u32 %v4614, 7
        %v4616 = vsub.s32 %v4613, %v4615
        %v4617 = vrot.slane %v4589, %v4616
        %v4618 = vcombine.high %v4596, %v4596
        %v4619 = vcombine.high %v4603, %v4603
        %v4620 = vcombine.high %v4610, %v4610
        %v4621 = vcombine.high %v4617, %v4617
        %v4622 = vcombine.high %v4569, %v4569
        %v4624 = vunpack.c.l.s4 1966171168
        %v4625 = vunpack.c.0.s8 %v4624
        %v4626 = vlaneseq
        %v4627 = vshrl.u32 %v4626, 7
        %v4628 = vsub.s32 %v4625, %v4627
        %v4629 = vrot.slane %v4569, %v4628
        %v4631 = vunpack.c.l.s4 1966171168
        %v4632 = vunpack.c.0.s8 %v4631
        %v4633 = vlaneseq
        %v4634 = vshrl.u32 %v4633, 7
        %v4635 = vsub.s32 %v4632, %v4634
        %v4636 = vrot.slane %v4622, %v4635
        %v4637 = vcombine.high %v4629, %v4629
        %v4638 = vcombine.high %v4636, %v4636
        %v4640 = vunpack.c.l.s4 1966171168
        %v4641 = vunpack.c.0.s8 %v4640
        %v4642 = vlaneseq
        %v4643 = vshrl.u32 %v4642, 7
        %v4644 = vsub.s32 %v4641, %v4643
        %v4645 = vrot.slane %v4629, %v4644
        %v4647 = vunpack.c.l.s4 1966171168
        %v4648 = vunpack.c.0.s8 %v4647
        %v4649 = vlaneseq
        %v4650 = vshrl.u32 %v4649, 7
        %v4651 = vsub.s32 %v4648, %v4650
        %v4652 = vrot.slane %v4636, %v4651
        %v4654 = vunpack.c.l.s4 1966171168
        %v4655 = vunpack.c.0.s8 %v4654
        %v4656 = vlaneseq
        %v4657 = vshrl.u32 %v4656, 7
        %v4658 = vsub.s32 %v4655, %v4657
        %v4659 = vrot.slane %v4637, %v4658
        %v4661 = vunpack.c.l.s4 1966171168
        %v4662 = vunpack.c.0.s8 %v4661
        %v4663 = vlaneseq
        %v4664 = vshrl.u32 %v4663, 7
        %v4665 = vsub.s32 %v4662, %v4664
        %v4666 = vrot.slane %v4638, %v4665
        %v4667 = vcombine.high %v4645, %v4645
        %v4668 = vcombine.high %v4652, %v4652
        %v4669 = vcombine.high %v4659, %v4659
        %v4670 = vcombine.high %v4666, %v4666
        %v4671 = vlaneseq
        %v4672 = vshrl.u32 %v4671, 7
        %v4673 = vsub.s32 0, %v4672
        %v4674 = vrot.slane %v4596, %v4673
        %v4675 = vlaneseq
        %v4676 = vshrl.u32 %v4675, 7
        %v4677 = vsub.s32 0, %v4676
        %v4678 = vrot.slane %v4610, %v4677
        %v4679 = vlaneseq
        %v4680 = vshrl.u32 %v4679, 7
        %v4681 = vsub.s32 0, %v4680
        %v4682 = vrot.slane %v4618, %v4681
        %v4683 = vlaneseq
        %v4684 = vshrl.u32 %v4683, 7
        %v4685 = vsub.s32 0, %v4684
        %v4686 = vrot.slane %v4620, %v4685
        %v4687 = vlaneseq
        %v4688 = vshrl.u32 %v4687, 7
        %v4689 = vsub.s32 0, %v4688
        %v4690 = vrot.slane %v4603, %v4689
        %v4691 = vlaneseq
        %v4692 = vshrl.u32 %v4691, 7
        %v4693 = vsub.s32 0, %v4692
        %v4694 = vrot.slane %v4617, %v4693
        %v4695 = vlaneseq
        %v4696 = vshrl.u32 %v4695, 7
        %v4697 = vsub.s32 0, %v4696
        %v4698 = vrot.slane %v4619, %v4697
        %v4699 = vlaneseq
        %v4700 = vshrl.u32 %v4699, 7
        %v4701 = vsub.s32 0, %v4700
        %v4702 = vrot.slane %v4621, %v4701
        %v4703 = vlaneseq
        %v4704 = vshrl.u32 %v4703, 7
        %v4705 = vsub.s32 0, %v4704
        %v4706 = vrot.slane %v4645, %v4705
        %v4707 = vlaneseq
        %v4708 = vshrl.u32 %v4707, 7
        %v4709 = vsub.s32 0, %v4708
        %v4710 = vrot.slane %v4659, %v4709
        %v4711 = vlaneseq
        %v4712 = vshrl.u32 %v4711, 7
        %v4713 = vsub.s32 0, %v4712
        %v4714 = vrot.slane %v4667, %v4713
        %v4715 = vlaneseq
        %v4716 = vshrl.u32 %v4715, 7
        %v4717 = vsub.s32 0, %v4716
        %v4718 = vrot.slane %v4669, %v4717
        %v4719 = vlaneseq
        %v4720 = vshrl.u32 %v4719, 7
        %v4721 = vsub.s32 0, %v4720
        %v4722 = vrot.slane %v4652, %v4721
        %v4723 = vlaneseq
        %v4724 = vshrl.u32 %v4723, 7
        %v4725 = vsub.s32 0, %v4724
        %v4726 = vrot.slane %v4666, %v4725
        %v4727 = vlaneseq
        %v4728 = vshrl.u32 %v4727, 7
        %v4729 = vsub.s32 0, %v4728
        %v4730 = vrot.slane %v4668, %v4729
        %v4731 = vlaneseq
        %v4732 = vshrl.u32 %v4731, 7
        %v4733 = vsub.s32 0, %v4732
        %v4734 = vrot.slane %v4670, %v4733
        %v4751 = vmul.f32 %v4674, %v4568
        %v4752 = vmul.f32 %v4674, %v4570
        %v4753 = vmul.f32 %v4678, %v4568
        %v4754 = vmul.f32 %v4678, %v4570
        %v4755 = vmul.f32 %v4682, %v4568
        %v4756 = vmul.f32 %v4682, %v4570
        %v4757 = vmul.f32 %v4686, %v4568
        %v4758 = vmul.f32 %v4686, %v4570
        %v4759 = vmul.f32 %v4690, %v4568
        %v4760 = vmul.f32 %v4690, %v4570
        %v4761 = vmul.f32 %v4694, %v4568
        %v4762 = vmul.f32 %v4694, %v4570
        %v4763 = vmul.f32 %v4698, %v4568
        %v4764 = vmul.f32 %v4698, %v4570
        %v4765 = vmul.f32 %v4702, %v4568
        %v4766 = vmul.f32 %v4702, %v4570
        %v4767 = vmul.f32 %v4706, %v4568
        %v4768 = vmul.f32 %v4706, %v4570
        %v4769 = vmul.f32 %v4710, %v4568
        %v4770 = vmul.f32 %v4710, %v4570
        %v4771 = vmul.f32 %v4714, %v4568
        %v4772 = vmul.f32 %v4714, %v4570
        %v4773 = vmul.f32 %v4718, %v4568
        %v4774 = vmul.f32 %v4718, %v4570
        %v4775 = vmul.f32 %v4722, %v4568
        %v4776 = vmul.f32 %v4722, %v4570
        %v4777 = vmul.f32 %v4726, %v4568
        %v4778 = vmul.f32 %v4726, %v4570
        %v4779 = vmul.f32 %v4730, %v4568
        %v4780 = vmul.f32 %v4730, %v4570
        %v4781 = vmul.f32 %v4734, %v4568
        %v4782 = vmul.f32 %v4734, %v4570
        %v4783 = vadd.f32 %v4535, %v4751
        %v4784 = vadd.f32 %v4536, %v4752
        %v4785 = vadd.f32 %v4537, %v4753
        %v4786 = vadd.f32 %v4538, %v4754
        %v4787 = vadd.f32 %v4539, %v4755
        %v4788 = vadd.f32 %v4540, %v4756
        %v4789 = vadd.f32 %v4541, %v4757
        %v4790 = vadd.f32 %v4542, %v4758
        %v4791 = vadd.f32 %v4543, %v4759
        %v4792 = vadd.f32 %v4544, %v4760
        %v4793 = vadd.f32 %v4545, %v4761
        %v4794 = vadd.f32 %v4546, %v4762
        %v4795 = vadd.f32 %v4547, %v4763
        %v4796 = vadd.f32 %v4548, %v4764
        %v4797 = vadd.f32 %v4549, %v4765
        %v4798 = vadd.f32 %v4550, %v4766
        %v4799 = vadd.f32 %v4551, %v4767
        %v4800 = vadd.f32 %v4552, %v4768
        %v4801 = vadd.f32 %v4553, %v4769
        %v4802 = vadd.f32 %v4554, %v4770
        %v4803 = vadd.f32 %v4555, %v4771
        %v4804 = vadd.f32 %v4556, %v4772
        %v4805 = vadd.f32 %v4557, %v4773
        %v4806 = vadd.f32 %v4558, %v4774
        %v4807 = vadd.f32 %v4559, %v4775
        %v4808 = vadd.f32 %v4560, %v4776
        %v4809 = vadd.f32 %v4561, %v4777
        %v4810 = vadd.f32 %v4562, %v4778
        %v4811 = vadd.f32 %v4563, %v4779
        %v4812 = vadd.f32 %v4564, %v4780
        %v4813 = vadd.f32 %v4565, %v4781
        %v4814 = vadd.f32 %v4566, %v4782
        %4847 = vrot.lane.b32.xlu0 %v4783, 64
        %v4848 = vpop.permute.xlu0 %4847
        %4849 = vrot.lane.b32.xlu0 %v4784, 64
        %v4850 = vpop.permute.xlu0 %4849
        %4851 = vrot.lane.b32.xlu0 %v4785, 64
        %v4852 = vpop.permute.xlu0 %4851
        %4853 = vrot.lane.b32.xlu0 %v4786, 64
        %v4854 = vpop.permute.xlu0 %4853
        %4855 = vrot.lane.b32.xlu0 %v4787, 64
        %v4856 = vpop.permute.xlu0 %4855
        %4857 = vrot.lane.b32.xlu0 %v4788, 64
        %v4858 = vpop.permute.xlu0 %4857
        %4859 = vrot.lane.b32.xlu0 %v4789, 64
        %v4860 = vpop.permute.xlu0 %4859
        %4861 = vrot.lane.b32.xlu0 %v4790, 64
        %v4862 = vpop.permute.xlu0 %4861
        %4863 = vrot.lane.b32.xlu0 %v4791, 64
        %v4864 = vpop.permute.xlu0 %4863
        %4865 = vrot.lane.b32.xlu0 %v4792, 64
        %v4866 = vpop.permute.xlu0 %4865
        %4867 = vrot.lane.b32.xlu0 %v4793, 64
        %v4868 = vpop.permute.xlu0 %4867
        %4869 = vrot.lane.b32.xlu0 %v4794, 64
        %v4870 = vpop.permute.xlu0 %4869
        %4871 = vrot.lane.b32.xlu0 %v4795, 64
        %v4872 = vpop.permute.xlu0 %4871
        %4873 = vrot.lane.b32.xlu0 %v4796, 64
        %v4874 = vpop.permute.xlu0 %4873
        %4875 = vrot.lane.b32.xlu0 %v4797, 64
        %v4876 = vpop.permute.xlu0 %4875
        %4877 = vrot.lane.b32.xlu0 %v4798, 64
        %v4878 = vpop.permute.xlu0 %4877
        %4879 = vrot.lane.b32.xlu0 %v4799, 64
        %v4880 = vpop.permute.xlu0 %4879
        %4881 = vrot.lane.b32.xlu0 %v4800, 64
        %v4882 = vpop.permute.xlu0 %4881
        %4883 = vrot.lane.b32.xlu0 %v4801, 64
        %v4884 = vpop.permute.xlu0 %4883
        %4885 = vrot.lane.b32.xlu0 %v4802, 64
        %v4886 = vpop.permute.xlu0 %4885
        %4887 = vrot.lane.b32.xlu0 %v4803, 64
        %v4888 = vpop.permute.xlu0 %4887
        %4889 = vrot.lane.b32.xlu0 %v4804, 64
        %v4890 = vpop.permute.xlu0 %4889
        %4891 = vrot.lane.b32.xlu0 %v4805, 64
        %v4892 = vpop.permute.xlu0 %4891
        %4893 = vrot.lane.b32.xlu0 %v4806, 64
        %v4894 = vpop.permute.xlu0 %4893
        %4895 = vrot.lane.b32.xlu0 %v4807, 64
        %v4896 = vpop.permute.xlu0 %4895
        %4897 = vrot.lane.b32.xlu0 %v4808, 64
        %v4898 = vpop.permute.xlu0 %4897
        %4899 = vrot.lane.b32.xlu0 %v4809, 64
        %v4900 = vpop.permute.xlu0 %4899
        %4901 = vrot.lane.b32.xlu0 %v4810, 64
        %v4902 = vpop.permute.xlu0 %4901
        %4903 = vrot.lane.b32.xlu0 %v4811, 64
        %v4904 = vpop.permute.xlu0 %4903
        %4905 = vrot.lane.b32.xlu0 %v4812, 64
        %v4906 = vpop.permute.xlu0 %4905
        %4907 = vrot.lane.b32.xlu0 %v4813, 64
        %v4908 = vpop.permute.xlu0 %4907
        %4909 = vrot.lane.b32.xlu0 %v4814, 64
        %v4910 = vpop.permute.xlu0 %4909
        %v4943 = vadd.f32 %v4783, %v4848
        %v4944 = vadd.f32 %v4784, %v4850
        %v4945 = vadd.f32 %v4785, %v4852
        %v4946 = vadd.f32 %v4786, %v4854
        %v4947 = vadd.f32 %v4787, %v4856
        %v4948 = vadd.f32 %v4788, %v4858
        %v4949 = vadd.f32 %v4789, %v4860
        %v4950 = vadd.f32 %v4790, %v4862
        %v4951 = vadd.f32 %v4791, %v4864
        %v4952 = vadd.f32 %v4792, %v4866
        %v4953 = vadd.f32 %v4793, %v4868
        %v4954 = vadd.f32 %v4794, %v4870
        %v4955 = vadd.f32 %v4795, %v4872
        %v4956 = vadd.f32 %v4796, %v4874
        %v4957 = vadd.f32 %v4797, %v4876
        %v4958 = vadd.f32 %v4798, %v4878
        %v4959 = vadd.f32 %v4799, %v4880
        %v4960 = vadd.f32 %v4800, %v4882
        %v4961 = vadd.f32 %v4801, %v4884
        %v4962 = vadd.f32 %v4802, %v4886
        %v4963 = vadd.f32 %v4803, %v4888
        %v4964 = vadd.f32 %v4804, %v4890
        %v4965 = vadd.f32 %v4805, %v4892
        %v4966 = vadd.f32 %v4806, %v4894
        %v4967 = vadd.f32 %v4807, %v4896
        %v4968 = vadd.f32 %v4808, %v4898
        %v4969 = vadd.f32 %v4809, %v4900
        %v4970 = vadd.f32 %v4810, %v4902
        %v4971 = vadd.f32 %v4811, %v4904
        %v4972 = vadd.f32 %v4812, %v4906
        %v4973 = vadd.f32 %v4813, %v4908
        %v4974 = vadd.f32 %v4814, %v4910
        %v4975 = vld [vmem:[%s6] sm:$0x1]
        %v4976 = vld [vmem:[%s7] sm:$0x1]
        %v4977 = vsel %vm1901, %v4943, 0.0
        %4978 = vadd.xlane.f32.xlu0 %v4977
        %v4979 = vpop.xlane.xlu0 %4978
        %v4980 = vsel %vm1901, %v4944, 0.0
        %4981 = vadd.xlane.f32.xlu0 %v4980
        %v4982 = vpop.xlane.xlu0 %4981
        %v4983 = vsel %vm1901, %v4945, 0.0
        %4984 = vadd.xlane.f32.xlu0 %v4983
        %v4985 = vpop.xlane.xlu0 %4984
        %v4986 = vsel %vm1901, %v4946, 0.0
        %4987 = vadd.xlane.f32.xlu0 %v4986
        %v4988 = vpop.xlane.xlu0 %4987
        %v4989 = vsel %vm1901, %v4947, 0.0
        %4990 = vadd.xlane.f32.xlu0 %v4989
        %v4991 = vpop.xlane.xlu0 %4990
        %v4992 = vsel %vm1901, %v4948, 0.0
        %4993 = vadd.xlane.f32.xlu0 %v4992
        %v4994 = vpop.xlane.xlu0 %4993
        %v4995 = vsel %vm1901, %v4949, 0.0
        %4996 = vadd.xlane.f32.xlu0 %v4995
        %v4997 = vpop.xlane.xlu0 %4996
        %v4998 = vsel %vm1901, %v4950, 0.0
        %4999 = vadd.xlane.f32.xlu0 %v4998
        %v5000 = vpop.xlane.xlu0 %4999
        %v5001 = vsel %vm1901, %v4951, 0.0
        %5002 = vadd.xlane.f32.xlu0 %v5001
        %v5003 = vpop.xlane.xlu0 %5002
        %v5004 = vsel %vm1901, %v4952, 0.0
        %5005 = vadd.xlane.f32.xlu0 %v5004
        %v5006 = vpop.xlane.xlu0 %5005
        %v5007 = vsel %vm1901, %v4953, 0.0
        %5008 = vadd.xlane.f32.xlu0 %v5007
        %v5009 = vpop.xlane.xlu0 %5008
        %v5010 = vsel %vm1901, %v4954, 0.0
        %5011 = vadd.xlane.f32.xlu0 %v5010
        %v5012 = vpop.xlane.xlu0 %5011
        %v5013 = vsel %vm1901, %v4955, 0.0
        %5014 = vadd.xlane.f32.xlu0 %v5013
        %v5015 = vpop.xlane.xlu0 %5014
        %v5016 = vsel %vm1901, %v4956, 0.0
        %5017 = vadd.xlane.f32.xlu0 %v5016
        %v5018 = vpop.xlane.xlu0 %5017
        %v5019 = vsel %vm1901, %v4957, 0.0
        %5020 = vadd.xlane.f32.xlu0 %v5019
        %v5021 = vpop.xlane.xlu0 %5020
        %v5022 = vsel %vm1901, %v4958, 0.0
        %5023 = vadd.xlane.f32.xlu0 %v5022
        %v5024 = vpop.xlane.xlu0 %5023
        %v5025 = vsel %vm1901, %v4959, 0.0
        %5026 = vadd.xlane.f32.xlu0 %v5025
        %v5027 = vpop.xlane.xlu0 %5026
        %v5028 = vsel %vm1901, %v4960, 0.0
        %5029 = vadd.xlane.f32.xlu0 %v5028
        %v5030 = vpop.xlane.xlu0 %5029
        %v5031 = vsel %vm1901, %v4961, 0.0
        %5032 = vadd.xlane.f32.xlu0 %v5031
        %v5033 = vpop.xlane.xlu0 %5032
        %v5034 = vsel %vm1901, %v4962, 0.0
        %5035 = vadd.xlane.f32.xlu0 %v5034
        %v5036 = vpop.xlane.xlu0 %5035
        %v5037 = vsel %vm1901, %v4963, 0.0
        %5038 = vadd.xlane.f32.xlu0 %v5037
        %v5039 = vpop.xlane.xlu0 %5038
        %v5040 = vsel %vm1901, %v4964, 0.0
        %5041 = vadd.xlane.f32.xlu0 %v5040
        %v5042 = vpop.xlane.xlu0 %5041
        %v5043 = vsel %vm1901, %v4965, 0.0
        %5044 = vadd.xlane.f32.xlu0 %v5043
        %v5045 = vpop.xlane.xlu0 %5044
        %v5046 = vsel %vm1901, %v4966, 0.0
        %5047 = vadd.xlane.f32.xlu0 %v5046
        %v5048 = vpop.xlane.xlu0 %5047
        %v5049 = vsel %vm1901, %v4967, 0.0
        %5050 = vadd.xlane.f32.xlu0 %v5049
        %v5051 = vpop.xlane.xlu0 %5050
        %v5052 = vsel %vm1901, %v4968, 0.0
        %5053 = vadd.xlane.f32.xlu0 %v5052
        %v5054 = vpop.xlane.xlu0 %5053
        %v5055 = vsel %vm1901, %v4969, 0.0
        %5056 = vadd.xlane.f32.xlu0 %v5055
        %v5057 = vpop.xlane.xlu0 %5056
        %v5058 = vsel %vm1901, %v4970, 0.0
        %5059 = vadd.xlane.f32.xlu0 %v5058
        %v5060 = vpop.xlane.xlu0 %5059
        %v5061 = vsel %vm1901, %v4971, 0.0
        %5062 = vadd.xlane.f32.xlu0 %v5061
        %v5063 = vpop.xlane.xlu0 %5062
        %v5064 = vsel %vm1901, %v4972, 0.0
        %5065 = vadd.xlane.f32.xlu0 %v5064
        %v5066 = vpop.xlane.xlu0 %5065
        %v5067 = vsel %vm1901, %v4973, 0.0
        %5068 = vadd.xlane.f32.xlu0 %v5067
        %v5069 = vpop.xlane.xlu0 %5068
        %v5070 = vsel %vm1901, %v4974, 0.0
        %5071 = vadd.xlane.f32.xlu0 %v5070
        %v5072 = vpop.xlane.xlu0 %5071
        %v5073 = vrcp.pop 64.0
        %v5074 = vmul.f32 %v4979, %v5073
        %v5075 = vmul.f32 %v4982, %v5073
        %v5076 = vmul.f32 %v4985, %v5073
        %v5077 = vmul.f32 %v4988, %v5073
        %v5078 = vmul.f32 %v4991, %v5073
        %v5079 = vmul.f32 %v4994, %v5073
        %v5080 = vmul.f32 %v4997, %v5073
        %v5081 = vmul.f32 %v5000, %v5073
        %v5082 = vmul.f32 %v5003, %v5073
        %v5083 = vmul.f32 %v5006, %v5073
        %v5084 = vmul.f32 %v5009, %v5073
        %v5085 = vmul.f32 %v5012, %v5073
        %v5086 = vmul.f32 %v5015, %v5073
        %v5087 = vmul.f32 %v5018, %v5073
        %v5088 = vmul.f32 %v5021, %v5073
        %v5089 = vmul.f32 %v5024, %v5073
        %v5090 = vmul.f32 %v5027, %v5073
        %v5091 = vmul.f32 %v5030, %v5073
        %v5092 = vmul.f32 %v5033, %v5073
        %v5093 = vmul.f32 %v5036, %v5073
        %v5094 = vmul.f32 %v5039, %v5073
        %v5095 = vmul.f32 %v5042, %v5073
        %v5096 = vmul.f32 %v5045, %v5073
        %v5097 = vmul.f32 %v5048, %v5073
        %v5098 = vmul.f32 %v5051, %v5073
        %v5099 = vmul.f32 %v5054, %v5073
        %v5100 = vmul.f32 %v5057, %v5073
        %v5101 = vmul.f32 %v5060, %v5073
        %v5102 = vmul.f32 %v5063, %v5073
        %v5103 = vmul.f32 %v5066, %v5073
        %v5104 = vmul.f32 %v5069, %v5073
        %v5105 = vmul.f32 %v5072, %v5073
        %v5106 = vsub.f32 %v4943, %v5074
        %v5107 = vsub.f32 %v4944, %v5075
        %v5108 = vsub.f32 %v4945, %v5076
        %v5109 = vsub.f32 %v4946, %v5077
        %v5110 = vsub.f32 %v4947, %v5078
        %v5111 = vsub.f32 %v4948, %v5079
        %v5112 = vsub.f32 %v4949, %v5080
        %v5113 = vsub.f32 %v4950, %v5081
        %v5114 = vsub.f32 %v4951, %v5082
        %v5115 = vsub.f32 %v4952, %v5083
        %v5116 = vsub.f32 %v4953, %v5084
        %v5117 = vsub.f32 %v4954, %v5085
        %v5118 = vsub.f32 %v4955, %v5086
        %v5119 = vsub.f32 %v4956, %v5087
        %v5120 = vsub.f32 %v4957, %v5088
        %v5121 = vsub.f32 %v4958, %v5089
        %v5122 = vsub.f32 %v4959, %v5090
        %v5123 = vsub.f32 %v4960, %v5091
        %v5124 = vsub.f32 %v4961, %v5092
        %v5125 = vsub.f32 %v4962, %v5093
        %v5126 = vsub.f32 %v4963, %v5094
        %v5127 = vsub.f32 %v4964, %v5095
        %v5128 = vsub.f32 %v4965, %v5096
        %v5129 = vsub.f32 %v4966, %v5097
        %v5130 = vsub.f32 %v4967, %v5098
        %v5131 = vsub.f32 %v4968, %v5099
        %v5132 = vsub.f32 %v4969, %v5100
        %v5133 = vsub.f32 %v4970, %v5101
        %v5134 = vsub.f32 %v4971, %v5102
        %v5135 = vsub.f32 %v4972, %v5103
        %v5136 = vsub.f32 %v4973, %v5104
        %v5137 = vsub.f32 %v4974, %v5105
        %v5138 = vmul.f32 %v5106, %v5106
        %v5139 = vmul.f32 %v5107, %v5107
        %v5140 = vmul.f32 %v5108, %v5108
        %v5141 = vmul.f32 %v5109, %v5109
        %v5142 = vmul.f32 %v5110, %v5110
        %v5143 = vmul.f32 %v5111, %v5111
        %v5144 = vmul.f32 %v5112, %v5112
        %v5145 = vmul.f32 %v5113, %v5113
        %v5146 = vmul.f32 %v5114, %v5114
        %v5147 = vmul.f32 %v5115, %v5115
        %v5148 = vmul.f32 %v5116, %v5116
        %v5149 = vmul.f32 %v5117, %v5117
        %v5150 = vmul.f32 %v5118, %v5118
        %v5151 = vmul.f32 %v5119, %v5119
        %v5152 = vmul.f32 %v5120, %v5120
        %v5153 = vmul.f32 %v5121, %v5121
        %v5154 = vmul.f32 %v5122, %v5122
        %v5155 = vmul.f32 %v5123, %v5123
        %v5156 = vmul.f32 %v5124, %v5124
        %v5157 = vmul.f32 %v5125, %v5125
        %v5158 = vmul.f32 %v5126, %v5126
        %v5159 = vmul.f32 %v5127, %v5127
        %v5160 = vmul.f32 %v5128, %v5128
        %v5161 = vmul.f32 %v5129, %v5129
        %v5162 = vmul.f32 %v5130, %v5130
        %v5163 = vmul.f32 %v5131, %v5131
        %v5164 = vmul.f32 %v5132, %v5132
        %v5165 = vmul.f32 %v5133, %v5133
        %v5166 = vmul.f32 %v5134, %v5134
        %v5167 = vmul.f32 %v5135, %v5135
        %v5168 = vmul.f32 %v5136, %v5136
        %v5169 = vmul.f32 %v5137, %v5137
        %v5170 = vsel %vm1901, %v5138, 0.0
        %5171 = vadd.xlane.f32.xlu0 %v5170
        %v5172 = vpop.xlane.xlu0 %5171
        %v5173 = vsel %vm1901, %v5139, 0.0
        %5174 = vadd.xlane.f32.xlu0 %v5173
        %v5175 = vpop.xlane.xlu0 %5174
        %v5176 = vsel %vm1901, %v5140, 0.0
        %5177 = vadd.xlane.f32.xlu0 %v5176
        %v5178 = vpop.xlane.xlu0 %5177
        %v5179 = vsel %vm1901, %v5141, 0.0
        %5180 = vadd.xlane.f32.xlu0 %v5179
        %v5181 = vpop.xlane.xlu0 %5180
        %v5182 = vsel %vm1901, %v5142, 0.0
        %5183 = vadd.xlane.f32.xlu0 %v5182
        %v5184 = vpop.xlane.xlu0 %5183
        %v5185 = vsel %vm1901, %v5143, 0.0
        %5186 = vadd.xlane.f32.xlu0 %v5185
        %v5187 = vpop.xlane.xlu0 %5186
        %v5188 = vsel %vm1901, %v5144, 0.0
        %5189 = vadd.xlane.f32.xlu0 %v5188
        %v5190 = vpop.xlane.xlu0 %5189
        %v5191 = vsel %vm1901, %v5145, 0.0
        %5192 = vadd.xlane.f32.xlu0 %v5191
        %v5193 = vpop.xlane.xlu0 %5192
        %v5194 = vsel %vm1901, %v5146, 0.0
        %5195 = vadd.xlane.f32.xlu0 %v5194
        %v5196 = vpop.xlane.xlu0 %5195
        %v5197 = vsel %vm1901, %v5147, 0.0
        %5198 = vadd.xlane.f32.xlu0 %v5197
        %v5199 = vpop.xlane.xlu0 %5198
        %v5200 = vsel %vm1901, %v5148, 0.0
        %5201 = vadd.xlane.f32.xlu0 %v5200
        %v5202 = vpop.xlane.xlu0 %5201
        %v5203 = vsel %vm1901, %v5149, 0.0
        %5204 = vadd.xlane.f32.xlu0 %v5203
        %v5205 = vpop.xlane.xlu0 %5204
        %v5206 = vsel %vm1901, %v5150, 0.0
        %5207 = vadd.xlane.f32.xlu0 %v5206
        %v5208 = vpop.xlane.xlu0 %5207
        %v5209 = vsel %vm1901, %v5151, 0.0
        %5210 = vadd.xlane.f32.xlu0 %v5209
        %v5211 = vpop.xlane.xlu0 %5210
        %v5212 = vsel %vm1901, %v5152, 0.0
        %5213 = vadd.xlane.f32.xlu0 %v5212
        %v5214 = vpop.xlane.xlu0 %5213
        %v5215 = vsel %vm1901, %v5153, 0.0
        %5216 = vadd.xlane.f32.xlu0 %v5215
        %v5217 = vpop.xlane.xlu0 %5216
        %v5218 = vsel %vm1901, %v5154, 0.0
        %5219 = vadd.xlane.f32.xlu0 %v5218
        %v5220 = vpop.xlane.xlu0 %5219
        %v5221 = vsel %vm1901, %v5155, 0.0
        %5222 = vadd.xlane.f32.xlu0 %v5221
        %v5223 = vpop.xlane.xlu0 %5222
        %v5224 = vsel %vm1901, %v5156, 0.0
        %5225 = vadd.xlane.f32.xlu0 %v5224
        %v5226 = vpop.xlane.xlu0 %5225
        %v5227 = vsel %vm1901, %v5157, 0.0
        %5228 = vadd.xlane.f32.xlu0 %v5227
        %v5229 = vpop.xlane.xlu0 %5228
        %v5230 = vsel %vm1901, %v5158, 0.0
        %5231 = vadd.xlane.f32.xlu0 %v5230
        %v5232 = vpop.xlane.xlu0 %5231
        %v5233 = vsel %vm1901, %v5159, 0.0
        %5234 = vadd.xlane.f32.xlu0 %v5233
        %v5235 = vpop.xlane.xlu0 %5234
        %v5236 = vsel %vm1901, %v5160, 0.0
        %5237 = vadd.xlane.f32.xlu0 %v5236
        %v5238 = vpop.xlane.xlu0 %5237
        %v5239 = vsel %vm1901, %v5161, 0.0
        %5240 = vadd.xlane.f32.xlu0 %v5239
        %v5241 = vpop.xlane.xlu0 %5240
        %v5242 = vsel %vm1901, %v5162, 0.0
        %5243 = vadd.xlane.f32.xlu0 %v5242
        %v5244 = vpop.xlane.xlu0 %5243
        %v5245 = vsel %vm1901, %v5163, 0.0
        %5246 = vadd.xlane.f32.xlu0 %v5245
        %v5247 = vpop.xlane.xlu0 %5246
        %v5248 = vsel %vm1901, %v5164, 0.0
        %5249 = vadd.xlane.f32.xlu0 %v5248
        %v5250 = vpop.xlane.xlu0 %5249
        %v5251 = vsel %vm1901, %v5165, 0.0
        %5252 = vadd.xlane.f32.xlu0 %v5251
        %v5253 = vpop.xlane.xlu0 %5252
        %v5254 = vsel %vm1901, %v5166, 0.0
        %5255 = vadd.xlane.f32.xlu0 %v5254
        %v5256 = vpop.xlane.xlu0 %5255
        %v5257 = vsel %vm1901, %v5167, 0.0
        %5258 = vadd.xlane.f32.xlu0 %v5257
        %v5259 = vpop.xlane.xlu0 %5258
        %v5260 = vsel %vm1901, %v5168, 0.0
        %5261 = vadd.xlane.f32.xlu0 %v5260
        %v5262 = vpop.xlane.xlu0 %5261
        %v5263 = vsel %vm1901, %v5169, 0.0
        %5264 = vadd.xlane.f32.xlu0 %v5263
        %v5265 = vpop.xlane.xlu0 %5264
        %v5266 = vmul.f32 %v5172, %v5073
        %v5267 = vmul.f32 %v5175, %v5073
        %v5268 = vmul.f32 %v5178, %v5073
        %v5269 = vmul.f32 %v5181, %v5073
        %v5270 = vmul.f32 %v5184, %v5073
        %v5271 = vmul.f32 %v5187, %v5073
        %v5272 = vmul.f32 %v5190, %v5073
        %v5273 = vmul.f32 %v5193, %v5073
        %v5274 = vmul.f32 %v5196, %v5073
        %v5275 = vmul.f32 %v5199, %v5073
        %v5276 = vmul.f32 %v5202, %v5073
        %v5277 = vmul.f32 %v5205, %v5073
        %v5278 = vmul.f32 %v5208, %v5073
        %v5279 = vmul.f32 %v5211, %v5073
        %v5280 = vmul.f32 %v5214, %v5073
        %v5281 = vmul.f32 %v5217, %v5073
        %v5282 = vmul.f32 %v5220, %v5073
        %v5283 = vmul.f32 %v5223, %v5073
        %v5284 = vmul.f32 %v5226, %v5073
        %v5285 = vmul.f32 %v5229, %v5073
        %v5286 = vmul.f32 %v5232, %v5073
        %v5287 = vmul.f32 %v5235, %v5073
        %v5288 = vmul.f32 %v5238, %v5073
        %v5289 = vmul.f32 %v5241, %v5073
        %v5290 = vmul.f32 %v5244, %v5073
        %v5291 = vmul.f32 %v5247, %v5073
        %v5292 = vmul.f32 %v5250, %v5073
        %v5293 = vmul.f32 %v5253, %v5073
        %v5294 = vmul.f32 %v5256, %v5073
        %v5295 = vmul.f32 %v5259, %v5073
        %v5296 = vmul.f32 %v5262, %v5073
        %v5297 = vmul.f32 %v5265, %v5073
        %v5298 = vadd.f32 %v5266, 1e-05
        %v5299 = vadd.f32 %v5267, 1e-05
        %v5300 = vadd.f32 %v5268, 1e-05
        %v5301 = vadd.f32 %v5269, 1e-05
        %v5302 = vadd.f32 %v5270, 1e-05
        %v5303 = vadd.f32 %v5271, 1e-05
        %v5304 = vadd.f32 %v5272, 1e-05
        %v5305 = vadd.f32 %v5273, 1e-05
        %v5306 = vadd.f32 %v5274, 1e-05
        %v5307 = vadd.f32 %v5275, 1e-05
        %v5308 = vadd.f32 %v5276, 1e-05
        %v5309 = vadd.f32 %v5277, 1e-05
        %v5310 = vadd.f32 %v5278, 1e-05
        %v5311 = vadd.f32 %v5279, 1e-05
        %v5312 = vadd.f32 %v5280, 1e-05
        %v5313 = vadd.f32 %v5281, 1e-05
        %v5314 = vadd.f32 %v5282, 1e-05
        %v5315 = vadd.f32 %v5283, 1e-05
        %v5316 = vadd.f32 %v5284, 1e-05
        %v5317 = vadd.f32 %v5285, 1e-05
        %v5318 = vadd.f32 %v5286, 1e-05
        %v5319 = vadd.f32 %v5287, 1e-05
        %v5320 = vadd.f32 %v5288, 1e-05
        %v5321 = vadd.f32 %v5289, 1e-05
        %v5322 = vadd.f32 %v5290, 1e-05
        %v5323 = vadd.f32 %v5291, 1e-05
        %v5324 = vadd.f32 %v5292, 1e-05
        %v5325 = vadd.f32 %v5293, 1e-05
        %v5326 = vadd.f32 %v5294, 1e-05
        %v5327 = vadd.f32 %v5295, 1e-05
        %v5328 = vadd.f32 %v5296, 1e-05
        %v5329 = vadd.f32 %v5297, 1e-05
        %v5330 = vrsqrt.pop %v5298
        %v5331 = vrsqrt.pop %v5299
        %v5332 = vrsqrt.pop %v5300
        %v5333 = vrsqrt.pop %v5301
        %v5334 = vrsqrt.pop %v5302
        %v5335 = vrsqrt.pop %v5303
        %v5336 = vrsqrt.pop %v5304
        %v5337 = vrsqrt.pop %v5305
        %v5338 = vrsqrt.pop %v5306
        %v5339 = vrsqrt.pop %v5307
        %v5340 = vrsqrt.pop %v5308
        %v5341 = vrsqrt.pop %v5309
        %v5342 = vrsqrt.pop %v5310
        %v5343 = vrsqrt.pop %v5311
        %v5344 = vrsqrt.pop %v5312
        %v5345 = vrsqrt.pop %v5313
        %v5346 = vrsqrt.pop %v5314
        %v5347 = vrsqrt.pop %v5315
        %v5348 = vrsqrt.pop %v5316
        %v5349 = vrsqrt.pop %v5317
        %v5350 = vrsqrt.pop %v5318
        %v5351 = vrsqrt.pop %v5319
        %v5352 = vrsqrt.pop %v5320
        %v5353 = vrsqrt.pop %v5321
        %v5354 = vrsqrt.pop %v5322
        %v5355 = vrsqrt.pop %v5323
        %v5356 = vrsqrt.pop %v5324
        %v5357 = vrsqrt.pop %v5325
        %v5358 = vrsqrt.pop %v5326
        %v5359 = vrsqrt.pop %v5327
        %v5360 = vrsqrt.pop %v5328
        %v5361 = vrsqrt.pop %v5329
        %v5362 = vmul.f32 %v5106, %v5330
        %v5363 = vmul.f32 %v5107, %v5331
        %v5364 = vmul.f32 %v5108, %v5332
        %v5365 = vmul.f32 %v5109, %v5333
        %v5366 = vmul.f32 %v5110, %v5334
        %v5367 = vmul.f32 %v5111, %v5335
        %v5368 = vmul.f32 %v5112, %v5336
        %v5369 = vmul.f32 %v5113, %v5337
        %v5370 = vmul.f32 %v5114, %v5338
        %v5371 = vmul.f32 %v5115, %v5339
        %v5372 = vmul.f32 %v5116, %v5340
        %v5373 = vmul.f32 %v5117, %v5341
        %v5374 = vmul.f32 %v5118, %v5342
        %v5375 = vmul.f32 %v5119, %v5343
        %v5376 = vmul.f32 %v5120, %v5344
        %v5377 = vmul.f32 %v5121, %v5345
        %v5378 = vmul.f32 %v5122, %v5346
        %v5379 = vmul.f32 %v5123, %v5347
        %v5380 = vmul.f32 %v5124, %v5348
        %v5381 = vmul.f32 %v5125, %v5349
        %v5382 = vmul.f32 %v5126, %v5350
        %v5383 = vmul.f32 %v5127, %v5351
        %v5384 = vmul.f32 %v5128, %v5352
        %v5385 = vmul.f32 %v5129, %v5353
        %v5386 = vmul.f32 %v5130, %v5354
        %v5387 = vmul.f32 %v5131, %v5355
        %v5388 = vmul.f32 %v5132, %v5356
        %v5389 = vmul.f32 %v5133, %v5357
        %v5390 = vmul.f32 %v5134, %v5358
        %v5391 = vmul.f32 %v5135, %v5359
        %v5392 = vmul.f32 %v5136, %v5360
        %v5393 = vmul.f32 %v5137, %v5361
        %v5395 = vlaneseq
        %v5396 = vshrl.u32 %v5395, 7
        %v5397 = vsub.s32 0, %v5396
        %v5398 = vrot.slane %v4975, %v5397
        %v5400 = vmul.f32 %v5362, %v5398
        %v5401 = vmul.f32 %v5363, %v5398
        %v5402 = vmul.f32 %v5364, %v5398
        %v5403 = vmul.f32 %v5365, %v5398
        %v5404 = vmul.f32 %v5366, %v5398
        %v5405 = vmul.f32 %v5367, %v5398
        %v5406 = vmul.f32 %v5368, %v5398
        %v5407 = vmul.f32 %v5369, %v5398
        %v5408 = vmul.f32 %v5370, %v5398
        %v5409 = vmul.f32 %v5371, %v5398
        %v5410 = vmul.f32 %v5372, %v5398
        %v5411 = vmul.f32 %v5373, %v5398
        %v5412 = vmul.f32 %v5374, %v5398
        %v5413 = vmul.f32 %v5375, %v5398
        %v5414 = vmul.f32 %v5376, %v5398
        %v5415 = vmul.f32 %v5377, %v5398
        %v5416 = vmul.f32 %v5378, %v5398
        %v5417 = vmul.f32 %v5379, %v5398
        %v5418 = vmul.f32 %v5380, %v5398
        %v5419 = vmul.f32 %v5381, %v5398
        %v5420 = vmul.f32 %v5382, %v5398
        %v5421 = vmul.f32 %v5383, %v5398
        %v5422 = vmul.f32 %v5384, %v5398
        %v5423 = vmul.f32 %v5385, %v5398
        %v5424 = vmul.f32 %v5386, %v5398
        %v5425 = vmul.f32 %v5387, %v5398
        %v5426 = vmul.f32 %v5388, %v5398
        %v5427 = vmul.f32 %v5389, %v5398
        %v5428 = vmul.f32 %v5390, %v5398
        %v5429 = vmul.f32 %v5391, %v5398
        %v5430 = vmul.f32 %v5392, %v5398
        %v5431 = vmul.f32 %v5393, %v5398
        %v5433 = vlaneseq
        %v5434 = vshrl.u32 %v5433, 7
        %v5435 = vsub.s32 0, %v5434
        %v5436 = vrot.slane %v4976, %v5435
        %v5438 = vadd.f32 %v5400, %v5436
        %v5439 = vadd.f32 %v5401, %v5436
        %v5440 = vadd.f32 %v5402, %v5436
        %v5441 = vadd.f32 %v5403, %v5436
        %v5442 = vadd.f32 %v5404, %v5436
        %v5443 = vadd.f32 %v5405, %v5436
        %v5444 = vadd.f32 %v5406, %v5436
        %v5445 = vadd.f32 %v5407, %v5436
        %v5446 = vadd.f32 %v5408, %v5436
        %v5447 = vadd.f32 %v5409, %v5436
        %v5448 = vadd.f32 %v5410, %v5436
        %v5449 = vadd.f32 %v5411, %v5436
        %v5450 = vadd.f32 %v5412, %v5436
        %v5451 = vadd.f32 %v5413, %v5436
        %v5452 = vadd.f32 %v5414, %v5436
        %v5453 = vadd.f32 %v5415, %v5436
        %v5454 = vadd.f32 %v5416, %v5436
        %v5455 = vadd.f32 %v5417, %v5436
        %v5456 = vadd.f32 %v5418, %v5436
        %v5457 = vadd.f32 %v5419, %v5436
        %v5458 = vadd.f32 %v5420, %v5436
        %v5459 = vadd.f32 %v5421, %v5436
        %v5460 = vadd.f32 %v5422, %v5436
        %v5461 = vadd.f32 %v5423, %v5436
        %v5462 = vadd.f32 %v5424, %v5436
        %v5463 = vadd.f32 %v5425, %v5436
        %v5464 = vadd.f32 %v5426, %v5436
        %v5465 = vadd.f32 %v5427, %v5436
        %v5466 = vadd.f32 %v5428, %v5436
        %v5467 = vadd.f32 %v5429, %v5436
        %v5468 = vadd.f32 %v5430, %v5436
        %v5469 = vadd.f32 %v5431, %v5436
        %v5470 = vld [vmem:[#allocation6] sm:$0xff]
        %v5471 = vld [vmem:[#allocation6 + $0x8] sm:$0xff]
        %v5472 = vld [vmem:[#allocation6 + $0x10] sm:$0xff]
        %v5473 = vld [vmem:[#allocation6 + $0x18] sm:$0xff]
        %v5474 = vld [vmem:[#allocation6 + $0x20] sm:$0xff]
        %v5475 = vld [vmem:[#allocation6 + $0x28] sm:$0xff]
        %v5476 = vld [vmem:[#allocation6 + $0x30] sm:$0xff]
        %v5477 = vld [vmem:[#allocation6 + $0x38] sm:$0xff]
        %v5478 = vld [vmem:[#allocation6 + $0x40] sm:$0xff]
        %v5479 = vld [vmem:[#allocation6 + $0x48] sm:$0xff]
        %v5480 = vld [vmem:[#allocation6 + $0x50] sm:$0xff]
        %v5481 = vld [vmem:[#allocation6 + $0x58] sm:$0xff]
        %v5482 = vld [vmem:[#allocation6 + $0x60] sm:$0xff]
        %v5483 = vld [vmem:[#allocation6 + $0x68] sm:$0xff]
        %v5484 = vld [vmem:[#allocation6 + $0x70] sm:$0xff]
        %v5485 = vld [vmem:[#allocation6 + $0x78] sm:$0xff]
        %v5486 = vld [vmem:[%s9] sm:$0x3]
        %v5488 = vlaneseq
        %v5489 = vshrl.u32 %v5488, 7
        %v5490 = vsub.s32 0, %v5489
        %v5491 = vrot.slane %v5486, %v5490
        %v5492 = vlaneseq
        %v5493 = vshrl.u32 %v5492, 7
        %v5494 = vsub.s32 1, %v5493
        %v5495 = vrot.slane %v5486, %v5494
        %v5499 = vsel %vm1901, %v5438, 0
        %v5502 = vsel %vm1901, %v5439, 0
        %v5505 = vsel %vm1901, %v5440, 0
        %v5508 = vsel %vm1901, %v5441, 0
        %v5511 = vsel %vm1901, %v5442, 0
        %v5514 = vsel %vm1901, %v5443, 0
        %v5517 = vsel %vm1901, %v5444, 0
        %v5520 = vsel %vm1901, %v5445, 0
        %v5523 = vsel %vm1901, %v5446, 0
        %v5526 = vsel %vm1901, %v5447, 0
        %v5529 = vsel %vm1901, %v5448, 0
        %v5532 = vsel %vm1901, %v5449, 0
        %v5535 = vsel %vm1901, %v5450, 0
        %v5538 = vsel %vm1901, %v5451, 0
        %v5541 = vsel %vm1901, %v5452, 0
        %v5544 = vsel %vm1901, %v5453, 0
        %v5547 = vsel %vm1901, %v5454, 0
        %v5550 = vsel %vm1901, %v5455, 0
        %v5553 = vsel %vm1901, %v5456, 0
        %v5556 = vsel %vm1901, %v5457, 0
        %v5559 = vsel %vm1901, %v5458, 0
        %v5562 = vsel %vm1901, %v5459, 0
        %v5565 = vsel %vm1901, %v5460, 0
        %v5568 = vsel %vm1901, %v5461, 0
        %v5571 = vsel %vm1901, %v5462, 0
        %v5574 = vsel %vm1901, %v5463, 0
        %v5577 = vsel %vm1901, %v5464, 0
        %v5580 = vsel %vm1901, %v5465, 0
        %v5583 = vsel %vm1901, %v5466, 0
        %v5586 = vsel %vm1901, %v5467, 0
        %v5589 = vsel %vm1901, %v5468, 0
        %v5592 = vsel %vm1901, %v5469, 0
        %5594 = vmatprep.subr.mxu0 %v5471
        %5595 = vmatpush1.msra.mxu0 %v5470
        %5596 = vmatprep.subr.mxu0 %v5473
        %5597 = vmatpush1.msra.mxu0 %v5472
        %5598 = vmatprep.subr.mxu0 %v5475
        %5599 = vmatpush1.msra.mxu0 %v5474
        %5600 = vmatprep.subr.mxu0 %v5477
        %5601 = vmatpush1.msra.mxu0 %v5476
        %5602 = vmatprep.subr.mxu0 %v5479
        %5603 = vmatpush1.msra.mxu0 %v5478
        %5604 = vmatprep.subr.mxu0 %v5481
        %5605 = vmatpush1.msra.mxu0 %v5480
        %5606 = vmatprep.subr.mxu0 %v5483
        %5607 = vmatpush1.msra.mxu0 %v5482
        %5608 = vmatprep.subr.mxu0 %v5485
        %5609 = vmatpush1.msra.mxu0 %v5484
        %5610 = vmatprep.subr.mxu0 0.0
        %5611 = vmatpush1.msra.mxu0 0.0
        %5612 = vmatprep.subr.mxu0 0.0
        %5613 = vmatpush1.msra.mxu0 0.0
        %5614 = vmatprep.subr.mxu0 0.0
        %5615 = vmatpush1.msra.mxu0 0.0
        %5616 = vmatprep.subr.mxu0 0.0
        %5617 = vmatpush1.msra.mxu0 0.0
        %5618 = vmatprep.subr.mxu0 0.0
        %5619 = vmatpush1.msra.mxu0 0.0
        %5620 = vmatprep.subr.mxu0 0.0
        %5621 = vmatpush1.msra.mxu0 0.0
        %5622 = vmatprep.subr.mxu0 0.0
        %5623 = vmatpush1.msra.mxu0 0.0
        %5624 = vmatprep.subr.mxu0 0.0
        %5625 = vmatpush1.msra.mxu0 0.0
        %5626 = vmatprep.subr.mxu0 0.0
        %5627 = vmatpush1.msra.mxu0 0.0
        %5628 = vmatprep.subr.mxu0 0.0
        %5629 = vmatpush1.msra.mxu0 0.0
        %5630 = vmatprep.subr.mxu0 0.0
        %5631 = vmatpush1.msra.mxu0 0.0
        %5632 = vmatprep.subr.mxu0 0.0
        %5633 = vmatpush1.msra.mxu0 0.0
        %5634 = vmatprep.subr.mxu0 0.0
        %5635 = vmatpush1.msra.mxu0 0.0
        %5636 = vmatprep.subr.mxu0 0.0
        %5637 = vmatpush1.msra.mxu0 0.0
        %5638 = vmatprep.subr.mxu0 0.0
        %5639 = vmatpush1.msra.mxu0 0.0
        %5640 = vmatprep.subr.mxu0 0.0
        %5641 = vmatpush1.msra.mxu0 0.0
        %5642 = vmatprep.subr.mxu0 0.0
        %5643 = vmatpush1.msra.mxu0 0.0
        %5644 = vmatprep.subr.mxu0 0.0
        %5645 = vmatpush1.msra.mxu0 0.0
        %5646 = vmatprep.subr.mxu0 0.0
        %5647 = vmatpush1.msra.mxu0 0.0
        %5648 = vmatprep.subr.mxu0 0.0
        %5649 = vmatpush1.msra.mxu0 0.0
        %5650 = vmatprep.subr.mxu0 0.0
        %5651 = vmatpush1.msra.mxu0 0.0
        %5652 = vmatprep.subr.mxu0 0.0
        %5653 = vmatpush1.msra.mxu0 0.0
        %5654 = vmatprep.subr.mxu0 0.0
        %5655 = vmatpush1.msra.mxu0 0.0
        %5656 = vmatprep.subr.mxu0 0.0
        %5657 = vmatpush1.msra.mxu0 0.0
        %5658 = vmatprep.mubr.f32.mxu0 0.0
        %5659 = vmatmul.mubr.f32.gmra.mrb[0].mxu0 %v5499
        %v5660 = vpop.f32.mrb[0].mxu0
        %v5661 = vadd.f32 %v5491, %v5660
        %v5662 = vpop.f32.mrb[0].mxu0
        %v5663 = vadd.f32 %v5495, %v5662
        %5664 = vmatprep.mubr.f32.mxu0 0.0
        %5665 = vmatmul.mubr.f32.gmra.mrb[0].mxu0 %v5502
        %v5666 = vpop.f32.mrb[0].mxu0
        %v5667 = vadd.f32 %v5491, %v5666
        %v5668 = vpop.f32.mrb[0].mxu0
        %v5669 = vadd.f32 %v5495, %v5668
        %5670 = vmatprep.mubr.f32.mxu0 0.0
        %5671 = vmatmul.mubr.f32.gmra.mrb[0].mxu0 %v5505
        %v5672 = vpop.f32.mrb[0].mxu0
        %v5673 = vadd.f32 %v5491, %v5672
        %v5674 = vpop.f32.mrb[0].mxu0
        %v5675 = vadd.f32 %v5495, %v5674
        %5676 = vmatprep.mubr.f32.mxu0 0.0
        %5677 = vmatmul.mubr.f32.gmra.mrb[0].mxu0 %v5508
        %v5678 = vpop.f32.mrb[0].mxu0
        %v5679 = vadd.f32 %v5491, %v5678
        %v5680 = vpop.f32.mrb[0].mxu0
        %v5681 = vadd.f32 %v5495, %v5680
        %5682 = vmatprep.mubr.f32.mxu0 0.0
        %5683 = vmatmul.mubr.f32.gmra.mrb[0].mxu0 %v5511
        %v5684 = vpop.f32.mrb[0].mxu0
        %v5685 = vadd.f32 %v5491, %v5684
        %v5686 = vpop.f32.mrb[0].mxu0
        %v5687 = vadd.f32 %v5495, %v5686
        %5688 = vmatprep.mubr.f32.mxu0 0.0
        %5689 = vmatmul.mubr.f32.gmra.mrb[0].mxu0 %v5514
        %v5690 = vpop.f32.mrb[0].mxu0
        %v5691 = vadd.f32 %v5491, %v5690
        %v5692 = vpop.f32.mrb[0].mxu0
        %v5693 = vadd.f32 %v5495, %v5692
        %5694 = vmatprep.mubr.f32.mxu0 0.0
        %5695 = vmatmul.mubr.f32.gmra.mrb[0].mxu0 %v5517
        %v5696 = vpop.f32.mrb[0].mxu0
        %v5697 = vadd.f32 %v5491, %v5696
        %v5698 = vpop.f32.mrb[0].mxu0
        %v5699 = vadd.f32 %v5495, %v5698
        %5700 = vmatprep.mubr.f32.mxu0 0.0
        %5701 = vmatmul.mubr.f32.gmra.mrb[0].mxu0 %v5520
        %v5702 = vpop.f32.mrb[0].mxu0
        %v5703 = vadd.f32 %v5491, %v5702
        %v5704 = vpop.f32.mrb[0].mxu0
        %v5705 = vadd.f32 %v5495, %v5704
        %5706 = vmatprep.mubr.f32.mxu0 0.0
        %5707 = vmatmul.mubr.f32.gmra.mrb[0].mxu0 %v5523
        %v5708 = vpop.f32.mrb[0].mxu0
        %v5709 = vadd.f32 %v5491, %v5708
        %v5710 = vpop.f32.mrb[0].mxu0
        %v5711 = vadd.f32 %v5495, %v5710
        %5712 = vmatprep.mubr.f32.mxu0 0.0
        %5713 = vmatmul.mubr.f32.gmra.mrb[0].mxu0 %v5526
        %v5714 = vpop.f32.mrb[0].mxu0
        %v5715 = vadd.f32 %v5491, %v5714
        %v5716 = vpop.f32.mrb[0].mxu0
        %v5717 = vadd.f32 %v5495, %v5716
        %5718 = vmatprep.mubr.f32.mxu0 0.0
        %5719 = vmatmul.mubr.f32.gmra.mrb[0].mxu0 %v5529
        %v5720 = vpop.f32.mrb[0].mxu0
        %v5721 = vadd.f32 %v5491, %v5720
        %v5722 = vpop.f32.mrb[0].mxu0
        %v5723 = vadd.f32 %v5495, %v5722
        %5724 = vmatprep.mubr.f32.mxu0 0.0
        %5725 = vmatmul.mubr.f32.gmra.mrb[0].mxu0 %v5532
        %v5726 = vpop.f32.mrb[0].mxu0
        %v5727 = vadd.f32 %v5491, %v5726
        %v5728 = vpop.f32.mrb[0].mxu0
        %v5729 = vadd.f32 %v5495, %v5728
        %5730 = vmatprep.mubr.f32.mxu0 0.0
        %5731 = vmatmul.mubr.f32.gmra.mrb[0].mxu0 %v5535
        %v5732 = vpop.f32.mrb[0].mxu0
        %v5733 = vadd.f32 %v5491, %v5732
        %v5734 = vpop.f32.mrb[0].mxu0
        %v5735 = vadd.f32 %v5495, %v5734
        %5736 = vmatprep.mubr.f32.mxu0 0.0
        %5737 = vmatmul.mubr.f32.gmra.mrb[0].mxu0 %v5538
        %v5738 = vpop.f32.mrb[0].mxu0
        %v5739 = vadd.f32 %v5491, %v5738
        %v5740 = vpop.f32.mrb[0].mxu0
        %v5741 = vadd.f32 %v5495, %v5740
        %5742 = vmatprep.mubr.f32.mxu0 0.0
        %5743 = vmatmul.mubr.f32.gmra.mrb[0].mxu0 %v5541
        %v5744 = vpop.f32.mrb[0].mxu0
        %v5745 = vadd.f32 %v5491, %v5744
        %v5746 = vpop.f32.mrb[0].mxu0
        %v5747 = vadd.f32 %v5495, %v5746
        %5748 = vmatprep.mubr.f32.mxu0 0.0
        %5749 = vmatmul.mubr.f32.gmra.mrb[0].mxu0 %v5544
        %v5750 = vpop.f32.mrb[0].mxu0
        %v5751 = vadd.f32 %v5491, %v5750
        %v5752 = vpop.f32.mrb[0].mxu0
        %v5753 = vadd.f32 %v5495, %v5752
        %5754 = vmatprep.mubr.f32.mxu0 0.0
        %5755 = vmatmul.mubr.f32.gmra.mrb[0].mxu0 %v5547
        %v5756 = vpop.f32.mrb[0].mxu0
        %v5757 = vadd.f32 %v5491, %v5756
        %v5758 = vpop.f32.mrb[0].mxu0
        %v5759 = vadd.f32 %v5495, %v5758
        %5760 = vmatprep.mubr.f32.mxu0 0.0
        %5761 = vmatmul.mubr.f32.gmra.mrb[0].mxu0 %v5550
        %v5762 = vpop.f32.mrb[0].mxu0
        %v5763 = vadd.f32 %v5491, %v5762
        %v5764 = vpop.f32.mrb[0].mxu0
        %v5765 = vadd.f32 %v5495, %v5764
        %5766 = vmatprep.mubr.f32.mxu0 0.0
        %5767 = vmatmul.mubr.f32.gmra.mrb[0].mxu0 %v5553
        %v5768 = vpop.f32.mrb[0].mxu0
        %v5769 = vadd.f32 %v5491, %v5768
        %v5770 = vpop.f32.mrb[0].mxu0
        %v5771 = vadd.f32 %v5495, %v5770
        %5772 = vmatprep.mubr.f32.mxu0 0.0
        %5773 = vmatmul.mubr.f32.gmra.mrb[0].mxu0 %v5556
        %v5774 = vpop.f32.mrb[0].mxu0
        %v5775 = vadd.f32 %v5491, %v5774
        %v5776 = vpop.f32.mrb[0].mxu0
        %v5777 = vadd.f32 %v5495, %v5776
        %5778 = vmatprep.mubr.f32.mxu0 0.0
        %5779 = vmatmul.mubr.f32.gmra.mrb[0].mxu0 %v5559
        %v5780 = vpop.f32.mrb[0].mxu0
        %v5781 = vadd.f32 %v5491, %v5780
        %v5782 = vpop.f32.mrb[0].mxu0
        %v5783 = vadd.f32 %v5495, %v5782
        %5784 = vmatprep.mubr.f32.mxu0 0.0
        %5785 = vmatmul.mubr.f32.gmra.mrb[0].mxu0 %v5562
        %v5786 = vpop.f32.mrb[0].mxu0
        %v5787 = vadd.f32 %v5491, %v5786
        %v5788 = vpop.f32.mrb[0].mxu0
        %v5789 = vadd.f32 %v5495, %v5788
        %5790 = vmatprep.mubr.f32.mxu0 0.0
        %5791 = vmatmul.mubr.f32.gmra.mrb[0].mxu0 %v5565
        %v5792 = vpop.f32.mrb[0].mxu0
        %v5793 = vadd.f32 %v5491, %v5792
        %v5794 = vpop.f32.mrb[0].mxu0
        %v5795 = vadd.f32 %v5495, %v5794
        %5796 = vmatprep.mubr.f32.mxu0 0.0
        %5797 = vmatmul.mubr.f32.gmra.mrb[0].mxu0 %v5568
        %v5798 = vpop.f32.mrb[0].mxu0
        %v5799 = vadd.f32 %v5491, %v5798
        %v5800 = vpop.f32.mrb[0].mxu0
        %v5801 = vadd.f32 %v5495, %v5800
        %5802 = vmatprep.mubr.f32.mxu0 0.0
        %5803 = vmatmul.mubr.f32.gmra.mrb[0].mxu0 %v5571
        %v5804 = vpop.f32.mrb[0].mxu0
        %v5805 = vadd.f32 %v5491, %v5804
        %v5806 = vpop.f32.mrb[0].mxu0
        %v5807 = vadd.f32 %v5495, %v5806
        %5808 = vmatprep.mubr.f32.mxu0 0.0
        %5809 = vmatmul.mubr.f32.gmra.mrb[0].mxu0 %v5574
        %v5810 = vpop.f32.mrb[0].mxu0
        %v5811 = vadd.f32 %v5491, %v5810
        %v5812 = vpop.f32.mrb[0].mxu0
        %v5813 = vadd.f32 %v5495, %v5812
        %5814 = vmatprep.mubr.f32.mxu0 0.0
        %5815 = vmatmul.mubr.f32.gmra.mrb[0].mxu0 %v5577
        %v5816 = vpop.f32.mrb[0].mxu0
        %v5817 = vadd.f32 %v5491, %v5816
        %v5818 = vpop.f32.mrb[0].mxu0
        %v5819 = vadd.f32 %v5495, %v5818
        %5820 = vmatprep.mubr.f32.mxu0 0.0
        %5821 = vmatmul.mubr.f32.gmra.mrb[0].mxu0 %v5580
        %v5822 = vpop.f32.mrb[0].mxu0
        %v5823 = vadd.f32 %v5491, %v5822
        %v5824 = vpop.f32.mrb[0].mxu0
        %v5825 = vadd.f32 %v5495, %v5824
        %5826 = vmatprep.mubr.f32.mxu0 0.0
        %5827 = vmatmul.mubr.f32.gmra.mrb[0].mxu0 %v5583
        %v5828 = vpop.f32.mrb[0].mxu0
        %v5829 = vadd.f32 %v5491, %v5828
        %v5830 = vpop.f32.mrb[0].mxu0
        %v5831 = vadd.f32 %v5495, %v5830
        %5832 = vmatprep.mubr.f32.mxu0 0.0
        %5833 = vmatmul.mubr.f32.gmra.mrb[0].mxu0 %v5586
        %v5834 = vpop.f32.mrb[0].mxu0
        %v5835 = vadd.f32 %v5491, %v5834
        %v5836 = vpop.f32.mrb[0].mxu0
        %v5837 = vadd.f32 %v5495, %v5836
        %5838 = vmatprep.mubr.f32.mxu0 0.0
        %5839 = vmatmul.mubr.f32.gmra.mrb[0].mxu0 %v5589
        %v5840 = vpop.f32.mrb[0].mxu0
        %v5841 = vadd.f32 %v5491, %v5840
        %v5842 = vpop.f32.mrb[0].mxu0
        %v5843 = vadd.f32 %v5495, %v5842
        %5844 = vmatprep.mubr.f32.mxu0 0.0
        %5845 = vmatmul.mubr.f32.gmra.mrb[0].mxu0 %v5592
        %v5846 = vpop.f32.mrb[0].mxu0
        %v5847 = vadd.f32 %v5491, %v5846
        %v5848 = vpop.f32.mrb[0].mxu0
        %v5849 = vadd.f32 %v5495, %v5848
        %5850 = vdwg.mxu0
        %v5851 = vsub.f32 0.0, %v5663
        %v5852 = vsub.f32 0.0, %v5669
        %v5853 = vsub.f32 0.0, %v5675
        %v5854 = vsub.f32 0.0, %v5681
        %v5855 = vsub.f32 0.0, %v5687
        %v5856 = vsub.f32 0.0, %v5693
        %v5857 = vsub.f32 0.0, %v5699
        %v5858 = vsub.f32 0.0, %v5705
        %v5859 = vsub.f32 0.0, %v5711
        %v5860 = vsub.f32 0.0, %v5717
        %v5861 = vsub.f32 0.0, %v5723
        %v5862 = vsub.f32 0.0, %v5729
        %v5863 = vsub.f32 0.0, %v5735
        %v5864 = vsub.f32 0.0, %v5741
        %v5865 = vsub.f32 0.0, %v5747
        %v5866 = vsub.f32 0.0, %v5753
        %v5867 = vsub.f32 0.0, %v5759
        %v5868 = vsub.f32 0.0, %v5765
        %v5869 = vsub.f32 0.0, %v5771
        %v5870 = vsub.f32 0.0, %v5777
        %v5871 = vsub.f32 0.0, %v5783
        %v5872 = vsub.f32 0.0, %v5789
        %v5873 = vsub.f32 0.0, %v5795
        %v5874 = vsub.f32 0.0, %v5801
        %v5875 = vsub.f32 0.0, %v5807
        %v5876 = vsub.f32 0.0, %v5813
        %v5877 = vsub.f32 0.0, %v5819
        %v5878 = vsub.f32 0.0, %v5825
        %v5879 = vsub.f32 0.0, %v5831
        %v5880 = vsub.f32 0.0, %v5837
        %v5881 = vsub.f32 0.0, %v5843
        %v5882 = vsub.f32 0.0, %v5849
        %v5883 = vmul.f32 %v5851, 1.442695
        %v5884 = vpow.pop %v5883
        %v5885 = vmul.f32 %v5852, 1.442695
        %v5886 = vpow.pop %v5885
        %v5887 = vmul.f32 %v5853, 1.442695
        %v5888 = vpow.pop %v5887
        %v5889 = vmul.f32 %v5854, 1.442695
        %v5890 = vpow.pop %v5889
        %v5891 = vmul.f32 %v5855, 1.442695
        %v5892 = vpow.pop %v5891
        %v5893 = vmul.f32 %v5856, 1.442695
        %v5894 = vpow.pop %v5893
        %v5895 = vmul.f32 %v5857, 1.442695
        %v5896 = vpow.pop %v5895
        %v5897 = vmul.f32 %v5858, 1.442695
        %v5898 = vpow.pop %v5897
        %v5899 = vmul.f32 %v5859, 1.442695
        %v5900 = vpow.pop %v5899
        %v5901 = vmul.f32 %v5860, 1.442695
        %v5902 = vpow.pop %v5901
        %v5903 = vmul.f32 %v5861, 1.442695
        %v5904 = vpow.pop %v5903
        %v5905 = vmul.f32 %v5862, 1.442695
        %v5906 = vpow.pop %v5905
        %v5907 = vmul.f32 %v5863, 1.442695
        %v5908 = vpow.pop %v5907
        %v5909 = vmul.f32 %v5864, 1.442695
        %v5910 = vpow.pop %v5909
        %v5911 = vmul.f32 %v5865, 1.442695
        %v5912 = vpow.pop %v5911
        %v5913 = vmul.f32 %v5866, 1.442695
        %v5914 = vpow.pop %v5913
        %v5915 = vmul.f32 %v5867, 1.442695
        %v5916 = vpow.pop %v5915
        %v5917 = vmul.f32 %v5868, 1.442695
        %v5918 = vpow.pop %v5917
        %v5919 = vmul.f32 %v5869, 1.442695
        %v5920 = vpow.pop %v5919
        %v5921 = vmul.f32 %v5870, 1.442695
        %v5922 = vpow.pop %v5921
        %v5923 = vmul.f32 %v5871, 1.442695
        %v5924 = vpow.pop %v5923
        %v5925 = vmul.f32 %v5872, 1.442695
        %v5926 = vpow.pop %v5925
        %v5927 = vmul.f32 %v5873, 1.442695
        %v5928 = vpow.pop %v5927
        %v5929 = vmul.f32 %v5874, 1.442695
        %v5930 = vpow.pop %v5929
        %v5931 = vmul.f32 %v5875, 1.442695
        %v5932 = vpow.pop %v5931
        %v5933 = vmul.f32 %v5876, 1.442695
        %v5934 = vpow.pop %v5933
        %v5935 = vmul.f32 %v5877, 1.442695
        %v5936 = vpow.pop %v5935
        %v5937 = vmul.f32 %v5878, 1.442695
        %v5938 = vpow.pop %v5937
        %v5939 = vmul.f32 %v5879, 1.442695
        %v5940 = vpow.pop %v5939
        %v5941 = vmul.f32 %v5880, 1.442695
        %v5942 = vpow.pop %v5941
        %v5943 = vmul.f32 %v5881, 1.442695
        %v5944 = vpow.pop %v5943
        %v5945 = vmul.f32 %v5882, 1.442695
        %v5946 = vpow.pop %v5945
        %v5947 = vadd.f32 %v5884, 1.0
        %v5948 = vadd.f32 %v5886, 1.0
        %v5949 = vadd.f32 %v5888, 1.0
        %v5950 = vadd.f32 %v5890, 1.0
        %v5951 = vadd.f32 %v5892, 1.0
        %v5952 = vadd.f32 %v5894, 1.0
        %v5953 = vadd.f32 %v5896, 1.0
        %v5954 = vadd.f32 %v5898, 1.0
        %v5955 = vadd.f32 %v5900, 1.0
        %v5956 = vadd.f32 %v5902, 1.0
        %v5957 = vadd.f32 %v5904, 1.0
        %v5958 = vadd.f32 %v5906, 1.0
        %v5959 = vadd.f32 %v5908, 1.0
        %v5960 = vadd.f32 %v5910, 1.0
        %v5961 = vadd.f32 %v5912, 1.0
        %v5962 = vadd.f32 %v5914, 1.0
        %v5963 = vadd.f32 %v5916, 1.0
        %v5964 = vadd.f32 %v5918, 1.0
        %v5965 = vadd.f32 %v5920, 1.0
        %v5966 = vadd.f32 %v5922, 1.0
        %v5967 = vadd.f32 %v5924, 1.0
        %v5968 = vadd.f32 %v5926, 1.0
        %v5969 = vadd.f32 %v5928, 1.0
        %v5970 = vadd.f32 %v5930, 1.0
        %v5971 = vadd.f32 %v5932, 1.0
        %v5972 = vadd.f32 %v5934, 1.0
        %v5973 = vadd.f32 %v5936, 1.0
        %v5974 = vadd.f32 %v5938, 1.0
        %v5975 = vadd.f32 %v5940, 1.0
        %v5976 = vadd.f32 %v5942, 1.0
        %v5977 = vadd.f32 %v5944, 1.0
        %v5978 = vadd.f32 %v5946, 1.0
        %v5979 = vrcp.pop %v5947
        %v5980 = vrcp.pop %v5948
        %v5981 = vrcp.pop %v5949
        %v5982 = vrcp.pop %v5950
        %v5983 = vrcp.pop %v5951
        %v5984 = vrcp.pop %v5952
        %v5985 = vrcp.pop %v5953
        %v5986 = vrcp.pop %v5954
        %v5987 = vrcp.pop %v5955
        %v5988 = vrcp.pop %v5956
        %v5989 = vrcp.pop %v5957
        %v5990 = vrcp.pop %v5958
        %v5991 = vrcp.pop %v5959
        %v5992 = vrcp.pop %v5960
        %v5993 = vrcp.pop %v5961
        %v5994 = vrcp.pop %v5962
        %v5995 = vrcp.pop %v5963
        %v5996 = vrcp.pop %v5964
        %v5997 = vrcp.pop %v5965
        %v5998 = vrcp.pop %v5966
        %v5999 = vrcp.pop %v5967
        %v6000 = vrcp.pop %v5968
        %v6001 = vrcp.pop %v5969
        %v6002 = vrcp.pop %v5970
        %v6003 = vrcp.pop %v5971
        %v6004 = vrcp.pop %v5972
        %v6005 = vrcp.pop %v5973
        %v6006 = vrcp.pop %v5974
        %v6007 = vrcp.pop %v5975
        %v6008 = vrcp.pop %v5976
        %v6009 = vrcp.pop %v5977
        %v6010 = vrcp.pop %v5978
        %v6011 = vmul.f32 %v5661, %v5979
        %v6012 = vmul.f32 %v5667, %v5980
        %v6013 = vmul.f32 %v5673, %v5981
        %v6014 = vmul.f32 %v5679, %v5982
        %v6015 = vmul.f32 %v5685, %v5983
        %v6016 = vmul.f32 %v5691, %v5984
        %v6017 = vmul.f32 %v5697, %v5985
        %v6018 = vmul.f32 %v5703, %v5986
        %v6019 = vmul.f32 %v5709, %v5987
        %v6020 = vmul.f32 %v5715, %v5988
        %v6021 = vmul.f32 %v5721, %v5989
        %v6022 = vmul.f32 %v5727, %v5990
        %v6023 = vmul.f32 %v5733, %v5991
        %v6024 = vmul.f32 %v5739, %v5992
        %v6025 = vmul.f32 %v5745, %v5993
        %v6026 = vmul.f32 %v5751, %v5994
        %v6027 = vmul.f32 %v5757, %v5995
        %v6028 = vmul.f32 %v5763, %v5996
        %v6029 = vmul.f32 %v5769, %v5997
        %v6030 = vmul.f32 %v5775, %v5998
        %v6031 = vmul.f32 %v5781, %v5999
        %v6032 = vmul.f32 %v5787, %v6000
        %v6033 = vmul.f32 %v5793, %v6001
        %v6034 = vmul.f32 %v5799, %v6002
        %v6035 = vmul.f32 %v5805, %v6003
        %v6036 = vmul.f32 %v5811, %v6004
        %v6037 = vmul.f32 %v5817, %v6005
        %v6038 = vmul.f32 %v5823, %v6006
        %v6039 = vmul.f32 %v5829, %v6007
        %v6040 = vmul.f32 %v5835, %v6008
        %v6041 = vmul.f32 %v5841, %v6009
        %v6042 = vmul.f32 %v5847, %v6010
        %v6043 = vadd.f32 %v599, %v6011
        %v6044 = vadd.f32 %v600, %v6012
        %v6045 = vadd.f32 %v601, %v6013
        %v6046 = vadd.f32 %v602, %v6014
        %v6047 = vadd.f32 %v603, %v6015
        %v6048 = vadd.f32 %v604, %v6016
        %v6049 = vadd.f32 %v605, %v6017
        %v6050 = vadd.f32 %v606, %v6018
        %v6051 = vadd.f32 %v607, %v6019
        %v6052 = vadd.f32 %v608, %v6020
        %v6053 = vadd.f32 %v609, %v6021
        %v6054 = vadd.f32 %v610, %v6022
        %v6055 = vadd.f32 %v611, %v6023
        %v6056 = vadd.f32 %v612, %v6024
        %v6057 = vadd.f32 %v613, %v6025
        %v6058 = vadd.f32 %v614, %v6026
        %v6059 = vadd.f32 %v615, %v6027
        %v6060 = vadd.f32 %v616, %v6028
        %v6061 = vadd.f32 %v617, %v6029
        %v6062 = vadd.f32 %v618, %v6030
        %v6063 = vadd.f32 %v619, %v6031
        %v6064 = vadd.f32 %v620, %v6032
        %v6065 = vadd.f32 %v621, %v6033
        %v6066 = vadd.f32 %v622, %v6034
        %v6067 = vadd.f32 %v623, %v6035
        %v6068 = vadd.f32 %v624, %v6036
        %v6069 = vadd.f32 %v625, %v6037
        %v6070 = vadd.f32 %v626, %v6038
        %v6071 = vadd.f32 %v627, %v6039
        %v6072 = vadd.f32 %v628, %v6040
        %v6073 = vadd.f32 %v629, %v6041
        %v6074 = vadd.f32 %v630, %v6042
        %v6075 = vld [vmem:[%s10] sm:$0x1]
        %v6076 = vld [vmem:[%s11] sm:$0x1]
        %6077 = vadd.xlane.f32.xlu0 %v6043
        %v6078 = vpop.xlane.xlu0 %6077
        %6079 = vadd.xlane.f32.xlu0 %v6044
        %v6080 = vpop.xlane.xlu0 %6079
        %6081 = vadd.xlane.f32.xlu0 %v6045
        %v6082 = vpop.xlane.xlu0 %6081
        %6083 = vadd.xlane.f32.xlu0 %v6046
        %v6084 = vpop.xlane.xlu0 %6083
        %6085 = vadd.xlane.f32.xlu0 %v6047
        %v6086 = vpop.xlane.xlu0 %6085
        %6087 = vadd.xlane.f32.xlu0 %v6048
        %v6088 = vpop.xlane.xlu0 %6087
        %6089 = vadd.xlane.f32.xlu0 %v6049
        %v6090 = vpop.xlane.xlu0 %6089
        %6091 = vadd.xlane.f32.xlu0 %v6050
        %v6092 = vpop.xlane.xlu0 %6091
        %6093 = vadd.xlane.f32.xlu0 %v6051
        %v6094 = vpop.xlane.xlu0 %6093
        %6095 = vadd.xlane.f32.xlu0 %v6052
        %v6096 = vpop.xlane.xlu0 %6095
        %6097 = vadd.xlane.f32.xlu0 %v6053
        %v6098 = vpop.xlane.xlu0 %6097
        %6099 = vadd.xlane.f32.xlu0 %v6054
        %v6100 = vpop.xlane.xlu0 %6099
        %6101 = vadd.xlane.f32.xlu0 %v6055
        %v6102 = vpop.xlane.xlu0 %6101
        %6103 = vadd.xlane.f32.xlu0 %v6056
        %v6104 = vpop.xlane.xlu0 %6103
        %6105 = vadd.xlane.f32.xlu0 %v6057
        %v6106 = vpop.xlane.xlu0 %6105
        %6107 = vadd.xlane.f32.xlu0 %v6058
        %v6108 = vpop.xlane.xlu0 %6107
        %6109 = vadd.xlane.f32.xlu0 %v6059
        %v6110 = vpop.xlane.xlu0 %6109
        %6111 = vadd.xlane.f32.xlu0 %v6060
        %v6112 = vpop.xlane.xlu0 %6111
        %6113 = vadd.xlane.f32.xlu0 %v6061
        %v6114 = vpop.xlane.xlu0 %6113
        %6115 = vadd.xlane.f32.xlu0 %v6062
        %v6116 = vpop.xlane.xlu0 %6115
        %6117 = vadd.xlane.f32.xlu0 %v6063
        %v6118 = vpop.xlane.xlu0 %6117
        %6119 = vadd.xlane.f32.xlu0 %v6064
        %v6120 = vpop.xlane.xlu0 %6119
        %6121 = vadd.xlane.f32.xlu0 %v6065
        %v6122 = vpop.xlane.xlu0 %6121
        %6123 = vadd.xlane.f32.xlu0 %v6066
        %v6124 = vpop.xlane.xlu0 %6123
        %6125 = vadd.xlane.f32.xlu0 %v6067
        %v6126 = vpop.xlane.xlu0 %6125
        %6127 = vadd.xlane.f32.xlu0 %v6068
        %v6128 = vpop.xlane.xlu0 %6127
        %6129 = vadd.xlane.f32.xlu0 %v6069
        %v6130 = vpop.xlane.xlu0 %6129
        %6131 = vadd.xlane.f32.xlu0 %v6070
        %v6132 = vpop.xlane.xlu0 %6131
        %6133 = vadd.xlane.f32.xlu0 %v6071
        %v6134 = vpop.xlane.xlu0 %6133
        %6135 = vadd.xlane.f32.xlu0 %v6072
        %v6136 = vpop.xlane.xlu0 %6135
        %6137 = vadd.xlane.f32.xlu0 %v6073
        %v6138 = vpop.xlane.xlu0 %6137
        %6139 = vadd.xlane.f32.xlu0 %v6074
        %v6140 = vpop.xlane.xlu0 %6139
        %v6141 = vmul.f32 %v6078, %v697
        %v6142 = vmul.f32 %v6080, %v697
        %v6143 = vmul.f32 %v6082, %v697
        %v6144 = vmul.f32 %v6084, %v697
        %v6145 = vmul.f32 %v6086, %v697
        %v6146 = vmul.f32 %v6088, %v697
        %v6147 = vmul.f32 %v6090, %v697
        %v6148 = vmul.f32 %v6092, %v697
        %v6149 = vmul.f32 %v6094, %v697
        %v6150 = vmul.f32 %v6096, %v697
        %v6151 = vmul.f32 %v6098, %v697
        %v6152 = vmul.f32 %v6100, %v697
        %v6153 = vmul.f32 %v6102, %v697
        %v6154 = vmul.f32 %v6104, %v697
        %v6155 = vmul.f32 %v6106, %v697
        %v6156 = vmul.f32 %v6108, %v697
        %v6157 = vmul.f32 %v6110, %v697
        %v6158 = vmul.f32 %v6112, %v697
        %v6159 = vmul.f32 %v6114, %v697
        %v6160 = vmul.f32 %v6116, %v697
        %v6161 = vmul.f32 %v6118, %v697
        %v6162 = vmul.f32 %v6120, %v697
        %v6163 = vmul.f32 %v6122, %v697
        %v6164 = vmul.f32 %v6124, %v697
        %v6165 = vmul.f32 %v6126, %v697
        %v6166 = vmul.f32 %v6128, %v697
        %v6167 = vmul.f32 %v6130, %v697
        %v6168 = vmul.f32 %v6132, %v697
        %v6169 = vmul.f32 %v6134, %v697
        %v6170 = vmul.f32 %v6136, %v697
        %v6171 = vmul.f32 %v6138, %v697
        %v6172 = vmul.f32 %v6140, %v697
        %v6173 = vsub.f32 %v6043, %v6141
        %v6174 = vsub.f32 %v6044, %v6142
        %v6175 = vsub.f32 %v6045, %v6143
        %v6176 = vsub.f32 %v6046, %v6144
        %v6177 = vsub.f32 %v6047, %v6145
        %v6178 = vsub.f32 %v6048, %v6146
        %v6179 = vsub.f32 %v6049, %v6147
        %v6180 = vsub.f32 %v6050, %v6148
        %v6181 = vsub.f32 %v6051, %v6149
        %v6182 = vsub.f32 %v6052, %v6150
        %v6183 = vsub.f32 %v6053, %v6151
        %v6184 = vsub.f32 %v6054, %v6152
        %v6185 = vsub.f32 %v6055, %v6153
        %v6186 = vsub.f32 %v6056, %v6154
        %v6187 = vsub.f32 %v6057, %v6155
        %v6188 = vsub.f32 %v6058, %v6156
        %v6189 = vsub.f32 %v6059, %v6157
        %v6190 = vsub.f32 %v6060, %v6158
        %v6191 = vsub.f32 %v6061, %v6159
        %v6192 = vsub.f32 %v6062, %v6160
        %v6193 = vsub.f32 %v6063, %v6161
        %v6194 = vsub.f32 %v6064, %v6162
        %v6195 = vsub.f32 %v6065, %v6163
        %v6196 = vsub.f32 %v6066, %v6164
        %v6197 = vsub.f32 %v6067, %v6165
        %v6198 = vsub.f32 %v6068, %v6166
        %v6199 = vsub.f32 %v6069, %v6167
        %v6200 = vsub.f32 %v6070, %v6168
        %v6201 = vsub.f32 %v6071, %v6169
        %v6202 = vsub.f32 %v6072, %v6170
        %v6203 = vsub.f32 %v6073, %v6171
        %v6204 = vsub.f32 %v6074, %v6172
        %v6205 = vmul.f32 %v6173, %v6173
        %v6206 = vmul.f32 %v6174, %v6174
        %v6207 = vmul.f32 %v6175, %v6175
        %v6208 = vmul.f32 %v6176, %v6176
        %v6209 = vmul.f32 %v6177, %v6177
        %v6210 = vmul.f32 %v6178, %v6178
        %v6211 = vmul.f32 %v6179, %v6179
        %v6212 = vmul.f32 %v6180, %v6180
        %v6213 = vmul.f32 %v6181, %v6181
        %v6214 = vmul.f32 %v6182, %v6182
        %v6215 = vmul.f32 %v6183, %v6183
        %v6216 = vmul.f32 %v6184, %v6184
        %v6217 = vmul.f32 %v6185, %v6185
        %v6218 = vmul.f32 %v6186, %v6186
        %v6219 = vmul.f32 %v6187, %v6187
        %v6220 = vmul.f32 %v6188, %v6188
        %v6221 = vmul.f32 %v6189, %v6189
        %v6222 = vmul.f32 %v6190, %v6190
        %v6223 = vmul.f32 %v6191, %v6191
        %v6224 = vmul.f32 %v6192, %v6192
        %v6225 = vmul.f32 %v6193, %v6193
        %v6226 = vmul.f32 %v6194, %v6194
        %v6227 = vmul.f32 %v6195, %v6195
        %v6228 = vmul.f32 %v6196, %v6196
        %v6229 = vmul.f32 %v6197, %v6197
        %v6230 = vmul.f32 %v6198, %v6198
        %v6231 = vmul.f32 %v6199, %v6199
        %v6232 = vmul.f32 %v6200, %v6200
        %v6233 = vmul.f32 %v6201, %v6201
        %v6234 = vmul.f32 %v6202, %v6202
        %v6235 = vmul.f32 %v6203, %v6203
        %v6236 = vmul.f32 %v6204, %v6204
        %6237 = vadd.xlane.f32.xlu0 %v6205
        %v6238 = vpop.xlane.xlu0 %6237
        %6239 = vadd.xlane.f32.xlu0 %v6206
        %v6240 = vpop.xlane.xlu0 %6239
        %6241 = vadd.xlane.f32.xlu0 %v6207
        %v6242 = vpop.xlane.xlu0 %6241
        %6243 = vadd.xlane.f32.xlu0 %v6208
        %v6244 = vpop.xlane.xlu0 %6243
        %6245 = vadd.xlane.f32.xlu0 %v6209
        %v6246 = vpop.xlane.xlu0 %6245
        %6247 = vadd.xlane.f32.xlu0 %v6210
        %v6248 = vpop.xlane.xlu0 %6247
        %6249 = vadd.xlane.f32.xlu0 %v6211
        %v6250 = vpop.xlane.xlu0 %6249
        %6251 = vadd.xlane.f32.xlu0 %v6212
        %v6252 = vpop.xlane.xlu0 %6251
        %6253 = vadd.xlane.f32.xlu0 %v6213
        %v6254 = vpop.xlane.xlu0 %6253
        %6255 = vadd.xlane.f32.xlu0 %v6214
        %v6256 = vpop.xlane.xlu0 %6255
        %6257 = vadd.xlane.f32.xlu0 %v6215
        %v6258 = vpop.xlane.xlu0 %6257
        %6259 = vadd.xlane.f32.xlu0 %v6216
        %v6260 = vpop.xlane.xlu0 %6259
        %6261 = vadd.xlane.f32.xlu0 %v6217
        %v6262 = vpop.xlane.xlu0 %6261
        %6263 = vadd.xlane.f32.xlu0 %v6218
        %v6264 = vpop.xlane.xlu0 %6263
        %6265 = vadd.xlane.f32.xlu0 %v6219
        %v6266 = vpop.xlane.xlu0 %6265
        %6267 = vadd.xlane.f32.xlu0 %v6220
        %v6268 = vpop.xlane.xlu0 %6267
        %6269 = vadd.xlane.f32.xlu0 %v6221
        %v6270 = vpop.xlane.xlu0 %6269
        %6271 = vadd.xlane.f32.xlu0 %v6222
        %v6272 = vpop.xlane.xlu0 %6271
        %6273 = vadd.xlane.f32.xlu0 %v6223
        %v6274 = vpop.xlane.xlu0 %6273
        %6275 = vadd.xlane.f32.xlu0 %v6224
        %v6276 = vpop.xlane.xlu0 %6275
        %6277 = vadd.xlane.f32.xlu0 %v6225
        %v6278 = vpop.xlane.xlu0 %6277
        %6279 = vadd.xlane.f32.xlu0 %v6226
        %v6280 = vpop.xlane.xlu0 %6279
        %6281 = vadd.xlane.f32.xlu0 %v6227
        %v6282 = vpop.xlane.xlu0 %6281
        %6283 = vadd.xlane.f32.xlu0 %v6228
        %v6284 = vpop.xlane.xlu0 %6283
        %6285 = vadd.xlane.f32.xlu0 %v6229
        %v6286 = vpop.xlane.xlu0 %6285
        %6287 = vadd.xlane.f32.xlu0 %v6230
        %v6288 = vpop.xlane.xlu0 %6287
        %6289 = vadd.xlane.f32.xlu0 %v6231
        %v6290 = vpop.xlane.xlu0 %6289
        %6291 = vadd.xlane.f32.xlu0 %v6232
        %v6292 = vpop.xlane.xlu0 %6291
        %6293 = vadd.xlane.f32.xlu0 %v6233
        %v6294 = vpop.xlane.xlu0 %6293
        %6295 = vadd.xlane.f32.xlu0 %v6234
        %v6296 = vpop.xlane.xlu0 %6295
        %6297 = vadd.xlane.f32.xlu0 %v6235
        %v6298 = vpop.xlane.xlu0 %6297
        %6299 = vadd.xlane.f32.xlu0 %v6236
        %v6300 = vpop.xlane.xlu0 %6299
        %v6301 = vmul.f32 %v6238, %v697
        %v6302 = vmul.f32 %v6240, %v697
        %v6303 = vmul.f32 %v6242, %v697
        %v6304 = vmul.f32 %v6244, %v697
        %v6305 = vmul.f32 %v6246, %v697
        %v6306 = vmul.f32 %v6248, %v697
        %v6307 = vmul.f32 %v6250, %v697
        %v6308 = vmul.f32 %v6252, %v697
        %v6309 = vmul.f32 %v6254, %v697
        %v6310 = vmul.f32 %v6256, %v697
        %v6311 = vmul.f32 %v6258, %v697
        %v6312 = vmul.f32 %v6260, %v697
        %v6313 = vmul.f32 %v6262, %v697
        %v6314 = vmul.f32 %v6264, %v697
        %v6315 = vmul.f32 %v6266, %v697
        %v6316 = vmul.f32 %v6268, %v697
        %v6317 = vmul.f32 %v6270, %v697
        %v6318 = vmul.f32 %v6272, %v697
        %v6319 = vmul.f32 %v6274, %v697
        %v6320 = vmul.f32 %v6276, %v697
        %v6321 = vmul.f32 %v6278, %v697
        %v6322 = vmul.f32 %v6280, %v697
        %v6323 = vmul.f32 %v6282, %v697
        %v6324 = vmul.f32 %v6284, %v697
        %v6325 = vmul.f32 %v6286, %v697
        %v6326 = vmul.f32 %v6288, %v697
        %v6327 = vmul.f32 %v6290, %v697
        %v6328 = vmul.f32 %v6292, %v697
        %v6329 = vmul.f32 %v6294, %v697
        %v6330 = vmul.f32 %v6296, %v697
        %v6331 = vmul.f32 %v6298, %v697
        %v6332 = vmul.f32 %v6300, %v697
        %v6333 = vadd.f32 %v6301, 1e-05
        %v6334 = vadd.f32 %v6302, 1e-05
        %v6335 = vadd.f32 %v6303, 1e-05
        %v6336 = vadd.f32 %v6304, 1e-05
        %v6337 = vadd.f32 %v6305, 1e-05
        %v6338 = vadd.f32 %v6306, 1e-05
        %v6339 = vadd.f32 %v6307, 1e-05
        %v6340 = vadd.f32 %v6308, 1e-05
        %v6341 = vadd.f32 %v6309, 1e-05
        %v6342 = vadd.f32 %v6310, 1e-05
        %v6343 = vadd.f32 %v6311, 1e-05
        %v6344 = vadd.f32 %v6312, 1e-05
        %v6345 = vadd.f32 %v6313, 1e-05
        %v6346 = vadd.f32 %v6314, 1e-05
        %v6347 = vadd.f32 %v6315, 1e-05
        %v6348 = vadd.f32 %v6316, 1e-05
        %v6349 = vadd.f32 %v6317, 1e-05
        %v6350 = vadd.f32 %v6318, 1e-05
        %v6351 = vadd.f32 %v6319, 1e-05
        %v6352 = vadd.f32 %v6320, 1e-05
        %v6353 = vadd.f32 %v6321, 1e-05
        %v6354 = vadd.f32 %v6322, 1e-05
        %v6355 = vadd.f32 %v6323, 1e-05
        %v6356 = vadd.f32 %v6324, 1e-05
        %v6357 = vadd.f32 %v6325, 1e-05
        %v6358 = vadd.f32 %v6326, 1e-05
        %v6359 = vadd.f32 %v6327, 1e-05
        %v6360 = vadd.f32 %v6328, 1e-05
        %v6361 = vadd.f32 %v6329, 1e-05
        %v6362 = vadd.f32 %v6330, 1e-05
        %v6363 = vadd.f32 %v6331, 1e-05
        %v6364 = vadd.f32 %v6332, 1e-05
        %v6365 = vrsqrt.pop %v6333
        %v6366 = vrsqrt.pop %v6334
        %v6367 = vrsqrt.pop %v6335
        %v6368 = vrsqrt.pop %v6336
        %v6369 = vrsqrt.pop %v6337
        %v6370 = vrsqrt.pop %v6338
        %v6371 = vrsqrt.pop %v6339
        %v6372 = vrsqrt.pop %v6340
        %v6373 = vrsqrt.pop %v6341
        %v6374 = vrsqrt.pop %v6342
        %v6375 = vrsqrt.pop %v6343
        %v6376 = vrsqrt.pop %v6344
        %v6377 = vrsqrt.pop %v6345
        %v6378 = vrsqrt.pop %v6346
        %v6379 = vrsqrt.pop %v6347
        %v6380 = vrsqrt.pop %v6348
        %v6381 = vrsqrt.pop %v6349
        %v6382 = vrsqrt.pop %v6350
        %v6383 = vrsqrt.pop %v6351
        %v6384 = vrsqrt.pop %v6352
        %v6385 = vrsqrt.pop %v6353
        %v6386 = vrsqrt.pop %v6354
        %v6387 = vrsqrt.pop %v6355
        %v6388 = vrsqrt.pop %v6356
        %v6389 = vrsqrt.pop %v6357
        %v6390 = vrsqrt.pop %v6358
        %v6391 = vrsqrt.pop %v6359
        %v6392 = vrsqrt.pop %v6360
        %v6393 = vrsqrt.pop %v6361
        %v6394 = vrsqrt.pop %v6362
        %v6395 = vrsqrt.pop %v6363
        %v6396 = vrsqrt.pop %v6364
        %v6397 = vmul.f32 %v6173, %v6365
        %v6398 = vmul.f32 %v6174, %v6366
        %v6399 = vmul.f32 %v6175, %v6367
        %v6400 = vmul.f32 %v6176, %v6368
        %v6401 = vmul.f32 %v6177, %v6369
        %v6402 = vmul.f32 %v6178, %v6370
        %v6403 = vmul.f32 %v6179, %v6371
        %v6404 = vmul.f32 %v6180, %v6372
        %v6405 = vmul.f32 %v6181, %v6373
        %v6406 = vmul.f32 %v6182, %v6374
        %v6407 = vmul.f32 %v6183, %v6375
        %v6408 = vmul.f32 %v6184, %v6376
        %v6409 = vmul.f32 %v6185, %v6377
        %v6410 = vmul.f32 %v6186, %v6378
        %v6411 = vmul.f32 %v6187, %v6379
        %v6412 = vmul.f32 %v6188, %v6380
        %v6413 = vmul.f32 %v6189, %v6381
        %v6414 = vmul.f32 %v6190, %v6382
        %v6415 = vmul.f32 %v6191, %v6383
        %v6416 = vmul.f32 %v6192, %v6384
        %v6417 = vmul.f32 %v6193, %v6385
        %v6418 = vmul.f32 %v6194, %v6386
        %v6419 = vmul.f32 %v6195, %v6387
        %v6420 = vmul.f32 %v6196, %v6388
        %v6421 = vmul.f32 %v6197, %v6389
        %v6422 = vmul.f32 %v6198, %v6390
        %v6423 = vmul.f32 %v6199, %v6391
        %v6424 = vmul.f32 %v6200, %v6392
        %v6425 = vmul.f32 %v6201, %v6393
        %v6426 = vmul.f32 %v6202, %v6394
        %v6427 = vmul.f32 %v6203, %v6395
        %v6428 = vmul.f32 %v6204, %v6396
        %v6430 = vlaneseq
        %v6431 = vshrl.u32 %v6430, 7
        %v6432 = vsub.s32 0, %v6431
        %v6433 = vrot.slane %v6075, %v6432
        %v6435 = vmul.f32 %v6397, %v6433
        %v6436 = vmul.f32 %v6398, %v6433
        %v6437 = vmul.f32 %v6399, %v6433
        %v6438 = vmul.f32 %v6400, %v6433
        %v6439 = vmul.f32 %v6401, %v6433
        %v6440 = vmul.f32 %v6402, %v6433
        %v6441 = vmul.f32 %v6403, %v6433
        %v6442 = vmul.f32 %v6404, %v6433
        %v6443 = vmul.f32 %v6405, %v6433
        %v6444 = vmul.f32 %v6406, %v6433
        %v6445 = vmul.f32 %v6407, %v6433
        %v6446 = vmul.f32 %v6408, %v6433
        %v6447 = vmul.f32 %v6409, %v6433
        %v6448 = vmul.f32 %v6410, %v6433
        %v6449 = vmul.f32 %v6411, %v6433
        %v6450 = vmul.f32 %v6412, %v6433
        %v6451 = vmul.f32 %v6413, %v6433
        %v6452 = vmul.f32 %v6414, %v6433
        %v6453 = vmul.f32 %v6415, %v6433
        %v6454 = vmul.f32 %v6416, %v6433
        %v6455 = vmul.f32 %v6417, %v6433
        %v6456 = vmul.f32 %v6418, %v6433
        %v6457 = vmul.f32 %v6419, %v6433
        %v6458 = vmul.f32 %v6420, %v6433
        %v6459 = vmul.f32 %v6421, %v6433
        %v6460 = vmul.f32 %v6422, %v6433
        %v6461 = vmul.f32 %v6423, %v6433
        %v6462 = vmul.f32 %v6424, %v6433
        %v6463 = vmul.f32 %v6425, %v6433
        %v6464 = vmul.f32 %v6426, %v6433
        %v6465 = vmul.f32 %v6427, %v6433
        %v6466 = vmul.f32 %v6428, %v6433
        %v6468 = vlaneseq
        %v6469 = vshrl.u32 %v6468, 7
        %v6470 = vsub.s32 0, %v6469
        %v6471 = vrot.slane %v6076, %v6470
        %v6473 = vadd.f32 %v6435, %v6471
        %v6474 = vadd.f32 %v6436, %v6471
        %v6475 = vadd.f32 %v6437, %v6471
        %v6476 = vadd.f32 %v6438, %v6471
        %v6477 = vadd.f32 %v6439, %v6471
        %v6478 = vadd.f32 %v6440, %v6471
        %v6479 = vadd.f32 %v6441, %v6471
        %v6480 = vadd.f32 %v6442, %v6471
        %v6481 = vadd.f32 %v6443, %v6471
        %v6482 = vadd.f32 %v6444, %v6471
        %v6483 = vadd.f32 %v6445, %v6471
        %v6484 = vadd.f32 %v6446, %v6471
        %v6485 = vadd.f32 %v6447, %v6471
        %v6486 = vadd.f32 %v6448, %v6471
        %v6487 = vadd.f32 %v6449, %v6471
        %v6488 = vadd.f32 %v6450, %v6471
        %v6489 = vadd.f32 %v6451, %v6471
        %v6490 = vadd.f32 %v6452, %v6471
        %v6491 = vadd.f32 %v6453, %v6471
        %v6492 = vadd.f32 %v6454, %v6471
        %v6493 = vadd.f32 %v6455, %v6471
        %v6494 = vadd.f32 %v6456, %v6471
        %v6495 = vadd.f32 %v6457, %v6471
        %v6496 = vadd.f32 %v6458, %v6471
        %v6497 = vadd.f32 %v6459, %v6471
        %v6498 = vadd.f32 %v6460, %v6471
        %v6499 = vadd.f32 %v6461, %v6471
        %v6500 = vadd.f32 %v6462, %v6471
        %v6501 = vadd.f32 %v6463, %v6471
        %v6502 = vadd.f32 %v6464, %v6471
        %v6503 = vadd.f32 %v6465, %v6471
        %v6504 = vadd.f32 %v6466, %v6471
        %v6505 = vld [vmem:[#allocation8] sm:$0xff]
        %v6506 = vld [vmem:[#allocation8 + $0x8] sm:$0xff]
        %v6507 = vld [vmem:[#allocation8 + $0x10] sm:$0xff]
        %v6508 = vld [vmem:[#allocation8 + $0x18] sm:$0xff]
        %v6509 = vld [vmem:[#allocation8 + $0x20] sm:$0xff]
        %v6510 = vld [vmem:[#allocation8 + $0x28] sm:$0xff]
        %v6511 = vld [vmem:[#allocation8 + $0x30] sm:$0xff]
        %v6512 = vld [vmem:[#allocation8 + $0x38] sm:$0xff]
        %v6513 = vld [vmem:[#allocation8 + $0x40] sm:$0xff]
        %v6514 = vld [vmem:[#allocation8 + $0x48] sm:$0xff]
        %v6515 = vld [vmem:[#allocation8 + $0x50] sm:$0xff]
        %v6516 = vld [vmem:[#allocation8 + $0x58] sm:$0xff]
        %v6517 = vld [vmem:[#allocation8 + $0x60] sm:$0xff]
        %v6518 = vld [vmem:[#allocation8 + $0x68] sm:$0xff]
        %v6519 = vld [vmem:[#allocation8 + $0x70] sm:$0xff]
        %v6520 = vld [vmem:[#allocation8 + $0x78] sm:$0xff]
        %v6521 = vld [vmem:[#allocation8 + $0x80] sm:$0xff]
        %v6522 = vld [vmem:[#allocation8 + $0x88] sm:$0xff]
        %v6523 = vld [vmem:[#allocation8 + $0x90] sm:$0xff]
        %v6524 = vld [vmem:[#allocation8 + $0x98] sm:$0xff]
        %v6525 = vld [vmem:[#allocation8 + $0xa0] sm:$0xff]
        %v6526 = vld [vmem:[#allocation8 + $0xa8] sm:$0xff]
        %v6527 = vld [vmem:[#allocation8 + $0xb0] sm:$0xff]
        %v6528 = vld [vmem:[#allocation8 + $0xb8] sm:$0xff]
        %v6529 = vld [vmem:[#allocation8 + $0xc0] sm:$0xff]
        %v6530 = vld [vmem:[#allocation8 + $0xc8] sm:$0xff]
        %v6531 = vld [vmem:[#allocation8 + $0xd0] sm:$0xff]
        %v6532 = vld [vmem:[#allocation8 + $0xd8] sm:$0xff]
        %v6533 = vld [vmem:[#allocation8 + $0xe0] sm:$0xff]
        %v6534 = vld [vmem:[#allocation8 + $0xe8] sm:$0xff]
        %v6535 = vld [vmem:[#allocation8 + $0xf0] sm:$0xff]
        %v6536 = vld [vmem:[#allocation8 + $0xf8] sm:$0xff]
        %v6537 = vld [vmem:[#allocation8 + $0x100] sm:$0xff]
        %v6538 = vld [vmem:[#allocation8 + $0x108] sm:$0xff]
        %v6539 = vld [vmem:[#allocation8 + $0x110] sm:$0xff]
        %v6540 = vld [vmem:[#allocation8 + $0x118] sm:$0xff]
        %v6541 = vld [vmem:[#allocation8 + $0x120] sm:$0xff]
        %v6542 = vld [vmem:[#allocation8 + $0x128] sm:$0xff]
        %v6543 = vld [vmem:[#allocation8 + $0x130] sm:$0xff]
        %v6544 = vld [vmem:[#allocation8 + $0x138] sm:$0xff]
        %v6545 = vld [vmem:[#allocation8 + $0x140] sm:$0xff]
        %v6546 = vld [vmem:[#allocation8 + $0x148] sm:$0xff]
        %v6547 = vld [vmem:[#allocation8 + $0x150] sm:$0xff]
        %v6548 = vld [vmem:[#allocation8 + $0x158] sm:$0xff]
        %v6549 = vld [vmem:[#allocation8 + $0x160] sm:$0xff]
        %v6550 = vld [vmem:[#allocation8 + $0x168] sm:$0xff]
        %v6551 = vld [vmem:[#allocation8 + $0x170] sm:$0xff]
        %v6552 = vld [vmem:[#allocation8 + $0x178] sm:$0xff]
        %v6553 = vld [vmem:[#allocation8 + $0x180] sm:$0xff]
        %v6554 = vld [vmem:[#allocation8 + $0x188] sm:$0xff]
        %v6555 = vld [vmem:[#allocation8 + $0x190] sm:$0xff]
        %v6556 = vld [vmem:[#allocation8 + $0x198] sm:$0xff]
        %v6557 = vld [vmem:[#allocation8 + $0x1a0] sm:$0xff]
        %v6558 = vld [vmem:[#allocation8 + $0x1a8] sm:$0xff]
        %v6559 = vld [vmem:[#allocation8 + $0x1b0] sm:$0xff]
        %v6560 = vld [vmem:[#allocation8 + $0x1b8] sm:$0xff]
        %v6561 = vld [vmem:[#allocation8 + $0x1c0] sm:$0xff]
        %v6562 = vld [vmem:[#allocation8 + $0x1c8] sm:$0xff]
        %v6563 = vld [vmem:[#allocation8 + $0x1d0] sm:$0xff]
        %v6564 = vld [vmem:[#allocation8 + $0x1d8] sm:$0xff]
        %v6565 = vld [vmem:[#allocation8 + $0x1e0] sm:$0xff]
        %v6566 = vld [vmem:[#allocation8 + $0x1e8] sm:$0xff]
        %v6567 = vld [vmem:[#allocation8 + $0x1f0] sm:$0xff]
        %v6568 = vld [vmem:[#allocation8 + $0x1f8] sm:$0xff]
        %v6569 = vld [vmem:[%s13] sm:$0xf]
        %v6571 = vlaneseq
        %v6572 = vshrl.u32 %v6571, 7
        %v6573 = vsub.s32 0, %v6572
        %v6574 = vrot.slane %v6569, %v6573
        %v6575 = vlaneseq
        %v6576 = vshrl.u32 %v6575, 7
        %v6577 = vsub.s32 1, %v6576
        %v6578 = vrot.slane %v6569, %v6577
        %v6579 = vlaneseq
        %v6580 = vshrl.u32 %v6579, 7
        %v6581 = vsub.s32 2, %v6580
        %v6582 = vrot.slane %v6569, %v6581
        %v6583 = vlaneseq
        %v6584 = vshrl.u32 %v6583, 7
        %v6585 = vsub.s32 3, %v6584
        %v6586 = vrot.slane %v6569, %v6585
        %6591 = vmatprep.subr.mxu0 %v6506
        %6592 = vmatpush1.msra.mxu0 %v6505
        %6593 = vmatprep.subr.mxu0 %v6510
        %6594 = vmatpush1.msra.mxu0 %v6509
        %6595 = vmatprep.subr.mxu0 %v6514
        %6596 = vmatpush1.msra.mxu0 %v6513
        %6597 = vmatprep.subr.mxu0 %v6518
        %6598 = vmatpush1.msra.mxu0 %v6517
        %6599 = vmatprep.subr.mxu0 %v6522
        %6600 = vmatpush1.msra.mxu0 %v6521
        %6601 = vmatprep.subr.mxu0 %v6526
        %6602 = vmatpush1.msra.mxu0 %v6525
        %6603 = vmatprep.subr.mxu0 %v6530
        %6604 = vmatpush1.msra.mxu0 %v6529
        %6605 = vmatprep.subr.mxu0 %v6534
        %6606 = vmatpush1.msra.mxu0 %v6533
        %6607 = vmatprep.subr.mxu0 %v6538
        %6608 = vmatpush1.msra.mxu0 %v6537
        %6609 = vmatprep.subr.mxu0 %v6542
        %6610 = vmatpush1.msra.mxu0 %v6541
        %6611 = vmatprep.subr.mxu0 %v6546
        %6612 = vmatpush1.msra.mxu0 %v6545
        %6613 = vmatprep.subr.mxu0 %v6550
        %6614 = vmatpush1.msra.mxu0 %v6549
        %6615 = vmatprep.subr.mxu0 %v6554
        %6616 = vmatpush1.msra.mxu0 %v6553
        %6617 = vmatprep.subr.mxu0 %v6558
        %6618 = vmatpush1.msra.mxu0 %v6557
        %6619 = vmatprep.subr.mxu0 %v6562
        %6620 = vmatpush1.msra.mxu0 %v6561
        %6621 = vmatprep.subr.mxu0 %v6566
        %6622 = vmatpush1.msra.mxu0 %v6565
        %6623 = vmatprep.subr.mxu0 0.0
        %6624 = vmatpush1.msra.mxu0 0.0
        %6625 = vmatprep.subr.mxu0 0.0
        %6626 = vmatpush1.msra.mxu0 0.0
        %6627 = vmatprep.subr.mxu0 0.0
        %6628 = vmatpush1.msra.mxu0 0.0
        %6629 = vmatprep.subr.mxu0 0.0
        %6630 = vmatpush1.msra.mxu0 0.0
        %6631 = vmatprep.subr.mxu0 0.0
        %6632 = vmatpush1.msra.mxu0 0.0
        %6633 = vmatprep.subr.mxu0 0.0
        %6634 = vmatpush1.msra.mxu0 0.0
        %6635 = vmatprep.subr.mxu0 0.0
        %6636 = vmatpush1.msra.mxu0 0.0
        %6637 = vmatprep.subr.mxu0 0.0
        %6638 = vmatpush1.msra.mxu0 0.0
        %6639 = vmatprep.subr.mxu0 0.0
        %6640 = vmatpush1.msra.mxu0 0.0
        %6641 = vmatprep.subr.mxu0 0.0
        %6642 = vmatpush1.msra.mxu0 0.0
        %6643 = vmatprep.subr.mxu0 0.0
        %6644 = vmatpush1.msra.mxu0 0.0
        %6645 = vmatprep.subr.mxu0 0.0
        %6646 = vmatpush1.msra.mxu0 0.0
        %6647 = vmatprep.subr.mxu0 0.0
        %6648 = vmatpush1.msra.mxu0 0.0
        %6649 = vmatprep.subr.mxu0 0.0
        %6650 = vmatpush1.msra.mxu0 0.0
        %6651 = vmatprep.subr.mxu0 0.0
        %6652 = vmatpush1.msra.mxu0 0.0
        %6653 = vmatprep.subr.mxu0 0.0
        %6654 = vmatpush1.msra.mxu0 0.0
        %6655 = vmatprep.mubr.f32.mxu0 0.0
        %6656 = vmatmul.mubr.f32.gmra.mrb[0].mxu0 %v6473
        %v6657 = vpop.f32.mrb[0].mxu0
        %v6658 = vadd.f32 %v6574, %v6657
        %v6659 = vpop.f32.mrb[0].mxu0
        %v6660 = vadd.f32 %v6578, %v6659
        %6661 = vmatprep.mubr.f32.mxu0 0.0
        %6662 = vmatmul.mubr.f32.gmra.mrb[0].mxu0 %v6474
        %v6663 = vpop.f32.mrb[0].mxu0
        %v6664 = vadd.f32 %v6574, %v6663
        %v6665 = vpop.f32.mrb[0].mxu0
        %v6666 = vadd.f32 %v6578, %v6665
        %6667 = vmatprep.mubr.f32.mxu0 0.0
        %6668 = vmatmul.mubr.f32.gmra.mrb[0].mxu0 %v6475
        %v6669 = vpop.f32.mrb[0].mxu0
        %v6670 = vadd.f32 %v6574, %v6669
        %v6671 = vpop.f32.mrb[0].mxu0
        %v6672 = vadd.f32 %v6578, %v6671
        %6673 = vmatprep.mubr.f32.mxu0 0.0
        %6674 = vmatmul.mubr.f32.gmra.mrb[0].mxu0 %v6476
        %v6675 = vpop.f32.mrb[0].mxu0
        %v6676 = vadd.f32 %v6574, %v6675
        %v6677 = vpop.f32.mrb[0].mxu0
        %v6678 = vadd.f32 %v6578, %v6677
        %6679 = vmatprep.mubr.f32.mxu0 0.0
        %6680 = vmatmul.mubr.f32.gmra.mrb[0].mxu0 %v6477
        %v6681 = vpop.f32.mrb[0].mxu0
        %v6682 = vadd.f32 %v6574, %v6681
        %v6683 = vpop.f32.mrb[0].mxu0
        %v6684 = vadd.f32 %v6578, %v6683
        %6685 = vmatprep.mubr.f32.mxu0 0.0
        %6686 = vmatmul.mubr.f32.gmra.mrb[0].mxu0 %v6478
        %v6687 = vpop.f32.mrb[0].mxu0
        %v6688 = vadd.f32 %v6574, %v6687
        %v6689 = vpop.f32.mrb[0].mxu0
        %v6690 = vadd.f32 %v6578, %v6689
        %6691 = vmatprep.mubr.f32.mxu0 0.0
        %6692 = vmatmul.mubr.f32.gmra.mrb[0].mxu0 %v6479
        %v6693 = vpop.f32.mrb[0].mxu0
        %v6694 = vadd.f32 %v6574, %v6693
        %v6695 = vpop.f32.mrb[0].mxu0
        %v6696 = vadd.f32 %v6578, %v6695
        %6697 = vmatprep.mubr.f32.mxu0 0.0
        %6698 = vmatmul.mubr.f32.gmra.mrb[0].mxu0 %v6480
        %v6699 = vpop.f32.mrb[0].mxu0
        %v6700 = vadd.f32 %v6574, %v6699
        %v6701 = vpop.f32.mrb[0].mxu0
        %v6702 = vadd.f32 %v6578, %v6701
        %6703 = vmatprep.mubr.f32.mxu0 0.0
        %6704 = vmatmul.mubr.f32.gmra.mrb[0].mxu0 %v6481
        %v6705 = vpop.f32.mrb[0].mxu0
        %v6706 = vadd.f32 %v6574, %v6705
        %v6707 = vpop.f32.mrb[0].mxu0
        %v6708 = vadd.f32 %v6578, %v6707
        %6709 = vmatprep.mubr.f32.mxu0 0.0
        %6710 = vmatmul.mubr.f32.gmra.mrb[0].mxu0 %v6482
        %v6711 = vpop.f32.mrb[0].mxu0
        %v6712 = vadd.f32 %v6574, %v6711
        %v6713 = vpop.f32.mrb[0].mxu0
        %v6714 = vadd.f32 %v6578, %v6713
        %6715 = vmatprep.mubr.f32.mxu0 0.0
        %6716 = vmatmul.mubr.f32.gmra.mrb[0].mxu0 %v6483
        %v6717 = vpop.f32.mrb[0].mxu0
        %v6718 = vadd.f32 %v6574, %v6717
        %v6719 = vpop.f32.mrb[0].mxu0
        %v6720 = vadd.f32 %v6578, %v6719
        %6721 = vmatprep.mubr.f32.mxu0 0.0
        %6722 = vmatmul.mubr.f32.gmra.mrb[0].mxu0 %v6484
        %v6723 = vpop.f32.mrb[0].mxu0
        %v6724 = vadd.f32 %v6574, %v6723
        %v6725 = vpop.f32.mrb[0].mxu0
        %v6726 = vadd.f32 %v6578, %v6725
        %6727 = vmatprep.mubr.f32.mxu0 0.0
        %6728 = vmatmul.mubr.f32.gmra.mrb[0].mxu0 %v6485
        %v6729 = vpop.f32.mrb[0].mxu0
        %v6730 = vadd.f32 %v6574, %v6729
        %v6731 = vpop.f32.mrb[0].mxu0
        %v6732 = vadd.f32 %v6578, %v6731
        %6733 = vmatprep.mubr.f32.mxu0 0.0
        %6734 = vmatmul.mubr.f32.gmra.mrb[0].mxu0 %v6486
        %v6735 = vpop.f32.mrb[0].mxu0
        %v6736 = vadd.f32 %v6574, %v6735
        %v6737 = vpop.f32.mrb[0].mxu0
        %v6738 = vadd.f32 %v6578, %v6737
        %6739 = vmatprep.mubr.f32.mxu0 0.0
        %6740 = vmatmul.mubr.f32.gmra.mrb[0].mxu0 %v6487
        %v6741 = vpop.f32.mrb[0].mxu0
        %v6742 = vadd.f32 %v6574, %v6741
        %v6743 = vpop.f32.mrb[0].mxu0
        %v6744 = vadd.f32 %v6578, %v6743
        %6745 = vmatprep.mubr.f32.mxu0 0.0
        %6746 = vmatmul.mubr.f32.gmra.mrb[0].mxu0 %v6488
        %v6747 = vpop.f32.mrb[0].mxu0
        %v6748 = vadd.f32 %v6574, %v6747
        %v6749 = vpop.f32.mrb[0].mxu0
        %v6750 = vadd.f32 %v6578, %v6749
        %6751 = vmatprep.mubr.f32.mxu0 0.0
        %6752 = vmatmul.mubr.f32.gmra.mrb[0].mxu0 %v6489
        %v6753 = vpop.f32.mrb[0].mxu0
        %v6754 = vadd.f32 %v6574, %v6753
        %v6755 = vpop.f32.mrb[0].mxu0
        %v6756 = vadd.f32 %v6578, %v6755
        %6757 = vmatprep.mubr.f32.mxu0 0.0
        %6758 = vmatmul.mubr.f32.gmra.mrb[0].mxu0 %v6490
        %v6759 = vpop.f32.mrb[0].mxu0
        %v6760 = vadd.f32 %v6574, %v6759
        %v6761 = vpop.f32.mrb[0].mxu0
        %v6762 = vadd.f32 %v6578, %v6761
        %6763 = vmatprep.mubr.f32.mxu0 0.0
        %6764 = vmatmul.mubr.f32.gmra.mrb[0].mxu0 %v6491
        %v6765 = vpop.f32.mrb[0].mxu0
        %v6766 = vadd.f32 %v6574, %v6765
        %v6767 = vpop.f32.mrb[0].mxu0
        %v6768 = vadd.f32 %v6578, %v6767
        %6769 = vmatprep.mubr.f32.mxu0 0.0
        %6770 = vmatmul.mubr.f32.gmra.mrb[0].mxu0 %v6492
        %v6771 = vpop.f32.mrb[0].mxu0
        %v6772 = vadd.f32 %v6574, %v6771
        %v6773 = vpop.f32.mrb[0].mxu0
        %v6774 = vadd.f32 %v6578, %v6773
        %6775 = vmatprep.mubr.f32.mxu0 0.0
        %6776 = vmatmul.mubr.f32.gmra.mrb[0].mxu0 %v6493
        %v6777 = vpop.f32.mrb[0].mxu0
        %v6778 = vadd.f32 %v6574, %v6777
        %v6779 = vpop.f32.mrb[0].mxu0
        %v6780 = vadd.f32 %v6578, %v6779
        %6781 = vmatprep.mubr.f32.mxu0 0.0
        %6782 = vmatmul.mubr.f32.gmra.mrb[0].mxu0 %v6494
        %v6783 = vpop.f32.mrb[0].mxu0
        %v6784 = vadd.f32 %v6574, %v6783
        %v6785 = vpop.f32.mrb[0].mxu0
        %v6786 = vadd.f32 %v6578, %v6785
        %6787 = vmatprep.mubr.f32.mxu0 0.0
        %6788 = vmatmul.mubr.f32.gmra.mrb[0].mxu0 %v6495
        %v6789 = vpop.f32.mrb[0].mxu0
        %v6790 = vadd.f32 %v6574, %v6789
        %v6791 = vpop.f32.mrb[0].mxu0
        %v6792 = vadd.f32 %v6578, %v6791
        %6793 = vmatprep.mubr.f32.mxu0 0.0
        %6794 = vmatmul.mubr.f32.gmra.mrb[0].mxu0 %v6496
        %v6795 = vpop.f32.mrb[0].mxu0
        %v6796 = vadd.f32 %v6574, %v6795
        %v6797 = vpop.f32.mrb[0].mxu0
        %v6798 = vadd.f32 %v6578, %v6797
        %6799 = vmatprep.mubr.f32.mxu0 0.0
        %6800 = vmatmul.mubr.f32.gmra.mrb[0].mxu0 %v6497
        %v6801 = vpop.f32.mrb[0].mxu0
        %v6802 = vadd.f32 %v6574, %v6801
        %v6803 = vpop.f32.mrb[0].mxu0
        %v6804 = vadd.f32 %v6578, %v6803
        %6805 = vmatprep.mubr.f32.mxu0 0.0
        %6806 = vmatmul.mubr.f32.gmra.mrb[0].mxu0 %v6498
        %v6807 = vpop.f32.mrb[0].mxu0
        %v6808 = vadd.f32 %v6574, %v6807
        %v6809 = vpop.f32.mrb[0].mxu0
        %v6810 = vadd.f32 %v6578, %v6809
        %6811 = vmatprep.mubr.f32.mxu0 0.0
        %6812 = vmatmul.mubr.f32.gmra.mrb[0].mxu0 %v6499
        %v6813 = vpop.f32.mrb[0].mxu0
        %v6814 = vadd.f32 %v6574, %v6813
        %v6815 = vpop.f32.mrb[0].mxu0
        %v6816 = vadd.f32 %v6578, %v6815
        %6817 = vmatprep.mubr.f32.mxu0 0.0
        %6818 = vmatmul.mubr.f32.gmra.mrb[0].mxu0 %v6500
        %v6819 = vpop.f32.mrb[0].mxu0
        %v6820 = vadd.f32 %v6574, %v6819
        %v6821 = vpop.f32.mrb[0].mxu0
        %v6822 = vadd.f32 %v6578, %v6821
        %6823 = vmatprep.mubr.f32.mxu0 0.0
        %6824 = vmatmul.mubr.f32.gmra.mrb[0].mxu0 %v6501
        %v6825 = vpop.f32.mrb[0].mxu0
        %v6826 = vadd.f32 %v6574, %v6825
        %v6827 = vpop.f32.mrb[0].mxu0
        %v6828 = vadd.f32 %v6578, %v6827
        %6829 = vmatprep.mubr.f32.mxu0 0.0
        %6830 = vmatmul.mubr.f32.gmra.mrb[0].mxu0 %v6502
        %v6831 = vpop.f32.mrb[0].mxu0
        %v6832 = vadd.f32 %v6574, %v6831
        %v6833 = vpop.f32.mrb[0].mxu0
        %v6834 = vadd.f32 %v6578, %v6833
        %6835 = vmatprep.mubr.f32.mxu0 0.0
        %6836 = vmatmul.mubr.f32.gmra.mrb[0].mxu0 %v6503
        %v6837 = vpop.f32.mrb[0].mxu0
        %v6838 = vadd.f32 %v6574, %v6837
        %v6839 = vpop.f32.mrb[0].mxu0
        %v6840 = vadd.f32 %v6578, %v6839
        %6841 = vmatprep.mubr.f32.mxu0 0.0
        %6842 = vmatmul.mubr.f32.gmra.mrb[0].mxu0 %v6504
        %v6843 = vpop.f32.mrb[0].mxu0
        %v6844 = vadd.f32 %v6574, %v6843
        %v6845 = vpop.f32.mrb[0].mxu0
        %v6846 = vadd.f32 %v6578, %v6845
        %6847 = vdwg.mxu0
        %6848 = vmatprep.subr.mxu0 %v6508
        %6849 = vmatpush1.msra.mxu0 %v6507
        %6850 = vmatprep.subr.mxu0 %v6512
        %6851 = vmatpush1.msra.mxu0 %v6511
        %6852 = vmatprep.subr.mxu0 %v6516
        %6853 = vmatpush1.msra.mxu0 %v6515
        %6854 = vmatprep.subr.mxu0 %v6520
        %6855 = vmatpush1.msra.mxu0 %v6519
        %6856 = vmatprep.subr.mxu0 %v6524
        %6857 = vmatpush1.msra.mxu0 %v6523
        %6858 = vmatprep.subr.mxu0 %v6528
        %6859 = vmatpush1.msra.mxu0 %v6527
        %6860 = vmatprep.subr.mxu0 %v6532
        %6861 = vmatpush1.msra.mxu0 %v6531
        %6862 = vmatprep.subr.mxu0 %v6536
        %6863 = vmatpush1.msra.mxu0 %v6535
        %6864 = vmatprep.subr.mxu0 %v6540
        %6865 = vmatpush1.msra.mxu0 %v6539
        %6866 = vmatprep.subr.mxu0 %v6544
        %6867 = vmatpush1.msra.mxu0 %v6543
        %6868 = vmatprep.subr.mxu0 %v6548
        %6869 = vmatpush1.msra.mxu0 %v6547
        %6870 = vmatprep.subr.mxu0 %v6552
        %6871 = vmatpush1.msra.mxu0 %v6551
        %6872 = vmatprep.subr.mxu0 %v6556
        %6873 = vmatpush1.msra.mxu0 %v6555
        %6874 = vmatprep.subr.mxu0 %v6560
        %6875 = vmatpush1.msra.mxu0 %v6559
        %6876 = vmatprep.subr.mxu0 %v6564
        %6877 = vmatpush1.msra.mxu0 %v6563
        %6878 = vmatprep.subr.mxu0 %v6568
        %6879 = vmatpush1.msra.mxu0 %v6567
        %6880 = vmatprep.subr.mxu0 0.0
        %6881 = vmatpush1.msra.mxu0 0.0
        %6882 = vmatprep.subr.mxu0 0.0
        %6883 = vmatpush1.msra.mxu0 0.0
        %6884 = vmatprep.subr.mxu0 0.0
        %6885 = vmatpush1.msra.mxu0 0.0
        %6886 = vmatprep.subr.mxu0 0.0
        %6887 = vmatpush1.msra.mxu0 0.0
        %6888 = vmatprep.subr.mxu0 0.0
        %6889 = vmatpush1.msra.mxu0 0.0
        %6890 = vmatprep.subr.mxu0 0.0
        %6891 = vmatpush1.msra.mxu0 0.0
        %6892 = vmatprep.subr.mxu0 0.0
        %6893 = vmatpush1.msra.mxu0 0.0
        %6894 = vmatprep.subr.mxu0 0.0
        %6895 = vmatpush1.msra.mxu0 0.0
        %6896 = vmatprep.subr.mxu0 0.0
        %6897 = vmatpush1.msra.mxu0 0.0
        %6898 = vmatprep.subr.mxu0 0.0
        %6899 = vmatpush1.msra.mxu0 0.0
        %6900 = vmatprep.subr.mxu0 0.0
        %6901 = vmatpush1.msra.mxu0 0.0
        %6902 = vmatprep.subr.mxu0 0.0
        %6903 = vmatpush1.msra.mxu0 0.0
        %6904 = vmatprep.subr.mxu0 0.0
        %6905 = vmatpush1.msra.mxu0 0.0
        %6906 = vmatprep.subr.mxu0 0.0
        %6907 = vmatpush1.msra.mxu0 0.0
        %6908 = vmatprep.subr.mxu0 0.0
        %6909 = vmatpush1.msra.mxu0 0.0
        %6910 = vmatprep.subr.mxu0 0.0
        %6911 = vmatpush1.msra.mxu0 0.0
        %6912 = vmatprep.mubr.f32.mxu0 0.0
        %6913 = vmatmul.mubr.f32.gmra.mrb[0].mxu0 %v6473
        %v6914 = vpop.f32.mrb[0].mxu0
        %v6915 = vadd.f32 %v6582, %v6914
        %v6916 = vpop.f32.mrb[0].mxu0
        %v6917 = vadd.f32 %v6586, %v6916
        %6918 = vmatprep.mubr.f32.mxu0 0.0
        %6919 = vmatmul.mubr.f32.gmra.mrb[0].mxu0 %v6474
        %v6920 = vpop.f32.mrb[0].mxu0
        %v6921 = vadd.f32 %v6582, %v6920
        %v6922 = vpop.f32.mrb[0].mxu0
        %v6923 = vadd.f32 %v6586, %v6922
        %6924 = vmatprep.mubr.f32.mxu0 0.0
        %6925 = vmatmul.mubr.f32.gmra.mrb[0].mxu0 %v6475
        %v6926 = vpop.f32.mrb[0].mxu0
        %v6927 = vadd.f32 %v6582, %v6926
        %v6928 = vpop.f32.mrb[0].mxu0
        %v6929 = vadd.f32 %v6586, %v6928
        %6930 = vmatprep.mubr.f32.mxu0 0.0
        %6931 = vmatmul.mubr.f32.gmra.mrb[0].mxu0 %v6476
        %v6932 = vpop.f32.mrb[0].mxu0
        %v6933 = vadd.f32 %v6582, %v6932
        %v6934 = vpop.f32.mrb[0].mxu0
        %v6935 = vadd.f32 %v6586, %v6934
        %6936 = vmatprep.mubr.f32.mxu0 0.0
        %6937 = vmatmul.mubr.f32.gmra.mrb[0].mxu0 %v6477
        %v6938 = vpop.f32.mrb[0].mxu0
        %v6939 = vadd.f32 %v6582, %v6938
        %v6940 = vpop.f32.mrb[0].mxu0
        %v6941 = vadd.f32 %v6586, %v6940
        %6942 = vmatprep.mubr.f32.mxu0 0.0
        %6943 = vmatmul.mubr.f32.gmra.mrb[0].mxu0 %v6478
        %v6944 = vpop.f32.mrb[0].mxu0
        %v6945 = vadd.f32 %v6582, %v6944
        %v6946 = vpop.f32.mrb[0].mxu0
        %v6947 = vadd.f32 %v6586, %v6946
        %6948 = vmatprep.mubr.f32.mxu0 0.0
        %6949 = vmatmul.mubr.f32.gmra.mrb[0].mxu0 %v6479
        %v6950 = vpop.f32.mrb[0].mxu0
        %v6951 = vadd.f32 %v6582, %v6950
        %v6952 = vpop.f32.mrb[0].mxu0
        %v6953 = vadd.f32 %v6586, %v6952
        %6954 = vmatprep.mubr.f32.mxu0 0.0
        %6955 = vmatmul.mubr.f32.gmra.mrb[0].mxu0 %v6480
        %v6956 = vpop.f32.mrb[0].mxu0
        %v6957 = vadd.f32 %v6582, %v6956
        %v6958 = vpop.f32.mrb[0].mxu0
        %v6959 = vadd.f32 %v6586, %v6958
        %6960 = vmatprep.mubr.f32.mxu0 0.0
        %6961 = vmatmul.mubr.f32.gmra.mrb[0].mxu0 %v6481
        %v6962 = vpop.f32.mrb[0].mxu0
        %v6963 = vadd.f32 %v6582, %v6962
        %v6964 = vpop.f32.mrb[0].mxu0
        %v6965 = vadd.f32 %v6586, %v6964
        %6966 = vmatprep.mubr.f32.mxu0 0.0
        %6967 = vmatmul.mubr.f32.gmra.mrb[0].mxu0 %v6482
        %v6968 = vpop.f32.mrb[0].mxu0
        %v6969 = vadd.f32 %v6582, %v6968
        %v6970 = vpop.f32.mrb[0].mxu0
        %v6971 = vadd.f32 %v6586, %v6970
        %6972 = vmatprep.mubr.f32.mxu0 0.0
        %6973 = vmatmul.mubr.f32.gmra.mrb[0].mxu0 %v6483
        %v6974 = vpop.f32.mrb[0].mxu0
        %v6975 = vadd.f32 %v6582, %v6974
        %v6976 = vpop.f32.mrb[0].mxu0
        %v6977 = vadd.f32 %v6586, %v6976
        %6978 = vmatprep.mubr.f32.mxu0 0.0
        %6979 = vmatmul.mubr.f32.gmra.mrb[0].mxu0 %v6484
        %v6980 = vpop.f32.mrb[0].mxu0
        %v6981 = vadd.f32 %v6582, %v6980
        %v6982 = vpop.f32.mrb[0].mxu0
        %v6983 = vadd.f32 %v6586, %v6982
        %6984 = vmatprep.mubr.f32.mxu0 0.0
        %6985 = vmatmul.mubr.f32.gmra.mrb[0].mxu0 %v6485
        %v6986 = vpop.f32.mrb[0].mxu0
        %v6987 = vadd.f32 %v6582, %v6986
        %v6988 = vpop.f32.mrb[0].mxu0
        %v6989 = vadd.f32 %v6586, %v6988
        %6990 = vmatprep.mubr.f32.mxu0 0.0
        %6991 = vmatmul.mubr.f32.gmra.mrb[0].mxu0 %v6486
        %v6992 = vpop.f32.mrb[0].mxu0
        %v6993 = vadd.f32 %v6582, %v6992
        %v6994 = vpop.f32.mrb[0].mxu0
        %v6995 = vadd.f32 %v6586, %v6994
        %6996 = vmatprep.mubr.f32.mxu0 0.0
        %6997 = vmatmul.mubr.f32.gmra.mrb[0].mxu0 %v6487
        %v6998 = vpop.f32.mrb[0].mxu0
        %v6999 = vadd.f32 %v6582, %v6998
        %v7000 = vpop.f32.mrb[0].mxu0
        %v7001 = vadd.f32 %v6586, %v7000
        %7002 = vmatprep.mubr.f32.mxu0 0.0
        %7003 = vmatmul.mubr.f32.gmra.mrb[0].mxu0 %v6488
        %v7004 = vpop.f32.mrb[0].mxu0
        %v7005 = vadd.f32 %v6582, %v7004
        %v7006 = vpop.f32.mrb[0].mxu0
        %v7007 = vadd.f32 %v6586, %v7006
        %7008 = vmatprep.mubr.f32.mxu0 0.0
        %7009 = vmatmul.mubr.f32.gmra.mrb[0].mxu0 %v6489
        %v7010 = vpop.f32.mrb[0].mxu0
        %v7011 = vadd.f32 %v6582, %v7010
        %v7012 = vpop.f32.mrb[0].mxu0
        %v7013 = vadd.f32 %v6586, %v7012
        %7014 = vmatprep.mubr.f32.mxu0 0.0
        %7015 = vmatmul.mubr.f32.gmra.mrb[0].mxu0 %v6490
        %v7016 = vpop.f32.mrb[0].mxu0
        %v7017 = vadd.f32 %v6582, %v7016
        %v7018 = vpop.f32.mrb[0].mxu0
        %v7019 = vadd.f32 %v6586, %v7018
        %7020 = vmatprep.mubr.f32.mxu0 0.0
        %7021 = vmatmul.mubr.f32.gmra.mrb[0].mxu0 %v6491
        %v7022 = vpop.f32.mrb[0].mxu0
        %v7023 = vadd.f32 %v6582, %v7022
        %v7024 = vpop.f32.mrb[0].mxu0
        %v7025 = vadd.f32 %v6586, %v7024
        %7026 = vmatprep.mubr.f32.mxu0 0.0
        %7027 = vmatmul.mubr.f32.gmra.mrb[0].mxu0 %v6492
        %v7028 = vpop.f32.mrb[0].mxu0
        %v7029 = vadd.f32 %v6582, %v7028
        %v7030 = vpop.f32.mrb[0].mxu0
        %v7031 = vadd.f32 %v6586, %v7030
        %7032 = vmatprep.mubr.f32.mxu0 0.0
        %7033 = vmatmul.mubr.f32.gmra.mrb[0].mxu0 %v6493
        %v7034 = vpop.f32.mrb[0].mxu0
        %v7035 = vadd.f32 %v6582, %v7034
        %v7036 = vpop.f32.mrb[0].mxu0
        %v7037 = vadd.f32 %v6586, %v7036
        %7038 = vmatprep.mubr.f32.mxu0 0.0
        %7039 = vmatmul.mubr.f32.gmra.mrb[0].mxu0 %v6494
        %v7040 = vpop.f32.mrb[0].mxu0
        %v7041 = vadd.f32 %v6582, %v7040
        %v7042 = vpop.f32.mrb[0].mxu0
        %v7043 = vadd.f32 %v6586, %v7042
        %7044 = vmatprep.mubr.f32.mxu0 0.0
        %7045 = vmatmul.mubr.f32.gmra.mrb[0].mxu0 %v6495
        %v7046 = vpop.f32.mrb[0].mxu0
        %v7047 = vadd.f32 %v6582, %v7046
        %v7048 = vpop.f32.mrb[0].mxu0
        %v7049 = vadd.f32 %v6586, %v7048
        %7050 = vmatprep.mubr.f32.mxu0 0.0
        %7051 = vmatmul.mubr.f32.gmra.mrb[0].mxu0 %v6496
        %v7052 = vpop.f32.mrb[0].mxu0
        %v7053 = vadd.f32 %v6582, %v7052
        %v7054 = vpop.f32.mrb[0].mxu0
        %v7055 = vadd.f32 %v6586, %v7054
        %7056 = vmatprep.mubr.f32.mxu0 0.0
        %7057 = vmatmul.mubr.f32.gmra.mrb[0].mxu0 %v6497
        %v7058 = vpop.f32.mrb[0].mxu0
        %v7059 = vadd.f32 %v6582, %v7058
        %v7060 = vpop.f32.mrb[0].mxu0
        %v7061 = vadd.f32 %v6586, %v7060
        %7062 = vmatprep.mubr.f32.mxu0 0.0
        %7063 = vmatmul.mubr.f32.gmra.mrb[0].mxu0 %v6498
        %v7064 = vpop.f32.mrb[0].mxu0
        %v7065 = vadd.f32 %v6582, %v7064
        %v7066 = vpop.f32.mrb[0].mxu0
        %v7067 = vadd.f32 %v6586, %v7066
        %7068 = vmatprep.mubr.f32.mxu0 0.0
        %7069 = vmatmul.mubr.f32.gmra.mrb[0].mxu0 %v6499
        %v7070 = vpop.f32.mrb[0].mxu0
        %v7071 = vadd.f32 %v6582, %v7070
        %v7072 = vpop.f32.mrb[0].mxu0
        %v7073 = vadd.f32 %v6586, %v7072
        %7074 = vmatprep.mubr.f32.mxu0 0.0
        %7075 = vmatmul.mubr.f32.gmra.mrb[0].mxu0 %v6500
        %v7076 = vpop.f32.mrb[0].mxu0
        %v7077 = vadd.f32 %v6582, %v7076
        %v7078 = vpop.f32.mrb[0].mxu0
        %v7079 = vadd.f32 %v6586, %v7078
        %7080 = vmatprep.mubr.f32.mxu0 0.0
        %7081 = vmatmul.mubr.f32.gmra.mrb[0].mxu0 %v6501
        %v7082 = vpop.f32.mrb[0].mxu0
        %v7083 = vadd.f32 %v6582, %v7082
        %v7084 = vpop.f32.mrb[0].mxu0
        %v7085 = vadd.f32 %v6586, %v7084
        %7086 = vmatprep.mubr.f32.mxu0 0.0
        %7087 = vmatmul.mubr.f32.gmra.mrb[0].mxu0 %v6502
        %v7088 = vpop.f32.mrb[0].mxu0
        %v7089 = vadd.f32 %v6582, %v7088
        %v7090 = vpop.f32.mrb[0].mxu0
        %v7091 = vadd.f32 %v6586, %v7090
        %7092 = vmatprep.mubr.f32.mxu0 0.0
        %7093 = vmatmul.mubr.f32.gmra.mrb[0].mxu0 %v6503
        %v7094 = vpop.f32.mrb[0].mxu0
        %v7095 = vadd.f32 %v6582, %v7094
        %v7096 = vpop.f32.mrb[0].mxu0
        %v7097 = vadd.f32 %v6586, %v7096
        %7098 = vmatprep.mubr.f32.mxu0 0.0
        %7099 = vmatmul.mubr.f32.gmra.mrb[0].mxu0 %v6504
        %v7100 = vpop.f32.mrb[0].mxu0
        %v7101 = vadd.f32 %v6582, %v7100
        %v7102 = vpop.f32.mrb[0].mxu0
        %v7103 = vadd.f32 %v6586, %v7102
        %7104 = vdwg.mxu0
        %v7105 = vmax.f32 %v6658, 0.0
        %v7106 = vmax.f32 %v6660, 0.0
        %v7107 = vmax.f32 %v6915, 0.0
        %v7108 = vmax.f32 %v6917, 0.0
        %v7109 = vmax.f32 %v6664, 0.0
        %v7110 = vmax.f32 %v6666, 0.0
        %v7111 = vmax.f32 %v6921, 0.0
        %v7112 = vmax.f32 %v6923, 0.0
        %v7113 = vmax.f32 %v6670, 0.0
        %v7114 = vmax.f32 %v6672, 0.0
        %v7115 = vmax.f32 %v6927, 0.0
        %v7116 = vmax.f32 %v6929, 0.0
        %v7117 = vmax.f32 %v6676, 0.0
        %v7118 = vmax.f32 %v6678, 0.0
        %v7119 = vmax.f32 %v6933, 0.0
        %v7120 = vmax.f32 %v6935, 0.0
        %v7121 = vmax.f32 %v6682, 0.0
        %v7122 = vmax.f32 %v6684, 0.0
        %v7123 = vmax.f32 %v6939, 0.0
        %v7124 = vmax.f32 %v6941, 0.0
        %v7125 = vmax.f32 %v6688, 0.0
        %v7126 = vmax.f32 %v6690, 0.0
        %v7127 = vmax.f32 %v6945, 0.0
        %v7128 = vmax.f32 %v6947, 0.0
        %v7129 = vmax.f32 %v6694, 0.0
        %v7130 = vmax.f32 %v6696, 0.0
        %v7131 = vmax.f32 %v6951, 0.0
        %v7132 = vmax.f32 %v6953, 0.0
        %v7133 = vmax.f32 %v6700, 0.0
        %v7134 = vmax.f32 %v6702, 0.0
        %v7135 = vmax.f32 %v6957, 0.0
        %v7136 = vmax.f32 %v6959, 0.0
        %v7137 = vmax.f32 %v6706, 0.0
        %v7138 = vmax.f32 %v6708, 0.0
        %v7139 = vmax.f32 %v6963, 0.0
        %v7140 = vmax.f32 %v6965, 0.0
        %v7141 = vmax.f32 %v6712, 0.0
        %v7142 = vmax.f32 %v6714, 0.0
        %v7143 = vmax.f32 %v6969, 0.0
        %v7144 = vmax.f32 %v6971, 0.0
        %v7145 = vmax.f32 %v6718, 0.0
        %v7146 = vmax.f32 %v6720, 0.0
        %v7147 = vmax.f32 %v6975, 0.0
        %v7148 = vmax.f32 %v6977, 0.0
        %v7149 = vmax.f32 %v6724, 0.0
        %v7150 = vmax.f32 %v6726, 0.0
        %v7151 = vmax.f32 %v6981, 0.0
        %v7152 = vmax.f32 %v6983, 0.0
        %v7153 = vmax.f32 %v6730, 0.0
        %v7154 = vmax.f32 %v6732, 0.0
        %v7155 = vmax.f32 %v6987, 0.0
        %v7156 = vmax.f32 %v6989, 0.0
        %v7157 = vmax.f32 %v6736, 0.0
        %v7158 = vmax.f32 %v6738, 0.0
        %v7159 = vmax.f32 %v6993, 0.0
        %v7160 = vmax.f32 %v6995, 0.0
        %v7161 = vmax.f32 %v6742, 0.0
        %v7162 = vmax.f32 %v6744, 0.0
        %v7163 = vmax.f32 %v6999, 0.0
        %v7164 = vmax.f32 %v7001, 0.0
        %v7165 = vmax.f32 %v6748, 0.0
        %v7166 = vmax.f32 %v6750, 0.0
        %v7167 = vmax.f32 %v7005, 0.0
        %v7168 = vmax.f32 %v7007, 0.0
        %v7169 = vmax.f32 %v6754, 0.0
        %v7170 = vmax.f32 %v6756, 0.0
        %v7171 = vmax.f32 %v7011, 0.0
        %v7172 = vmax.f32 %v7013, 0.0
        %v7173 = vmax.f32 %v6760, 0.0
        %v7174 = vmax.f32 %v6762, 0.0
        %v7175 = vmax.f32 %v7017, 0.0
        %v7176 = vmax.f32 %v7019, 0.0
        %v7177 = vmax.f32 %v6766, 0.0
        %v7178 = vmax.f32 %v6768, 0.0
        %v7179 = vmax.f32 %v7023, 0.0
        %v7180 = vmax.f32 %v7025, 0.0
        %v7181 = vmax.f32 %v6772, 0.0
        %v7182 = vmax.f32 %v6774, 0.0
        %v7183 = vmax.f32 %v7029, 0.0
        %v7184 = vmax.f32 %v7031, 0.0
        %v7185 = vmax.f32 %v6778, 0.0
        %v7186 = vmax.f32 %v6780, 0.0
        %v7187 = vmax.f32 %v7035, 0.0
        %v7188 = vmax.f32 %v7037, 0.0
        %v7189 = vmax.f32 %v6784, 0.0
        %v7190 = vmax.f32 %v6786, 0.0
        %v7191 = vmax.f32 %v7041, 0.0
        %v7192 = vmax.f32 %v7043, 0.0
        %v7193 = vmax.f32 %v6790, 0.0
        %v7194 = vmax.f32 %v6792, 0.0
        %v7195 = vmax.f32 %v7047, 0.0
        %v7196 = vmax.f32 %v7049, 0.0
        %v7197 = vmax.f32 %v6796, 0.0
        %v7198 = vmax.f32 %v6798, 0.0
        %v7199 = vmax.f32 %v7053, 0.0
        %v7200 = vmax.f32 %v7055, 0.0
        %v7201 = vmax.f32 %v6802, 0.0
        %v7202 = vmax.f32 %v6804, 0.0
        %v7203 = vmax.f32 %v7059, 0.0
        %v7204 = vmax.f32 %v7061, 0.0
        %v7205 = vmax.f32 %v6808, 0.0
        %v7206 = vmax.f32 %v6810, 0.0
        %v7207 = vmax.f32 %v7065, 0.0
        %v7208 = vmax.f32 %v7067, 0.0
        %v7209 = vmax.f32 %v6814, 0.0
        %v7210 = vmax.f32 %v6816, 0.0
        %v7211 = vmax.f32 %v7071, 0.0
        %v7212 = vmax.f32 %v7073, 0.0
        %v7213 = vmax.f32 %v6820, 0.0
        %v7214 = vmax.f32 %v6822, 0.0
        %v7215 = vmax.f32 %v7077, 0.0
        %v7216 = vmax.f32 %v7079, 0.0
        %v7217 = vmax.f32 %v6826, 0.0
        %v7218 = vmax.f32 %v6828, 0.0
        %v7219 = vmax.f32 %v7083, 0.0
        %v7220 = vmax.f32 %v7085, 0.0
        %v7221 = vmax.f32 %v6832, 0.0
        %v7222 = vmax.f32 %v6834, 0.0
        %v7223 = vmax.f32 %v7089, 0.0
        %v7224 = vmax.f32 %v7091, 0.0
        %v7225 = vmax.f32 %v6838, 0.0
        %v7226 = vmax.f32 %v6840, 0.0
        %v7227 = vmax.f32 %v7095, 0.0
        %v7228 = vmax.f32 %v7097, 0.0
        %v7229 = vmax.f32 %v6844, 0.0
        %v7230 = vmax.f32 %v6846, 0.0
        %v7231 = vmax.f32 %v7101, 0.0
        %v7232 = vmax.f32 %v7103, 0.0
        %v7233 = vld [vmem:[#allocation9] sm:$0xff]
        %v7234 = vld [vmem:[#allocation9 + $0x8] sm:$0xff]
        %v7235 = vld [vmem:[#allocation9 + $0x10] sm:$0xff]
        %v7236 = vld [vmem:[#allocation9 + $0x18] sm:$0xff]
        %v7237 = vld [vmem:[#allocation9 + $0x20] sm:$0xff]
        %v7238 = vld [vmem:[#allocation9 + $0x28] sm:$0xff]
        %v7239 = vld [vmem:[#allocation9 + $0x30] sm:$0xff]
        %v7240 = vld [vmem:[#allocation9 + $0x38] sm:$0xff]
        %v7241 = vld [vmem:[#allocation9 + $0x40] sm:$0xff]
        %v7242 = vld [vmem:[#allocation9 + $0x48] sm:$0xff]
        %v7243 = vld [vmem:[#allocation9 + $0x50] sm:$0xff]
        %v7244 = vld [vmem:[#allocation9 + $0x58] sm:$0xff]
        %v7245 = vld [vmem:[#allocation9 + $0x60] sm:$0xff]
        %v7246 = vld [vmem:[#allocation9 + $0x68] sm:$0xff]
        %v7247 = vld [vmem:[#allocation9 + $0x70] sm:$0xff]
        %v7248 = vld [vmem:[#allocation9 + $0x78] sm:$0xff]
        %v7249 = vld [vmem:[#allocation9 + $0x80] sm:$0xff]
        %v7250 = vld [vmem:[#allocation9 + $0x88] sm:$0xff]
        %v7251 = vld [vmem:[#allocation9 + $0x90] sm:$0xff]
        %v7252 = vld [vmem:[#allocation9 + $0x98] sm:$0xff]
        %v7253 = vld [vmem:[#allocation9 + $0xa0] sm:$0xff]
        %v7254 = vld [vmem:[#allocation9 + $0xa8] sm:$0xff]
        %v7255 = vld [vmem:[#allocation9 + $0xb0] sm:$0xff]
        %v7256 = vld [vmem:[#allocation9 + $0xb8] sm:$0xff]
        %v7257 = vld [vmem:[#allocation9 + $0xc0] sm:$0xff]
        %v7258 = vld [vmem:[#allocation9 + $0xc8] sm:$0xff]
        %v7259 = vld [vmem:[#allocation9 + $0xd0] sm:$0xff]
        %v7260 = vld [vmem:[#allocation9 + $0xd8] sm:$0xff]
        %v7261 = vld [vmem:[#allocation9 + $0xe0] sm:$0xff]
        %v7262 = vld [vmem:[#allocation9 + $0xe8] sm:$0xff]
        %v7263 = vld [vmem:[#allocation9 + $0xf0] sm:$0xff]
        %v7264 = vld [vmem:[#allocation9 + $0xf8] sm:$0xff]
        %v7265 = vld [vmem:[#allocation9 + $0x100] sm:$0xff]
        %v7266 = vld [vmem:[#allocation9 + $0x108] sm:$0xff]
        %v7267 = vld [vmem:[#allocation9 + $0x110] sm:$0xff]
        %v7268 = vld [vmem:[#allocation9 + $0x118] sm:$0xff]
        %v7269 = vld [vmem:[#allocation9 + $0x120] sm:$0xff]
        %v7270 = vld [vmem:[#allocation9 + $0x128] sm:$0xff]
        %v7271 = vld [vmem:[#allocation9 + $0x130] sm:$0xff]
        %v7272 = vld [vmem:[#allocation9 + $0x138] sm:$0xff]
        %v7273 = vld [vmem:[#allocation9 + $0x140] sm:$0xff]
        %v7274 = vld [vmem:[#allocation9 + $0x148] sm:$0xff]
        %v7275 = vld [vmem:[#allocation9 + $0x150] sm:$0xff]
        %v7276 = vld [vmem:[#allocation9 + $0x158] sm:$0xff]
        %v7277 = vld [vmem:[#allocation9 + $0x160] sm:$0xff]
        %v7278 = vld [vmem:[#allocation9 + $0x168] sm:$0xff]
        %v7279 = vld [vmem:[#allocation9 + $0x170] sm:$0xff]
        %v7280 = vld [vmem:[#allocation9 + $0x178] sm:$0xff]
        %v7281 = vld [vmem:[#allocation9 + $0x180] sm:$0xff]
        %v7282 = vld [vmem:[#allocation9 + $0x188] sm:$0xff]
        %v7283 = vld [vmem:[#allocation9 + $0x190] sm:$0xff]
        %v7284 = vld [vmem:[#allocation9 + $0x198] sm:$0xff]
        %v7285 = vld [vmem:[#allocation9 + $0x1a0] sm:$0xff]
        %v7286 = vld [vmem:[#allocation9 + $0x1a8] sm:$0xff]
        %v7287 = vld [vmem:[#allocation9 + $0x1b0] sm:$0xff]
        %v7288 = vld [vmem:[#allocation9 + $0x1b8] sm:$0xff]
        %v7289 = vld [vmem:[#allocation9 + $0x1c0] sm:$0xff]
        %v7290 = vld [vmem:[#allocation9 + $0x1c8] sm:$0xff]
        %v7291 = vld [vmem:[#allocation9 + $0x1d0] sm:$0xff]
        %v7292 = vld [vmem:[#allocation9 + $0x1d8] sm:$0xff]
        %v7293 = vld [vmem:[#allocation9 + $0x1e0] sm:$0xff]
        %v7294 = vld [vmem:[#allocation9 + $0x1e8] sm:$0xff]
        %v7295 = vld [vmem:[#allocation9 + $0x1f0] sm:$0xff]
        %v7296 = vld [vmem:[#allocation9 + $0x1f8] sm:$0xff]
        %v7297 = vld [vmem:[%s15] sm:$0x1]
        %v7299 = vlaneseq
        %v7300 = vshrl.u32 %v7299, 7
        %v7301 = vsub.s32 0, %v7300
        %v7302 = vrot.slane %v7297, %v7301
        %7304 = vmatprep.subr.mxu0 0.0
        %7305 = vmatpush1.msra.mxu0 %v7233
        %7306 = vmatprep.subr.mxu0 0.0
        %7307 = vmatpush1.msra.mxu0 %v7234
        %7308 = vmatprep.subr.mxu0 0.0
        %7309 = vmatpush1.msra.mxu0 %v7235
        %7310 = vmatprep.subr.mxu0 0.0
        %7311 = vmatpush1.msra.mxu0 %v7236
        %7312 = vmatprep.subr.mxu0 0.0
        %7313 = vmatpush1.msra.mxu0 %v7237
        %7314 = vmatprep.subr.mxu0 0.0
        %7315 = vmatpush1.msra.mxu0 %v7238
        %7316 = vmatprep.subr.mxu0 0.0
        %7317 = vmatpush1.msra.mxu0 %v7239
        %7318 = vmatprep.subr.mxu0 0.0
        %7319 = vmatpush1.msra.mxu0 %v7240
        %7320 = vmatprep.subr.mxu0 0.0
        %7321 = vmatpush1.msra.mxu0 %v7241
        %7322 = vmatprep.subr.mxu0 0.0
        %7323 = vmatpush1.msra.mxu0 %v7242
        %7324 = vmatprep.subr.mxu0 0.0
        %7325 = vmatpush1.msra.mxu0 %v7243
        %7326 = vmatprep.subr.mxu0 0.0
        %7327 = vmatpush1.msra.mxu0 %v7244
        %7328 = vmatprep.subr.mxu0 0.0
        %7329 = vmatpush1.msra.mxu0 %v7245
        %7330 = vmatprep.subr.mxu0 0.0
        %7331 = vmatpush1.msra.mxu0 %v7246
        %7332 = vmatprep.subr.mxu0 0.0
        %7333 = vmatpush1.msra.mxu0 %v7247
        %7334 = vmatprep.subr.mxu0 0.0
        %7335 = vmatpush1.msra.mxu0 %v7248
        %7336 = vmatprep.subr.mxu0 0.0
        %7337 = vmatpush1.msra.mxu0 %v7249
        %7338 = vmatprep.subr.mxu0 0.0
        %7339 = vmatpush1.msra.mxu0 %v7250
        %7340 = vmatprep.subr.mxu0 0.0
        %7341 = vmatpush1.msra.mxu0 %v7251
        %7342 = vmatprep.subr.mxu0 0.0
        %7343 = vmatpush1.msra.mxu0 %v7252
        %7344 = vmatprep.subr.mxu0 0.0
        %7345 = vmatpush1.msra.mxu0 %v7253
        %7346 = vmatprep.subr.mxu0 0.0
        %7347 = vmatpush1.msra.mxu0 %v7254
        %7348 = vmatprep.subr.mxu0 0.0
        %7349 = vmatpush1.msra.mxu0 %v7255
        %7350 = vmatprep.subr.mxu0 0.0
        %7351 = vmatpush1.msra.mxu0 %v7256
        %7352 = vmatprep.subr.mxu0 0.0
        %7353 = vmatpush1.msra.mxu0 %v7257
        %7354 = vmatprep.subr.mxu0 0.0
        %7355 = vmatpush1.msra.mxu0 %v7258
        %7356 = vmatprep.subr.mxu0 0.0
        %7357 = vmatpush1.msra.mxu0 %v7259
        %7358 = vmatprep.subr.mxu0 0.0
        %7359 = vmatpush1.msra.mxu0 %v7260
        %7360 = vmatprep.subr.mxu0 0.0
        %7361 = vmatpush1.msra.mxu0 %v7261
        %7362 = vmatprep.subr.mxu0 0.0
        %7363 = vmatpush1.msra.mxu0 %v7262
        %7364 = vmatprep.subr.mxu0 0.0
        %7365 = vmatpush1.msra.mxu0 %v7263
        %7366 = vmatprep.subr.mxu0 0.0
        %7367 = vmatpush1.msra.mxu0 %v7264
        %7368 = vmatprep.mubr.f32.mxu0 %v7106
        %7369 = vmatmul.mubr.f32.gmra.mrb[0].mxu0 %v7105
        %v7370 = vpop.f32.mrb[0].mxu0
        %v7371 = vadd.f32 %v7302, %v7370
        %v7372 = vpop.f32.mrb[0].mxu0
        %7373 = vmatprep.mubr.f32.mxu0 %v7110
        %7374 = vmatmul.mubr.f32.gmra.mrb[0].mxu0 %v7109
        %v7375 = vpop.f32.mrb[0].mxu0
        %v7376 = vadd.f32 %v7302, %v7375
        %v7377 = vpop.f32.mrb[0].mxu0
        %7378 = vmatprep.mubr.f32.mxu0 %v7114
        %7379 = vmatmul.mubr.f32.gmra.mrb[0].mxu0 %v7113
        %v7380 = vpop.f32.mrb[0].mxu0
        %v7381 = vadd.f32 %v7302, %v7380
        %v7382 = vpop.f32.mrb[0].mxu0
        %7383 = vmatprep.mubr.f32.mxu0 %v7118
        %7384 = vmatmul.mubr.f32.gmra.mrb[0].mxu0 %v7117
        %v7385 = vpop.f32.mrb[0].mxu0
        %v7386 = vadd.f32 %v7302, %v7385
        %v7387 = vpop.f32.mrb[0].mxu0
        %7388 = vmatprep.mubr.f32.mxu0 %v7122
        %7389 = vmatmul.mubr.f32.gmra.mrb[0].mxu0 %v7121
        %v7390 = vpop.f32.mrb[0].mxu0
        %v7391 = vadd.f32 %v7302, %v7390
        %v7392 = vpop.f32.mrb[0].mxu0
        %7393 = vmatprep.mubr.f32.mxu0 %v7126
        %7394 = vmatmul.mubr.f32.gmra.mrb[0].mxu0 %v7125
        %v7395 = vpop.f32.mrb[0].mxu0
        %v7396 = vadd.f32 %v7302, %v7395
        %v7397 = vpop.f32.mrb[0].mxu0
        %7398 = vmatprep.mubr.f32.mxu0 %v7130
        %7399 = vmatmul.mubr.f32.gmra.mrb[0].mxu0 %v7129
        %v7400 = vpop.f32.mrb[0].mxu0
        %v7401 = vadd.f32 %v7302, %v7400
        %v7402 = vpop.f32.mrb[0].mxu0
        %7403 = vmatprep.mubr.f32.mxu0 %v7134
        %7404 = vmatmul.mubr.f32.gmra.mrb[0].mxu0 %v7133
        %v7405 = vpop.f32.mrb[0].mxu0
        %v7406 = vadd.f32 %v7302, %v7405
        %v7407 = vpop.f32.mrb[0].mxu0
        %7408 = vmatprep.mubr.f32.mxu0 %v7138
        %7409 = vmatmul.mubr.f32.gmra.mrb[0].mxu0 %v7137
        %v7410 = vpop.f32.mrb[0].mxu0
        %v7411 = vadd.f32 %v7302, %v7410
        %v7412 = vpop.f32.mrb[0].mxu0
        %7413 = vmatprep.mubr.f32.mxu0 %v7142
        %7414 = vmatmul.mubr.f32.gmra.mrb[0].mxu0 %v7141
        %v7415 = vpop.f32.mrb[0].mxu0
        %v7416 = vadd.f32 %v7302, %v7415
        %v7417 = vpop.f32.mrb[0].mxu0
        %7418 = vmatprep.mubr.f32.mxu0 %v7146
        %7419 = vmatmul.mubr.f32.gmra.mrb[0].mxu0 %v7145
        %v7420 = vpop.f32.mrb[0].mxu0
        %v7421 = vadd.f32 %v7302, %v7420
        %v7422 = vpop.f32.mrb[0].mxu0
        %7423 = vmatprep.mubr.f32.mxu0 %v7150
        %7424 = vmatmul.mubr.f32.gmra.mrb[0].mxu0 %v7149
        %v7425 = vpop.f32.mrb[0].mxu0
        %v7426 = vadd.f32 %v7302, %v7425
        %v7427 = vpop.f32.mrb[0].mxu0
        %7428 = vmatprep.mubr.f32.mxu0 %v7154
        %7429 = vmatmul.mubr.f32.gmra.mrb[0].mxu0 %v7153
        %v7430 = vpop.f32.mrb[0].mxu0
        %v7431 = vadd.f32 %v7302, %v7430
        %v7432 = vpop.f32.mrb[0].mxu0
        %7433 = vmatprep.mubr.f32.mxu0 %v7158
        %7434 = vmatmul.mubr.f32.gmra.mrb[0].mxu0 %v7157
        %v7435 = vpop.f32.mrb[0].mxu0
        %v7436 = vadd.f32 %v7302, %v7435
        %v7437 = vpop.f32.mrb[0].mxu0
        %7438 = vmatprep.mubr.f32.mxu0 %v7162
        %7439 = vmatmul.mubr.f32.gmra.mrb[0].mxu0 %v7161
        %v7440 = vpop.f32.mrb[0].mxu0
        %v7441 = vadd.f32 %v7302, %v7440
        %v7442 = vpop.f32.mrb[0].mxu0
        %7443 = vmatprep.mubr.f32.mxu0 %v7166
        %7444 = vmatmul.mubr.f32.gmra.mrb[0].mxu0 %v7165
        %v7445 = vpop.f32.mrb[0].mxu0
        %v7446 = vadd.f32 %v7302, %v7445
        %v7447 = vpop.f32.mrb[0].mxu0
        %7448 = vmatprep.mubr.f32.mxu0 %v7170
        %7449 = vmatmul.mubr.f32.gmra.mrb[0].mxu0 %v7169
        %v7450 = vpop.f32.mrb[0].mxu0
        %v7451 = vadd.f32 %v7302, %v7450
        %v7452 = vpop.f32.mrb[0].mxu0
        %7453 = vmatprep.mubr.f32.mxu0 %v7174
        %7454 = vmatmul.mubr.f32.gmra.mrb[0].mxu0 %v7173
        %v7455 = vpop.f32.mrb[0].mxu0
        %v7456 = vadd.f32 %v7302, %v7455
        %v7457 = vpop.f32.mrb[0].mxu0
        %7458 = vmatprep.mubr.f32.mxu0 %v7178
        %7459 = vmatmul.mubr.f32.gmra.mrb[0].mxu0 %v7177
        %v7460 = vpop.f32.mrb[0].mxu0
        %v7461 = vadd.f32 %v7302, %v7460
        %v7462 = vpop.f32.mrb[0].mxu0
        %7463 = vmatprep.mubr.f32.mxu0 %v7182
        %7464 = vmatmul.mubr.f32.gmra.mrb[0].mxu0 %v7181
        %v7465 = vpop.f32.mrb[0].mxu0
        %v7466 = vadd.f32 %v7302, %v7465
        %v7467 = vpop.f32.mrb[0].mxu0
        %7468 = vmatprep.mubr.f32.mxu0 %v7186
        %7469 = vmatmul.mubr.f32.gmra.mrb[0].mxu0 %v7185
        %v7470 = vpop.f32.mrb[0].mxu0
        %v7471 = vadd.f32 %v7302, %v7470
        %v7472 = vpop.f32.mrb[0].mxu0
        %7473 = vmatprep.mubr.f32.mxu0 %v7190
        %7474 = vmatmul.mubr.f32.gmra.mrb[0].mxu0 %v7189
        %v7475 = vpop.f32.mrb[0].mxu0
        %v7476 = vadd.f32 %v7302, %v7475
        %v7477 = vpop.f32.mrb[0].mxu0
        %7478 = vmatprep.mubr.f32.mxu0 %v7194
        %7479 = vmatmul.mubr.f32.gmra.mrb[0].mxu0 %v7193
        %v7480 = vpop.f32.mrb[0].mxu0
        %v7481 = vadd.f32 %v7302, %v7480
        %v7482 = vpop.f32.mrb[0].mxu0
        %7483 = vmatprep.mubr.f32.mxu0 %v7198
        %7484 = vmatmul.mubr.f32.gmra.mrb[0].mxu0 %v7197
        %v7485 = vpop.f32.mrb[0].mxu0
        %v7486 = vadd.f32 %v7302, %v7485
        %v7487 = vpop.f32.mrb[0].mxu0
        %7488 = vmatprep.mubr.f32.mxu0 %v7202
        %7489 = vmatmul.mubr.f32.gmra.mrb[0].mxu0 %v7201
        %v7490 = vpop.f32.mrb[0].mxu0
        %v7491 = vadd.f32 %v7302, %v7490
        %v7492 = vpop.f32.mrb[0].mxu0
        %7493 = vmatprep.mubr.f32.mxu0 %v7206
        %7494 = vmatmul.mubr.f32.gmra.mrb[0].mxu0 %v7205
        %v7495 = vpop.f32.mrb[0].mxu0
        %v7496 = vadd.f32 %v7302, %v7495
        %v7497 = vpop.f32.mrb[0].mxu0
        %7498 = vmatprep.mubr.f32.mxu0 %v7210
        %7499 = vmatmul.mubr.f32.gmra.mrb[0].mxu0 %v7209
        %v7500 = vpop.f32.mrb[0].mxu0
        %v7501 = vadd.f32 %v7302, %v7500
        %v7502 = vpop.f32.mrb[0].mxu0
        %7503 = vmatprep.mubr.f32.mxu0 %v7214
        %7504 = vmatmul.mubr.f32.gmra.mrb[0].mxu0 %v7213
        %v7505 = vpop.f32.mrb[0].mxu0
        %v7506 = vadd.f32 %v7302, %v7505
        %v7507 = vpop.f32.mrb[0].mxu0
        %7508 = vmatprep.mubr.f32.mxu0 %v7218
        %7509 = vmatmul.mubr.f32.gmra.mrb[0].mxu0 %v7217
        %v7510 = vpop.f32.mrb[0].mxu0
        %v7511 = vadd.f32 %v7302, %v7510
        %v7512 = vpop.f32.mrb[0].mxu0
        %7513 = vmatprep.mubr.f32.mxu0 %v7222
        %7514 = vmatmul.mubr.f32.gmra.mrb[0].mxu0 %v7221
        %v7515 = vpop.f32.mrb[0].mxu0
        %v7516 = vadd.f32 %v7302, %v7515
        %v7517 = vpop.f32.mrb[0].mxu0
        %7518 = vmatprep.mubr.f32.mxu0 %v7226
        %7519 = vmatmul.mubr.f32.gmra.mrb[0].mxu0 %v7225
        %v7520 = vpop.f32.mrb[0].mxu0
        %v7521 = vadd.f32 %v7302, %v7520
        %v7522 = vpop.f32.mrb[0].mxu0
        %7523 = vmatprep.mubr.f32.mxu0 %v7230
        %7524 = vmatmul.mubr.f32.gmra.mrb[0].mxu0 %v7229
        %v7525 = vpop.f32.mrb[0].mxu0
        %v7526 = vadd.f32 %v7302, %v7525
        %v7527 = vpop.f32.mrb[0].mxu0
        %7528 = vdwg.mxu0
        %7529 = vmatprep.subr.mxu0 0.0
        %7530 = vmatpush1.msra.mxu0 %v7265
        %7531 = vmatprep.subr.mxu0 0.0
        %7532 = vmatpush1.msra.mxu0 %v7266
        %7533 = vmatprep.subr.mxu0 0.0
        %7534 = vmatpush1.msra.mxu0 %v7267
        %7535 = vmatprep.subr.mxu0 0.0
        %7536 = vmatpush1.msra.mxu0 %v7268
        %7537 = vmatprep.subr.mxu0 0.0
        %7538 = vmatpush1.msra.mxu0 %v7269
        %7539 = vmatprep.subr.mxu0 0.0
        %7540 = vmatpush1.msra.mxu0 %v7270
        %7541 = vmatprep.subr.mxu0 0.0
        %7542 = vmatpush1.msra.mxu0 %v7271
        %7543 = vmatprep.subr.mxu0 0.0
        %7544 = vmatpush1.msra.mxu0 %v7272
        %7545 = vmatprep.subr.mxu0 0.0
        %7546 = vmatpush1.msra.mxu0 %v7273
        %7547 = vmatprep.subr.mxu0 0.0
        %7548 = vmatpush1.msra.mxu0 %v7274
        %7549 = vmatprep.subr.mxu0 0.0
        %7550 = vmatpush1.msra.mxu0 %v7275
        %7551 = vmatprep.subr.mxu0 0.0
        %7552 = vmatpush1.msra.mxu0 %v7276
        %7553 = vmatprep.subr.mxu0 0.0
        %7554 = vmatpush1.msra.mxu0 %v7277
        %7555 = vmatprep.subr.mxu0 0.0
        %7556 = vmatpush1.msra.mxu0 %v7278
        %7557 = vmatprep.subr.mxu0 0.0
        %7558 = vmatpush1.msra.mxu0 %v7279
        %7559 = vmatprep.subr.mxu0 0.0
        %7560 = vmatpush1.msra.mxu0 %v7280
        %7561 = vmatprep.subr.mxu0 0.0
        %7562 = vmatpush1.msra.mxu0 %v7281
        %7563 = vmatprep.subr.mxu0 0.0
        %7564 = vmatpush1.msra.mxu0 %v7282
        %7565 = vmatprep.subr.mxu0 0.0
        %7566 = vmatpush1.msra.mxu0 %v7283
        %7567 = vmatprep.subr.mxu0 0.0
        %7568 = vmatpush1.msra.mxu0 %v7284
        %7569 = vmatprep.subr.mxu0 0.0
        %7570 = vmatpush1.msra.mxu0 %v7285
        %7571 = vmatprep.subr.mxu0 0.0
        %7572 = vmatpush1.msra.mxu0 %v7286
        %7573 = vmatprep.subr.mxu0 0.0
        %7574 = vmatpush1.msra.mxu0 %v7287
        %7575 = vmatprep.subr.mxu0 0.0
        %7576 = vmatpush1.msra.mxu0 %v7288
        %7577 = vmatprep.subr.mxu0 0.0
        %7578 = vmatpush1.msra.mxu0 %v7289
        %7579 = vmatprep.subr.mxu0 0.0
        %7580 = vmatpush1.msra.mxu0 %v7290
        %7581 = vmatprep.subr.mxu0 0.0
        %7582 = vmatpush1.msra.mxu0 %v7291
        %7583 = vmatprep.subr.mxu0 0.0
        %7584 = vmatpush1.msra.mxu0 %v7292
        %7585 = vmatprep.subr.mxu0 0.0
        %7586 = vmatpush1.msra.mxu0 %v7293
        %7587 = vmatprep.subr.mxu0 0.0
        %7588 = vmatpush1.msra.mxu0 %v7294
        %7589 = vmatprep.subr.mxu0 0.0
        %7590 = vmatpush1.msra.mxu0 %v7295
        %7591 = vmatprep.subr.mxu0 0.0
        %7592 = vmatpush1.msra.mxu0 %v7296
        %7593 = vmatprep.mubr.f32.mxu0 %v7108
        %7594 = vmatmul.mubr.f32.gmra.mrb[0].mxu0 %v7107
        %v7595 = vpop.f32.mrb[0].mxu0
        %v7596 = vadd.f32 %v7371, %v7595
        %v7597 = vpop.f32.mrb[0].mxu0
        %7598 = vmatprep.mubr.f32.mxu0 %v7112
        %7599 = vmatmul.mubr.f32.gmra.mrb[0].mxu0 %v7111
        %v7600 = vpop.f32.mrb[0].mxu0
        %v7601 = vadd.f32 %v7376, %v7600
        %v7602 = vpop.f32.mrb[0].mxu0
        %7603 = vmatprep.mubr.f32.mxu0 %v7116
        %7604 = vmatmul.mubr.f32.gmra.mrb[0].mxu0 %v7115
        %v7605 = vpop.f32.mrb[0].mxu0
        %v7606 = vadd.f32 %v7381, %v7605
        %v7607 = vpop.f32.mrb[0].mxu0
        %7608 = vmatprep.mubr.f32.mxu0 %v7120
        %7609 = vmatmul.mubr.f32.gmra.mrb[0].mxu0 %v7119
        %v7610 = vpop.f32.mrb[0].mxu0
        %v7611 = vadd.f32 %v7386, %v7610
        %v7612 = vpop.f32.mrb[0].mxu0
        %7613 = vmatprep.mubr.f32.mxu0 %v7124
        %7614 = vmatmul.mubr.f32.gmra.mrb[0].mxu0 %v7123
        %v7615 = vpop.f32.mrb[0].mxu0
        %v7616 = vadd.f32 %v7391, %v7615
        %v7617 = vpop.f32.mrb[0].mxu0
        %7618 = vmatprep.mubr.f32.mxu0 %v7128
        %7619 = vmatmul.mubr.f32.gmra.mrb[0].mxu0 %v7127
        %v7620 = vpop.f32.mrb[0].mxu0
        %v7621 = vadd.f32 %v7396, %v7620
        %v7622 = vpop.f32.mrb[0].mxu0
        %7623 = vmatprep.mubr.f32.mxu0 %v7132
        %7624 = vmatmul.mubr.f32.gmra.mrb[0].mxu0 %v7131
        %v7625 = vpop.f32.mrb[0].mxu0
        %v7626 = vadd.f32 %v7401, %v7625
        %v7627 = vpop.f32.mrb[0].mxu0
        %7628 = vmatprep.mubr.f32.mxu0 %v7136
        %7629 = vmatmul.mubr.f32.gmra.mrb[0].mxu0 %v7135
        %v7630 = vpop.f32.mrb[0].mxu0
        %v7631 = vadd.f32 %v7406, %v7630
        %v7632 = vpop.f32.mrb[0].mxu0
        %7633 = vmatprep.mubr.f32.mxu0 %v7140
        %7634 = vmatmul.mubr.f32.gmra.mrb[0].mxu0 %v7139
        %v7635 = vpop.f32.mrb[0].mxu0
        %v7636 = vadd.f32 %v7411, %v7635
        %v7637 = vpop.f32.mrb[0].mxu0
        %7638 = vmatprep.mubr.f32.mxu0 %v7144
        %7639 = vmatmul.mubr.f32.gmra.mrb[0].mxu0 %v7143
        %v7640 = vpop.f32.mrb[0].mxu0
        %v7641 = vadd.f32 %v7416, %v7640
        %v7642 = vpop.f32.mrb[0].mxu0
        %7643 = vmatprep.mubr.f32.mxu0 %v7148
        %7644 = vmatmul.mubr.f32.gmra.mrb[0].mxu0 %v7147
        %v7645 = vpop.f32.mrb[0].mxu0
        %v7646 = vadd.f32 %v7421, %v7645
        %v7647 = vpop.f32.mrb[0].mxu0
        %7648 = vmatprep.mubr.f32.mxu0 %v7152
        %7649 = vmatmul.mubr.f32.gmra.mrb[0].mxu0 %v7151
        %v7650 = vpop.f32.mrb[0].mxu0
        %v7651 = vadd.f32 %v7426, %v7650
        %v7652 = vpop.f32.mrb[0].mxu0
        %7653 = vmatprep.mubr.f32.mxu0 %v7156
        %7654 = vmatmul.mubr.f32.gmra.mrb[0].mxu0 %v7155
        %v7655 = vpop.f32.mrb[0].mxu0
        %v7656 = vadd.f32 %v7431, %v7655
        %v7657 = vpop.f32.mrb[0].mxu0
        %7658 = vmatprep.mubr.f32.mxu0 %v7160
        %7659 = vmatmul.mubr.f32.gmra.mrb[0].mxu0 %v7159
        %v7660 = vpop.f32.mrb[0].mxu0
        %v7661 = vadd.f32 %v7436, %v7660
        %v7662 = vpop.f32.mrb[0].mxu0
        %7663 = vmatprep.mubr.f32.mxu0 %v7164
        %7664 = vmatmul.mubr.f32.gmra.mrb[0].mxu0 %v7163
        %v7665 = vpop.f32.mrb[0].mxu0
        %v7666 = vadd.f32 %v7441, %v7665
        %v7667 = vpop.f32.mrb[0].mxu0
        %7668 = vmatprep.mubr.f32.mxu0 %v7168
        %7669 = vmatmul.mubr.f32.gmra.mrb[0].mxu0 %v7167
        %v7670 = vpop.f32.mrb[0].mxu0
        %v7671 = vadd.f32 %v7446, %v7670
        %v7672 = vpop.f32.mrb[0].mxu0
        %7673 = vmatprep.mubr.f32.mxu0 %v7172
        %7674 = vmatmul.mubr.f32.gmra.mrb[0].mxu0 %v7171
        %v7675 = vpop.f32.mrb[0].mxu0
        %v7676 = vadd.f32 %v7451, %v7675
        %v7677 = vpop.f32.mrb[0].mxu0
        %7678 = vmatprep.mubr.f32.mxu0 %v7176
        %7679 = vmatmul.mubr.f32.gmra.mrb[0].mxu0 %v7175
        %v7680 = vpop.f32.mrb[0].mxu0
        %v7681 = vadd.f32 %v7456, %v7680
        %v7682 = vpop.f32.mrb[0].mxu0
        %7683 = vmatprep.mubr.f32.mxu0 %v7180
        %7684 = vmatmul.mubr.f32.gmra.mrb[0].mxu0 %v7179
        %v7685 = vpop.f32.mrb[0].mxu0
        %v7686 = vadd.f32 %v7461, %v7685
        %v7687 = vpop.f32.mrb[0].mxu0
        %7688 = vmatprep.mubr.f32.mxu0 %v7184
        %7689 = vmatmul.mubr.f32.gmra.mrb[0].mxu0 %v7183
        %v7690 = vpop.f32.mrb[0].mxu0
        %v7691 = vadd.f32 %v7466, %v7690
        %v7692 = vpop.f32.mrb[0].mxu0
        %7693 = vmatprep.mubr.f32.mxu0 %v7188
        %7694 = vmatmul.mubr.f32.gmra.mrb[0].mxu0 %v7187
        %v7695 = vpop.f32.mrb[0].mxu0
        %v7696 = vadd.f32 %v7471, %v7695
        %v7697 = vpop.f32.mrb[0].mxu0
        %7698 = vmatprep.mubr.f32.mxu0 %v7192
        %7699 = vmatmul.mubr.f32.gmra.mrb[0].mxu0 %v7191
        %v7700 = vpop.f32.mrb[0].mxu0
        %v7701 = vadd.f32 %v7476, %v7700
        %v7702 = vpop.f32.mrb[0].mxu0
        %7703 = vmatprep.mubr.f32.mxu0 %v7196
        %7704 = vmatmul.mubr.f32.gmra.mrb[0].mxu0 %v7195
        %v7705 = vpop.f32.mrb[0].mxu0
        %v7706 = vadd.f32 %v7481, %v7705
        %v7707 = vpop.f32.mrb[0].mxu0
        %7708 = vmatprep.mubr.f32.mxu0 %v7200
        %7709 = vmatmul.mubr.f32.gmra.mrb[0].mxu0 %v7199
        %v7710 = vpop.f32.mrb[0].mxu0
        %v7711 = vadd.f32 %v7486, %v7710
        %v7712 = vpop.f32.mrb[0].mxu0
        %7713 = vmatprep.mubr.f32.mxu0 %v7204
        %7714 = vmatmul.mubr.f32.gmra.mrb[0].mxu0 %v7203
        %v7715 = vpop.f32.mrb[0].mxu0
        %v7716 = vadd.f32 %v7491, %v7715
        %v7717 = vpop.f32.mrb[0].mxu0
        %7718 = vmatprep.mubr.f32.mxu0 %v7208
        %7719 = vmatmul.mubr.f32.gmra.mrb[0].mxu0 %v7207
        %v7720 = vpop.f32.mrb[0].mxu0
        %v7721 = vadd.f32 %v7496, %v7720
        %v7722 = vpop.f32.mrb[0].mxu0
        %7723 = vmatprep.mubr.f32.mxu0 %v7212
        %7724 = vmatmul.mubr.f32.gmra.mrb[0].mxu0 %v7211
        %v7725 = vpop.f32.mrb[0].mxu0
        %v7726 = vadd.f32 %v7501, %v7725
        %v7727 = vpop.f32.mrb[0].mxu0
        %7728 = vmatprep.mubr.f32.mxu0 %v7216
        %7729 = vmatmul.mubr.f32.gmra.mrb[0].mxu0 %v7215
        %v7730 = vpop.f32.mrb[0].mxu0
        %v7731 = vadd.f32 %v7506, %v7730
        %v7732 = vpop.f32.mrb[0].mxu0
        %7733 = vmatprep.mubr.f32.mxu0 %v7220
        %7734 = vmatmul.mubr.f32.gmra.mrb[0].mxu0 %v7219
        %v7735 = vpop.f32.mrb[0].mxu0
        %v7736 = vadd.f32 %v7511, %v7735
        %v7737 = vpop.f32.mrb[0].mxu0
        %7738 = vmatprep.mubr.f32.mxu0 %v7224
        %7739 = vmatmul.mubr.f32.gmra.mrb[0].mxu0 %v7223
        %v7740 = vpop.f32.mrb[0].mxu0
        %v7741 = vadd.f32 %v7516, %v7740
        %v7742 = vpop.f32.mrb[0].mxu0
        %7743 = vmatprep.mubr.f32.mxu0 %v7228
        %7744 = vmatmul.mubr.f32.gmra.mrb[0].mxu0 %v7227
        %v7745 = vpop.f32.mrb[0].mxu0
        %v7746 = vadd.f32 %v7521, %v7745
        %v7747 = vpop.f32.mrb[0].mxu0
        %7748 = vmatprep.mubr.f32.mxu0 %v7232
        %7749 = vmatmul.mubr.f32.gmra.mrb[0].mxu0 %v7231
        %v7750 = vpop.f32.mrb[0].mxu0
        %v7751 = vadd.f32 %v7526, %v7750
        %v7752 = vpop.f32.mrb[0].mxu0
        %7753 = vdwg.mxu0
        %v7754 = vadd.f32 %v6043, %v7596
        %v7755 = vadd.f32 %v6044, %v7601
        %v7756 = vadd.f32 %v6045, %v7606
        %v7757 = vadd.f32 %v6046, %v7611
        %v7758 = vadd.f32 %v6047, %v7616
        %v7759 = vadd.f32 %v6048, %v7621
        %v7760 = vadd.f32 %v6049, %v7626
        %v7761 = vadd.f32 %v6050, %v7631
        %v7762 = vadd.f32 %v6051, %v7636
        %v7763 = vadd.f32 %v6052, %v7641
        %v7764 = vadd.f32 %v6053, %v7646
        %v7765 = vadd.f32 %v6054, %v7651
        %v7766 = vadd.f32 %v6055, %v7656
        %v7767 = vadd.f32 %v6056, %v7661
        %v7768 = vadd.f32 %v6057, %v7666
        %v7769 = vadd.f32 %v6058, %v7671
        %v7770 = vadd.f32 %v6059, %v7676
        %v7771 = vadd.f32 %v6060, %v7681
        %v7772 = vadd.f32 %v6061, %v7686
        %v7773 = vadd.f32 %v6062, %v7691
        %v7774 = vadd.f32 %v6063, %v7696
        %v7775 = vadd.f32 %v6064, %v7701
        %v7776 = vadd.f32 %v6065, %v7706
        %v7777 = vadd.f32 %v6066, %v7711
        %v7778 = vadd.f32 %v6067, %v7716
        %v7779 = vadd.f32 %v6068, %v7721
        %v7780 = vadd.f32 %v6069, %v7726
        %v7781 = vadd.f32 %v6070, %v7731
        %v7782 = vadd.f32 %v6071, %v7736
        %v7783 = vadd.f32 %v6072, %v7741
        %v7784 = vadd.f32 %v6073, %v7746
        %v7785 = vadd.f32 %v6074, %v7751
        %7786 = vst [vmem:[%s588] sm:$0xff] %v7754
        %7787 = vst [vmem:[%s588 + $0x8] sm:$0xff] %v7755
        %7788 = vst [vmem:[%s588 + $0x10] sm:$0xff] %v7756
        %7789 = vst [vmem:[%s588 + $0x18] sm:$0xff] %v7757
        %7790 = vst [vmem:[%s588 + $0x20] sm:$0xff] %v7758
        %7791 = vst [vmem:[%s588 + $0x28] sm:$0xff] %v7759
        %7792 = vst [vmem:[%s588 + $0x30] sm:$0xff] %v7760
        %7793 = vst [vmem:[%s588 + $0x38] sm:$0xff] %v7761
        %7794 = vst [vmem:[%s588 + $0x40] sm:$0xff] %v7762
        %7795 = vst [vmem:[%s588 + $0x48] sm:$0xff] %v7763
        %7796 = vst [vmem:[%s588 + $0x50] sm:$0xff] %v7764
        %7797 = vst [vmem:[%s588 + $0x58] sm:$0xff] %v7765
        %7798 = vst [vmem:[%s588 + $0x60] sm:$0xff] %v7766
        %7799 = vst [vmem:[%s588 + $0x68] sm:$0xff] %v7767
        %7800 = vst [vmem:[%s588 + $0x70] sm:$0xff] %v7768
        %7801 = vst [vmem:[%s588 + $0x78] sm:$0xff] %v7769
        %7802 = vst [vmem:[%s588 + $0x80] sm:$0xff] %v7770
        %7803 = vst [vmem:[%s588 + $0x88] sm:$0xff] %v7771
        %7804 = vst [vmem:[%s588 + $0x90] sm:$0xff] %v7772
        %7805 = vst [vmem:[%s588 + $0x98] sm:$0xff] %v7773
        %7806 = vst [vmem:[%s588 + $0xa0] sm:$0xff] %v7774
        %7807 = vst [vmem:[%s588 + $0xa8] sm:$0xff] %v7775
        %7808 = vst [vmem:[%s588 + $0xb0] sm:$0xff] %v7776
        %7809 = vst [vmem:[%s588 + $0xb8] sm:$0xff] %v7777
        %7810 = vst [vmem:[%s588 + $0xc0] sm:$0xff] %v7778
        %7811 = vst [vmem:[%s588 + $0xc8] sm:$0xff] %v7779
        %7812 = vst [vmem:[%s588 + $0xd0] sm:$0xff] %v7780
        %7813 = vst [vmem:[%s588 + $0xd8] sm:$0xff] %v7781
        %7814 = vst [vmem:[%s588 + $0xe0] sm:$0xff] %v7782
        %7815 = vst [vmem:[%s588 + $0xe8] sm:$0xff] %v7783
        %7816 = vst [vmem:[%s588 + $0xf0] sm:$0xff] %v7784
        %7817 = vst [vmem:[%s588 + $0xf8] sm:$0xff] %v7785
        %s7818 = sand.u32 %s387, 1
        %s7819 = scalar_lea.sflag [#allocation5], %s7818
        %s7820 = sand.u32 %s387, 1
        %s7821 = smul.addr %s7820, 256
        %s7822 = scalar_lea.vmem [#allocation11], %s7821
        // Predicated region
        $region101: #{block_forward.1} parent=83 // pred_check
          %p7823 = pneg %p397
        $region102: #{block_forward.1} parent=83 // pred_check_branch
          %7825 = sbr.rel (%p7823) target = $region104
        $region103: #{block_forward.1} parent=83 // pred_region
          %s7827 = ssub.s32 4096, 4096
          %7828 = vsyncadd %s7819, %s7827
          %s7829 = smul.addr %s33, 32
          %s7830 = smul.addr %s7829, 128
          %s7831 = scalar_lea.hbm %s16, %s7830
          %s7832 = sshll.u32 %s7822, 4
          %s7833 = int_to_ptr.vmem [resolvable:$true] %s7832
          %7838 = dma.vmem_to_hbm [thread:$0]  %s7833, 4096, %s7831, %s7819, 128, 128, 8
        $region104: #{block_forward.1} parent=83 // pred_fallthru
          _
      $region84: #{block_forward.1} parent=5 // pred_fallthru
        _
      %p7839 = scmp.le.s32.totalorder 2, %s28
      // Predicated region
      $region105: #{block_forward.1} parent=5 // pred_check
        %p7840 = pneg %p7839
      $region106: #{block_forward.1} parent=5 // pred_check_branch
        %7842 = sbr.rel (%p7840) target = $region108
      $region107: #{block_forward.1} parent=5 // pred_region
        %s7843 = ssub.s32 %s28, 2
        // Predicated region
        $region109: #{block_forward.1} parent=107 // pred_check
          %p7844 = pneg %p403
        $region110: #{block_forward.1} parent=107 // pred_check_branch
          %7846 = sbr.rel (%p7844) target = $region112
        $region111: #{block_forward.1} parent=107 // pred_region
          %s7847 = sand.u32 %s388, 1
          %s7848 = scalar_lea.sflag [#allocation5], %s7847
          %s7849 = sand.u32 %s388, 1
          %s7850 = smul.addr %s7849, 256
          %s7851 = scalar_lea.vmem [#allocation11], %s7850
          %7852 = dma.done %s7848, 4096
        $region112: #{block_forward.1} parent=107 // pred_fallthru
          _
      $region108: #{block_forward.1} parent=5 // pred_fallthru
        _
    $region6: #{block_forward.1} parent=1 // loop_footer
      %s32 = sadd.s32 1, %s28
    $region7: #{block_forward.1} parent=1 // loop_footer_branch
      %27 = sbr.rel target = $region3
    $region8: #{block_forward.1} parent=1 // loop_exit
      _
    %7853 = vsyncpa [#allocation4], 1
    %s7854 = scalar_lea.sflag [#allocation4], 1
    %7855 = vsyncpa %s7854, 1
    %7856 = vsyncpa [#allocation7], 1
    %7857 = vsyncpa [#allocation10], 1
    %7858 = vsyncpa [#allocation5], 1
    %s7859 = scalar_lea.sflag [#allocation5], 1
    %7860 = vsyncpa %s7859, 1

</llo_original>
